<compile_context>
chip_gen: v6e
topology: v6e:2x2x1
jax: 0.10.0
libtpu: 0.0.40
codegen_flags: <defaults>
</compile_context>

<pallas_src>
import functools

import jax
import jax.numpy as jnp
from jax import lax
from jax.experimental import pallas as pl
from jax.experimental.pallas import tpu as pltpu


# ---------------------------------------------------------------------------
# Pallas kernels
# ---------------------------------------------------------------------------

def _bilstm_layer_kernel(*refs, n_inputs, t_chunk, hidden, last_layer):
    """One fused bidirectional LSTM layer; grid = (direction, time-chunk).

    Ref layout (inputs, outputs, scratch):
      len_ref                     (B, 1)               i32  valid lengths
      [tgt_ref if last_layer]     (1, B, 1)            i32  readout timestep (this dir)
      x_0 .. x_{n-1}              (1, t_chunk, B, d_i) bf16 activation chunk
      wih_0 .. wih_{n-1}          (1, d_i, 4H)         bf16 input->gates (this dir)
      whh_ref                     (1, H, 4H)           bf16 hidden->gates (this dir)
      bias_ref                    (1, 1, 4H)           f32  b_ih + b_hh (this dir)
      out_ref                     (1, t_chunk, B, H)   bf16 full sequence (not last layer)
                                  (1, B, H)            bf16 readout row   (last layer)
      gates_scr                   (t_chunk, B, 4H)     f32
      h_scr, c_scr                (B, H)               f32  recurrent state
    Gate column order is (i, f, o | g).
    """
    pos = 0
    len_ref = refs[pos]; pos += 1
    tgt_ref = None
    if last_layer:
        tgt_ref = refs[pos]; pos += 1
    x_refs = refs[pos:pos + n_inputs]; pos += n_inputs
    wih_refs = refs[pos:pos + n_inputs]; pos += n_inputs
    whh_ref = refs[pos]; pos += 1
    bias_ref = refs[pos]; pos += 1
    out_ref = refs[pos]; pos += 1
    gates_scr, h_scr, c_scr = refs[pos:pos + 3]

    d = pl.program_id(0)
    c = pl.program_id(1)
    nchunks = pl.num_programs(1)
    B = h_scr.shape[0]

    @pl.when(c == 0)
    def _():
        h_scr[...] = jnp.zeros_like(h_scr)
        c_scr[...] = jnp.zeros_like(c_scr)
        if last_layer:
            out_ref[...] = jnp.zeros(out_ref.shape, out_ref.dtype)

    # ---- fused input projection: one (t_chunk*B, d_in) x (d_in, 4H) MXU matmul
    # per feature source; gate pre-activations stay f32 in VMEM, never in HBM. ----
    rows = t_chunk * B
    acc = jnp.dot(x_refs[0][0].reshape(rows, -1), wih_refs[0][0],
                  preferred_element_type=jnp.float32)
    for xr, wr in zip(x_refs[1:], wih_refs[1:]):
        acc = acc + jnp.dot(xr[0].reshape(rows, -1), wr[0],
                            preferred_element_type=jnp.float32)
    gates_scr[...] = (acc + bias_ref[0]).reshape(t_chunk, B, 4 * hidden)

    # backward direction (d=1) walks chunks, and steps within a chunk, in reverse
    chunk_block = (1 - d) * c + d * (nchunks - 1 - c)
    chunk_start = chunk_block * t_chunk

    lens = len_ref[...]                        # (B, 1) i32
    tgt = tgt_ref[0] if last_layer else None   # (B, 1) i32

    def body(j, carry):
        lj = (1 - d) * j + d * (t_chunk - 1 - j)
        t = chunk_start + lj

        gates = gates_scr[lj] + jnp.dot(h_scr[...].astype(jnp.bfloat16),
                                        whh_ref[0],
                                        preferred_element_type=jnp.float32)
        sig = jax.nn.sigmoid(gates[:, :3 * hidden])          # i, f, o
        i_g = sig[:, :hidden]
        f_g = sig[:, hidden:2 * hidden]
        o_g = sig[:, 2 * hidden:3 * hidden]
        g_g = jnp.tanh(gates[:, 3 * hidden:])                # g

        c_new = f_g * c_scr[...] + i_g * g_g
        h_new = o_g * jnp.tanh(c_new)

        # packed-sequence semantics: state only advances while t < length[b]
        # (a single (B,1) VPU compare per step -- negligible next to h @ W_hh)
        valid = lens > t
        h_scr[...] = jnp.where(valid, h_new, h_scr[...])
        c_scr[...] = jnp.where(valid, c_new, c_scr[...])
        out_val = jnp.where(valid, h_new, 0.0).astype(out_ref.dtype)
        if last_layer:
            # keep only the masked-position readout row for this direction
            out_ref[0] = jnp.where(tgt == t, out_val, out_ref[0])
        else:
            out_ref[0, lj] = out_val
        return carry

    lax.fori_loop(0, t_chunk, body, 0, unroll=True)


def _head_kernel(ro_ref, wt_ref, wb_ref, b_ref, o_ref):
    """preds = ReLU(cat(h_fwd, h_bwd)) @ W_fc1 + b, W_fc1 pre-split into row blocks."""
    hf = jnp.maximum(ro_ref[0], 0)
    hb = jnp.maximum(ro_ref[1], 0)
    o_ref[...] = (jnp.dot(hf, wt_ref[...], preferred_element_type=jnp.float32)
                  + jnp.dot(hb, wb_ref[...], preferred_element_type=jnp.float32)
                  + b_ref[...])


# ---------------------------------------------------------------------------
# Wrappers
# ---------------------------------------------------------------------------

def _round_up(x, m):
    return ((x + m - 1) // m) * m


def bilstm_layer(inputs, wih_parts, whh, bias, lengths_b1, *, t_chunk,
                 readout_targets=None):
    """Run one fused bidirectional LSTM layer (input projection + recurrence).

    inputs          : list of (array, src) pairs; array is (S, T, B, d_i) bf16 and
                      src picks the leading-axis slab feeding this layer
                      (layer 0: [(x, 0)]; deeper layers: [(prev, 0), (prev, 1)]
                      so fwd/bwd halves are consumed without a concat).
    wih_parts       : list of (2, d_i, 4H) bf16 per-direction input->gate weights
    whh             : (2, H, 4H) bf16
    bias            : (2, 1, 4H) f32 (b_ih + b_hh)
    lengths_b1      : (B, 1) i32
    readout_targets : optional (2, B, 1) i32; if given the layer emits only the
                      (2, B, H) readout rows instead of the full (2, T, B, H) output.
    """
    hidden = whh.shape[1]
    gdim = whh.shape[2]
    B = lengths_b1.shape[0]
    T = inputs[0][0].shape[1]
    nchunks = T // t_chunk
    n_inputs = len(inputs)
    last_layer = readout_targets is not None

    def chunk(d, c):
        # backward direction consumes time chunks in reverse order
        return (1 - d) * c + d * (nchunks - 1 - c)

    def x_spec(arr, src):
        return pl.BlockSpec((1, t_chunk, B, arr.shape[-1]),
                            lambda d, c, src=src: (src, chunk(d, c), 0, 0))

    def weight_spec(shape):
        # grid-invariant along the time-chunk axis -> single-buffer to save VMEM
        return pl.BlockSpec(shape, lambda d, c: (d, 0, 0),
                            pipeline_mode=pl.Buffered(1))

    in_specs = [pl.BlockSpec((B, 1), lambda d, c: (0, 0))]
    args = [lengths_b1]
    if last_layer:
        in_specs.append(pl.BlockSpec((1, B, 1), lambda d, c: (d, 0, 0)))
        args.append(readout_targets)
    for arr, src in inputs:
        in_specs.append(x_spec(arr, src))
        args.append(arr)
    for w in wih_parts:
        in_specs.append(weight_spec((1, w.shape[1], gdim)))
        args.append(w)
    in_specs.append(weight_spec((1, hidden, gdim)))
    args.append(whh)
    in_specs.append(pl.BlockSpec((1, 1, gdim), lambda d, c: (d, 0, 0)))
    args.append(bias)

    if last_layer:
        out_shape = jax.ShapeDtypeStruct((2, B, hidden), jnp.bfloat16)
        out_spec = pl.BlockSpec((1, B, hidden), lambda d, c: (d, 0, 0))
    else:
        out_shape = jax.ShapeDtypeStruct((2, T, B, hidden), jnp.bfloat16)
        out_spec = pl.BlockSpec((1, t_chunk, B, hidden),
                                lambda d, c: (d, chunk(d, c), 0, 0))

    kern = functools.partial(_bilstm_layer_kernel, n_inputs=n_inputs,
                             t_chunk=t_chunk, hidden=hidden,
                             last_layer=last_layer)
    return pl.pallas_call(
        kern,
        out_shape=out_shape,
        grid=(2, nchunks),
        in_specs=in_specs,
        out_specs=out_spec,
        scratch_shapes=[pltpu.VMEM((t_chunk, B, gdim), jnp.float32),
                        pltpu.VMEM((B, hidden), jnp.float32),
                        pltpu.VMEM((B, hidden), jnp.float32)],
        compiler_params=pltpu.CompilerParams(
            # TODO(synk): on v7x confirm via xprof that the direction axis really
            # shards across both TensorCores; if one TC sits idle, switch this
            # axis to pltpu.CORE_PARALLEL.
            dimension_semantics=("parallel", "arbitrary"),
            vmem_limit_bytes=64 * 1024 * 1024),
    )(*args)


# ---------------------------------------------------------------------------
# Parameters (random init directly in the padded kernel layout)
# ---------------------------------------------------------------------------

def _pad_gate_cols(w, hidden, hpad):
    """Zero-pad each of the 4 gate column blocks from `hidden` to `hpad` lanes."""
    if hpad == hidden:
        return w
    parts = jnp.split(w, 4, axis=-1)
    pad = [(0, 0)] * (w.ndim - 1) + [(0, hpad - hidden)]
    return jnp.concatenate([jnp.pad(p, pad) for p in parts], axis=-1)


def init_params(key, vocab, embed_dim, hidden, layers):
    hpad = _round_up(hidden, 128)      # 128-lane hidden padding
    params = {}
    k = key

    def nxt():
        nonlocal k
        k, sub = jax.random.split(k)
        return sub

    # nn.Embedding.from_pretrained(embedding_weight); stored bf16
    params["embedding"] = (0.1 * jax.random.normal(
        nxt(), (vocab, embed_dim), jnp.float32)).astype(jnp.bfloat16)

    scale_h = 1.0 / jnp.sqrt(jnp.float32(hidden))

    def gate_w(d_in, pad_rows):
        w = scale_h * jax.random.normal(nxt(), (2, d_in, 4 * hidden), jnp.float32)
        w = _pad_gate_cols(w, hidden, hpad)
        if pad_rows:
            w = jnp.pad(w, ((0, 0), (0, hpad - d_in), (0, 0)))
        return w.astype(jnp.bfloat16)

    params["lstm"] = []
    for layer_idx in range(layers):
        if layer_idx == 0:
            wih_parts = [gate_w(embed_dim, pad_rows=False)]
        else:  # deeper layers see (h_fwd, h_bwd) halves -> two row blocks
            wih_parts = [gate_w(hidden, pad_rows=True),
                         gate_w(hidden, pad_rows=True)]
        params["lstm"].append({
            "wih_parts": wih_parts,
            "whh": gate_w(hidden, pad_rows=True),
            # b_ih + b_hh combined, gate-column order (i, f, o, g)
            "bias": _pad_gate_cols(
                0.1 * jax.random.normal(nxt(), (2, 1, 4 * hidden), jnp.float32),
                hidden, hpad),
        })

    scale_fc = 1.0 / jnp.sqrt(jnp.float32(2 * hidden))

    def fc_w():
        w = scale_fc * jax.random.normal(nxt(), (hidden, embed_dim), jnp.float32)
        return jnp.pad(w, ((0, hpad - hidden), (0, 0))).astype(jnp.bfloat16)

    params["fc1_w_top"] = fc_w()
    params["fc1_w_bot"] = fc_w()
    params["fc1_b"] = 0.1 * jax.random.normal(nxt(), (1, embed_dim), jnp.float32)
    return params


# ---------------------------------------------------------------------------
# Forward pass
# ---------------------------------------------------------------------------

def forward(params, tokens, masks, lengths, *, t_chunk=8):
    """Equivalent of my_languagemodel.forward for pre-tokenized integer inputs.

    tokens : (B, T) int32 word indices (word->index dict lookup is host-side glue)
    masks  : (B,)   int32 masked-token position per sequence
    lengths: (B,)   int32 valid sequence lengths
    """
    B, T = tokens.shape
    embed_dim = params["embedding"].shape[1]

    # pad batch to 16 sublanes (bf16 packing / MXU M-occupancy) and time to the
    # chunk size; padded rows get length 0 so they stay at zero state.
    B_pad = _round_up(max(B, 16), 16)
    T_pad = _round_up(T, t_chunk)
    tokens_p = jnp.pad(tokens, ((0, B_pad - B), (0, T_pad - T)))
    lengths_p = jnp.pad(lengths.astype(jnp.int32), (0, B_pad - B))
    masks_p = jnp.pad(masks.astype(jnp.int32), (0, B_pad - B))
    lengths_b1 = lengths_p.reshape(B_pad, 1)

    # bf16 embedding gather + the single layout transpose to time-major
    x = params["embedding"][tokens_p]                     # (B_pad, T_pad, E) bf16
    x_tbe = jnp.transpose(x, (1, 0, 2))[None]             # (1, T_pad, B_pad, E)

    # masked-position readout timesteps (same index math as the torch module)
    forward_cond = jnp.where(masks_p - 1 < 0, 0, masks_p - 1)
    backward_cond = jnp.where(masks_p + 1 >= lengths_p, masks_p, masks_p + 1)
    readout_t = jnp.stack([forward_cond, backward_cond]).reshape(2, B_pad, 1)

    n_layers = len(params["lstm"])
    inputs = [(x_tbe, 0)]
    readout = None
    for li, layer in enumerate(params["lstm"]):
        last = li == n_layers - 1
        out = bilstm_layer(inputs, layer["wih_parts"], layer["whh"],
                           layer["bias"], lengths_b1, t_chunk=t_chunk,
                           readout_targets=readout_t if last else None)
        if last:
            readout = out                                 # (2, B_pad, H_pad) bf16
        else:
            inputs = [(out, 0), (out, 1)]                 # fwd/bwd halves, no concat

    vmem = pl.BlockSpec(memory_space=pltpu.MemorySpace.VMEM)
    preds = pl.pallas_call(
        _head_kernel,
        out_shape=jax.ShapeDtypeStruct((B_pad, embed_dim), jnp.float32),
        in_specs=[vmem, vmem, vmem, vmem],
        out_specs=vmem,
    )(readout, params["fc1_w_top"], params["fc1_w_bot"], params["fc1_b"])
    return preds[:B]


# TODO(synk): get_index_word / get_index_sent are host-side Python string->int dict
# lookups (no array compute); they are assumed done before the kernel is called.

if __name__ == "__main__":
    B, T, VOCAB, EMBED, HIDDEN, LAYERS = 2, 12, 16, 32, 32, 2

    key = jax.random.PRNGKey(0)
    k_params, k_tok = jax.random.split(key)
    params = init_params(k_params, VOCAB, EMBED, HIDDEN, LAYERS)

    tokens = jax.random.randint(k_tok, (B, T), 0, VOCAB, dtype=jnp.int32)
    lengths = jnp.array([12, 7], dtype=jnp.int32)
    masks = jnp.array([3, 4], dtype=jnp.int32)

    fwd = jax.jit(functools.partial(forward, t_chunk=8))
    preds = jax.block_until_ready(fwd(params, tokens, masks, lengths))
    assert preds.shape == (B, EMBED) and bool(jnp.all(jnp.isfinite(preds)))
    print("KERNEL_OK")
</pallas_src>

<mosaic_0001>
module attributes {stable_mosaic.version = 11 : i64} {
  func.func @_head_kernel(%arg0: memref<2x16x128xbf16, #tpu.memory_space<vmem>>, %arg1: memref<128x32xbf16, #tpu.memory_space<vmem>>, %arg2: memref<128x32xbf16, #tpu.memory_space<vmem>>, %arg3: memref<1x32xf32, #tpu.memory_space<vmem>>, %arg4: memref<16x32xf32, #tpu.memory_space<vmem>>) attributes {dimension_semantics = [], scalar_prefetch = 0 : i64, scratch_operands = 0 : i64, tpu.core_type = #tpu.core_type<tc>} {
    %c0 = arith.constant 0 : index
    %c0_0 = arith.constant 0 : index
    %c0_1 = arith.constant 0 : index
    %0 = vector.load %arg0[%c0, %c0_0, %c0_1] : memref<2x16x128xbf16, #tpu.memory_space<vmem>>, vector<1x16x128xbf16>
    %1 = vector.shape_cast %0 : vector<1x16x128xbf16> to vector<16x128xbf16>
    %cst = arith.constant 0.000000e+00 : bf16
    %2 = vector.broadcast %cst : bf16 to vector<16x128xbf16>
    %3 = arith.maximumf %1, %2 : vector<16x128xbf16>
    %c1 = arith.constant 1 : index
    %c0_2 = arith.constant 0 : index
    %c0_3 = arith.constant 0 : index
    %4 = vector.load %arg0[%c1, %c0_2, %c0_3] : memref<2x16x128xbf16, #tpu.memory_space<vmem>>, vector<1x16x128xbf16>
    %5 = vector.shape_cast %4 : vector<1x16x128xbf16> to vector<16x128xbf16>
    %cst_4 = arith.constant 0.000000e+00 : bf16
    %6 = vector.broadcast %cst_4 : bf16 to vector<16x128xbf16>
    %7 = arith.maximumf %5, %6 : vector<16x128xbf16>
    %c0_5 = arith.constant 0 : index
    %c0_6 = arith.constant 0 : index
    %8 = vector.load %arg1[%c0_5, %c0_6] : memref<128x32xbf16, #tpu.memory_space<vmem>>, vector<128x32xbf16>
    %cst_7 = arith.constant dense<0.000000e+00> : vector<16x32xf32>
    %9 = tpu.matmul %3, %8, %cst_7 {dimension_numbers = #tpu.dot_dimension_numbers<[1], [0], [0], [1], [0, 0, 1, 1], [], []>} : vector<16x128xbf16>, vector<128x32xbf16>, vector<16x32xf32> -> vector<16x32xf32>
    %c0_8 = arith.constant 0 : index
    %c0_9 = arith.constant 0 : index
    %10 = vector.load %arg2[%c0_8, %c0_9] : memref<128x32xbf16, #tpu.memory_space<vmem>>, vector<128x32xbf16>
    %cst_10 = arith.constant dense<0.000000e+00> : vector<16x32xf32>
    %11 = tpu.matmul %7, %10, %cst_10 {dimension_numbers = #tpu.dot_dimension_numbers<[1], [0], [0], [1], [0, 0, 1, 1], [], []>} : vector<16x128xbf16>, vector<128x32xbf16>, vector<16x32xf32> -> vector<16x32xf32>
    %12 = arith.addf %9, %11 : vector<16x32xf32>
    %c0_11 = arith.constant 0 : index
    %c0_12 = arith.constant 0 : index
    %13 = vector.load %arg3[%c0_11, %c0_12] : memref<1x32xf32, #tpu.memory_space<vmem>>, vector<1x32xf32>
    %14 = vector.broadcast %13 : vector<1x32xf32> to vector<16x32xf32>
    %15 = arith.addf %12, %14 : vector<16x32xf32>
    %c0_13 = arith.constant 0 : index
    %c0_14 = arith.constant 0 : index
    %16 = vector.load %arg4[%c0_13, %c0_14] : memref<16x32xf32, #tpu.memory_space<vmem>>, vector<16x32xf32>
    tpu.vector_store %arg4[%c0_13, %c0_14], %15 {strides = array<i32>} : memref<16x32xf32, #tpu.memory_space<vmem>>, vector<16x32xf32>,
    return
  }
}

module attributes {stable_mosaic.version = 11 : i64} {
  func.func @_bilstm_layer_kernel(%arg0: i32, %arg1: i32, %arg2: memref<16x1xi32, #tpu.memory_space<vmem>>, %arg3: memref<1x8x16x32xbf16, #tpu.memory_space<vmem>>, %arg4: memref<1x32x512xbf16, #tpu.memory_space<vmem>>, %arg5: memref<1x128x512xbf16, #tpu.memory_space<vmem>>, %arg6: memref<1x1x512xf32, #tpu.memory_space<vmem>>, %arg7: memref<1x8x16x128xbf16, #tpu.memory_space<vmem>>, %arg8: memref<8x16x512xf32, #tpu.memory_space<vmem>>, %arg9: memref<16x128xf32, #tpu.memory_space<vmem>>, %arg10: memref<16x128xf32, #tpu.memory_space<vmem>>) attributes {dimension_semantics = [#tpu.dimension_semantics<parallel>, #tpu.dimension_semantics<arbitrary>], iteration_bounds = array<i64: 2, 2>, scalar_prefetch = 0 : i64, scratch_operands = 3 : i64, tpu.core_type = #tpu.core_type<tc>, window_params = [{pipeline_mode = #tpu.pipeline_mode<synchronous>, transform_indices = @transform_0, window_bounds = array<i64: 16, 1>}, {transform_indices = @transform_1, window_bounds = array<i64: 1, 8, 16, 32>}, {pipeline_mode = #tpu.pipeline_mode<synchronous>, transform_indices = @transform_2, window_bounds = array<i64: 1, 32, 512>}, {pipeline_mode = #tpu.pipeline_mode<synchronous>, transform_indices = @transform_3, window_bounds = array<i64: 1, 128, 512>}, {transform_indices = @transform_4, window_bounds = array<i64: 1, 1, 512>}, {transform_indices = @transform_5, window_bounds = array<i64: 1, 8, 16, 128>}]} {
    %c0_i32 = arith.constant 0 : i32
    %0 = arith.cmpi eq, %arg1, %c0_i32 : i32
    %1 = arith.extui %0 : i1 to i32
    %c0_i32_0 = arith.constant 0 : i32
    %2 = arith.cmpi ne, %1, %c0_i32_0 : i32
    scf.if %2 {
      %cst_219 = arith.constant 0.000000e+00 : f32
      %446 = vector.broadcast %cst_219 : f32 to vector<16x128xf32>
      %c0_220 = arith.constant 0 : index
      %c0_221 = arith.constant 0 : index
      %447 = vector.load %arg9[%c0_220, %c0_221] : memref<16x128xf32, #tpu.memory_space<vmem>>, vector<16x128xf32>
      tpu.vector_store %arg9[%c0_220, %c0_221], %446 {strides = array<i32>} : memref<16x128xf32, #tpu.memory_space<vmem>>, vector<16x128xf32>,
      %cst_222 = arith.constant 0.000000e+00 : f32
      %448 = vector.broadcast %cst_222 : f32 to vector<16x128xf32>
      %c0_223 = arith.constant 0 : index
      %c0_224 = arith.constant 0 : index
      %449 = vector.load %arg10[%c0_223, %c0_224] : memref<16x128xf32, #tpu.memory_space<vmem>>, vector<16x128xf32>
      tpu.vector_store %arg10[%c0_223, %c0_224], %448 {strides = array<i32>} : memref<16x128xf32, #tpu.memory_space<vmem>>, vector<16x128xf32>,
    } else {
    }
    %c0 = arith.constant 0 : index
    %c0_1 = arith.constant 0 : index
    %c0_2 = arith.constant 0 : index
    %c0_3 = arith.constant 0 : index
    %3 = vector.load %arg3[%c0, %c0_1, %c0_2, %c0_3] : memref<1x8x16x32xbf16, #tpu.memory_space<vmem>>, vector<1x8x16x32xbf16>
    %4 = vector.shape_cast %3 : vector<1x8x16x32xbf16> to vector<8x16x32xbf16>
    %5 = vector.shape_cast %4 : vector<8x16x32xbf16> to vector<128x32xbf16>
    %c0_4 = arith.constant 0 : index
    %c0_5 = arith.constant 0 : index
    %c0_6 = arith.constant 0 : index
    %6 = vector.load %arg4[%c0_4, %c0_5, %c0_6] : memref<1x32x512xbf16, #tpu.memory_space<vmem>>, vector<1x32x512xbf16>
    %7 = vector.shape_cast %6 : vector<1x32x512xbf16> to vector<32x512xbf16>
    %cst = arith.constant dense<0.000000e+00> : vector<128x512xf32>
    %8 = tpu.matmul %5, %7, %cst {dimension_numbers = #tpu.dot_dimension_numbers<[1], [0], [0], [1], [0, 0, 1, 1], [], []>} : vector<128x32xbf16>, vector<32x512xbf16>, vector<128x512xf32> -> vector<128x512xf32>
    %c0_7 = arith.constant 0 : index
    %c0_8 = arith.constant 0 : index
    %c0_9 = arith.constant 0 : index
    %9 = vector.load %arg6[%c0_7, %c0_8, %c0_9] : memref<1x1x512xf32, #tpu.memory_space<vmem>>, vector<1x1x512xf32>
    %10 = vector.shape_cast %9 : vector<1x1x512xf32> to vector<1x512xf32>
    %11 = vector.broadcast %10 : vector<1x512xf32> to vector<128x512xf32>
    %12 = arith.addf %8, %11 : vector<128x512xf32>
    %13 = vector.shape_cast %12 : vector<128x512xf32> to vector<8x16x512xf32>
    %c0_10 = arith.constant 0 : index
    %c0_11 = arith.constant 0 : index
    %c0_12 = arith.constant 0 : index
    %14 = vector.load %arg8[%c0_10, %c0_11, %c0_12] : memref<8x16x512xf32, #tpu.memory_space<vmem>>, vector<8x16x512xf32>
    tpu.vector_store %arg8[%c0_10, %c0_11, %c0_12], %13 {strides = array<i32>} : memref<8x16x512xf32, #tpu.memory_space<vmem>>, vector<8x16x512xf32>,
    %c1_i32 = arith.constant 1 : i32
    %15 = arith.subi %c1_i32, %arg0 : i32
    %16 = arith.muli %15, %arg1 : i32
    %c1_i32_13 = arith.constant 1 : i32
    %17 = arith.subi %c1_i32_13, %arg1 : i32
    %18 = arith.muli %arg0, %17 : i32
    %19 = arith.addi %16, %18 : i32
    %c8_i32 = arith.constant 8 : i32
    %20 = arith.muli %19, %c8_i32 : i32
    %c0_14 = arith.constant 0 : index
    %c0_15 = arith.constant 0 : index
    %21 = vector.load %arg2[%c0_14, %c0_15] : memref<16x1xi32, #tpu.memory_space<vmem>>, vector<16x1xi32>
    %c0_i32_16 = arith.constant 0 : i32
    %c1_i32_17 = arith.constant 1 : i32
    %22 = arith.subi %c1_i32_17, %arg0 : i32
    %23 = arith.muli %22, %c0_i32_16 : i32
    %c7_i32 = arith.constant 7 : i32
    %24 = arith.subi %c7_i32, %c0_i32_16 : i32
    %25 = arith.muli %arg0, %24 : i32
    %26 = arith.addi %23, %25 : i32
    %27 = arith.addi %20, %26 : i32
    %28 = arith.index_cast %26 : i32 to index
    %c0_18 = arith.constant 0 : index
    %c0_19 = arith.constant 0 : index
    %29 = vector.load %arg8[%28, %c0_18, %c0_19] : memref<8x16x512xf32, #tpu.memory_space<vmem>>, vector<1x16x512xf32>
    %30 = vector.shape_cast %29 : vector<1x16x512xf32> to vector<16x512xf32>
    %c0_20 = arith.constant 0 : index
    %c0_21 = arith.constant 0 : index
    %31 = vector.load %arg9[%c0_20, %c0_21] : memref<16x128xf32, #tpu.memory_space<vmem>>, vector<16x128xf32>
    %32 = arith.truncf %31 : vector<16x128xf32> to vector<16x128xbf16>
    %c0_22 = arith.constant 0 : index
    %c0_23 = arith.constant 0 : index
    %c0_24 = arith.constant 0 : index
    %33 = vector.load %arg5[%c0_22, %c0_23, %c0_24] : memref<1x128x512xbf16, #tpu.memory_space<vmem>>, vector<1x128x512xbf16>
    %34 = vector.shape_cast %33 : vector<1x128x512xbf16> to vector<128x512xbf16>
    %cst_25 = arith.constant dense<0.000000e+00> : vector<16x512xf32>
    %35 = tpu.matmul %32, %34, %cst_25 {dimension_numbers = #tpu.dot_dimension_numbers<[1], [0], [0], [1], [0, 0, 1, 1], [], []>} : vector<16x128xbf16>, vector<128x512xbf16>, vector<16x512xf32> -> vector<16x512xf32>
    %36 = arith.addf %30, %35 : vector<16x512xf32>
    %37 = vector.extract_strided_slice %36 {offsets = [0, 0], sizes = [16, 384], strides = [1, 1]} : vector<16x512xf32> to vector<16x384xf32>
    %38 = arith.negf %37 : vector<16x384xf32>
    %39 = math.exp %38 : vector<16x384xf32>
    %cst_26 = arith.constant 1.000000e+00 : f32
    %40 = vector.broadcast %cst_26 : f32 to vector<16x384xf32>
    %41 = arith.addf %40, %39 : vector<16x384xf32>
    %42 = arith.divf %40, %41 : vector<16x384xf32>
    %43 = vector.extract_strided_slice %42 {offsets = [0, 0], sizes = [16, 128], strides = [1, 1]} : vector<16x384xf32> to vector<16x128xf32>
    %44 = vector.extract_strided_slice %42 {offsets = [0, 128], sizes = [16, 128], strides = [1, 1]} : vector<16x384xf32> to vector<16x128xf32>
    %45 = vector.extract_strided_slice %42 {offsets = [0, 256], sizes = [16, 128], strides = [1, 1]} : vector<16x384xf32> to vector<16x128xf32>
    %46 = vector.extract_strided_slice %36 {offsets = [0, 384], sizes = [16, 128], strides = [1, 1]} : vector<16x512xf32> to vector<16x128xf32>
    %47 = math.tanh %46 : vector<16x128xf32>
    %c0_27 = arith.constant 0 : index
    %c0_28 = arith.constant 0 : index
    %48 = vector.load %arg10[%c0_27, %c0_28] : memref<16x128xf32, #tpu.memory_space<vmem>>, vector<16x128xf32>
    %49 = arith.mulf %44, %48 : vector<16x128xf32>
    %50 = arith.mulf %43, %47 : vector<16x128xf32>
    %51 = arith.addf %49, %50 : vector<16x128xf32>
    %52 = math.tanh %51 : vector<16x128xf32>
    %53 = arith.mulf %45, %52 : vector<16x128xf32>
    %54 = vector.broadcast %27 : i32 to vector<16x1xi32>
    %55 = arith.cmpi sgt, %21, %54 : vector<16x1xi32>
    %c0_29 = arith.constant 0 : index
    %c0_30 = arith.constant 0 : index
    %56 = vector.load %arg9[%c0_29, %c0_30] : memref<16x128xf32, #tpu.memory_space<vmem>>, vector<16x128xf32>
    %57 = vector.shape_cast %55 : vector<16x1xi1> to vector<16x1xi1>
    %58 = vector.broadcast %57 : vector<16x1xi1> to vector<16x128xi1>
    %59 = arith.select %58, %53, %56 : vector<16x128xi1>, vector<16x128xf32>
    %c0_31 = arith.constant 0 : index
    %c0_32 = arith.constant 0 : index
    %60 = vector.load %arg9[%c0_31, %c0_32] : memref<16x128xf32, #tpu.memory_space<vmem>>, vector<16x128xf32>
    tpu.vector_store %arg9[%c0_31, %c0_32], %59 {strides = array<i32>} : memref<16x128xf32, #tpu.memory_space<vmem>>, vector<16x128xf32>,
    %c0_33 = arith.constant 0 : index
    %c0_34 = arith.constant 0 : index
    %61 = vector.load %arg10[%c0_33, %c0_34] : memref<16x128xf32, #tpu.memory_space<vmem>>, vector<16x128xf32>
    %62 = vector.shape_cast %55 : vector<16x1xi1> to vector<16x1xi1>
    %63 = vector.broadcast %62 : vector<16x1xi1> to vector<16x128xi1>
    %64 = arith.select %63, %51, %61 : vector<16x128xi1>, vector<16x128xf32>
    %c0_35 = arith.constant 0 : index
    %c0_36 = arith.constant 0 : index
    %65 = vector.load %arg10[%c0_35, %c0_36] : memref<16x128xf32, #tpu.memory_space<vmem>>, vector<16x128xf32>
    tpu.vector_store %arg10[%c0_35, %c0_36], %64 {strides = array<i32>} : memref<16x128xf32, #tpu.memory_space<vmem>>, vector<16x128xf32>,
    %cst_37 = arith.constant 0.000000e+00 : f32
    %66 = vector.shape_cast %55 : vector<16x1xi1> to vector<16x1xi1>
    %67 = vector.broadcast %66 : vector<16x1xi1> to vector<16x128xi1>
    %68 = vector.broadcast %cst_37 : f32 to vector<16x128xf32>
    %69 = arith.select %67, %53, %68 : vector<16x128xi1>, vector<16x128xf32>
    %70 = arith.truncf %69 : vector<16x128xf32> to vector<16x128xbf16>
    %c0_38 = arith.constant 0 : index
    %71 = arith.index_cast %26 : i32 to index
    %c0_39 = arith.constant 0 : index
    %c0_40 = arith.constant 0 : index
    %72 = vector.load %arg7[%c0_38, %71, %c0_39, %c0_40] : memref<1x8x16x128xbf16, #tpu.memory_space<vmem>>, vector<1x1x16x128xbf16>
    %73 = vector.shape_cast %72 : vector<1x1x16x128xbf16> to vector<16x128xbf16>
    %74 = vector.shape_cast %70 : vector<16x128xbf16> to vector<1x1x16x128xbf16>
    tpu.vector_store %arg7[%c0_38, %71, %c0_39, %c0_40], %74 {strides = array<i32>} : memref<1x8x16x128xbf16, #tpu.memory_space<vmem>>, vector<1x1x16x128xbf16>,
    %c1_i32_41 = arith.constant 1 : i32
    %c1_i32_42 = arith.constant 1 : i32
    %75 = arith.subi %c1_i32_42, %arg0 : i32
    %76 = arith.muli %75, %c1_i32_41 : i32
    %c7_i32_43 = arith.constant 7 : i32
    %77 = arith.subi %c7_i32_43, %c1_i32_41 : i32
    %78 = arith.muli %arg0, %77 : i32
    %79 = arith.addi %76, %78 : i32
    %80 = arith.addi %20, %79 : i32
    %81 = arith.index_cast %79 : i32 to index
    %c0_44 = arith.constant 0 : index
    %c0_45 = arith.constant 0 : index
    %82 = vector.load %arg8[%81, %c0_44, %c0_45] : memref<8x16x512xf32, #tpu.memory_space<vmem>>, vector<1x16x512xf32>
    %83 = vector.shape_cast %82 : vector<1x16x512xf32> to vector<16x512xf32>
    %c0_46 = arith.constant 0 : index
    %c0_47 = arith.constant 0 : index
    %84 = vector.load %arg9[%c0_46, %c0_47] : memref<16x128xf32, #tpu.memory_space<vmem>>, vector<16x128xf32>
    %85 = arith.truncf %84 : vector<16x128xf32> to vector<16x128xbf16>
    %c0_48 = arith.constant 0 : index
    %c0_49 = arith.constant 0 : index
    %c0_50 = arith.constant 0 : index
    %86 = vector.load %arg5[%c0_48, %c0_49, %c0_50] : memref<1x128x512xbf16, #tpu.memory_space<vmem>>, vector<1x128x512xbf16>
    %87 = vector.shape_cast %86 : vector<1x128x512xbf16> to vector<128x512xbf16>
    %cst_51 = arith.constant dense<0.000000e+00> : vector<16x512xf32>
    %88 = tpu.matmul %85, %87, %cst_51 {dimension_numbers = #tpu.dot_dimension_numbers<[1], [0], [0], [1], [0, 0, 1, 1], [], []>} : vector<16x128xbf16>, vector<128x512xbf16>, vector<16x512xf32> -> vector<16x512xf32>
    %89 = arith.addf %83, %88 : vector<16x512xf32>
    %90 = vector.extract_strided_slice %89 {offsets = [0, 0], sizes = [16, 384], strides = [1, 1]} : vector<16x512xf32> to vector<16x384xf32>
    %91 = arith.negf %90 : vector<16x384xf32>
    %92 = math.exp %91 : vector<16x384xf32>
    %cst_52 = arith.constant 1.000000e+00 : f32
    %93 = vector.broadcast %cst_52 : f32 to vector<16x384xf32>
    %94 = arith.addf %93, %92 : vector<16x384xf32>
    %95 = arith.divf %93, %94 : vector<16x384xf32>
    %96 = vector.extract_strided_slice %95 {offsets = [0, 0], sizes = [16, 128], strides = [1, 1]} : vector<16x384xf32> to vector<16x128xf32>
    %97 = vector.extract_strided_slice %95 {offsets = [0, 128], sizes = [16, 128], strides = [1, 1]} : vector<16x384xf32> to vector<16x128xf32>
    %98 = vector.extract_strided_slice %95 {offsets = [0, 256], sizes = [16, 128], strides = [1, 1]} : vector<16x384xf32> to vector<16x128xf32>
    %99 = vector.extract_strided_slice %89 {offsets = [0, 384], sizes = [16, 128], strides = [1, 1]} : vector<16x512xf32> to vector<16x128xf32>
    %100 = math.tanh %99 : vector<16x128xf32>
    %c0_53 = arith.constant 0 : index
    %c0_54 = arith.constant 0 : index
    %101 = vector.load %arg10[%c0_53, %c0_54] : memref<16x128xf32, #tpu.memory_space<vmem>>, vector<16x128xf32>
    %102 = arith.mulf %97, %101 : vector<16x128xf32>
    %103 = arith.mulf %96, %100 : vector<16x128xf32>
    %104 = arith.addf %102, %103 : vector<16x128xf32>
    %105 = math.tanh %104 : vector<16x128xf32>
    %106 = arith.mulf %98, %105 : vector<16x128xf32>
    %107 = vector.broadcast %80 : i32 to vector<16x1xi32>
    %108 = arith.cmpi sgt, %21, %107 : vector<16x1xi32>
    %c0_55 = arith.constant 0 : index
    %c0_56 = arith.constant 0 : index
    %109 = vector.load %arg9[%c0_55, %c0_56] : memref<16x128xf32, #tpu.memory_space<vmem>>, vector<16x128xf32>
    %110 = vector.shape_cast %108 : vector<16x1xi1> to vector<16x1xi1>
    %111 = vector.broadcast %110 : vector<16x1xi1> to vector<16x128xi1>
    %112 = arith.select %111, %106, %109 : vector<16x128xi1>, vector<16x128xf32>
    %c0_57 = arith.constant 0 : index
    %c0_58 = arith.constant 0 : index
    %113 = vector.load %arg9[%c0_57, %c0_58] : memref<16x128xf32, #tpu.memory_space<vmem>>, vector<16x128xf32>
    tpu.vector_store %arg9[%c0_57, %c0_58], %112 {strides = array<i32>} : memref<16x128xf32, #tpu.memory_space<vmem>>, vector<16x128xf32>,
    %c0_59 = arith.constant 0 : index
    %c0_60 = arith.constant 0 : index
    %114 = vector.load %arg10[%c0_59, %c0_60] : memref<16x128xf32, #tpu.memory_space<vmem>>, vector<16x128xf32>
    %115 = vector.shape_cast %108 : vector<16x1xi1> to vector<16x1xi1>
    %116 = vector.broadcast %115 : vector<16x1xi1> to vector<16x128xi1>
    %117 = arith.select %116, %104, %114 : vector<16x128xi1>, vector<16x128xf32>
    %c0_61 = arith.constant 0 : index
    %c0_62 = arith.constant 0 : index
    %118 = vector.load %arg10[%c0_61, %c0_62] : memref<16x128xf32, #tpu.memory_space<vmem>>, vector<16x128xf32>
    tpu.vector_store %arg10[%c0_61, %c0_62], %117 {strides = array<i32>} : memref<16x128xf32, #tpu.memory_space<vmem>>, vector<16x128xf32>,
    %cst_63 = arith.constant 0.000000e+00 : f32
    %119 = vector.shape_cast %108 : vector<16x1xi1> to vector<16x1xi1>
    %120 = vector.broadcast %119 : vector<16x1xi1> to vector<16x128xi1>
    %121 = vector.broadcast %cst_63 : f32 to vector<16x128xf32>
    %122 = arith.select %120, %106, %121 : vector<16x128xi1>, vector<16x128xf32>
    %123 = arith.truncf %122 : vector<16x128xf32> to vector<16x128xbf16>
    %c0_64 = arith.constant 0 : index
    %124 = arith.index_cast %79 : i32 to index
    %c0_65 = arith.constant 0 : index
    %c0_66 = arith.constant 0 : index
    %125 = vector.load %arg7[%c0_64, %124, %c0_65, %c0_66] : memref<1x8x16x128xbf16, #tpu.memory_space<vmem>>, vector<1x1x16x128xbf16>
    %126 = vector.shape_cast %125 : vector<1x1x16x128xbf16> to vector<16x128xbf16>
    %127 = vector.shape_cast %123 : vector<16x128xbf16> to vector<1x1x16x128xbf16>
    tpu.vector_store %arg7[%c0_64, %124, %c0_65, %c0_66], %127 {strides = array<i32>} : memref<1x8x16x128xbf16, #tpu.memory_space<vmem>>, vector<1x1x16x128xbf16>,
    %c2_i32 = arith.constant 2 : i32
    %c1_i32_67 = arith.constant 1 : i32
    %128 = arith.subi %c1_i32_67, %arg0 : i32
    %129 = arith.muli %128, %c2_i32 : i32
    %c7_i32_68 = arith.constant 7 : i32
    %130 = arith.subi %c7_i32_68, %c2_i32 : i32
    %131 = arith.muli %arg0, %130 : i32
    %132 = arith.addi %129, %131 : i32
    %133 = arith.addi %20, %132 : i32
    %134 = arith.index_cast %132 : i32 to index
    %c0_69 = arith.constant 0 : index
    %c0_70 = arith.constant 0 : index
    %135 = vector.load %arg8[%134, %c0_69, %c0_70] : memref<8x16x512xf32, #tpu.memory_space<vmem>>, vector<1x16x512xf32>
    %136 = vector.shape_cast %135 : vector<1x16x512xf32> to vector<16x512xf32>
    %c0_71 = arith.constant 0 : index
    %c0_72 = arith.constant 0 : index
    %137 = vector.load %arg9[%c0_71, %c0_72] : memref<16x128xf32, #tpu.memory_space<vmem>>, vector<16x128xf32>
    %138 = arith.truncf %137 : vector<16x128xf32> to vector<16x128xbf16>
    %c0_73 = arith.constant 0 : index
    %c0_74 = arith.constant 0 : index
    %c0_75 = arith.constant 0 : index
    %139 = vector.load %arg5[%c0_73, %c0_74, %c0_75] : memref<1x128x512xbf16, #tpu.memory_space<vmem>>, vector<1x128x512xbf16>
    %140 = vector.shape_cast %139 : vector<1x128x512xbf16> to vector<128x512xbf16>
    %cst_76 = arith.constant dense<0.000000e+00> : vector<16x512xf32>
    %141 = tpu.matmul %138, %140, %cst_76 {dimension_numbers = #tpu.dot_dimension_numbers<[1], [0], [0], [1], [0, 0, 1, 1], [], []>} : vector<16x128xbf16>, vector<128x512xbf16>, vector<16x512xf32> -> vector<16x512xf32>
    %142 = arith.addf %136, %141 : vector<16x512xf32>
    %143 = vector.extract_strided_slice %142 {offsets = [0, 0], sizes = [16, 384], strides = [1, 1]} : vector<16x512xf32> to vector<16x384xf32>
    %144 = arith.negf %143 : vector<16x384xf32>
    %145 = math.exp %144 : vector<16x384xf32>
    %cst_77 = arith.constant 1.000000e+00 : f32
    %146 = vector.broadcast %cst_77 : f32 to vector<16x384xf32>
    %147 = arith.addf %146, %145 : vector<16x384xf32>
    %148 = arith.divf %146, %147 : vector<16x384xf32>
    %149 = vector.extract_strided_slice %148 {offsets = [0, 0], sizes = [16, 128], strides = [1, 1]} : vector<16x384xf32> to vector<16x128xf32>
    %150 = vector.extract_strided_slice %148 {offsets = [0, 128], sizes = [16, 128], strides = [1, 1]} : vector<16x384xf32> to vector<16x128xf32>
    %151 = vector.extract_strided_slice %148 {offsets = [0, 256], sizes = [16, 128], strides = [1, 1]} : vector<16x384xf32> to vector<16x128xf32>
    %152 = vector.extract_strided_slice %142 {offsets = [0, 384], sizes = [16, 128], strides = [1, 1]} : vector<16x512xf32> to vector<16x128xf32>
    %153 = math.tanh %152 : vector<16x128xf32>
    %c0_78 = arith.constant 0 : index
    %c0_79 = arith.constant 0 : index
    %154 = vector.load %arg10[%c0_78, %c0_79] : memref<16x128xf32, #tpu.memory_space<vmem>>, vector<16x128xf32>
    %155 = arith.mulf %150, %154 : vector<16x128xf32>
    %156 = arith.mulf %149, %153 : vector<16x128xf32>
    %157 = arith.addf %155, %156 : vector<16x128xf32>
    %158 = math.tanh %157 : vector<16x128xf32>
    %159 = arith.mulf %151, %158 : vector<16x128xf32>
    %160 = vector.broadcast %133 : i32 to vector<16x1xi32>
    %161 = arith.cmpi sgt, %21, %160 : vector<16x1xi32>
    %c0_80 = arith.constant 0 : index
    %c0_81 = arith.constant 0 : index
    %162 = vector.load %arg9[%c0_80, %c0_81] : memref<16x128xf32, #tpu.memory_space<vmem>>, vector<16x128xf32>
    %163 = vector.shape_cast %161 : vector<16x1xi1> to vector<16x1xi1>
    %164 = vector.broadcast %163 : vector<16x1xi1> to vector<16x128xi1>
    %165 = arith.select %164, %159, %162 : vector<16x128xi1>, vector<16x128xf32>
    %c0_82 = arith.constant 0 : index
    %c0_83 = arith.constant 0 : index
    %166 = vector.load %arg9[%c0_82, %c0_83] : memref<16x128xf32, #tpu.memory_space<vmem>>, vector<16x128xf32>
    tpu.vector_store %arg9[%c0_82, %c0_83], %165 {strides = array<i32>} : memref<16x128xf32, #tpu.memory_space<vmem>>, vector<16x128xf32>,
    %c0_84 = arith.constant 0 : index
    %c0_85 = arith.constant 0 : index
    %167 = vector.load %arg10[%c0_84, %c0_85] : memref<16x128xf32, #tpu.memory_space<vmem>>, vector<16x128xf32>
    %168 = vector.shape_cast %161 : vector<16x1xi1> to vector<16x1xi1>
    %169 = vector.broadcast %168 : vector<16x1xi1> to vector<16x128xi1>
    %170 = arith.select %169, %157, %167 : vector<16x128xi1>, vector<16x128xf32>
    %c0_86 = arith.constant 0 : index
    %c0_87 = arith.constant 0 : index
    %171 = vector.load %arg10[%c0_86, %c0_87] : memref<16x128xf32, #tpu.memory_space<vmem>>, vector<16x128xf32>
    tpu.vector_store %arg10[%c0_86, %c0_87], %170 {strides = array<i32>} : memref<16x128xf32, #tpu.memory_space<vmem>>, vector<16x128xf32>,
    %cst_88 = arith.constant 0.000000e+00 : f32
    %172 = vector.shape_cast %161 : vector<16x1xi1> to vector<16x1xi1>
    %173 = vector.broadcast %172 : vector<16x1xi1> to vector<16x128xi1>
    %174 = vector.broadcast %cst_88 : f32 to vector<16x128xf32>
    %175 = arith.select %173, %159, %174 : vector<16x128xi1>, vector<16x128xf32>
    %176 = arith.truncf %175 : vector<16x128xf32> to vector<16x128xbf16>
    %c0_89 = arith.constant 0 : index
    %177 = arith.index_cast %132 : i32 to index
    %c0_90 = arith.constant 0 : index
    %c0_91 = arith.constant 0 : index
    %178 = vector.load %arg7[%c0_89, %177, %c0_90, %c0_91] : memref<1x8x16x128xbf16, #tpu.memory_space<vmem>>, vector<1x1x16x128xbf16>
    %179 = vector.shape_cast %178 : vector<1x1x16x128xbf16> to vector<16x128xbf16>
    %180 = vector.shape_cast %176 : vector<16x128xbf16> to vector<1x1x16x128xbf16>
    tpu.vector_store %arg7[%c0_89, %177, %c0_90, %c0_91], %180 {strides = array<i32>} : memref<1x8x16x128xbf16, #tpu.memory_space<vmem>>, vector<1x1x16x128xbf16>,
    %c3_i32 = arith.constant 3 : i32
    %c1_i32_92 = arith.constant 1 : i32
    %181 = arith.subi %c1_i32_92, %arg0 : i32
    %182 = arith.muli %181, %c3_i32 : i32
    %c7_i32_93 = arith.constant 7 : i32
    %183 = arith.subi %c7_i32_93, %c3_i32 : i32
    %184 = arith.muli %arg0, %183 : i32
    %185 = arith.addi %182, %184 : i32
    %186 = arith.addi %20, %185 : i32
    %187 = arith.index_cast %185 : i32 to index
    %c0_94 = arith.constant 0 : index
    %c0_95 = arith.constant 0 : index
    %188 = vector.load %arg8[%187, %c0_94, %c0_95] : memref<8x16x512xf32, #tpu.memory_space<vmem>>, vector<1x16x512xf32>
    %189 = vector.shape_cast %188 : vector<1x16x512xf32> to vector<16x512xf32>
    %c0_96 = arith.constant 0 : index
    %c0_97 = arith.constant 0 : index
    %190 = vector.load %arg9[%c0_96, %c0_97] : memref<16x128xf32, #tpu.memory_space<vmem>>, vector<16x128xf32>
    %191 = arith.truncf %190 : vector<16x128xf32> to vector<16x128xbf16>
    %c0_98 = arith.constant 0 : index
    %c0_99 = arith.constant 0 : index
    %c0_100 = arith.constant 0 : index
    %192 = vector.load %arg5[%c0_98, %c0_99, %c0_100] : memref<1x128x512xbf16, #tpu.memory_space<vmem>>, vector<1x128x512xbf16>
    %193 = vector.shape_cast %192 : vector<1x128x512xbf16> to vector<128x512xbf16>
    %cst_101 = arith.constant dense<0.000000e+00> : vector<16x512xf32>
    %194 = tpu.matmul %191, %193, %cst_101 {dimension_numbers = #tpu.dot_dimension_numbers<[1], [0], [0], [1], [0, 0, 1, 1], [], []>} : vector<16x128xbf16>, vector<128x512xbf16>, vector<16x512xf32> -> vector<16x512xf32>
    %195 = arith.addf %189, %194 : vector<16x512xf32>
    %196 = vector.extract_strided_slice %195 {offsets = [0, 0], sizes = [16, 384], strides = [1, 1]} : vector<16x512xf32> to vector<16x384xf32>
    %197 = arith.negf %196 : vector<16x384xf32>
    %198 = math.exp %197 : vector<16x384xf32>
    %cst_102 = arith.constant 1.000000e+00 : f32
    %199 = vector.broadcast %cst_102 : f32 to vector<16x384xf32>
    %200 = arith.addf %199, %198 : vector<16x384xf32>
    %201 = arith.divf %199, %200 : vector<16x384xf32>
    %202 = vector.extract_strided_slice %201 {offsets = [0, 0], sizes = [16, 128], strides = [1, 1]} : vector<16x384xf32> to vector<16x128xf32>
    %203 = vector.extract_strided_slice %201 {offsets = [0, 128], sizes = [16, 128], strides = [1, 1]} : vector<16x384xf32> to vector<16x128xf32>
    %204 = vector.extract_strided_slice %201 {offsets = [0, 256], sizes = [16, 128], strides = [1, 1]} : vector<16x384xf32> to vector<16x128xf32>
    %205 = vector.extract_strided_slice %195 {offsets = [0, 384], sizes = [16, 128], strides = [1, 1]} : vector<16x512xf32> to vector<16x128xf32>
    %206 = math.tanh %205 : vector<16x128xf32>
    %c0_103 = arith.constant 0 : index
    %c0_104 = arith.constant 0 : index
    %207 = vector.load %arg10[%c0_103, %c0_104] : memref<16x128xf32, #tpu.memory_space<vmem>>, vector<16x128xf32>
    %208 = arith.mulf %203, %207 : vector<16x128xf32>
    %209 = arith.mulf %202, %206 : vector<16x128xf32>
    %210 = arith.addf %208, %209 : vector<16x128xf32>
    %211 = math.tanh %210 : vector<16x128xf32>
    %212 = arith.mulf %204, %211 : vector<16x128xf32>
    %213 = vector.broadcast %186 : i32 to vector<16x1xi32>
    %214 = arith.cmpi sgt, %21, %213 : vector<16x1xi32>
    %c0_105 = arith.constant 0 : index
    %c0_106 = arith.constant 0 : index
    %215 = vector.load %arg9[%c0_105, %c0_106] : memref<16x128xf32, #tpu.memory_space<vmem>>, vector<16x128xf32>
    %216 = vector.shape_cast %214 : vector<16x1xi1> to vector<16x1xi1>
    %217 = vector.broadcast %216 : vector<16x1xi1> to vector<16x128xi1>
    %218 = arith.select %217, %212, %215 : vector<16x128xi1>, vector<16x128xf32>
    %c0_107 = arith.constant 0 : index
    %c0_108 = arith.constant 0 : index
    %219 = vector.load %arg9[%c0_107, %c0_108] : memref<16x128xf32, #tpu.memory_space<vmem>>, vector<16x128xf32>
    tpu.vector_store %arg9[%c0_107, %c0_108], %218 {strides = array<i32>} : memref<16x128xf32, #tpu.memory_space<vmem>>, vector<16x128xf32>,
    %c0_109 = arith.constant 0 : index
    %c0_110 = arith.constant 0 : index
    %220 = vector.load %arg10[%c0_109, %c0_110] : memref<16x128xf32, #tpu.memory_space<vmem>>, vector<16x128xf32>
    %221 = vector.shape_cast %214 : vector<16x1xi1> to vector<16x1xi1>
    %222 = vector.broadcast %221 : vector<16x1xi1> to vector<16x128xi1>
    %223 = arith.select %222, %210, %220 : vector<16x128xi1>, vector<16x128xf32>
    %c0_111 = arith.constant 0 : index
    %c0_112 = arith.constant 0 : index
    %224 = vector.load %arg10[%c0_111, %c0_112] : memref<16x128xf32, #tpu.memory_space<vmem>>, vector<16x128xf32>
    tpu.vector_store %arg10[%c0_111, %c0_112], %223 {strides = array<i32>} : memref<16x128xf32, #tpu.memory_space<vmem>>, vector<16x128xf32>,
    %cst_113 = arith.constant 0.000000e+00 : f32
    %225 = vector.shape_cast %214 : vector<16x1xi1> to vector<16x1xi1>
    %226 = vector.broadcast %225 : vector<16x1xi1> to vector<16x128xi1>
    %227 = vector.broadcast %cst_113 : f32 to vector<16x128xf32>
    %228 = arith.select %226, %212, %227 : vector<16x128xi1>, vector<16x128xf32>
    %229 = arith.truncf %228 : vector<16x128xf32> to vector<16x128xbf16>
    %c0_114 = arith.constant 0 : index
    %230 = arith.index_cast %185 : i32 to index
    %c0_115 = arith.constant 0 : index
    %c0_116 = arith.constant 0 : index
    %231 = vector.load %arg7[%c0_114, %230, %c0_115, %c0_116] : memref<1x8x16x128xbf16, #tpu.memory_space<vmem>>, vector<1x1x16x128xbf16>
    %232 = vector.shape_cast %231 : vector<1x1x16x128xbf16> to vector<16x128xbf16>
    %233 = vector.shape_cast %229 : vector<16x128xbf16> to vector<1x1x16x128xbf16>
    tpu.vector_store %arg7[%c0_114, %230, %c0_115, %c0_116], %233 {strides = array<i32>} : memref<1x8x16x128xbf16, #tpu.memory_space<vmem>>, vector<1x1x16x128xbf16>,
    %c4_i32 = arith.constant 4 : i32
    %c1_i32_117 = arith.constant 1 : i32
    %234 = arith.subi %c1_i32_117, %arg0 : i32
    %235 = arith.muli %234, %c4_i32 : i32
    %c7_i32_118 = arith.constant 7 : i32
    %236 = arith.subi %c7_i32_118, %c4_i32 : i32
    %237 = arith.muli %arg0, %236 : i32
    %238 = arith.addi %235, %237 : i32
    %239 = arith.addi %20, %238 : i32
    %240 = arith.index_cast %238 : i32 to index
    %c0_119 = arith.constant 0 : index
    %c0_120 = arith.constant 0 : index
    %241 = vector.load %arg8[%240, %c0_119, %c0_120] : memref<8x16x512xf32, #tpu.memory_space<vmem>>, vector<1x16x512xf32>
    %242 = vector.shape_cast %241 : vector<1x16x512xf32> to vector<16x512xf32>
    %c0_121 = arith.constant 0 : index
    %c0_122 = arith.constant 0 : index
    %243 = vector.load %arg9[%c0_121, %c0_122] : memref<16x128xf32, #tpu.memory_space<vmem>>, vector<16x128xf32>
    %244 = arith.truncf %243 : vector<16x128xf32> to vector<16x128xbf16>
    %c0_123 = arith.constant 0 : index
    %c0_124 = arith.constant 0 : index
    %c0_125 = arith.constant 0 : index
    %245 = vector.load %arg5[%c0_123, %c0_124, %c0_125] : memref<1x128x512xbf16, #tpu.memory_space<vmem>>, vector<1x128x512xbf16>
    %246 = vector.shape_cast %245 : vector<1x128x512xbf16> to vector<128x512xbf16>
    %cst_126 = arith.constant dense<0.000000e+00> : vector<16x512xf32>
    %247 = tpu.matmul %244, %246, %cst_126 {dimension_numbers = #tpu.dot_dimension_numbers<[1], [0], [0], [1], [0, 0, 1, 1], [], []>} : vector<16x128xbf16>, vector<128x512xbf16>, vector<16x512xf32> -> vector<16x512xf32>
    %248 = arith.addf %242, %247 : vector<16x512xf32>
    %249 = vector.extract_strided_slice %248 {offsets = [0, 0], sizes = [16, 384], strides = [1, 1]} : vector<16x512xf32> to vector<16x384xf32>
    %250 = arith.negf %249 : vector<16x384xf32>
    %251 = math.exp %250 : vector<16x384xf32>
    %cst_127 = arith.constant 1.000000e+00 : f32
    %252 = vector.broadcast %cst_127 : f32 to vector<16x384xf32>
    %253 = arith.addf %252, %251 : vector<16x384xf32>
    %254 = arith.divf %252, %253 : vector<16x384xf32>
    %255 = vector.extract_strided_slice %254 {offsets = [0, 0], sizes = [16, 128], strides = [1, 1]} : vector<16x384xf32> to vector<16x128xf32>
    %256 = vector.extract_strided_slice %254 {offsets = [0, 128], sizes = [16, 128], strides = [1, 1]} : vector<16x384xf32> to vector<16x128xf32>
    %257 = vector.extract_strided_slice %254 {offsets = [0, 256], sizes = [16, 128], strides = [1, 1]} : vector<16x384xf32> to vector<16x128xf32>
    %258 = vector.extract_strided_slice %248 {offsets = [0, 384], sizes = [16, 128], strides = [1, 1]} : vector<16x512xf32> to vector<16x128xf32>
    %259 = math.tanh %258 : vector<16x128xf32>
    %c0_128 = arith.constant 0 : index
    %c0_129 = arith.constant 0 : index
    %260 = vector.load %arg10[%c0_128, %c0_129] : memref<16x128xf32, #tpu.memory_space<vmem>>, vector<16x128xf32>
    %261 = arith.mulf %256, %260 : vector<16x128xf32>
    %262 = arith.mulf %255, %259 : vector<16x128xf32>
    %263 = arith.addf %261, %262 : vector<16x128xf32>
    %264 = math.tanh %263 : vector<16x128xf32>
    %265 = arith.mulf %257, %264 : vector<16x128xf32>
    %266 = vector.broadcast %239 : i32 to vector<16x1xi32>
    %267 = arith.cmpi sgt, %21, %266 : vector<16x1xi32>
    %c0_130 = arith.constant 0 : index
    %c0_131 = arith.constant 0 : index
    %268 = vector.load %arg9[%c0_130, %c0_131] : memref<16x128xf32, #tpu.memory_space<vmem>>, vector<16x128xf32>
    %269 = vector.shape_cast %267 : vector<16x1xi1> to vector<16x1xi1>
    %270 = vector.broadcast %269 : vector<16x1xi1> to vector<16x128xi1>
    %271 = arith.select %270, %265, %268 : vector<16x128xi1>, vector<16x128xf32>
    %c0_132 = arith.constant 0 : index
    %c0_133 = arith.constant 0 : index
    %272 = vector.load %arg9[%c0_132, %c0_133] : memref<16x128xf32, #tpu.memory_space<vmem>>, vector<16x128xf32>
    tpu.vector_store %arg9[%c0_132, %c0_133], %271 {strides = array<i32>} : memref<16x128xf32, #tpu.memory_space<vmem>>, vector<16x128xf32>,
    %c0_134 = arith.constant 0 : index
    %c0_135 = arith.constant 0 : index
    %273 = vector.load %arg10[%c0_134, %c0_135] : memref<16x128xf32, #tpu.memory_space<vmem>>, vector<16x128xf32>
    %274 = vector.shape_cast %267 : vector<16x1xi1> to vector<16x1xi1>
    %275 = vector.broadcast %274 : vector<16x1xi1> to vector<16x128xi1>
    %276 = arith.select %275, %263, %273 : vector<16x128xi1>, vector<16x128xf32>
    %c0_136 = arith.constant 0 : index
    %c0_137 = arith.constant 0 : index
    %277 = vector.load %arg10[%c0_136, %c0_137] : memref<16x128xf32, #tpu.memory_space<vmem>>, vector<16x128xf32>
    tpu.vector_store %arg10[%c0_136, %c0_137], %276 {strides = array<i32>} : memref<16x128xf32, #tpu.memory_space<vmem>>, vector<16x128xf32>,
    %cst_138 = arith.constant 0.000000e+00 : f32
    %278 = vector.shape_cast %267 : vector<16x1xi1> to vector<16x1xi1>
    %279 = vector.broadcast %278 : vector<16x1xi1> to vector<16x128xi1>
    %280 = vector.broadcast %cst_138 : f32 to vector<16x128xf32>
    %281 = arith.select %279, %265, %280 : vector<16x128xi1>, vector<16x128xf32>
    %282 = arith.truncf %281 : vector<16x128xf32> to vector<16x128xbf16>
    %c0_139 = arith.constant 0 : index
    %283 = arith.index_cast %238 : i32 to index
    %c0_140 = arith.constant 0 : index
    %c0_141 = arith.constant 0 : index
    %284 = vector.load %arg7[%c0_139, %283, %c0_140, %c0_141] : memref<1x8x16x128xbf16, #tpu.memory_space<vmem>>, vector<1x1x16x128xbf16>
    %285 = vector.shape_cast %284 : vector<1x1x16x128xbf16> to vector<16x128xbf16>
    %286 = vector.shape_cast %282 : vector<16x128xbf16> to vector<1x1x16x128xbf16>
    tpu.vector_store %arg7[%c0_139, %283, %c0_140, %c0_141], %286 {strides = array<i32>} : memref<1x8x16x128xbf16, #tpu.memory_space<vmem>>, vector<1x1x16x128xbf16>,
    %c5_i32 = arith.constant 5 : i32
    %c1_i32_142 = arith.constant 1 : i32
    %287 = arith.subi %c1_i32_142, %arg0 : i32
    %288 = arith.muli %287, %c5_i32 : i32
    %c7_i32_143 = arith.constant 7 : i32
    %289 = arith.subi %c7_i32_143, %c5_i32 : i32
    %290 = arith.muli %arg0, %289 : i32
    %291 = arith.addi %288, %290 : i32
    %292 = arith.addi %20, %291 : i32
    %293 = arith.index_cast %291 : i32 to index
    %c0_144 = arith.constant 0 : index
    %c0_145 = arith.constant 0 : index
    %294 = vector.load %arg8[%293, %c0_144, %c0_145] : memref<8x16x512xf32, #tpu.memory_space<vmem>>, vector<1x16x512xf32>
    %295 = vector.shape_cast %294 : vector<1x16x512xf32> to vector<16x512xf32>
    %c0_146 = arith.constant 0 : index
    %c0_147 = arith.constant 0 : index
    %296 = vector.load %arg9[%c0_146, %c0_147] : memref<16x128xf32, #tpu.memory_space<vmem>>, vector<16x128xf32>
    %297 = arith.truncf %296 : vector<16x128xf32> to vector<16x128xbf16>
    %c0_148 = arith.constant 0 : index
    %c0_149 = arith.constant 0 : index
    %c0_150 = arith.constant 0 : index
    %298 = vector.load %arg5[%c0_148, %c0_149, %c0_150] : memref<1x128x512xbf16, #tpu.memory_space<vmem>>, vector<1x128x512xbf16>
    %299 = vector.shape_cast %298 : vector<1x128x512xbf16> to vector<128x512xbf16>
    %cst_151 = arith.constant dense<0.000000e+00> : vector<16x512xf32>
    %300 = tpu.matmul %297, %299, %cst_151 {dimension_numbers = #tpu.dot_dimension_numbers<[1], [0], [0], [1], [0, 0, 1, 1], [], []>} : vector<16x128xbf16>, vector<128x512xbf16>, vector<16x512xf32> -> vector<16x512xf32>
    %301 = arith.addf %295, %300 : vector<16x512xf32>
    %302 = vector.extract_strided_slice %301 {offsets = [0, 0], sizes = [16, 384], strides = [1, 1]} : vector<16x512xf32> to vector<16x384xf32>
    %303 = arith.negf %302 : vector<16x384xf32>
    %304 = math.exp %303 : vector<16x384xf32>
    %cst_152 = arith.constant 1.000000e+00 : f32
    %305 = vector.broadcast %cst_152 : f32 to vector<16x384xf32>
    %306 = arith.addf %305, %304 : vector<16x384xf32>
    %307 = arith.divf %305, %306 : vector<16x384xf32>
    %308 = vector.extract_strided_slice %307 {offsets = [0, 0], sizes = [16, 128], strides = [1, 1]} : vector<16x384xf32> to vector<16x128xf32>
    %309 = vector.extract_strided_slice %307 {offsets = [0, 128], sizes = [16, 128], strides = [1, 1]} : vector<16x384xf32> to vector<16x128xf32>
    %310 = vector.extract_strided_slice %307 {offsets = [0, 256], sizes = [16, 128], strides = [1, 1]} : vector<16x384xf32> to vector<16x128xf32>
    %311 = vector.extract_strided_slice %301 {offsets = [0, 384], sizes = [16, 128], strides = [1, 1]} : vector<16x512xf32> to vector<16x128xf32>
    %312 = math.tanh %311 : vector<16x128xf32>
    %c0_153 = arith.constant 0 : index
    %c0_154 = arith.constant 0 : index
    %313 = vector.load %arg10[%c0_153, %c0_154] : memref<16x128xf32, #tpu.memory_space<vmem>>, vector<16x128xf32>
    %314 = arith.mulf %309, %313 : vector<16x128xf32>
    %315 = arith.mulf %308, %312 : vector<16x128xf32>
    %316 = arith.addf %314, %315 : vector<16x128xf32>
    %317 = math.tanh %316 : vector<16x128xf32>
    %318 = arith.mulf %310, %317 : vector<16x128xf32>
    %319 = vector.broadcast %292 : i32 to vector<16x1xi32>
    %320 = arith.cmpi sgt, %21, %319 : vector<16x1xi32>
    %c0_155 = arith.constant 0 : index
    %c0_156 = arith.constant 0 : index
    %321 = vector.load %arg9[%c0_155, %c0_156] : memref<16x128xf32, #tpu.memory_space<vmem>>, vector<16x128xf32>
    %322 = vector.shape_cast %320 : vector<16x1xi1> to vector<16x1xi1>
    %323 = vector.broadcast %322 : vector<16x1xi1> to vector<16x128xi1>
    %324 = arith.select %323, %318, %321 : vector<16x128xi1>, vector<16x128xf32>
    %c0_157 = arith.constant 0 : index
    %c0_158 = arith.constant 0 : index
    %325 = vector.load %arg9[%c0_157, %c0_158] : memref<16x128xf32, #tpu.memory_space<vmem>>, vector<16x128xf32>
    tpu.vector_store %arg9[%c0_157, %c0_158], %324 {strides = array<i32>} : memref<16x128xf32, #tpu.memory_space<vmem>>, vector<16x128xf32>,
    %c0_159 = arith.constant 0 : index
    %c0_160 = arith.constant 0 : index
    %326 = vector.load %arg10[%c0_159, %c0_160] : memref<16x128xf32, #tpu.memory_space<vmem>>, vector<16x128xf32>
    %327 = vector.shape_cast %320 : vector<16x1xi1> to vector<16x1xi1>
    %328 = vector.broadcast %327 : vector<16x1xi1> to vector<16x128xi1>
    %329 = arith.select %328, %316, %326 : vector<16x128xi1>, vector<16x128xf32>
    %c0_161 = arith.constant 0 : index
    %c0_162 = arith.constant 0 : index
    %330 = vector.load %arg10[%c0_161, %c0_162] : memref<16x128xf32, #tpu.memory_space<vmem>>, vector<16x128xf32>
    tpu.vector_store %arg10[%c0_161, %c0_162], %329 {strides = array<i32>} : memref<16x128xf32, #tpu.memory_space<vmem>>, vector<16x128xf32>,
    %cst_163 = arith.constant 0.000000e+00 : f32
    %331 = vector.shape_cast %320 : vector<16x1xi1> to vector<16x1xi1>
    %332 = vector.broadcast %331 : vector<16x1xi1> to vector<16x128xi1>
    %333 = vector.broadcast %cst_163 : f32 to vector<16x128xf32>
    %334 = arith.select %332, %318, %333 : vector<16x128xi1>, vector<16x128xf32>
    %335 = arith.truncf %334 : vector<16x128xf32> to vector<16x128xbf16>
    %c0_164 = arith.constant 0 : index
    %336 = arith.index_cast %291 : i32 to index
    %c0_165 = arith.constant 0 : index
    %c0_166 = arith.constant 0 : index
    %337 = vector.load %arg7[%c0_164, %336, %c0_165, %c0_166] : memref<1x8x16x128xbf16, #tpu.memory_space<vmem>>, vector<1x1x16x128xbf16>
    %338 = vector.shape_cast %337 : vector<1x1x16x128xbf16> to vector<16x128xbf16>
    %339 = vector.shape_cast %335 : vector<16x128xbf16> to vector<1x1x16x128xbf16>
    tpu.vector_store %arg7[%c0_164, %336, %c0_165, %c0_166], %339 {strides = array<i32>} : memref<1x8x16x128xbf16, #tpu.memory_space<vmem>>, vector<1x1x16x128xbf16>,
    %c6_i32 = arith.constant 6 : i32
    %c1_i32_167 = arith.constant 1 : i32
    %340 = arith.subi %c1_i32_167, %arg0 : i32
    %341 = arith.muli %340, %c6_i32 : i32
    %c7_i32_168 = arith.constant 7 : i32
    %342 = arith.subi %c7_i32_168, %c6_i32 : i32
    %343 = arith.muli %arg0, %342 : i32
    %344 = arith.addi %341, %343 : i32
    %345 = arith.addi %20, %344 : i32
    %346 = arith.index_cast %344 : i32 to index
    %c0_169 = arith.constant 0 : index
    %c0_170 = arith.constant 0 : index
    %347 = vector.load %arg8[%346, %c0_169, %c0_170] : memref<8x16x512xf32, #tpu.memory_space<vmem>>, vector<1x16x512xf32>
    %348 = vector.shape_cast %347 : vector<1x16x512xf32> to vector<16x512xf32>
    %c0_171 = arith.constant 0 : index
    %c0_172 = arith.constant 0 : index
    %349 = vector.load %arg9[%c0_171, %c0_172] : memref<16x128xf32, #tpu.memory_space<vmem>>, vector<16x128xf32>
    %350 = arith.truncf %349 : vector<16x128xf32> to vector<16x128xbf16>
    %c0_173 = arith.constant 0 : index
    %c0_174 = arith.constant 0 : index
    %c0_175 = arith.constant 0 : index
    %351 = vector.load %arg5[%c0_173, %c0_174, %c0_175] : memref<1x128x512xbf16, #tpu.memory_space<vmem>>, vector<1x128x512xbf16>
    %352 = vector.shape_cast %351 : vector<1x128x512xbf16> to vector<128x512xbf16>
    %cst_176 = arith.constant dense<0.000000e+00> : vector<16x512xf32>
    %353 = tpu.matmul %350, %352, %cst_176 {dimension_numbers = #tpu.dot_dimension_numbers<[1], [0], [0], [1], [0, 0, 1, 1], [], []>} : vector<16x128xbf16>, vector<128x512xbf16>, vector<16x512xf32> -> vector<16x512xf32>
    %354 = arith.addf %348, %353 : vector<16x512xf32>
    %355 = vector.extract_strided_slice %354 {offsets = [0, 0], sizes = [16, 384], strides = [1, 1]} : vector<16x512xf32> to vector<16x384xf32>
    %356 = arith.negf %355 : vector<16x384xf32>
    %357 = math.exp %356 : vector<16x384xf32>
    %cst_177 = arith.constant 1.000000e+00 : f32
    %358 = vector.broadcast %cst_177 : f32 to vector<16x384xf32>
    %359 = arith.addf %358, %357 : vector<16x384xf32>
    %360 = arith.divf %358, %359 : vector<16x384xf32>
    %361 = vector.extract_strided_slice %360 {offsets = [0, 0], sizes = [16, 128], strides = [1, 1]} : vector<16x384xf32> to vector<16x128xf32>
    %362 = vector.extract_strided_slice %360 {offsets = [0, 128], sizes = [16, 128], strides = [1, 1]} : vector<16x384xf32> to vector<16x128xf32>
    %363 = vector.extract_strided_slice %360 {offsets = [0, 256], sizes = [16, 128], strides = [1, 1]} : vector<16x384xf32> to vector<16x128xf32>
    %364 = vector.extract_strided_slice %354 {offsets = [0, 384], sizes = [16, 128], strides = [1, 1]} : vector<16x512xf32> to vector<16x128xf32>
    %365 = math.tanh %364 : vector<16x128xf32>
    %c0_178 = arith.constant 0 : index
    %c0_179 = arith.constant 0 : index
    %366 = vector.load %arg10[%c0_178, %c0_179] : memref<16x128xf32, #tpu.memory_space<vmem>>, vector<16x128xf32>
    %367 = arith.mulf %362, %366 : vector<16x128xf32>
    %368 = arith.mulf %361, %365 : vector<16x128xf32>
    %369 = arith.addf %367, %368 : vector<16x128xf32>
    %370 = math.tanh %369 : vector<16x128xf32>
    %371 = arith.mulf %363, %370 : vector<16x128xf32>
    %372 = vector.broadcast %345 : i32 to vector<16x1xi32>
    %373 = arith.cmpi sgt, %21, %372 : vector<16x1xi32>
    %c0_180 = arith.constant 0 : index
    %c0_181 = arith.constant 0 : index
    %374 = vector.load %arg9[%c0_180, %c0_181] : memref<16x128xf32, #tpu.memory_space<vmem>>, vector<16x128xf32>
    %375 = vector.shape_cast %373 : vector<16x1xi1> to vector<16x1xi1>
    %376 = vector.broadcast %375 : vector<16x1xi1> to vector<16x128xi1>
    %377 = arith.select %376, %371, %374 : vector<16x128xi1>, vector<16x128xf32>
    %c0_182 = arith.constant 0 : index
    %c0_183 = arith.constant 0 : index
    %378 = vector.load %arg9[%c0_182, %c0_183] : memref<16x128xf32, #tpu.memory_space<vmem>>, vector<16x128xf32>
    tpu.vector_store %arg9[%c0_182, %c0_183], %377 {strides = array<i32>} : memref<16x128xf32, #tpu.memory_space<vmem>>, vector<16x128xf32>,
    %c0_184 = arith.constant 0 : index
    %c0_185 = arith.constant 0 : index
    %379 = vector.load %arg10[%c0_184, %c0_185] : memref<16x128xf32, #tpu.memory_space<vmem>>, vector<16x128xf32>
    %380 = vector.shape_cast %373 : vector<16x1xi1> to vector<16x1xi1>
    %381 = vector.broadcast %380 : vector<16x1xi1> to vector<16x128xi1>
    %382 = arith.select %381, %369, %379 : vector<16x128xi1>, vector<16x128xf32>
    %c0_186 = arith.constant 0 : index
    %c0_187 = arith.constant 0 : index
    %383 = vector.load %arg10[%c0_186, %c0_187] : memref<16x128xf32, #tpu.memory_space<vmem>>, vector<16x128xf32>
    tpu.vector_store %arg10[%c0_186, %c0_187], %382 {strides = array<i32>} : memref<16x128xf32, #tpu.memory_space<vmem>>, vector<16x128xf32>,
    %cst_188 = arith.constant 0.000000e+00 : f32
    %384 = vector.shape_cast %373 : vector<16x1xi1> to vector<16x1xi1>
    %385 = vector.broadcast %384 : vector<16x1xi1> to vector<16x128xi1>
    %386 = vector.broadcast %cst_188 : f32 to vector<16x128xf32>
    %387 = arith.select %385, %371, %386 : vector<16x128xi1>, vector<16x128xf32>
    %388 = arith.truncf %387 : vector<16x128xf32> to vector<16x128xbf16>
    %c0_189 = arith.constant 0 : index
    %389 = arith.index_cast %344 : i32 to index
    %c0_190 = arith.constant 0 : index
    %c0_191 = arith.constant 0 : index
    %390 = vector.load %arg7[%c0_189, %389, %c0_190, %c0_191] : memref<1x8x16x128xbf16, #tpu.memory_space<vmem>>, vector<1x1x16x128xbf16>
    %391 = vector.shape_cast %390 : vector<1x1x16x128xbf16> to vector<16x128xbf16>
    %392 = vector.shape_cast %388 : vector<16x128xbf16> to vector<1x1x16x128xbf16>
    tpu.vector_store %arg7[%c0_189, %389, %c0_190, %c0_191], %392 {strides = array<i32>} : memref<1x8x16x128xbf16, #tpu.memory_space<vmem>>, vector<1x1x16x128xbf16>,
    %c7_i32_192 = arith.constant 7 : i32
    %c1_i32_193 = arith.constant 1 : i32
    %393 = arith.subi %c1_i32_193, %arg0 : i32
    %394 = arith.muli %393, %c7_i32_192 : i32
    %c7_i32_194 = arith.constant 7 : i32
    %395 = arith.subi %c7_i32_194, %c7_i32_192 : i32
    %396 = arith.muli %arg0, %395 : i32
    %397 = arith.addi %394, %396 : i32
    %398 = arith.addi %20, %397 : i32
    %399 = arith.index_cast %397 : i32 to index
    %c0_195 = arith.constant 0 : index
    %c0_196 = arith.constant 0 : index
    %400 = vector.load %arg8[%399, %c0_195, %c0_196] : memref<8x16x512xf32, #tpu.memory_space<vmem>>, vector<1x16x512xf32>
    %401 = vector.shape_cast %400 : vector<1x16x512xf32> to vector<16x512xf32>
    %c0_197 = arith.constant 0 : index
    %c0_198 = arith.constant 0 : index
    %402 = vector.load %arg9[%c0_197, %c0_198] : memref<16x128xf32, #tpu.memory_space<vmem>>, vector<16x128xf32>
    %403 = arith.truncf %402 : vector<16x128xf32> to vector<16x128xbf16>
    %c0_199 = arith.constant 0 : index
    %c0_200 = arith.constant 0 : index
    %c0_201 = arith.constant 0 : index
    %404 = vector.load %arg5[%c0_199, %c0_200, %c0_201] : memref<1x128x512xbf16, #tpu.memory_space<vmem>>, vector<1x128x512xbf16>
    %405 = vector.shape_cast %404 : vector<1x128x512xbf16> to vector<128x512xbf16>
    %cst_202 = arith.constant dense<0.000000e+00> : vector<16x512xf32>
    %406 = tpu.matmul %403, %405, %cst_202 {dimension_numbers = #tpu.dot_dimension_numbers<[1], [0], [0], [1], [0, 0, 1, 1], [], []>} : vector<16x128xbf16>, vector<128x512xbf16>, vector<16x512xf32> -> vector<16x512xf32>
    %407 = arith.addf %401, %406 : vector<16x512xf32>
    %408 = vector.extract_strided_slice %407 {offsets = [0, 0], sizes = [16, 384], strides = [1, 1]} : vector<16x512xf32> to vector<16x384xf32>
    %409 = arith.negf %408 : vector<16x384xf32>
    %410 = math.exp %409 : vector<16x384xf32>
    %cst_203 = arith.constant 1.000000e+00 : f32
    %411 = vector.broadcast %cst_203 : f32 to vector<16x384xf32>
    %412 = arith.addf %411, %410 : vector<16x384xf32>
    %413 = arith.divf %411, %412 : vector<16x384xf32>
    %414 = vector.extract_strided_slice %413 {offsets = [0, 0], sizes = [16, 128], strides = [1, 1]} : vector<16x384xf32> to vector<16x128xf32>
    %415 = vector.extract_strided_slice %413 {offsets = [0, 128], sizes = [16, 128], strides = [1, 1]} : vector<16x384xf32> to vector<16x128xf32>
    %416 = vector.extract_strided_slice %413 {offsets = [0, 256], sizes = [16, 128], strides = [1, 1]} : vector<16x384xf32> to vector<16x128xf32>
    %417 = vector.extract_strided_slice %407 {offsets = [0, 384], sizes = [16, 128], strides = [1, 1]} : vector<16x512xf32> to vector<16x128xf32>
    %418 = math.tanh %417 : vector<16x128xf32>
    %c0_204 = arith.constant 0 : index
    %c0_205 = arith.constant 0 : index
    %419 = vector.load %arg10[%c0_204, %c0_205] : memref<16x128xf32, #tpu.memory_space<vmem>>, vector<16x128xf32>
    %420 = arith.mulf %415, %419 : vector<16x128xf32>
    %421 = arith.mulf %414, %418 : vector<16x128xf32>
    %422 = arith.addf %420, %421 : vector<16x128xf32>
    %423 = math.tanh %422 : vector<16x128xf32>
    %424 = arith.mulf %416, %423 : vector<16x128xf32>
    %425 = vector.broadcast %398 : i32 to vector<16x1xi32>
    %426 = arith.cmpi sgt, %21, %425 : vector<16x1xi32>
    %c0_206 = arith.constant 0 : index
    %c0_207 = arith.constant 0 : index
    %427 = vector.load %arg9[%c0_206, %c0_207] : memref<16x128xf32, #tpu.memory_space<vmem>>, vector<16x128xf32>
    %428 = vector.shape_cast %426 : vector<16x1xi1> to vector<16x1xi1>
    %429 = vector.broadcast %428 : vector<16x1xi1> to vector<16x128xi1>
    %430 = arith.select %429, %424, %427 : vector<16x128xi1>, vector<16x128xf32>
    %c0_208 = arith.constant 0 : index
    %c0_209 = arith.constant 0 : index
    %431 = vector.load %arg9[%c0_208, %c0_209] : memref<16x128xf32, #tpu.memory_space<vmem>>, vector<16x128xf32>
    tpu.vector_store %arg9[%c0_208, %c0_209], %430 {strides = array<i32>} : memref<16x128xf32, #tpu.memory_space<vmem>>, vector<16x128xf32>,
    %c0_210 = arith.constant 0 : index
    %c0_211 = arith.constant 0 : index
    %432 = vector.load %arg10[%c0_210, %c0_211] : memref<16x128xf32, #tpu.memory_space<vmem>>, vector<16x128xf32>
    %433 = vector.shape_cast %426 : vector<16x1xi1> to vector<16x1xi1>
    %434 = vector.broadcast %433 : vector<16x1xi1> to vector<16x128xi1>
    %435 = arith.select %434, %422, %432 : vector<16x128xi1>, vector<16x128xf32>
    %c0_212 = arith.constant 0 : index
    %c0_213 = arith.constant 0 : index
    %436 = vector.load %arg10[%c0_212, %c0_213] : memref<16x128xf32, #tpu.memory_space<vmem>>, vector<16x128xf32>
    tpu.vector_store %arg10[%c0_212, %c0_213], %435 {strides = array<i32>} : memref<16x128xf32, #tpu.memory_space<vmem>>, vector<16x128xf32>,
    %cst_214 = arith.constant 0.000000e+00 : f32
    %437 = vector.shape_cast %426 : vector<16x1xi1> to vector<16x1xi1>
    %438 = vector.broadcast %437 : vector<16x1xi1> to vector<16x128xi1>
    %439 = vector.broadcast %cst_214 : f32 to vector<16x128xf32>
    %440 = arith.select %438, %424, %439 : vector<16x128xi1>, vector<16x128xf32>
    %441 = arith.truncf %440 : vector<16x128xf32> to vector<16x128xbf16>
    %c0_215 = arith.constant 0 : index
    %442 = arith.index_cast %397 : i32 to index
    %c0_216 = arith.constant 0 : index
    %c0_217 = arith.constant 0 : index
    %443 = vector.load %arg7[%c0_215, %442, %c0_216, %c0_217] : memref<1x8x16x128xbf16, #tpu.memory_space<vmem>>, vector<1x1x16x128xbf16>
    %444 = vector.shape_cast %443 : vector<1x1x16x128xbf16> to vector<16x128xbf16>
    %445 = vector.shape_cast %441 : vector<16x128xbf16> to vector<1x1x16x128xbf16>
    tpu.vector_store %arg7[%c0_215, %442, %c0_216, %c0_217], %445 {strides = array<i32>} : memref<1x8x16x128xbf16, #tpu.memory_space<vmem>>, vector<1x1x16x128xbf16>,
    %c8_i32_218 = arith.constant 8 : i32
    return
  }
  func.func @transform_0(%arg0: i32, %arg1: i32) -> (i32, i32) {
    %c0_i32 = arith.constant 0 : i32
    %c0_i32_0 = arith.constant 0 : i32
    %c0_i32_1 = arith.constant 0 : i32
    return %c0_i32, %c0_i32_0 : i32, i32
  }
  func.func @transform_1(%arg0: i32, %arg1: i32) -> (i32, i32, i32, i32) {
    %c1_i32 = arith.constant 1 : i32
    %0 = arith.subi %c1_i32, %arg0 : i32
    %1 = arith.muli %0, %arg1 : i32
    %c1_i32_0 = arith.constant 1 : i32
    %2 = arith.subi %c1_i32_0, %arg1 : i32
    %3 = arith.muli %arg0, %2 : i32
    %4 = arith.addi %1, %3 : i32
    %c0_i32 = arith.constant 0 : i32
    %c0_i32_1 = arith.constant 0 : i32
    %c0_i32_2 = arith.constant 0 : i32
    %c0_i32_3 = arith.constant 0 : i32
    return %c0_i32, %4, %c0_i32_1, %c0_i32_2 : i32, i32, i32, i32
  }
  func.func @transform_2(%arg0: i32, %arg1: i32) -> (i32, i32, i32) {
    %c0_i32 = arith.constant 0 : i32
    %c0_i32_0 = arith.constant 0 : i32
    %c0_i32_1 = arith.constant 0 : i32
    return %arg0, %c0_i32, %c0_i32_0 : i32, i32, i32
  }
  func.func @transform_3(%arg0: i32, %arg1: i32) -> (i32, i32, i32) {
    %c0_i32 = arith.constant 0 : i32
    %c0_i32_0 = arith.constant 0 : i32
    %c0_i32_1 = arith.constant 0 : i32
    return %arg0, %c0_i32, %c0_i32_0 : i32, i32, i32
  }
  func.func @transform_4(%arg0: i32, %arg1: i32) -> (i32, i32, i32) {
    %c0_i32 = arith.constant 0 : i32
    %c0_i32_0 = arith.constant 0 : i32
    %c0_i32_1 = arith.constant 0 : i32
    return %arg0, %c0_i32, %c0_i32_0 : i32, i32, i32
  }
  func.func @transform_5(%arg0: i32, %arg1: i32) -> (i32, i32, i32, i32) {
    %c1_i32 = arith.constant 1 : i32
    %0 = arith.subi %c1_i32, %arg0 : i32
    %1 = arith.muli %0, %arg1 : i32
    %c1_i32_0 = arith.constant 1 : i32
    %2 = arith.subi %c1_i32_0, %arg1 : i32
    %3 = arith.muli %arg0, %2 : i32
    %4 = arith.addi %1, %3 : i32
    %c0_i32 = arith.constant 0 : i32
    %c0_i32_1 = arith.constant 0 : i32
    %c0_i32_2 = arith.constant 0 : i32
    return %arg0, %4, %c0_i32, %c0_i32_1 : i32, i32, i32, i32
  }
}

module attributes {stable_mosaic.version = 11 : i64} {
  func.func @_bilstm_layer_kernel(%arg0: i32, %arg1: i32, %arg2: memref<16x1xi32, #tpu.memory_space<vmem>>, %arg3: memref<1x16x1xi32, #tpu.memory_space<vmem>>, %arg4: memref<1x8x16x128xbf16, #tpu.memory_space<vmem>>, %arg5: memref<1x8x16x128xbf16, #tpu.memory_space<vmem>>, %arg6: memref<1x128x512xbf16, #tpu.memory_space<vmem>>, %arg7: memref<1x128x512xbf16, #tpu.memory_space<vmem>>, %arg8: memref<1x128x512xbf16, #tpu.memory_space<vmem>>, %arg9: memref<1x1x512xf32, #tpu.memory_space<vmem>>, %arg10: memref<1x16x128xbf16, #tpu.memory_space<vmem>>, %arg11: memref<8x16x512xf32, #tpu.memory_space<vmem>>, %arg12: memref<16x128xf32, #tpu.memory_space<vmem>>, %arg13: memref<16x128xf32, #tpu.memory_space<vmem>>) attributes {dimension_semantics = [#tpu.dimension_semantics<parallel>, #tpu.dimension_semantics<arbitrary>], iteration_bounds = array<i64: 2, 2>, scalar_prefetch = 0 : i64, scratch_operands = 3 : i64, tpu.core_type = #tpu.core_type<tc>, window_params = [{pipeline_mode = #tpu.pipeline_mode<synchronous>, transform_indices = @transform_0, window_bounds = array<i64: 16, 1>}, {transform_indices = @transform_1, window_bounds = array<i64: 1, 16, 1>}, {transform_indices = @transform_2, window_bounds = array<i64: 1, 8, 16, 128>}, {transform_indices = @transform_3, window_bounds = array<i64: 1, 8, 16, 128>}, {pipeline_mode = #tpu.pipeline_mode<synchronous>, transform_indices = @transform_4, window_bounds = array<i64: 1, 128, 512>}, {pipeline_mode = #tpu.pipeline_mode<synchronous>, transform_indices = @transform_5, window_bounds = array<i64: 1, 128, 512>}, {pipeline_mode = #tpu.pipeline_mode<synchronous>, transform_indices = @transform_6, window_bounds = array<i64: 1, 128, 512>}, {transform_indices = @transform_7, window_bounds = array<i64: 1, 1, 512>}, {transform_indices = @transform_8, window_bounds = array<i64: 1, 16, 128>}]} {
    %c0_i32 = arith.constant 0 : i32
    %0 = arith.cmpi eq, %arg1, %c0_i32 : i32
    %1 = arith.extui %0 : i1 to i32
    %c0_i32_0 = arith.constant 0 : i32
    %2 = arith.cmpi ne, %1, %c0_i32_0 : i32
    scf.if %2 {
      %cst_254 = arith.constant 0.000000e+00 : f32
      %503 = vector.broadcast %cst_254 : f32 to vector<16x128xf32>
      %c0_255 = arith.constant 0 : index
      %c0_256 = arith.constant 0 : index
      %504 = vector.load %arg12[%c0_255, %c0_256] : memref<16x128xf32, #tpu.memory_space<vmem>>, vector<16x128xf32>
      tpu.vector_store %arg12[%c0_255, %c0_256], %503 {strides = array<i32>} : memref<16x128xf32, #tpu.memory_space<vmem>>, vector<16x128xf32>,
      %cst_257 = arith.constant 0.000000e+00 : f32
      %505 = vector.broadcast %cst_257 : f32 to vector<16x128xf32>
      %c0_258 = arith.constant 0 : index
      %c0_259 = arith.constant 0 : index
      %506 = vector.load %arg13[%c0_258, %c0_259] : memref<16x128xf32, #tpu.memory_space<vmem>>, vector<16x128xf32>
      tpu.vector_store %arg13[%c0_258, %c0_259], %505 {strides = array<i32>} : memref<16x128xf32, #tpu.memory_space<vmem>>, vector<16x128xf32>,
      %cst_260 = arith.constant 0.000000e+00 : bf16
      %507 = vector.broadcast %cst_260 : bf16 to vector<1x16x128xbf16>
      %c0_261 = arith.constant 0 : index
      %c0_262 = arith.constant 0 : index
      %c0_263 = arith.constant 0 : index
      %508 = vector.load %arg10[%c0_261, %c0_262, %c0_263] : memref<1x16x128xbf16, #tpu.memory_space<vmem>>, vector<1x16x128xbf16>
      tpu.vector_store %arg10[%c0_261, %c0_262, %c0_263], %507 {strides = array<i32>} : memref<1x16x128xbf16, #tpu.memory_space<vmem>>, vector<1x16x128xbf16>,
    } else {
    }
    %c0 = arith.constant 0 : index
    %c0_1 = arith.constant 0 : index
    %c0_2 = arith.constant 0 : index
    %c0_3 = arith.constant 0 : index
    %3 = vector.load %arg4[%c0, %c0_1, %c0_2, %c0_3] : memref<1x8x16x128xbf16, #tpu.memory_space<vmem>>, vector<1x8x16x128xbf16>
    %4 = vector.shape_cast %3 : vector<1x8x16x128xbf16> to vector<8x16x128xbf16>
    %5 = vector.shape_cast %4 : vector<8x16x128xbf16> to vector<128x128xbf16>
    %c0_4 = arith.constant 0 : index
    %c0_5 = arith.constant 0 : index
    %c0_6 = arith.constant 0 : index
    %6 = vector.load %arg6[%c0_4, %c0_5, %c0_6] : memref<1x128x512xbf16, #tpu.memory_space<vmem>>, vector<1x128x512xbf16>
    %7 = vector.shape_cast %6 : vector<1x128x512xbf16> to vector<128x512xbf16>
    %cst = arith.constant dense<0.000000e+00> : vector<128x512xf32>
    %8 = tpu.matmul %5, %7, %cst {dimension_numbers = #tpu.dot_dimension_numbers<[1], [0], [0], [1], [0, 0, 1, 1], [], []>} : vector<128x128xbf16>, vector<128x512xbf16>, vector<128x512xf32> -> vector<128x512xf32>
    %c0_7 = arith.constant 0 : index
    %c0_8 = arith.constant 0 : index
    %c0_9 = arith.constant 0 : index
    %c0_10 = arith.constant 0 : index
    %9 = vector.load %arg5[%c0_7, %c0_8, %c0_9, %c0_10] : memref<1x8x16x128xbf16, #tpu.memory_space<vmem>>, vector<1x8x16x128xbf16>
    %10 = vector.shape_cast %9 : vector<1x8x16x128xbf16> to vector<8x16x128xbf16>
    %11 = vector.shape_cast %10 : vector<8x16x128xbf16> to vector<128x128xbf16>
    %c0_11 = arith.constant 0 : index
    %c0_12 = arith.constant 0 : index
    %c0_13 = arith.constant 0 : index
    %12 = vector.load %arg7[%c0_11, %c0_12, %c0_13] : memref<1x128x512xbf16, #tpu.memory_space<vmem>>, vector<1x128x512xbf16>
    %13 = vector.shape_cast %12 : vector<1x128x512xbf16> to vector<128x512xbf16>
    %cst_14 = arith.constant dense<0.000000e+00> : vector<128x512xf32>
    %14 = tpu.matmul %11, %13, %cst_14 {dimension_numbers = #tpu.dot_dimension_numbers<[1], [0], [0], [1], [0, 0, 1, 1], [], []>} : vector<128x128xbf16>, vector<128x512xbf16>, vector<128x512xf32> -> vector<128x512xf32>
    %15 = arith.addf %8, %14 : vector<128x512xf32>
    %c0_15 = arith.constant 0 : index
    %c0_16 = arith.constant 0 : index
    %c0_17 = arith.constant 0 : index
    %16 = vector.load %arg9[%c0_15, %c0_16, %c0_17] : memref<1x1x512xf32, #tpu.memory_space<vmem>>, vector<1x1x512xf32>
    %17 = vector.shape_cast %16 : vector<1x1x512xf32> to vector<1x512xf32>
    %18 = vector.broadcast %17 : vector<1x512xf32> to vector<128x512xf32>
    %19 = arith.addf %15, %18 : vector<128x512xf32>
    %20 = vector.shape_cast %19 : vector<128x512xf32> to vector<8x16x512xf32>
    %c0_18 = arith.constant 0 : index
    %c0_19 = arith.constant 0 : index
    %c0_20 = arith.constant 0 : index
    %21 = vector.load %arg11[%c0_18, %c0_19, %c0_20] : memref<8x16x512xf32, #tpu.memory_space<vmem>>, vector<8x16x512xf32>
    tpu.vector_store %arg11[%c0_18, %c0_19, %c0_20], %20 {strides = array<i32>} : memref<8x16x512xf32, #tpu.memory_space<vmem>>, vector<8x16x512xf32>,
    %c1_i32 = arith.constant 1 : i32
    %22 = arith.subi %c1_i32, %arg0 : i32
    %23 = arith.muli %22, %arg1 : i32
    %c1_i32_21 = arith.constant 1 : i32
    %24 = arith.subi %c1_i32_21, %arg1 : i32
    %25 = arith.muli %arg0, %24 : i32
    %26 = arith.addi %23, %25 : i32
    %c8_i32 = arith.constant 8 : i32
    %27 = arith.muli %26, %c8_i32 : i32
    %c0_22 = arith.constant 0 : index
    %c0_23 = arith.constant 0 : index
    %28 = vector.load %arg2[%c0_22, %c0_23] : memref<16x1xi32, #tpu.memory_space<vmem>>, vector<16x1xi32>
    %c0_24 = arith.constant 0 : index
    %c0_25 = arith.constant 0 : index
    %c0_26 = arith.constant 0 : index
    %29 = vector.load %arg3[%c0_24, %c0_25, %c0_26] : memref<1x16x1xi32, #tpu.memory_space<vmem>>, vector<1x16x1xi32>
    %30 = vector.shape_cast %29 : vector<1x16x1xi32> to vector<16x1xi32>
    %c0_i32_27 = arith.constant 0 : i32
    %c1_i32_28 = arith.constant 1 : i32
    %31 = arith.subi %c1_i32_28, %arg0 : i32
    %32 = arith.muli %31, %c0_i32_27 : i32
    %c7_i32 = arith.constant 7 : i32
    %33 = arith.subi %c7_i32, %c0_i32_27 : i32
    %34 = arith.muli %arg0, %33 : i32
    %35 = arith.addi %32, %34 : i32
    %36 = arith.addi %27, %35 : i32
    %37 = arith.index_cast %35 : i32 to index
    %c0_29 = arith.constant 0 : index
    %c0_30 = arith.constant 0 : index
    %38 = vector.load %arg11[%37, %c0_29, %c0_30] : memref<8x16x512xf32, #tpu.memory_space<vmem>>, vector<1x16x512xf32>
    %39 = vector.shape_cast %38 : vector<1x16x512xf32> to vector<16x512xf32>
    %c0_31 = arith.constant 0 : index
    %c0_32 = arith.constant 0 : index
    %40 = vector.load %arg12[%c0_31, %c0_32] : memref<16x128xf32, #tpu.memory_space<vmem>>, vector<16x128xf32>
    %41 = arith.truncf %40 : vector<16x128xf32> to vector<16x128xbf16>
    %c0_33 = arith.constant 0 : index
    %c0_34 = arith.constant 0 : index
    %c0_35 = arith.constant 0 : index
    %42 = vector.load %arg8[%c0_33, %c0_34, %c0_35] : memref<1x128x512xbf16, #tpu.memory_space<vmem>>, vector<1x128x512xbf16>
    %43 = vector.shape_cast %42 : vector<1x128x512xbf16> to vector<128x512xbf16>
    %cst_36 = arith.constant dense<0.000000e+00> : vector<16x512xf32>
    %44 = tpu.matmul %41, %43, %cst_36 {dimension_numbers = #tpu.dot_dimension_numbers<[1], [0], [0], [1], [0, 0, 1, 1], [], []>} : vector<16x128xbf16>, vector<128x512xbf16>, vector<16x512xf32> -> vector<16x512xf32>
    %45 = arith.addf %39, %44 : vector<16x512xf32>
    %46 = vector.extract_strided_slice %45 {offsets = [0, 0], sizes = [16, 384], strides = [1, 1]} : vector<16x512xf32> to vector<16x384xf32>
    %47 = arith.negf %46 : vector<16x384xf32>
    %48 = math.exp %47 : vector<16x384xf32>
    %cst_37 = arith.constant 1.000000e+00 : f32
    %49 = vector.broadcast %cst_37 : f32 to vector<16x384xf32>
    %50 = arith.addf %49, %48 : vector<16x384xf32>
    %51 = arith.divf %49, %50 : vector<16x384xf32>
    %52 = vector.extract_strided_slice %51 {offsets = [0, 0], sizes = [16, 128], strides = [1, 1]} : vector<16x384xf32> to vector<16x128xf32>
    %53 = vector.extract_strided_slice %51 {offsets = [0, 128], sizes = [16, 128], strides = [1, 1]} : vector<16x384xf32> to vector<16x128xf32>
    %54 = vector.extract_strided_slice %51 {offsets = [0, 256], sizes = [16, 128], strides = [1, 1]} : vector<16x384xf32> to vector<16x128xf32>
    %55 = vector.extract_strided_slice %45 {offsets = [0, 384], sizes = [16, 128], strides = [1, 1]} : vector<16x512xf32> to vector<16x128xf32>
    %56 = math.tanh %55 : vector<16x128xf32>
    %c0_38 = arith.constant 0 : index
    %c0_39 = arith.constant 0 : index
    %57 = vector.load %arg13[%c0_38, %c0_39] : memref<16x128xf32, #tpu.memory_space<vmem>>, vector<16x128xf32>
    %58 = arith.mulf %53, %57 : vector<16x128xf32>
    %59 = arith.mulf %52, %56 : vector<16x128xf32>
    %60 = arith.addf %58, %59 : vector<16x128xf32>
    %61 = math.tanh %60 : vector<16x128xf32>
    %62 = arith.mulf %54, %61 : vector<16x128xf32>
    %63 = vector.broadcast %36 : i32 to vector<16x1xi32>
    %64 = arith.cmpi sgt, %28, %63 : vector<16x1xi32>
    %c0_40 = arith.constant 0 : index
    %c0_41 = arith.constant 0 : index
    %65 = vector.load %arg12[%c0_40, %c0_41] : memref<16x128xf32, #tpu.memory_space<vmem>>, vector<16x128xf32>
    %66 = vector.shape_cast %64 : vector<16x1xi1> to vector<16x1xi1>
    %67 = vector.broadcast %66 : vector<16x1xi1> to vector<16x128xi1>
    %68 = arith.select %67, %62, %65 : vector<16x128xi1>, vector<16x128xf32>
    %c0_42 = arith.constant 0 : index
    %c0_43 = arith.constant 0 : index
    %69 = vector.load %arg12[%c0_42, %c0_43] : memref<16x128xf32, #tpu.memory_space<vmem>>, vector<16x128xf32>
    tpu.vector_store %arg12[%c0_42, %c0_43], %68 {strides = array<i32>} : memref<16x128xf32, #tpu.memory_space<vmem>>, vector<16x128xf32>,
    %c0_44 = arith.constant 0 : index
    %c0_45 = arith.constant 0 : index
    %70 = vector.load %arg13[%c0_44, %c0_45] : memref<16x128xf32, #tpu.memory_space<vmem>>, vector<16x128xf32>
    %71 = vector.shape_cast %64 : vector<16x1xi1> to vector<16x1xi1>
    %72 = vector.broadcast %71 : vector<16x1xi1> to vector<16x128xi1>
    %73 = arith.select %72, %60, %70 : vector<16x128xi1>, vector<16x128xf32>
    %c0_46 = arith.constant 0 : index
    %c0_47 = arith.constant 0 : index
    %74 = vector.load %arg13[%c0_46, %c0_47] : memref<16x128xf32, #tpu.memory_space<vmem>>, vector<16x128xf32>
    tpu.vector_store %arg13[%c0_46, %c0_47], %73 {strides = array<i32>} : memref<16x128xf32, #tpu.memory_space<vmem>>, vector<16x128xf32>,
    %cst_48 = arith.constant 0.000000e+00 : f32
    %75 = vector.shape_cast %64 : vector<16x1xi1> to vector<16x1xi1>
    %76 = vector.broadcast %75 : vector<16x1xi1> to vector<16x128xi1>
    %77 = vector.broadcast %cst_48 : f32 to vector<16x128xf32>
    %78 = arith.select %76, %62, %77 : vector<16x128xi1>, vector<16x128xf32>
    %79 = arith.truncf %78 : vector<16x128xf32> to vector<16x128xbf16>
    %80 = vector.broadcast %36 : i32 to vector<16x1xi32>
    %81 = arith.cmpi eq, %30, %80 : vector<16x1xi32>
    %c0_49 = arith.constant 0 : index
    %c0_50 = arith.constant 0 : index
    %c0_51 = arith.constant 0 : index
    %82 = vector.load %arg10[%c0_49, %c0_50, %c0_51] : memref<1x16x128xbf16, #tpu.memory_space<vmem>>, vector<1x16x128xbf16>
    %83 = vector.shape_cast %82 : vector<1x16x128xbf16> to vector<16x128xbf16>
    %84 = vector.shape_cast %81 : vector<16x1xi1> to vector<16x1xi1>
    %85 = vector.broadcast %84 : vector<16x1xi1> to vector<16x128xi1>
    %86 = arith.select %85, %79, %83 : vector<16x128xi1>, vector<16x128xbf16>
    %c0_52 = arith.constant 0 : index
    %c0_53 = arith.constant 0 : index
    %c0_54 = arith.constant 0 : index
    %87 = vector.load %arg10[%c0_52, %c0_53, %c0_54] : memref<1x16x128xbf16, #tpu.memory_space<vmem>>, vector<1x16x128xbf16>
    %88 = vector.shape_cast %87 : vector<1x16x128xbf16> to vector<16x128xbf16>
    %89 = vector.shape_cast %86 : vector<16x128xbf16> to vector<1x16x128xbf16>
    tpu.vector_store %arg10[%c0_52, %c0_53, %c0_54], %89 {strides = array<i32>} : memref<1x16x128xbf16, #tpu.memory_space<vmem>>, vector<1x16x128xbf16>,
    %c1_i32_55 = arith.constant 1 : i32
    %c1_i32_56 = arith.constant 1 : i32
    %90 = arith.subi %c1_i32_56, %arg0 : i32
    %91 = arith.muli %90, %c1_i32_55 : i32
    %c7_i32_57 = arith.constant 7 : i32
    %92 = arith.subi %c7_i32_57, %c1_i32_55 : i32
    %93 = arith.muli %arg0, %92 : i32
    %94 = arith.addi %91, %93 : i32
    %95 = arith.addi %27, %94 : i32
    %96 = arith.index_cast %94 : i32 to index
    %c0_58 = arith.constant 0 : index
    %c0_59 = arith.constant 0 : index
    %97 = vector.load %arg11[%96, %c0_58, %c0_59] : memref<8x16x512xf32, #tpu.memory_space<vmem>>, vector<1x16x512xf32>
    %98 = vector.shape_cast %97 : vector<1x16x512xf32> to vector<16x512xf32>
    %c0_60 = arith.constant 0 : index
    %c0_61 = arith.constant 0 : index
    %99 = vector.load %arg12[%c0_60, %c0_61] : memref<16x128xf32, #tpu.memory_space<vmem>>, vector<16x128xf32>
    %100 = arith.truncf %99 : vector<16x128xf32> to vector<16x128xbf16>
    %c0_62 = arith.constant 0 : index
    %c0_63 = arith.constant 0 : index
    %c0_64 = arith.constant 0 : index
    %101 = vector.load %arg8[%c0_62, %c0_63, %c0_64] : memref<1x128x512xbf16, #tpu.memory_space<vmem>>, vector<1x128x512xbf16>
    %102 = vector.shape_cast %101 : vector<1x128x512xbf16> to vector<128x512xbf16>
    %cst_65 = arith.constant dense<0.000000e+00> : vector<16x512xf32>
    %103 = tpu.matmul %100, %102, %cst_65 {dimension_numbers = #tpu.dot_dimension_numbers<[1], [0], [0], [1], [0, 0, 1, 1], [], []>} : vector<16x128xbf16>, vector<128x512xbf16>, vector<16x512xf32> -> vector<16x512xf32>
    %104 = arith.addf %98, %103 : vector<16x512xf32>
    %105 = vector.extract_strided_slice %104 {offsets = [0, 0], sizes = [16, 384], strides = [1, 1]} : vector<16x512xf32> to vector<16x384xf32>
    %106 = arith.negf %105 : vector<16x384xf32>
    %107 = math.exp %106 : vector<16x384xf32>
    %cst_66 = arith.constant 1.000000e+00 : f32
    %108 = vector.broadcast %cst_66 : f32 to vector<16x384xf32>
    %109 = arith.addf %108, %107 : vector<16x384xf32>
    %110 = arith.divf %108, %109 : vector<16x384xf32>
    %111 = vector.extract_strided_slice %110 {offsets = [0, 0], sizes = [16, 128], strides = [1, 1]} : vector<16x384xf32> to vector<16x128xf32>
    %112 = vector.extract_strided_slice %110 {offsets = [0, 128], sizes = [16, 128], strides = [1, 1]} : vector<16x384xf32> to vector<16x128xf32>
    %113 = vector.extract_strided_slice %110 {offsets = [0, 256], sizes = [16, 128], strides = [1, 1]} : vector<16x384xf32> to vector<16x128xf32>
    %114 = vector.extract_strided_slice %104 {offsets = [0, 384], sizes = [16, 128], strides = [1, 1]} : vector<16x512xf32> to vector<16x128xf32>
    %115 = math.tanh %114 : vector<16x128xf32>
    %c0_67 = arith.constant 0 : index
    %c0_68 = arith.constant 0 : index
    %116 = vector.load %arg13[%c0_67, %c0_68] : memref<16x128xf32, #tpu.memory_space<vmem>>, vector<16x128xf32>
    %117 = arith.mulf %112, %116 : vector<16x128xf32>
    %118 = arith.mulf %111, %115 : vector<16x128xf32>
    %119 = arith.addf %117, %118 : vector<16x128xf32>
    %120 = math.tanh %119 : vector<16x128xf32>
    %121 = arith.mulf %113, %120 : vector<16x128xf32>
    %122 = vector.broadcast %95 : i32 to vector<16x1xi32>
    %123 = arith.cmpi sgt, %28, %122 : vector<16x1xi32>
    %c0_69 = arith.constant 0 : index
    %c0_70 = arith.constant 0 : index
    %124 = vector.load %arg12[%c0_69, %c0_70] : memref<16x128xf32, #tpu.memory_space<vmem>>, vector<16x128xf32>
    %125 = vector.shape_cast %123 : vector<16x1xi1> to vector<16x1xi1>
    %126 = vector.broadcast %125 : vector<16x1xi1> to vector<16x128xi1>
    %127 = arith.select %126, %121, %124 : vector<16x128xi1>, vector<16x128xf32>
    %c0_71 = arith.constant 0 : index
    %c0_72 = arith.constant 0 : index
    %128 = vector.load %arg12[%c0_71, %c0_72] : memref<16x128xf32, #tpu.memory_space<vmem>>, vector<16x128xf32>
    tpu.vector_store %arg12[%c0_71, %c0_72], %127 {strides = array<i32>} : memref<16x128xf32, #tpu.memory_space<vmem>>, vector<16x128xf32>,
    %c0_73 = arith.constant 0 : index
    %c0_74 = arith.constant 0 : index
    %129 = vector.load %arg13[%c0_73, %c0_74] : memref<16x128xf32, #tpu.memory_space<vmem>>, vector<16x128xf32>
    %130 = vector.shape_cast %123 : vector<16x1xi1> to vector<16x1xi1>
    %131 = vector.broadcast %130 : vector<16x1xi1> to vector<16x128xi1>
    %132 = arith.select %131, %119, %129 : vector<16x128xi1>, vector<16x128xf32>
    %c0_75 = arith.constant 0 : index
    %c0_76 = arith.constant 0 : index
    %133 = vector.load %arg13[%c0_75, %c0_76] : memref<16x128xf32, #tpu.memory_space<vmem>>, vector<16x128xf32>
    tpu.vector_store %arg13[%c0_75, %c0_76], %132 {strides = array<i32>} : memref<16x128xf32, #tpu.memory_space<vmem>>, vector<16x128xf32>,
    %cst_77 = arith.constant 0.000000e+00 : f32
    %134 = vector.shape_cast %123 : vector<16x1xi1> to vector<16x1xi1>
    %135 = vector.broadcast %134 : vector<16x1xi1> to vector<16x128xi1>
    %136 = vector.broadcast %cst_77 : f32 to vector<16x128xf32>
    %137 = arith.select %135, %121, %136 : vector<16x128xi1>, vector<16x128xf32>
    %138 = arith.truncf %137 : vector<16x128xf32> to vector<16x128xbf16>
    %139 = vector.broadcast %95 : i32 to vector<16x1xi32>
    %140 = arith.cmpi eq, %30, %139 : vector<16x1xi32>
    %c0_78 = arith.constant 0 : index
    %c0_79 = arith.constant 0 : index
    %c0_80 = arith.constant 0 : index
    %141 = vector.load %arg10[%c0_78, %c0_79, %c0_80] : memref<1x16x128xbf16, #tpu.memory_space<vmem>>, vector<1x16x128xbf16>
    %142 = vector.shape_cast %141 : vector<1x16x128xbf16> to vector<16x128xbf16>
    %143 = vector.shape_cast %140 : vector<16x1xi1> to vector<16x1xi1>
    %144 = vector.broadcast %143 : vector<16x1xi1> to vector<16x128xi1>
    %145 = arith.select %144, %138, %142 : vector<16x128xi1>, vector<16x128xbf16>
    %c0_81 = arith.constant 0 : index
    %c0_82 = arith.constant 0 : index
    %c0_83 = arith.constant 0 : index
    %146 = vector.load %arg10[%c0_81, %c0_82, %c0_83] : memref<1x16x128xbf16, #tpu.memory_space<vmem>>, vector<1x16x128xbf16>
    %147 = vector.shape_cast %146 : vector<1x16x128xbf16> to vector<16x128xbf16>
    %148 = vector.shape_cast %145 : vector<16x128xbf16> to vector<1x16x128xbf16>
    tpu.vector_store %arg10[%c0_81, %c0_82, %c0_83], %148 {strides = array<i32>} : memref<1x16x128xbf16, #tpu.memory_space<vmem>>, vector<1x16x128xbf16>,
    %c2_i32 = arith.constant 2 : i32
    %c1_i32_84 = arith.constant 1 : i32
    %149 = arith.subi %c1_i32_84, %arg0 : i32
    %150 = arith.muli %149, %c2_i32 : i32
    %c7_i32_85 = arith.constant 7 : i32
    %151 = arith.subi %c7_i32_85, %c2_i32 : i32
    %152 = arith.muli %arg0, %151 : i32
    %153 = arith.addi %150, %152 : i32
    %154 = arith.addi %27, %153 : i32
    %155 = arith.index_cast %153 : i32 to index
    %c0_86 = arith.constant 0 : index
    %c0_87 = arith.constant 0 : index
    %156 = vector.load %arg11[%155, %c0_86, %c0_87] : memref<8x16x512xf32, #tpu.memory_space<vmem>>, vector<1x16x512xf32>
    %157 = vector.shape_cast %156 : vector<1x16x512xf32> to vector<16x512xf32>
    %c0_88 = arith.constant 0 : index
    %c0_89 = arith.constant 0 : index
    %158 = vector.load %arg12[%c0_88, %c0_89] : memref<16x128xf32, #tpu.memory_space<vmem>>, vector<16x128xf32>
    %159 = arith.truncf %158 : vector<16x128xf32> to vector<16x128xbf16>
    %c0_90 = arith.constant 0 : index
    %c0_91 = arith.constant 0 : index
    %c0_92 = arith.constant 0 : index
    %160 = vector.load %arg8[%c0_90, %c0_91, %c0_92] : memref<1x128x512xbf16, #tpu.memory_space<vmem>>, vector<1x128x512xbf16>
    %161 = vector.shape_cast %160 : vector<1x128x512xbf16> to vector<128x512xbf16>
    %cst_93 = arith.constant dense<0.000000e+00> : vector<16x512xf32>
    %162 = tpu.matmul %159, %161, %cst_93 {dimension_numbers = #tpu.dot_dimension_numbers<[1], [0], [0], [1], [0, 0, 1, 1], [], []>} : vector<16x128xbf16>, vector<128x512xbf16>, vector<16x512xf32> -> vector<16x512xf32>
    %163 = arith.addf %157, %162 : vector<16x512xf32>
    %164 = vector.extract_strided_slice %163 {offsets = [0, 0], sizes = [16, 384], strides = [1, 1]} : vector<16x512xf32> to vector<16x384xf32>
    %165 = arith.negf %164 : vector<16x384xf32>
    %166 = math.exp %165 : vector<16x384xf32>
    %cst_94 = arith.constant 1.000000e+00 : f32
    %167 = vector.broadcast %cst_94 : f32 to vector<16x384xf32>
    %168 = arith.addf %167, %166 : vector<16x384xf32>
    %169 = arith.divf %167, %168 : vector<16x384xf32>
    %170 = vector.extract_strided_slice %169 {offsets = [0, 0], sizes = [16, 128], strides = [1, 1]} : vector<16x384xf32> to vector<16x128xf32>
    %171 = vector.extract_strided_slice %169 {offsets = [0, 128], sizes = [16, 128], strides = [1, 1]} : vector<16x384xf32> to vector<16x128xf32>
    %172 = vector.extract_strided_slice %169 {offsets = [0, 256], sizes = [16, 128], strides = [1, 1]} : vector<16x384xf32> to vector<16x128xf32>
    %173 = vector.extract_strided_slice %163 {offsets = [0, 384], sizes = [16, 128], strides = [1, 1]} : vector<16x512xf32> to vector<16x128xf32>
    %174 = math.tanh %173 : vector<16x128xf32>
    %c0_95 = arith.constant 0 : index
    %c0_96 = arith.constant 0 : index
    %175 = vector.load %arg13[%c0_95, %c0_96] : memref<16x128xf32, #tpu.memory_space<vmem>>, vector<16x128xf32>
    %176 = arith.mulf %171, %175 : vector<16x128xf32>
    %177 = arith.mulf %170, %174 : vector<16x128xf32>
    %178 = arith.addf %176, %177 : vector<16x128xf32>
    %179 = math.tanh %178 : vector<16x128xf32>
    %180 = arith.mulf %172, %179 : vector<16x128xf32>
    %181 = vector.broadcast %154 : i32 to vector<16x1xi32>
    %182 = arith.cmpi sgt, %28, %181 : vector<16x1xi32>
    %c0_97 = arith.constant 0 : index
    %c0_98 = arith.constant 0 : index
    %183 = vector.load %arg12[%c0_97, %c0_98] : memref<16x128xf32, #tpu.memory_space<vmem>>, vector<16x128xf32>
    %184 = vector.shape_cast %182 : vector<16x1xi1> to vector<16x1xi1>
    %185 = vector.broadcast %184 : vector<16x1xi1> to vector<16x128xi1>
    %186 = arith.select %185, %180, %183 : vector<16x128xi1>, vector<16x128xf32>
    %c0_99 = arith.constant 0 : index
    %c0_100 = arith.constant 0 : index
    %187 = vector.load %arg12[%c0_99, %c0_100] : memref<16x128xf32, #tpu.memory_space<vmem>>, vector<16x128xf32>
    tpu.vector_store %arg12[%c0_99, %c0_100], %186 {strides = array<i32>} : memref<16x128xf32, #tpu.memory_space<vmem>>, vector<16x128xf32>,
    %c0_101 = arith.constant 0 : index
    %c0_102 = arith.constant 0 : index
    %188 = vector.load %arg13[%c0_101, %c0_102] : memref<16x128xf32, #tpu.memory_space<vmem>>, vector<16x128xf32>
    %189 = vector.shape_cast %182 : vector<16x1xi1> to vector<16x1xi1>
    %190 = vector.broadcast %189 : vector<16x1xi1> to vector<16x128xi1>
    %191 = arith.select %190, %178, %188 : vector<16x128xi1>, vector<16x128xf32>
    %c0_103 = arith.constant 0 : index
    %c0_104 = arith.constant 0 : index
    %192 = vector.load %arg13[%c0_103, %c0_104] : memref<16x128xf32, #tpu.memory_space<vmem>>, vector<16x128xf32>
    tpu.vector_store %arg13[%c0_103, %c0_104], %191 {strides = array<i32>} : memref<16x128xf32, #tpu.memory_space<vmem>>, vector<16x128xf32>,
    %cst_105 = arith.constant 0.000000e+00 : f32
    %193 = vector.shape_cast %182 : vector<16x1xi1> to vector<16x1xi1>
    %194 = vector.broadcast %193 : vector<16x1xi1> to vector<16x128xi1>
    %195 = vector.broadcast %cst_105 : f32 to vector<16x128xf32>
    %196 = arith.select %194, %180, %195 : vector<16x128xi1>, vector<16x128xf32>
    %197 = arith.truncf %196 : vector<16x128xf32> to vector<16x128xbf16>
    %198 = vector.broadcast %154 : i32 to vector<16x1xi32>
    %199 = arith.cmpi eq, %30, %198 : vector<16x1xi32>
    %c0_106 = arith.constant 0 : index
    %c0_107 = arith.constant 0 : index
    %c0_108 = arith.constant 0 : index
    %200 = vector.load %arg10[%c0_106, %c0_107, %c0_108] : memref<1x16x128xbf16, #tpu.memory_space<vmem>>, vector<1x16x128xbf16>
    %201 = vector.shape_cast %200 : vector<1x16x128xbf16> to vector<16x128xbf16>
    %202 = vector.shape_cast %199 : vector<16x1xi1> to vector<16x1xi1>
    %203 = vector.broadcast %202 : vector<16x1xi1> to vector<16x128xi1>
    %204 = arith.select %203, %197, %201 : vector<16x128xi1>, vector<16x128xbf16>
    %c0_109 = arith.constant 0 : index
    %c0_110 = arith.constant 0 : index
    %c0_111 = arith.constant 0 : index
    %205 = vector.load %arg10[%c0_109, %c0_110, %c0_111] : memref<1x16x128xbf16, #tpu.memory_space<vmem>>, vector<1x16x128xbf16>
    %206 = vector.shape_cast %205 : vector<1x16x128xbf16> to vector<16x128xbf16>
    %207 = vector.shape_cast %204 : vector<16x128xbf16> to vector<1x16x128xbf16>
    tpu.vector_store %arg10[%c0_109, %c0_110, %c0_111], %207 {strides = array<i32>} : memref<1x16x128xbf16, #tpu.memory_space<vmem>>, vector<1x16x128xbf16>,
    %c3_i32 = arith.constant 3 : i32
    %c1_i32_112 = arith.constant 1 : i32
    %208 = arith.subi %c1_i32_112, %arg0 : i32
    %209 = arith.muli %208, %c3_i32 : i32
    %c7_i32_113 = arith.constant 7 : i32
    %210 = arith.subi %c7_i32_113, %c3_i32 : i32
    %211 = arith.muli %arg0, %210 : i32
    %212 = arith.addi %209, %211 : i32
    %213 = arith.addi %27, %212 : i32
    %214 = arith.index_cast %212 : i32 to index
    %c0_114 = arith.constant 0 : index
    %c0_115 = arith.constant 0 : index
    %215 = vector.load %arg11[%214, %c0_114, %c0_115] : memref<8x16x512xf32, #tpu.memory_space<vmem>>, vector<1x16x512xf32>
    %216 = vector.shape_cast %215 : vector<1x16x512xf32> to vector<16x512xf32>
    %c0_116 = arith.constant 0 : index
    %c0_117 = arith.constant 0 : index
    %217 = vector.load %arg12[%c0_116, %c0_117] : memref<16x128xf32, #tpu.memory_space<vmem>>, vector<16x128xf32>
    %218 = arith.truncf %217 : vector<16x128xf32> to vector<16x128xbf16>
    %c0_118 = arith.constant 0 : index
    %c0_119 = arith.constant 0 : index
    %c0_120 = arith.constant 0 : index
    %219 = vector.load %arg8[%c0_118, %c0_119, %c0_120] : memref<1x128x512xbf16, #tpu.memory_space<vmem>>, vector<1x128x512xbf16>
    %220 = vector.shape_cast %219 : vector<1x128x512xbf16> to vector<128x512xbf16>
    %cst_121 = arith.constant dense<0.000000e+00> : vector<16x512xf32>
    %221 = tpu.matmul %218, %220, %cst_121 {dimension_numbers = #tpu.dot_dimension_numbers<[1], [0], [0], [1], [0, 0, 1, 1], [], []>} : vector<16x128xbf16>, vector<128x512xbf16>, vector<16x512xf32> -> vector<16x512xf32>
    %222 = arith.addf %216, %221 : vector<16x512xf32>
    %223 = vector.extract_strided_slice %222 {offsets = [0, 0], sizes = [16, 384], strides = [1, 1]} : vector<16x512xf32> to vector<16x384xf32>
    %224 = arith.negf %223 : vector<16x384xf32>
    %225 = math.exp %224 : vector<16x384xf32>
    %cst_122 = arith.constant 1.000000e+00 : f32
    %226 = vector.broadcast %cst_122 : f32 to vector<16x384xf32>
    %227 = arith.addf %226, %225 : vector<16x384xf32>
    %228 = arith.divf %226, %227 : vector<16x384xf32>
    %229 = vector.extract_strided_slice %228 {offsets = [0, 0], sizes = [16, 128], strides = [1, 1]} : vector<16x384xf32> to vector<16x128xf32>
    %230 = vector.extract_strided_slice %228 {offsets = [0, 128], sizes = [16, 128], strides = [1, 1]} : vector<16x384xf32> to vector<16x128xf32>
    %231 = vector.extract_strided_slice %228 {offsets = [0, 256], sizes = [16, 128], strides = [1, 1]} : vector<16x384xf32> to vector<16x128xf32>
    %232 = vector.extract_strided_slice %222 {offsets = [0, 384], sizes = [16, 128], strides = [1, 1]} : vector<16x512xf32> to vector<16x128xf32>
    %233 = math.tanh %232 : vector<16x128xf32>
    %c0_123 = arith.constant 0 : index
    %c0_124 = arith.constant 0 : index
    %234 = vector.load %arg13[%c0_123, %c0_124] : memref<16x128xf32, #tpu.memory_space<vmem>>, vector<16x128xf32>
    %235 = arith.mulf %230, %234 : vector<16x128xf32>
    %236 = arith.mulf %229, %233 : vector<16x128xf32>
    %237 = arith.addf %235, %236 : vector<16x128xf32>
    %238 = math.tanh %237 : vector<16x128xf32>
    %239 = arith.mulf %231, %238 : vector<16x128xf32>
    %240 = vector.broadcast %213 : i32 to vector<16x1xi32>
    %241 = arith.cmpi sgt, %28, %240 : vector<16x1xi32>
    %c0_125 = arith.constant 0 : index
    %c0_126 = arith.constant 0 : index
    %242 = vector.load %arg12[%c0_125, %c0_126] : memref<16x128xf32, #tpu.memory_space<vmem>>, vector<16x128xf32>
    %243 = vector.shape_cast %241 : vector<16x1xi1> to vector<16x1xi1>
    %244 = vector.broadcast %243 : vector<16x1xi1> to vector<16x128xi1>
    %245 = arith.select %244, %239, %242 : vector<16x128xi1>, vector<16x128xf32>
    %c0_127 = arith.constant 0 : index
    %c0_128 = arith.constant 0 : index
    %246 = vector.load %arg12[%c0_127, %c0_128] : memref<16x128xf32, #tpu.memory_space<vmem>>, vector<16x128xf32>
    tpu.vector_store %arg12[%c0_127, %c0_128], %245 {strides = array<i32>} : memref<16x128xf32, #tpu.memory_space<vmem>>, vector<16x128xf32>,
    %c0_129 = arith.constant 0 : index
    %c0_130 = arith.constant 0 : index
    %247 = vector.load %arg13[%c0_129, %c0_130] : memref<16x128xf32, #tpu.memory_space<vmem>>, vector<16x128xf32>
    %248 = vector.shape_cast %241 : vector<16x1xi1> to vector<16x1xi1>
    %249 = vector.broadcast %248 : vector<16x1xi1> to vector<16x128xi1>
    %250 = arith.select %249, %237, %247 : vector<16x128xi1>, vector<16x128xf32>
    %c0_131 = arith.constant 0 : index
    %c0_132 = arith.constant 0 : index
    %251 = vector.load %arg13[%c0_131, %c0_132] : memref<16x128xf32, #tpu.memory_space<vmem>>, vector<16x128xf32>
    tpu.vector_store %arg13[%c0_131, %c0_132], %250 {strides = array<i32>} : memref<16x128xf32, #tpu.memory_space<vmem>>, vector<16x128xf32>,
    %cst_133 = arith.constant 0.000000e+00 : f32
    %252 = vector.shape_cast %241 : vector<16x1xi1> to vector<16x1xi1>
    %253 = vector.broadcast %252 : vector<16x1xi1> to vector<16x128xi1>
    %254 = vector.broadcast %cst_133 : f32 to vector<16x128xf32>
    %255 = arith.select %253, %239, %254 : vector<16x128xi1>, vector<16x128xf32>
    %256 = arith.truncf %255 : vector<16x128xf32> to vector<16x128xbf16>
    %257 = vector.broadcast %213 : i32 to vector<16x1xi32>
    %258 = arith.cmpi eq, %30, %257 : vector<16x1xi32>
    %c0_134 = arith.constant 0 : index
    %c0_135 = arith.constant 0 : index
    %c0_136 = arith.constant 0 : index
    %259 = vector.load %arg10[%c0_134, %c0_135, %c0_136] : memref<1x16x128xbf16, #tpu.memory_space<vmem>>, vector<1x16x128xbf16>
    %260 = vector.shape_cast %259 : vector<1x16x128xbf16> to vector<16x128xbf16>
    %261 = vector.shape_cast %258 : vector<16x1xi1> to vector<16x1xi1>
    %262 = vector.broadcast %261 : vector<16x1xi1> to vector<16x128xi1>
    %263 = arith.select %262, %256, %260 : vector<16x128xi1>, vector<16x128xbf16>
    %c0_137 = arith.constant 0 : index
    %c0_138 = arith.constant 0 : index
    %c0_139 = arith.constant 0 : index
    %264 = vector.load %arg10[%c0_137, %c0_138, %c0_139] : memref<1x16x128xbf16, #tpu.memory_space<vmem>>, vector<1x16x128xbf16>
    %265 = vector.shape_cast %264 : vector<1x16x128xbf16> to vector<16x128xbf16>
    %266 = vector.shape_cast %263 : vector<16x128xbf16> to vector<1x16x128xbf16>
    tpu.vector_store %arg10[%c0_137, %c0_138, %c0_139], %266 {strides = array<i32>} : memref<1x16x128xbf16, #tpu.memory_space<vmem>>, vector<1x16x128xbf16>,
    %c4_i32 = arith.constant 4 : i32
    %c1_i32_140 = arith.constant 1 : i32
    %267 = arith.subi %c1_i32_140, %arg0 : i32
    %268 = arith.muli %267, %c4_i32 : i32
    %c7_i32_141 = arith.constant 7 : i32
    %269 = arith.subi %c7_i32_141, %c4_i32 : i32
    %270 = arith.muli %arg0, %269 : i32
    %271 = arith.addi %268, %270 : i32
    %272 = arith.addi %27, %271 : i32
    %273 = arith.index_cast %271 : i32 to index
    %c0_142 = arith.constant 0 : index
    %c0_143 = arith.constant 0 : index
    %274 = vector.load %arg11[%273, %c0_142, %c0_143] : memref<8x16x512xf32, #tpu.memory_space<vmem>>, vector<1x16x512xf32>
    %275 = vector.shape_cast %274 : vector<1x16x512xf32> to vector<16x512xf32>
    %c0_144 = arith.constant 0 : index
    %c0_145 = arith.constant 0 : index
    %276 = vector.load %arg12[%c0_144, %c0_145] : memref<16x128xf32, #tpu.memory_space<vmem>>, vector<16x128xf32>
    %277 = arith.truncf %276 : vector<16x128xf32> to vector<16x128xbf16>
    %c0_146 = arith.constant 0 : index
    %c0_147 = arith.constant 0 : index
    %c0_148 = arith.constant 0 : index
    %278 = vector.load %arg8[%c0_146, %c0_147, %c0_148] : memref<1x128x512xbf16, #tpu.memory_space<vmem>>, vector<1x128x512xbf16>
    %279 = vector.shape_cast %278 : vector<1x128x512xbf16> to vector<128x512xbf16>
    %cst_149 = arith.constant dense<0.000000e+00> : vector<16x512xf32>
    %280 = tpu.matmul %277, %279, %cst_149 {dimension_numbers = #tpu.dot_dimension_numbers<[1], [0], [0], [1], [0, 0, 1, 1], [], []>} : vector<16x128xbf16>, vector<128x512xbf16>, vector<16x512xf32> -> vector<16x512xf32>
    %281 = arith.addf %275, %280 : vector<16x512xf32>
    %282 = vector.extract_strided_slice %281 {offsets = [0, 0], sizes = [16, 384], strides = [1, 1]} : vector<16x512xf32> to vector<16x384xf32>
    %283 = arith.negf %282 : vector<16x384xf32>
    %284 = math.exp %283 : vector<16x384xf32>
    %cst_150 = arith.constant 1.000000e+00 : f32
    %285 = vector.broadcast %cst_150 : f32 to vector<16x384xf32>
    %286 = arith.addf %285, %284 : vector<16x384xf32>
    %287 = arith.divf %285, %286 : vector<16x384xf32>
    %288 = vector.extract_strided_slice %287 {offsets = [0, 0], sizes = [16, 128], strides = [1, 1]} : vector<16x384xf32> to vector<16x128xf32>
    %289 = vector.extract_strided_slice %287 {offsets = [0, 128], sizes = [16, 128], strides = [1, 1]} : vector<16x384xf32> to vector<16x128xf32>
    %290 = vector.extract_strided_slice %287 {offsets = [0, 256], sizes = [16, 128], strides = [1, 1]} : vector<16x384xf32> to vector<16x128xf32>
    %291 = vector.extract_strided_slice %281 {offsets = [0, 384], sizes = [16, 128], strides = [1, 1]} : vector<16x512xf32> to vector<16x128xf32>
    %292 = math.tanh %291 : vector<16x128xf32>
    %c0_151 = arith.constant 0 : index
    %c0_152 = arith.constant 0 : index
    %293 = vector.load %arg13[%c0_151, %c0_152] : memref<16x128xf32, #tpu.memory_space<vmem>>, vector<16x128xf32>
    %294 = arith.mulf %289, %293 : vector<16x128xf32>
    %295 = arith.mulf %288, %292 : vector<16x128xf32>
    %296 = arith.addf %294, %295 : vector<16x128xf32>
    %297 = math.tanh %296 : vector<16x128xf32>
    %298 = arith.mulf %290, %297 : vector<16x128xf32>
    %299 = vector.broadcast %272 : i32 to vector<16x1xi32>
    %300 = arith.cmpi sgt, %28, %299 : vector<16x1xi32>
    %c0_153 = arith.constant 0 : index
    %c0_154 = arith.constant 0 : index
    %301 = vector.load %arg12[%c0_153, %c0_154] : memref<16x128xf32, #tpu.memory_space<vmem>>, vector<16x128xf32>
    %302 = vector.shape_cast %300 : vector<16x1xi1> to vector<16x1xi1>
    %303 = vector.broadcast %302 : vector<16x1xi1> to vector<16x128xi1>
    %304 = arith.select %303, %298, %301 : vector<16x128xi1>, vector<16x128xf32>
    %c0_155 = arith.constant 0 : index
    %c0_156 = arith.constant 0 : index
    %305 = vector.load %arg12[%c0_155, %c0_156] : memref<16x128xf32, #tpu.memory_space<vmem>>, vector<16x128xf32>
    tpu.vector_store %arg12[%c0_155, %c0_156], %304 {strides = array<i32>} : memref<16x128xf32, #tpu.memory_space<vmem>>, vector<16x128xf32>,
    %c0_157 = arith.constant 0 : index
    %c0_158 = arith.constant 0 : index
    %306 = vector.load %arg13[%c0_157, %c0_158] : memref<16x128xf32, #tpu.memory_space<vmem>>, vector<16x128xf32>
    %307 = vector.shape_cast %300 : vector<16x1xi1> to vector<16x1xi1>
    %308 = vector.broadcast %307 : vector<16x1xi1> to vector<16x128xi1>
    %309 = arith.select %308, %296, %306 : vector<16x128xi1>, vector<16x128xf32>
    %c0_159 = arith.constant 0 : index
    %c0_160 = arith.constant 0 : index
    %310 = vector.load %arg13[%c0_159, %c0_160] : memref<16x128xf32, #tpu.memory_space<vmem>>, vector<16x128xf32>
    tpu.vector_store %arg13[%c0_159, %c0_160], %309 {strides = array<i32>} : memref<16x128xf32, #tpu.memory_space<vmem>>, vector<16x128xf32>,
    %cst_161 = arith.constant 0.000000e+00 : f32
    %311 = vector.shape_cast %300 : vector<16x1xi1> to vector<16x1xi1>
    %312 = vector.broadcast %311 : vector<16x1xi1> to vector<16x128xi1>
    %313 = vector.broadcast %cst_161 : f32 to vector<16x128xf32>
    %314 = arith.select %312, %298, %313 : vector<16x128xi1>, vector<16x128xf32>
    %315 = arith.truncf %314 : vector<16x128xf32> to vector<16x128xbf16>
    %316 = vector.broadcast %272 : i32 to vector<16x1xi32>
    %317 = arith.cmpi eq, %30, %316 : vector<16x1xi32>
    %c0_162 = arith.constant 0 : index
    %c0_163 = arith.constant 0 : index
    %c0_164 = arith.constant 0 : index
    %318 = vector.load %arg10[%c0_162, %c0_163, %c0_164] : memref<1x16x128xbf16, #tpu.memory_space<vmem>>, vector<1x16x128xbf16>
    %319 = vector.shape_cast %318 : vector<1x16x128xbf16> to vector<16x128xbf16>
    %320 = vector.shape_cast %317 : vector<16x1xi1> to vector<16x1xi1>
    %321 = vector.broadcast %320 : vector<16x1xi1> to vector<16x128xi1>
    %322 = arith.select %321, %315, %319 : vector<16x128xi1>, vector<16x128xbf16>
    %c0_165 = arith.constant 0 : index
    %c0_166 = arith.constant 0 : index
    %c0_167 = arith.constant 0 : index
    %323 = vector.load %arg10[%c0_165, %c0_166, %c0_167] : memref<1x16x128xbf16, #tpu.memory_space<vmem>>, vector<1x16x128xbf16>
    %324 = vector.shape_cast %323 : vector<1x16x128xbf16> to vector<16x128xbf16>
    %325 = vector.shape_cast %322 : vector<16x128xbf16> to vector<1x16x128xbf16>
    tpu.vector_store %arg10[%c0_165, %c0_166, %c0_167], %325 {strides = array<i32>} : memref<1x16x128xbf16, #tpu.memory_space<vmem>>, vector<1x16x128xbf16>,
    %c5_i32 = arith.constant 5 : i32
    %c1_i32_168 = arith.constant 1 : i32
    %326 = arith.subi %c1_i32_168, %arg0 : i32
    %327 = arith.muli %326, %c5_i32 : i32
    %c7_i32_169 = arith.constant 7 : i32
    %328 = arith.subi %c7_i32_169, %c5_i32 : i32
    %329 = arith.muli %arg0, %328 : i32
    %330 = arith.addi %327, %329 : i32
    %331 = arith.addi %27, %330 : i32
    %332 = arith.index_cast %330 : i32 to index
    %c0_170 = arith.constant 0 : index
    %c0_171 = arith.constant 0 : index
    %333 = vector.load %arg11[%332, %c0_170, %c0_171] : memref<8x16x512xf32, #tpu.memory_space<vmem>>, vector<1x16x512xf32>
    %334 = vector.shape_cast %333 : vector<1x16x512xf32> to vector<16x512xf32>
    %c0_172 = arith.constant 0 : index
    %c0_173 = arith.constant 0 : index
    %335 = vector.load %arg12[%c0_172, %c0_173] : memref<16x128xf32, #tpu.memory_space<vmem>>, vector<16x128xf32>
    %336 = arith.truncf %335 : vector<16x128xf32> to vector<16x128xbf16>
    %c0_174 = arith.constant 0 : index
    %c0_175 = arith.constant 0 : index
    %c0_176 = arith.constant 0 : index
    %337 = vector.load %arg8[%c0_174, %c0_175, %c0_176] : memref<1x128x512xbf16, #tpu.memory_space<vmem>>, vector<1x128x512xbf16>
    %338 = vector.shape_cast %337 : vector<1x128x512xbf16> to vector<128x512xbf16>
    %cst_177 = arith.constant dense<0.000000e+00> : vector<16x512xf32>
    %339 = tpu.matmul %336, %338, %cst_177 {dimension_numbers = #tpu.dot_dimension_numbers<[1], [0], [0], [1], [0, 0, 1, 1], [], []>} : vector<16x128xbf16>, vector<128x512xbf16>, vector<16x512xf32> -> vector<16x512xf32>
    %340 = arith.addf %334, %339 : vector<16x512xf32>
    %341 = vector.extract_strided_slice %340 {offsets = [0, 0], sizes = [16, 384], strides = [1, 1]} : vector<16x512xf32> to vector<16x384xf32>
    %342 = arith.negf %341 : vector<16x384xf32>
    %343 = math.exp %342 : vector<16x384xf32>
    %cst_178 = arith.constant 1.000000e+00 : f32
    %344 = vector.broadcast %cst_178 : f32 to vector<16x384xf32>
    %345 = arith.addf %344, %343 : vector<16x384xf32>
    %346 = arith.divf %344, %345 : vector<16x384xf32>
    %347 = vector.extract_strided_slice %346 {offsets = [0, 0], sizes = [16, 128], strides = [1, 1]} : vector<16x384xf32> to vector<16x128xf32>
    %348 = vector.extract_strided_slice %346 {offsets = [0, 128], sizes = [16, 128], strides = [1, 1]} : vector<16x384xf32> to vector<16x128xf32>
    %349 = vector.extract_strided_slice %346 {offsets = [0, 256], sizes = [16, 128], strides = [1, 1]} : vector<16x384xf32> to vector<16x128xf32>
    %350 = vector.extract_strided_slice %340 {offsets = [0, 384], sizes = [16, 128], strides = [1, 1]} : vector<16x512xf32> to vector<16x128xf32>
    %351 = math.tanh %350 : vector<16x128xf32>
    %c0_179 = arith.constant 0 : index
    %c0_180 = arith.constant 0 : index
    %352 = vector.load %arg13[%c0_179, %c0_180] : memref<16x128xf32, #tpu.memory_space<vmem>>, vector<16x128xf32>
    %353 = arith.mulf %348, %352 : vector<16x128xf32>
    %354 = arith.mulf %347, %351 : vector<16x128xf32>
    %355 = arith.addf %353, %354 : vector<16x128xf32>
    %356 = math.tanh %355 : vector<16x128xf32>
    %357 = arith.mulf %349, %356 : vector<16x128xf32>
    %358 = vector.broadcast %331 : i32 to vector<16x1xi32>
    %359 = arith.cmpi sgt, %28, %358 : vector<16x1xi32>
    %c0_181 = arith.constant 0 : index
    %c0_182 = arith.constant 0 : index
    %360 = vector.load %arg12[%c0_181, %c0_182] : memref<16x128xf32, #tpu.memory_space<vmem>>, vector<16x128xf32>
    %361 = vector.shape_cast %359 : vector<16x1xi1> to vector<16x1xi1>
    %362 = vector.broadcast %361 : vector<16x1xi1> to vector<16x128xi1>
    %363 = arith.select %362, %357, %360 : vector<16x128xi1>, vector<16x128xf32>
    %c0_183 = arith.constant 0 : index
    %c0_184 = arith.constant 0 : index
    %364 = vector.load %arg12[%c0_183, %c0_184] : memref<16x128xf32, #tpu.memory_space<vmem>>, vector<16x128xf32>
    tpu.vector_store %arg12[%c0_183, %c0_184], %363 {strides = array<i32>} : memref<16x128xf32, #tpu.memory_space<vmem>>, vector<16x128xf32>,
    %c0_185 = arith.constant 0 : index
    %c0_186 = arith.constant 0 : index
    %365 = vector.load %arg13[%c0_185, %c0_186] : memref<16x128xf32, #tpu.memory_space<vmem>>, vector<16x128xf32>
    %366 = vector.shape_cast %359 : vector<16x1xi1> to vector<16x1xi1>
    %367 = vector.broadcast %366 : vector<16x1xi1> to vector<16x128xi1>
    %368 = arith.select %367, %355, %365 : vector<16x128xi1>, vector<16x128xf32>
    %c0_187 = arith.constant 0 : index
    %c0_188 = arith.constant 0 : index
    %369 = vector.load %arg13[%c0_187, %c0_188] : memref<16x128xf32, #tpu.memory_space<vmem>>, vector<16x128xf32>
    tpu.vector_store %arg13[%c0_187, %c0_188], %368 {strides = array<i32>} : memref<16x128xf32, #tpu.memory_space<vmem>>, vector<16x128xf32>,
    %cst_189 = arith.constant 0.000000e+00 : f32
    %370 = vector.shape_cast %359 : vector<16x1xi1> to vector<16x1xi1>
    %371 = vector.broadcast %370 : vector<16x1xi1> to vector<16x128xi1>
    %372 = vector.broadcast %cst_189 : f32 to vector<16x128xf32>
    %373 = arith.select %371, %357, %372 : vector<16x128xi1>, vector<16x128xf32>
    %374 = arith.truncf %373 : vector<16x128xf32> to vector<16x128xbf16>
    %375 = vector.broadcast %331 : i32 to vector<16x1xi32>
    %376 = arith.cmpi eq, %30, %375 : vector<16x1xi32>
    %c0_190 = arith.constant 0 : index
    %c0_191 = arith.constant 0 : index
    %c0_192 = arith.constant 0 : index
    %377 = vector.load %arg10[%c0_190, %c0_191, %c0_192] : memref<1x16x128xbf16, #tpu.memory_space<vmem>>, vector<1x16x128xbf16>
    %378 = vector.shape_cast %377 : vector<1x16x128xbf16> to vector<16x128xbf16>
    %379 = vector.shape_cast %376 : vector<16x1xi1> to vector<16x1xi1>
    %380 = vector.broadcast %379 : vector<16x1xi1> to vector<16x128xi1>
    %381 = arith.select %380, %374, %378 : vector<16x128xi1>, vector<16x128xbf16>
    %c0_193 = arith.constant 0 : index
    %c0_194 = arith.constant 0 : index
    %c0_195 = arith.constant 0 : index
    %382 = vector.load %arg10[%c0_193, %c0_194, %c0_195] : memref<1x16x128xbf16, #tpu.memory_space<vmem>>, vector<1x16x128xbf16>
    %383 = vector.shape_cast %382 : vector<1x16x128xbf16> to vector<16x128xbf16>
    %384 = vector.shape_cast %381 : vector<16x128xbf16> to vector<1x16x128xbf16>
    tpu.vector_store %arg10[%c0_193, %c0_194, %c0_195], %384 {strides = array<i32>} : memref<1x16x128xbf16, #tpu.memory_space<vmem>>, vector<1x16x128xbf16>,
    %c6_i32 = arith.constant 6 : i32
    %c1_i32_196 = arith.constant 1 : i32
    %385 = arith.subi %c1_i32_196, %arg0 : i32
    %386 = arith.muli %385, %c6_i32 : i32
    %c7_i32_197 = arith.constant 7 : i32
    %387 = arith.subi %c7_i32_197, %c6_i32 : i32
    %388 = arith.muli %arg0, %387 : i32
    %389 = arith.addi %386, %388 : i32
    %390 = arith.addi %27, %389 : i32
    %391 = arith.index_cast %389 : i32 to index
    %c0_198 = arith.constant 0 : index
    %c0_199 = arith.constant 0 : index
    %392 = vector.load %arg11[%391, %c0_198, %c0_199] : memref<8x16x512xf32, #tpu.memory_space<vmem>>, vector<1x16x512xf32>
    %393 = vector.shape_cast %392 : vector<1x16x512xf32> to vector<16x512xf32>
    %c0_200 = arith.constant 0 : index
    %c0_201 = arith.constant 0 : index
    %394 = vector.load %arg12[%c0_200, %c0_201] : memref<16x128xf32, #tpu.memory_space<vmem>>, vector<16x128xf32>
    %395 = arith.truncf %394 : vector<16x128xf32> to vector<16x128xbf16>
    %c0_202 = arith.constant 0 : index
    %c0_203 = arith.constant 0 : index
    %c0_204 = arith.constant 0 : index
    %396 = vector.load %arg8[%c0_202, %c0_203, %c0_204] : memref<1x128x512xbf16, #tpu.memory_space<vmem>>, vector<1x128x512xbf16>
    %397 = vector.shape_cast %396 : vector<1x128x512xbf16> to vector<128x512xbf16>
    %cst_205 = arith.constant dense<0.000000e+00> : vector<16x512xf32>
    %398 = tpu.matmul %395, %397, %cst_205 {dimension_numbers = #tpu.dot_dimension_numbers<[1], [0], [0], [1], [0, 0, 1, 1], [], []>} : vector<16x128xbf16>, vector<128x512xbf16>, vector<16x512xf32> -> vector<16x512xf32>
    %399 = arith.addf %393, %398 : vector<16x512xf32>
    %400 = vector.extract_strided_slice %399 {offsets = [0, 0], sizes = [16, 384], strides = [1, 1]} : vector<16x512xf32> to vector<16x384xf32>
    %401 = arith.negf %400 : vector<16x384xf32>
    %402 = math.exp %401 : vector<16x384xf32>
    %cst_206 = arith.constant 1.000000e+00 : f32
    %403 = vector.broadcast %cst_206 : f32 to vector<16x384xf32>
    %404 = arith.addf %403, %402 : vector<16x384xf32>
    %405 = arith.divf %403, %404 : vector<16x384xf32>
    %406 = vector.extract_strided_slice %405 {offsets = [0, 0], sizes = [16, 128], strides = [1, 1]} : vector<16x384xf32> to vector<16x128xf32>
    %407 = vector.extract_strided_slice %405 {offsets = [0, 128], sizes = [16, 128], strides = [1, 1]} : vector<16x384xf32> to vector<16x128xf32>
    %408 = vector.extract_strided_slice %405 {offsets = [0, 256], sizes = [16, 128], strides = [1, 1]} : vector<16x384xf32> to vector<16x128xf32>
    %409 = vector.extract_strided_slice %399 {offsets = [0, 384], sizes = [16, 128], strides = [1, 1]} : vector<16x512xf32> to vector<16x128xf32>
    %410 = math.tanh %409 : vector<16x128xf32>
    %c0_207 = arith.constant 0 : index
    %c0_208 = arith.constant 0 : index
    %411 = vector.load %arg13[%c0_207, %c0_208] : memref<16x128xf32, #tpu.memory_space<vmem>>, vector<16x128xf32>
    %412 = arith.mulf %407, %411 : vector<16x128xf32>
    %413 = arith.mulf %406, %410 : vector<16x128xf32>
    %414 = arith.addf %412, %413 : vector<16x128xf32>
    %415 = math.tanh %414 : vector<16x128xf32>
    %416 = arith.mulf %408, %415 : vector<16x128xf32>
    %417 = vector.broadcast %390 : i32 to vector<16x1xi32>
    %418 = arith.cmpi sgt, %28, %417 : vector<16x1xi32>
    %c0_209 = arith.constant 0 : index
    %c0_210 = arith.constant 0 : index
    %419 = vector.load %arg12[%c0_209, %c0_210] : memref<16x128xf32, #tpu.memory_space<vmem>>, vector<16x128xf32>
    %420 = vector.shape_cast %418 : vector<16x1xi1> to vector<16x1xi1>
    %421 = vector.broadcast %420 : vector<16x1xi1> to vector<16x128xi1>
    %422 = arith.select %421, %416, %419 : vector<16x128xi1>, vector<16x128xf32>
    %c0_211 = arith.constant 0 : index
    %c0_212 = arith.constant 0 : index
    %423 = vector.load %arg12[%c0_211, %c0_212] : memref<16x128xf32, #tpu.memory_space<vmem>>, vector<16x128xf32>
    tpu.vector_store %arg12[%c0_211, %c0_212], %422 {strides = array<i32>} : memref<16x128xf32, #tpu.memory_space<vmem>>, vector<16x128xf32>,
    %c0_213 = arith.constant 0 : index
    %c0_214 = arith.constant 0 : index
    %424 = vector.load %arg13[%c0_213, %c0_214] : memref<16x128xf32, #tpu.memory_space<vmem>>, vector<16x128xf32>
    %425 = vector.shape_cast %418 : vector<16x1xi1> to vector<16x1xi1>
    %426 = vector.broadcast %425 : vector<16x1xi1> to vector<16x128xi1>
    %427 = arith.select %426, %414, %424 : vector<16x128xi1>, vector<16x128xf32>
    %c0_215 = arith.constant 0 : index
    %c0_216 = arith.constant 0 : index
    %428 = vector.load %arg13[%c0_215, %c0_216] : memref<16x128xf32, #tpu.memory_space<vmem>>, vector<16x128xf32>
    tpu.vector_store %arg13[%c0_215, %c0_216], %427 {strides = array<i32>} : memref<16x128xf32, #tpu.memory_space<vmem>>, vector<16x128xf32>,
    %cst_217 = arith.constant 0.000000e+00 : f32
    %429 = vector.shape_cast %418 : vector<16x1xi1> to vector<16x1xi1>
    %430 = vector.broadcast %429 : vector<16x1xi1> to vector<16x128xi1>
    %431 = vector.broadcast %cst_217 : f32 to vector<16x128xf32>
    %432 = arith.select %430, %416, %431 : vector<16x128xi1>, vector<16x128xf32>
    %433 = arith.truncf %432 : vector<16x128xf32> to vector<16x128xbf16>
    %434 = vector.broadcast %390 : i32 to vector<16x1xi32>
    %435 = arith.cmpi eq, %30, %434 : vector<16x1xi32>
    %c0_218 = arith.constant 0 : index
    %c0_219 = arith.constant 0 : index
    %c0_220 = arith.constant 0 : index
    %436 = vector.load %arg10[%c0_218, %c0_219, %c0_220] : memref<1x16x128xbf16, #tpu.memory_space<vmem>>, vector<1x16x128xbf16>
    %437 = vector.shape_cast %436 : vector<1x16x128xbf16> to vector<16x128xbf16>
    %438 = vector.shape_cast %435 : vector<16x1xi1> to vector<16x1xi1>
    %439 = vector.broadcast %438 : vector<16x1xi1> to vector<16x128xi1>
    %440 = arith.select %439, %433, %437 : vector<16x128xi1>, vector<16x128xbf16>
    %c0_221 = arith.constant 0 : index
    %c0_222 = arith.constant 0 : index
    %c0_223 = arith.constant 0 : index
    %441 = vector.load %arg10[%c0_221, %c0_222, %c0_223] : memref<1x16x128xbf16, #tpu.memory_space<vmem>>, vector<1x16x128xbf16>
    %442 = vector.shape_cast %441 : vector<1x16x128xbf16> to vector<16x128xbf16>
    %443 = vector.shape_cast %440 : vector<16x128xbf16> to vector<1x16x128xbf16>
    tpu.vector_store %arg10[%c0_221, %c0_222, %c0_223], %443 {strides = array<i32>} : memref<1x16x128xbf16, #tpu.memory_space<vmem>>, vector<1x16x128xbf16>,
    %c7_i32_224 = arith.constant 7 : i32
    %c1_i32_225 = arith.constant 1 : i32
    %444 = arith.subi %c1_i32_225, %arg0 : i32
    %445 = arith.muli %444, %c7_i32_224 : i32
    %c7_i32_226 = arith.constant 7 : i32
    %446 = arith.subi %c7_i32_226, %c7_i32_224 : i32
    %447 = arith.muli %arg0, %446 : i32
    %448 = arith.addi %445, %447 : i32
    %449 = arith.addi %27, %448 : i32
    %450 = arith.index_cast %448 : i32 to index
    %c0_227 = arith.constant 0 : index
    %c0_228 = arith.constant 0 : index
    %451 = vector.load %arg11[%450, %c0_227, %c0_228] : memref<8x16x512xf32, #tpu.memory_space<vmem>>, vector<1x16x512xf32>
    %452 = vector.shape_cast %451 : vector<1x16x512xf32> to vector<16x512xf32>
    %c0_229 = arith.constant 0 : index
    %c0_230 = arith.constant 0 : index
    %453 = vector.load %arg12[%c0_229, %c0_230] : memref<16x128xf32, #tpu.memory_space<vmem>>, vector<16x128xf32>
    %454 = arith.truncf %453 : vector<16x128xf32> to vector<16x128xbf16>
    %c0_231 = arith.constant 0 : index
    %c0_232 = arith.constant 0 : index
    %c0_233 = arith.constant 0 : index
    %455 = vector.load %arg8[%c0_231, %c0_232, %c0_233] : memref<1x128x512xbf16, #tpu.memory_space<vmem>>, vector<1x128x512xbf16>
    %456 = vector.shape_cast %455 : vector<1x128x512xbf16> to vector<128x512xbf16>
    %cst_234 = arith.constant dense<0.000000e+00> : vector<16x512xf32>
    %457 = tpu.matmul %454, %456, %cst_234 {dimension_numbers = #tpu.dot_dimension_numbers<[1], [0], [0], [1], [0, 0, 1, 1], [], []>} : vector<16x128xbf16>, vector<128x512xbf16>, vector<16x512xf32> -> vector<16x512xf32>
    %458 = arith.addf %452, %457 : vector<16x512xf32>
    %459 = vector.extract_strided_slice %458 {offsets = [0, 0], sizes = [16, 384], strides = [1, 1]} : vector<16x512xf32> to vector<16x384xf32>
    %460 = arith.negf %459 : vector<16x384xf32>
    %461 = math.exp %460 : vector<16x384xf32>
    %cst_235 = arith.constant 1.000000e+00 : f32
    %462 = vector.broadcast %cst_235 : f32 to vector<16x384xf32>
    %463 = arith.addf %462, %461 : vector<16x384xf32>
    %464 = arith.divf %462, %463 : vector<16x384xf32>
    %465 = vector.extract_strided_slice %464 {offsets = [0, 0], sizes = [16, 128], strides = [1, 1]} : vector<16x384xf32> to vector<16x128xf32>
    %466 = vector.extract_strided_slice %464 {offsets = [0, 128], sizes = [16, 128], strides = [1, 1]} : vector<16x384xf32> to vector<16x128xf32>
    %467 = vector.extract_strided_slice %464 {offsets = [0, 256], sizes = [16, 128], strides = [1, 1]} : vector<16x384xf32> to vector<16x128xf32>
    %468 = vector.extract_strided_slice %458 {offsets = [0, 384], sizes = [16, 128], strides = [1, 1]} : vector<16x512xf32> to vector<16x128xf32>
    %469 = math.tanh %468 : vector<16x128xf32>
    %c0_236 = arith.constant 0 : index
    %c0_237 = arith.constant 0 : index
    %470 = vector.load %arg13[%c0_236, %c0_237] : memref<16x128xf32, #tpu.memory_space<vmem>>, vector<16x128xf32>
    %471 = arith.mulf %466, %470 : vector<16x128xf32>
    %472 = arith.mulf %465, %469 : vector<16x128xf32>
    %473 = arith.addf %471, %472 : vector<16x128xf32>
    %474 = math.tanh %473 : vector<16x128xf32>
    %475 = arith.mulf %467, %474 : vector<16x128xf32>
    %476 = vector.broadcast %449 : i32 to vector<16x1xi32>
    %477 = arith.cmpi sgt, %28, %476 : vector<16x1xi32>
    %c0_238 = arith.constant 0 : index
    %c0_239 = arith.constant 0 : index
    %478 = vector.load %arg12[%c0_238, %c0_239] : memref<16x128xf32, #tpu.memory_space<vmem>>, vector<16x128xf32>
    %479 = vector.shape_cast %477 : vector<16x1xi1> to vector<16x1xi1>
    %480 = vector.broadcast %479 : vector<16x1xi1> to vector<16x128xi1>
    %481 = arith.select %480, %475, %478 : vector<16x128xi1>, vector<16x128xf32>
    %c0_240 = arith.constant 0 : index
    %c0_241 = arith.constant 0 : index
    %482 = vector.load %arg12[%c0_240, %c0_241] : memref<16x128xf32, #tpu.memory_space<vmem>>, vector<16x128xf32>
    tpu.vector_store %arg12[%c0_240, %c0_241], %481 {strides = array<i32>} : memref<16x128xf32, #tpu.memory_space<vmem>>, vector<16x128xf32>,
    %c0_242 = arith.constant 0 : index
    %c0_243 = arith.constant 0 : index
    %483 = vector.load %arg13[%c0_242, %c0_243] : memref<16x128xf32, #tpu.memory_space<vmem>>, vector<16x128xf32>
    %484 = vector.shape_cast %477 : vector<16x1xi1> to vector<16x1xi1>
    %485 = vector.broadcast %484 : vector<16x1xi1> to vector<16x128xi1>
    %486 = arith.select %485, %473, %483 : vector<16x128xi1>, vector<16x128xf32>
    %c0_244 = arith.constant 0 : index
    %c0_245 = arith.constant 0 : index
    %487 = vector.load %arg13[%c0_244, %c0_245] : memref<16x128xf32, #tpu.memory_space<vmem>>, vector<16x128xf32>
    tpu.vector_store %arg13[%c0_244, %c0_245], %486 {strides = array<i32>} : memref<16x128xf32, #tpu.memory_space<vmem>>, vector<16x128xf32>,
    %cst_246 = arith.constant 0.000000e+00 : f32
    %488 = vector.shape_cast %477 : vector<16x1xi1> to vector<16x1xi1>
    %489 = vector.broadcast %488 : vector<16x1xi1> to vector<16x128xi1>
    %490 = vector.broadcast %cst_246 : f32 to vector<16x128xf32>
    %491 = arith.select %489, %475, %490 : vector<16x128xi1>, vector<16x128xf32>
    %492 = arith.truncf %491 : vector<16x128xf32> to vector<16x128xbf16>
    %493 = vector.broadcast %449 : i32 to vector<16x1xi32>
    %494 = arith.cmpi eq, %30, %493 : vector<16x1xi32>
    %c0_247 = arith.constant 0 : index
    %c0_248 = arith.constant 0 : index
    %c0_249 = arith.constant 0 : index
    %495 = vector.load %arg10[%c0_247, %c0_248, %c0_249] : memref<1x16x128xbf16, #tpu.memory_space<vmem>>, vector<1x16x128xbf16>
    %496 = vector.shape_cast %495 : vector<1x16x128xbf16> to vector<16x128xbf16>
    %497 = vector.shape_cast %494 : vector<16x1xi1> to vector<16x1xi1>
    %498 = vector.broadcast %497 : vector<16x1xi1> to vector<16x128xi1>
    %499 = arith.select %498, %492, %496 : vector<16x128xi1>, vector<16x128xbf16>
    %c0_250 = arith.constant 0 : index
    %c0_251 = arith.constant 0 : index
    %c0_252 = arith.constant 0 : index
    %500 = vector.load %arg10[%c0_250, %c0_251, %c0_252] : memref<1x16x128xbf16, #tpu.memory_space<vmem>>, vector<1x16x128xbf16>
    %501 = vector.shape_cast %500 : vector<1x16x128xbf16> to vector<16x128xbf16>
    %502 = vector.shape_cast %499 : vector<16x128xbf16> to vector<1x16x128xbf16>
    tpu.vector_store %arg10[%c0_250, %c0_251, %c0_252], %502 {strides = array<i32>} : memref<1x16x128xbf16, #tpu.memory_space<vmem>>, vector<1x16x128xbf16>,
    %c8_i32_253 = arith.constant 8 : i32
    return
  }
  func.func @transform_0(%arg0: i32, %arg1: i32) -> (i32, i32) {
    %c0_i32 = arith.constant 0 : i32
    %c0_i32_0 = arith.constant 0 : i32
    %c0_i32_1 = arith.constant 0 : i32
    return %c0_i32, %c0_i32_0 : i32, i32
  }
  func.func @transform_1(%arg0: i32, %arg1: i32) -> (i32, i32, i32) {
    %c0_i32 = arith.constant 0 : i32
    %c0_i32_0 = arith.constant 0 : i32
    %c0_i32_1 = arith.constant 0 : i32
    return %arg0, %c0_i32, %c0_i32_0 : i32, i32, i32
  }
  func.func @transform_2(%arg0: i32, %arg1: i32) -> (i32, i32, i32, i32) {
    %c1_i32 = arith.constant 1 : i32
    %0 = arith.subi %c1_i32, %arg0 : i32
    %1 = arith.muli %0, %arg1 : i32
    %c1_i32_0 = arith.constant 1 : i32
    %2 = arith.subi %c1_i32_0, %arg1 : i32
    %3 = arith.muli %arg0, %2 : i32
    %4 = arith.addi %1, %3 : i32
    %c0_i32 = arith.constant 0 : i32
    %c0_i32_1 = arith.constant 0 : i32
    %c0_i32_2 = arith.constant 0 : i32
    %c0_i32_3 = arith.constant 0 : i32
    return %c0_i32, %4, %c0_i32_1, %c0_i32_2 : i32, i32, i32, i32
  }
  func.func @transform_3(%arg0: i32, %arg1: i32) -> (i32, i32, i32, i32) {
    %c1_i32 = arith.constant 1 : i32
    %0 = arith.subi %c1_i32, %arg0 : i32
    %1 = arith.muli %0, %arg1 : i32
    %c1_i32_0 = arith.constant 1 : i32
    %2 = arith.subi %c1_i32_0, %arg1 : i32
    %3 = arith.muli %arg0, %2 : i32
    %4 = arith.addi %1, %3 : i32
    %c1_i32_1 = arith.constant 1 : i32
    %c0_i32 = arith.constant 0 : i32
    %c0_i32_2 = arith.constant 0 : i32
    %c0_i32_3 = arith.constant 0 : i32
    return %c1_i32_1, %4, %c0_i32, %c0_i32_2 : i32, i32, i32, i32
  }
  func.func @transform_4(%arg0: i32, %arg1: i32) -> (i32, i32, i32) {
    %c0_i32 = arith.constant 0 : i32
    %c0_i32_0 = arith.constant 0 : i32
    %c0_i32_1 = arith.constant 0 : i32
    return %arg0, %c0_i32, %c0_i32_0 : i32, i32, i32
  }
  func.func @transform_5(%arg0: i32, %arg1: i32) -> (i32, i32, i32) {
    %c0_i32 = arith.constant 0 : i32
    %c0_i32_0 = arith.constant 0 : i32
    %c0_i32_1 = arith.constant 0 : i32
    return %arg0, %c0_i32, %c0_i32_0 : i32, i32, i32
  }
  func.func @transform_6(%arg0: i32, %arg1: i32) -> (i32, i32, i32) {
    %c0_i32 = arith.constant 0 : i32
    %c0_i32_0 = arith.constant 0 : i32
    %c0_i32_1 = arith.constant 0 : i32
    return %arg0, %c0_i32, %c0_i32_0 : i32, i32, i32
  }
  func.func @transform_7(%arg0: i32, %arg1: i32) -> (i32, i32, i32) {
    %c0_i32 = arith.constant 0 : i32
    %c0_i32_0 = arith.constant 0 : i32
    %c0_i32_1 = arith.constant 0 : i32
    return %arg0, %c0_i32, %c0_i32_0 : i32, i32, i32
  }
  func.func @transform_8(%arg0: i32, %arg1: i32) -> (i32, i32, i32) {
    %c0_i32 = arith.constant 0 : i32
    %c0_i32_0 = arith.constant 0 : i32
    %c0_i32_1 = arith.constant 0 : i32
    return %arg0, %c0_i32, %c0_i32_0 : i32, i32, i32
  }
}

</mosaic_0001>

<llo_original>
// kernel: forward.5
$region0: #{forward.5}
  #allocation0 [shape = 'u32[]', space=smem, size = 0x4, offset = 0x4, fixed_abs, tag = 'smem constant byte address 0x4 - core index']
  #allocation1 [shape = 'u32[144,128]{1,0:T(1,128)}', space=vmem, size = 0x12000, scoped, tag = 'internal scratch']
  %s0 = inlined_call_operand.vmem [shape: bf16[2,16,128], index: 0, kind: input, shape index: {}]
  %s1 = inlined_call_operand.vmem [shape: bf16[128,32], index: 1, kind: input, shape index: {}]
  %s2 = inlined_call_operand.vmem [shape: bf16[128,32], index: 2, kind: input, shape index: {}]
  %s3 = inlined_call_operand.vmem [shape: f32[1,32], index: 3, kind: input, shape index: {}]
  %s4 = inlined_call_operand.vmem [shape: f32[16,32], index: 4, kind: output, shape index: {}]
  %s5 = sld [smem:[#allocation0]]
  $region26: #{forward.5} parent=0
    _
  %s7 = ssub.s32 1, %s5
  %s8 = scalar_select 0, %s7, %s5
  // Predicated region
  $region2: #{forward.5} parent=0 // pred_check
    _
  $region3: #{forward.5} parent=0 // pred_check_branch
    %10 = sbr.rel (0) target = $region5
  $region4: #{forward.5} parent=0 // pred_region
    _
  $region5: #{forward.5} parent=0 // pred_fallthru
    _
  // Predicated region
  $region6: #{forward.5} parent=0 // pred_check
    _
  $region7: #{forward.5} parent=0 // pred_check_branch
    %12 = sbr.rel (0) target = $region9
  $region8: #{forward.5} parent=0 // pred_region
    _
  $region9: #{forward.5} parent=0 // pred_fallthru
    _
  // Predicated region
  $region10: #{forward.5} parent=0 // pred_check
    _
  $region11: #{forward.5} parent=0 // pred_check_branch
    %14 = sbr.rel (0) target = $region13
  $region12: #{forward.5} parent=0 // pred_region
    _
  $region13: #{forward.5} parent=0 // pred_fallthru
    _
  // Predicated region
  $region14: #{forward.5} parent=0 // pred_check
    _
  $region15: #{forward.5} parent=0 // pred_check_branch
    %16 = sbr.rel (0) target = $region17
  $region16: #{forward.5} parent=0 // pred_region
    _
  $region17: #{forward.5} parent=0 // pred_fallthru
    _
  %v18 = vld [vmem:[%s0] sm:$0xf]
  %v19 = vld [vmem:[%s0 + $0x4] sm:$0xf]
  %v20 = vmax.bf16 %v18, 0
  %v21 = vmax.bf16 %v19, 0
  %s22 = scalar_lea.vmem %s0, 8
  %v23 = vld [vmem:[%s22] sm:$0xf]
  %v24 = vld [vmem:[%s22 + $0x4] sm:$0xf]
  %v25 = vmax.bf16 %v23, 0
  %v26 = vmax.bf16 %v24, 0
  %v27 = vld [vmem:[%s1] sm:$0xf]
  %v28 = vld [vmem:[%s1 + $0x4] sm:$0xf]
  %v29 = vld [vmem:[%s1 + $0x8] sm:$0xf]
  %v30 = vld [vmem:[%s1 + $0xc] sm:$0xf]
  %v31 = vld [vmem:[%s1 + $0x10] sm:$0xf]
  %v32 = vld [vmem:[%s1 + $0x14] sm:$0xf]
  %v33 = vld [vmem:[%s1 + $0x18] sm:$0xf]
  %v34 = vld [vmem:[%s1 + $0x1c] sm:$0xf]
  %v35 = vld [vmem:[%s1 + $0x20] sm:$0xf]
  %v36 = vld [vmem:[%s1 + $0x24] sm:$0xf]
  %v37 = vld [vmem:[%s1 + $0x28] sm:$0xf]
  %v38 = vld [vmem:[%s1 + $0x2c] sm:$0xf]
  %v39 = vld [vmem:[%s1 + $0x30] sm:$0xf]
  %v40 = vld [vmem:[%s1 + $0x34] sm:$0xf]
  %v41 = vld [vmem:[%s1 + $0x38] sm:$0xf]
  %v42 = vld [vmem:[%s1 + $0x3c] sm:$0xf]
  %v43 = vld [vmem:[%s2] sm:$0xf]
  %v44 = vld [vmem:[%s2 + $0x4] sm:$0xf]
  %v45 = vld [vmem:[%s2 + $0x8] sm:$0xf]
  %v46 = vld [vmem:[%s2 + $0xc] sm:$0xf]
  %v47 = vld [vmem:[%s2 + $0x10] sm:$0xf]
  %v48 = vld [vmem:[%s2 + $0x14] sm:$0xf]
  %v49 = vld [vmem:[%s2 + $0x18] sm:$0xf]
  %v50 = vld [vmem:[%s2 + $0x1c] sm:$0xf]
  %v51 = vld [vmem:[%s2 + $0x20] sm:$0xf]
  %v52 = vld [vmem:[%s2 + $0x24] sm:$0xf]
  %v53 = vld [vmem:[%s2 + $0x28] sm:$0xf]
  %v54 = vld [vmem:[%s2 + $0x2c] sm:$0xf]
  %v55 = vld [vmem:[%s2 + $0x30] sm:$0xf]
  %v56 = vld [vmem:[%s2 + $0x34] sm:$0xf]
  %v57 = vld [vmem:[%s2 + $0x38] sm:$0xf]
  %v58 = vld [vmem:[%s2 + $0x3c] sm:$0xf]
  %v61 = vunpack.c.l.b16 %v25
  %v62 = vunpack.c.l.b16 %v26
  %v63 = vpack.c.b16 %v62, %v61
  %v81 = vunpack.c.l.b16 %v43
  %v82 = vunpack.c.l.b16 %v44
  %v83 = vunpack.c.l.b16 %v45
  %v84 = vunpack.c.l.b16 %v46
  %v85 = vunpack.c.l.b16 %v47
  %v86 = vunpack.c.l.b16 %v48
  %v87 = vunpack.c.l.b16 %v49
  %v88 = vunpack.c.l.b16 %v50
  %v89 = vunpack.c.l.b16 %v51
  %v90 = vunpack.c.l.b16 %v52
  %v91 = vunpack.c.l.b16 %v53
  %v92 = vunpack.c.l.b16 %v54
  %v93 = vunpack.c.l.b16 %v55
  %v94 = vunpack.c.l.b16 %v56
  %v95 = vunpack.c.l.b16 %v57
  %v96 = vunpack.c.l.b16 %v58
  %v97 = vpack.c.b16 %v82, %v81
  %v98 = vpack.c.b16 %v84, %v83
  %v99 = vpack.c.b16 %v86, %v85
  %v100 = vpack.c.b16 %v88, %v87
  %v101 = vpack.c.b16 %v90, %v89
  %v102 = vpack.c.b16 %v92, %v91
  %v103 = vpack.c.b16 %v94, %v93
  %v104 = vpack.c.b16 %v96, %v95
  %113 = vmatprep.subr.bf16.mxu0 0
  %114 = vmatpush1.bf16.msra.mxu0 %v104
  %115 = vmatprep.subr.bf16.mxu0 0
  %116 = vmatpush1.bf16.msra.mxu0 %v103
  %117 = vmatprep.subr.bf16.mxu0 0
  %118 = vmatpush1.bf16.msra.mxu0 %v102
  %119 = vmatprep.subr.bf16.mxu0 0
  %120 = vmatpush1.bf16.msra.mxu0 %v101
  %121 = vmatprep.subr.bf16.mxu0 0
  %122 = vmatpush1.bf16.msra.mxu0 %v100
  %123 = vmatprep.subr.bf16.mxu0 0
  %124 = vmatpush1.bf16.msra.mxu0 %v99
  %125 = vmatprep.subr.bf16.mxu0 0
  %126 = vmatpush1.bf16.msra.mxu0 %v98
  %127 = vmatprep.subr.bf16.mxu0 0
  %128 = vmatpush1.bf16.msra.mxu0 %v97
  %129 = vmatprep.subr.bf16.mxu0 0
  %130 = vmatpush2.bf16.msra.mxu0 0
  %131 = vmatprep.subr.bf16.mxu0 0
  %132 = vmatpush2.bf16.msra.mxu0 0
  %133 = vmatprep.subr.bf16.mxu0 0
  %134 = vmatpush2.bf16.msra.mxu0 0
  %135 = vmatprep.subr.bf16.mxu0 0
  %136 = vmatpush2.bf16.msra.mxu0 0
  %137 = vmatprep.subr.bf16.mxu0 0
  %138 = vmatpush2.bf16.msra.mxu0 0
  %139 = vmatprep.subr.bf16.mxu0 0
  %140 = vmatpush2.bf16.msra.mxu0 0
  %141 = vmatprep.subr.bf16.mxu0 0
  %142 = vmatpush2.bf16.msra.mxu0 0
  %143 = vmatprep.subr.bf16.mxu0 0
  %144 = vmatpush2.bf16.msra.mxu0 0
  %145 = vmatprep.mubr.bf16.mxu0 0
  %146 = vmatmul.mubr.bf16.gmra.mxu0 %v63
  %v147 = vpop.f32.mrf.mxu0
  %v148 = vadd.f32 0.0, %v147
  %v149 = vpop.f32.mrf.mxu0
  %v150 = vpop.f32.mrf.mxu0
  %v151 = vadd.f32 0.0, %v150
  %v152 = vpop.f32.mrf.mxu0
  %153 = vdwg.mxu0
  %v156 = vunpack.c.l.b16 %v20
  %v157 = vunpack.c.l.b16 %v21
  %v158 = vpack.c.b16 %v157, %v156
  %v176 = vunpack.c.l.b16 %v27
  %v177 = vunpack.c.l.b16 %v28
  %v178 = vunpack.c.l.b16 %v29
  %v179 = vunpack.c.l.b16 %v30
  %v180 = vunpack.c.l.b16 %v31
  %v181 = vunpack.c.l.b16 %v32
  %v182 = vunpack.c.l.b16 %v33
  %v183 = vunpack.c.l.b16 %v34
  %v184 = vunpack.c.l.b16 %v35
  %v185 = vunpack.c.l.b16 %v36
  %v186 = vunpack.c.l.b16 %v37
  %v187 = vunpack.c.l.b16 %v38
  %v188 = vunpack.c.l.b16 %v39
  %v189 = vunpack.c.l.b16 %v40
  %v190 = vunpack.c.l.b16 %v41
  %v191 = vunpack.c.l.b16 %v42
  %v192 = vpack.c.b16 %v177, %v176
  %v193 = vpack.c.b16 %v179, %v178
  %v194 = vpack.c.b16 %v181, %v180
  %v195 = vpack.c.b16 %v183, %v182
  %v196 = vpack.c.b16 %v185, %v184
  %v197 = vpack.c.b16 %v187, %v186
  %v198 = vpack.c.b16 %v189, %v188
  %v199 = vpack.c.b16 %v191, %v190
  %208 = vmatprep.subr.bf16.mxu0 0
  %209 = vmatpush1.bf16.msra.mxu0 %v199
  %210 = vmatprep.subr.bf16.mxu0 0
  %211 = vmatpush1.bf16.msra.mxu0 %v198
  %212 = vmatprep.subr.bf16.mxu0 0
  %213 = vmatpush1.bf16.msra.mxu0 %v197
  %214 = vmatprep.subr.bf16.mxu0 0
  %215 = vmatpush1.bf16.msra.mxu0 %v196
  %216 = vmatprep.subr.bf16.mxu0 0
  %217 = vmatpush1.bf16.msra.mxu0 %v195
  %218 = vmatprep.subr.bf16.mxu0 0
  %219 = vmatpush1.bf16.msra.mxu0 %v194
  %220 = vmatprep.subr.bf16.mxu0 0
  %221 = vmatpush1.bf16.msra.mxu0 %v193
  %222 = vmatprep.subr.bf16.mxu0 0
  %223 = vmatpush1.bf16.msra.mxu0 %v192
  %224 = vmatprep.subr.bf16.mxu0 0
  %225 = vmatpush2.bf16.msra.mxu0 0
  %226 = vmatprep.subr.bf16.mxu0 0
  %227 = vmatpush2.bf16.msra.mxu0 0
  %228 = vmatprep.subr.bf16.mxu0 0
  %229 = vmatpush2.bf16.msra.mxu0 0
  %230 = vmatprep.subr.bf16.mxu0 0
  %231 = vmatpush2.bf16.msra.mxu0 0
  %232 = vmatprep.subr.bf16.mxu0 0
  %233 = vmatpush2.bf16.msra.mxu0 0
  %234 = vmatprep.subr.bf16.mxu0 0
  %235 = vmatpush2.bf16.msra.mxu0 0
  %236 = vmatprep.subr.bf16.mxu0 0
  %237 = vmatpush2.bf16.msra.mxu0 0
  %238 = vmatprep.subr.bf16.mxu0 0
  %239 = vmatpush2.bf16.msra.mxu0 0
  %240 = vmatprep.mubr.bf16.mxu0 0
  %241 = vmatmul.mubr.bf16.gmra.mxu0 %v158
  %v242 = vpop.f32.mrf.mxu0
  %v243 = vadd.f32 %v148, %v242
  %v244 = vpop.f32.mrf.mxu0
  %v245 = vpop.f32.mrf.mxu0
  %v246 = vadd.f32 %v151, %v245
  %v247 = vpop.f32.mrf.mxu0
  %248 = vdwg.mxu0
  %v249 = vld [vmem:[%s3] sm:$0x1]
  %v251 = vlaneseq
  %v252 = vshrl.u32 %v251, 7
  %v253 = vsub.s32 0, %v252
  %v254 = vrot.slane %v249, %v253
  %v256 = vadd.f32 %v243, %v254
  %v257 = vadd.f32 %v246, %v254
  %vm258 = vcmask 261120
  %259 = vst.msk [vmem:[%s4] sm:$0xff] %vm258, %v256
  %260 = vst.msk [vmem:[%s4 + $0x8] sm:$0xff] %vm258, %v257
  // Predicated region
  $region18: #{forward.5} parent=0 // pred_check
    _
  $region19: #{forward.5} parent=0 // pred_check_branch
    %262 = sbr.rel (0) target = $region21
  $region20: #{forward.5} parent=0 // pred_region
    _
  $region21: #{forward.5} parent=0 // pred_fallthru
    _
  // Predicated region
  $region22: #{forward.5} parent=0 // pred_check
    _
  $region23: #{forward.5} parent=0 // pred_check_branch
    %264 = sbr.rel (0) target = $region25
  $region24: #{forward.5} parent=0 // pred_region
    _
  $region25: #{forward.5} parent=0 // pred_fallthru
    _

// kernel: forward.3
$region0: #{forward.3}
  #allocation0 [shape = 'u32[]', space=smem, size = 0x4, offset = 0x4, fixed_abs, tag = 'smem constant byte address 0x4 - core index']
  #allocation1 [shape = 'u32[144,128]{1,0:T(1,128)}', space=vmem, size = 0x12000, scoped, tag = 'internal scratch']
  #allocation2 [shape = 'f32[8,16,512]{2,1,0:T(8,128)}', space=vmem, size = 0x40000, scoped, tag = 'scratch operand']
  #allocation3 [shape = 'f32[16,128]{1,0:T(8,128)}', space=vmem, size = 0x2000, scoped, tag = 'scratch operand']
  #allocation4 [shape = 'f32[16,128]{1,0:T(8,128)}', space=vmem, size = 0x2000, scoped, tag = 'scratch operand']
  %s0 = inlined_call_operand.vmem [shape: s32[16,1], index: 0, kind: input, shape index: {}]
  %s1 = inlined_call_operand.vmem [shape: bf16[1,16,16,32], index: 1, kind: input, shape index: {}]
  %s2 = inlined_call_operand.vmem [shape: bf16[2,32,512], index: 2, kind: input, shape index: {}]
  %s3 = inlined_call_operand.vmem [shape: bf16[2,128,512], index: 3, kind: input, shape index: {}]
  %s4 = inlined_call_operand.vmem [shape: f32[2,1,512], index: 4, kind: input, shape index: {}]
  %s5 = inlined_call_operand.vmem [shape: bf16[2,16,16,128], index: 5, kind: output, shape index: {}]
  %s6 = sld [smem:[#allocation0]]
  $region57: #{forward.3} parent=0
    _
  %s8 = ssub.s32 1, %s6
  %s9 = scalar_select 0, %s8, %s6
  loop: start=0, step=1, limit=6
  $region2: #{forward.3} parent=0 // loop_pre_header
    _
  $region3: #{forward.3} parent=0 // loop_header
    %s11 = sphi 0, %s15
    %p12 = scmp.ge.s32.totalorder %s11, 6
    %s18 = sphi 0, %s30
    %s19 = sphi 0, %s26
    %s20 = sphi 0, %s18
    %s21 = sphi 0, %s19
    %s22 = sphi 0, %s20
    %s23 = sphi 0, %s21
    %s31 = sphi 0, %s31
    %s33 = sphi 0, %s31
    %s34 = sphi 0, %s33
    %s48 = sphi 0, %s34
    %s64 = sphi 0, %s66
    %s67 = sphi 0, %s64
    %s68 = sphi 0, %s67
    %s84 = sphi 0, %s68
    %s90 = sphi 0, %s92
    %s93 = sphi 0, %s90
    %s94 = sphi 0, %s93
    %s110 = sphi 0, %s94
    %s116 = sphi 0, %s118
    %s119 = sphi 0, %s116
    %s120 = sphi 0, %s119
    %s136 = sphi 0, %s120
    %s142 = sphi 0, %s144
    %s145 = sphi 0, %s142
    %s146 = sphi 0, %s145
    %s162 = sphi 0, %s146
    %s180 = sphi 0, %s182
    %s183 = sphi 0, %s180
    %s184 = sphi 0, %s183
    %s200 = sphi 0, %s184
  $region4: #{forward.3} parent=0 // loop_header_branch
    %14 = sbr.rel (%p12) target = $region8
  $region5: #{forward.3} parent=0 // loop_body
    %s16 = ssub.s32 %s11, 1
    %s17 = ssub.s32 %s11, 2
    %s24 = sadd.s32 1, %s19
    %p25 = scmp.ge.s32.totalorder %s24, 2
    %s26 = scalar_select %p25, 0, %s24
    %s27 = sadd.s32 1, %s18
    %s28 = scalar_select %p25, %s27, %s18
    %p29 = scmp.ge.s32.totalorder %s28, 2
    %s30 = scalar_select %p29, 0, %s28
    %s32 = sadd.s32 %s31, 1
    %p35 = scmp.eq.s32.totalorder %s11, 3
    %p36 = scmp.ne.s32.totalorder %s31, %s33
    %p37 = scmp.eq.s32.totalorder %s11, 0
    %p38 = por %p36, %p37
    %p39 = scmp.ne.s32.totalorder %s31, %s33
    %p40 = scmp.eq.s32.totalorder %s16, 3
    %p41 = por %p39, %p40
    %p42 = scmp.ne.s32.totalorder %s33, %s34
    %p43 = scmp.eq.s32.totalorder %s16, 0
    %p44 = por %p42, %p43
    %p45 = scmp.ne.s32.totalorder %s33, %s34
    %p46 = scmp.eq.s32.totalorder %s17, 3
    %p47 = por %p45, %p46
    %p49 = scmp.ne.s32.totalorder %s34, %s48
    %p50 = scmp.eq.s32.totalorder %s17, 0
    %p51 = por %p49, %p50
    %s52 = ssub.s32 1, %s18
    %s53 = smul.u32 %s52, %s19
    %s54 = ssub.s32 1, %s19
    %s55 = smul.u32 %s18, %s54
    %s56 = sadd.s32 %s53, %s55
    %s57 = ssub.s32 1, %s30
    %s58 = smul.u32 %s57, %s26
    %s59 = ssub.s32 1, %s26
    %s60 = smul.u32 %s30, %s59
    %s61 = sadd.s32 %s58, %s60
    %s62 = ssub.s32 %s56, %s61
    %p63 = scmp.eq.s32.totalorder %s62, 0
    %s65 = sadd.s32 %s64, 1
    %s66 = scalar_select %p63, %s64, %s65
    %p69 = pneg %p63
    %p70 = scmp.eq.s32.totalorder %s11, 3
    %p71 = por %p69, %p70
    %p72 = scmp.ne.s32.totalorder %s64, %s67
    %p73 = scmp.eq.s32.totalorder %s11, 0
    %p74 = por %p72, %p73
    %p75 = scmp.ne.s32.totalorder %s64, %s67
    %p76 = scmp.eq.s32.totalorder %s16, 3
    %p77 = por %p75, %p76
    %p78 = scmp.ne.s32.totalorder %s67, %s68
    %p79 = scmp.eq.s32.totalorder %s16, 0
    %p80 = por %p78, %p79
    %p81 = scmp.ne.s32.totalorder %s67, %s68
    %p82 = scmp.eq.s32.totalorder %s17, 3
    %p83 = por %p81, %p82
    %p85 = scmp.ne.s32.totalorder %s68, %s84
    %p86 = scmp.eq.s32.totalorder %s17, 0
    %p87 = por %p85, %p86
    %s88 = ssub.s32 %s18, %s30
    %p89 = scmp.eq.s32.totalorder %s88, 0
    %s91 = sadd.s32 %s90, 1
    %s92 = scalar_select %p89, %s90, %s91
    %p95 = pneg %p89
    %p96 = scmp.eq.s32.totalorder %s11, 3
    %p97 = por %p95, %p96
    %p98 = scmp.ne.s32.totalorder %s90, %s93
    %p99 = scmp.eq.s32.totalorder %s11, 0
    %p100 = por %p98, %p99
    %p101 = scmp.ne.s32.totalorder %s90, %s93
    %p102 = scmp.eq.s32.totalorder %s16, 3
    %p103 = por %p101, %p102
    %p104 = scmp.ne.s32.totalorder %s93, %s94
    %p105 = scmp.eq.s32.totalorder %s16, 0
    %p106 = por %p104, %p105
    %p107 = scmp.ne.s32.totalorder %s93, %s94
    %p108 = scmp.eq.s32.totalorder %s17, 3
    %p109 = por %p107, %p108
    %p111 = scmp.ne.s32.totalorder %s94, %s110
    %p112 = scmp.eq.s32.totalorder %s17, 0
    %p113 = por %p111, %p112
    %s114 = ssub.s32 %s18, %s30
    %p115 = scmp.eq.s32.totalorder %s114, 0
    %s117 = sadd.s32 %s116, 1
    %s118 = scalar_select %p115, %s116, %s117
    %p121 = pneg %p115
    %p122 = scmp.eq.s32.totalorder %s11, 3
    %p123 = por %p121, %p122
    %p124 = scmp.ne.s32.totalorder %s116, %s119
    %p125 = scmp.eq.s32.totalorder %s11, 0
    %p126 = por %p124, %p125
    %p127 = scmp.ne.s32.totalorder %s116, %s119
    %p128 = scmp.eq.s32.totalorder %s16, 3
    %p129 = por %p127, %p128
    %p130 = scmp.ne.s32.totalorder %s119, %s120
    %p131 = scmp.eq.s32.totalorder %s16, 0
    %p132 = por %p130, %p131
    %p133 = scmp.ne.s32.totalorder %s119, %s120
    %p134 = scmp.eq.s32.totalorder %s17, 3
    %p135 = por %p133, %p134
    %p137 = scmp.ne.s32.totalorder %s120, %s136
    %p138 = scmp.eq.s32.totalorder %s17, 0
    %p139 = por %p137, %p138
    %s140 = ssub.s32 %s18, %s30
    %p141 = scmp.eq.s32.totalorder %s140, 0
    %s143 = sadd.s32 %s142, 1
    %s144 = scalar_select %p141, %s142, %s143
    %p147 = pneg %p141
    %p148 = scmp.eq.s32.totalorder %s11, 3
    %p149 = por %p147, %p148
    %p150 = scmp.ne.s32.totalorder %s142, %s145
    %p151 = scmp.eq.s32.totalorder %s11, 0
    %p152 = por %p150, %p151
    %p153 = scmp.ne.s32.totalorder %s142, %s145
    %p154 = scmp.eq.s32.totalorder %s16, 3
    %p155 = por %p153, %p154
    %p156 = scmp.ne.s32.totalorder %s145, %s146
    %p157 = scmp.eq.s32.totalorder %s16, 0
    %p158 = por %p156, %p157
    %p159 = scmp.ne.s32.totalorder %s145, %s146
    %p160 = scmp.eq.s32.totalorder %s17, 3
    %p161 = por %p159, %p160
    %p163 = scmp.ne.s32.totalorder %s146, %s162
    %p164 = scmp.eq.s32.totalorder %s17, 0
    %p165 = por %p163, %p164
    %s166 = ssub.s32 1, %s18
    %s167 = smul.u32 %s166, %s19
    %s168 = ssub.s32 1, %s19
    %s169 = smul.u32 %s18, %s168
    %s170 = sadd.s32 %s167, %s169
    %s171 = ssub.s32 1, %s30
    %s172 = smul.u32 %s171, %s26
    %s173 = ssub.s32 1, %s26
    %s174 = smul.u32 %s30, %s173
    %s175 = sadd.s32 %s172, %s174
    %s176 = ssub.s32 %s18, %s30
    %s177 = ssub.s32 %s170, %s175
    %s178 = sor.u32 %s176, %s177
    %p179 = scmp.eq.s32.totalorder %s178, 0
    %s181 = sadd.s32 %s180, 1
    %s182 = scalar_select %p179, %s180, %s181
    %p185 = pneg %p179
    %p186 = scmp.eq.s32.totalorder %s11, 3
    %p187 = por %p185, %p186
    %p188 = scmp.ne.s32.totalorder %s180, %s183
    %p189 = scmp.eq.s32.totalorder %s11, 0
    %p190 = por %p188, %p189
    %p191 = scmp.ne.s32.totalorder %s180, %s183
    %p192 = scmp.eq.s32.totalorder %s16, 3
    %p193 = por %p191, %p192
    %p194 = scmp.ne.s32.totalorder %s183, %s184
    %p195 = scmp.eq.s32.totalorder %s16, 0
    %p196 = por %p194, %p195
    %p197 = scmp.ne.s32.totalorder %s183, %s184
    %p198 = scmp.eq.s32.totalorder %s17, 3
    %p199 = por %p197, %p198
    %p201 = scmp.ne.s32.totalorder %s184, %s200
    %p202 = scmp.eq.s32.totalorder %s17, 0
    %p203 = por %p201, %p202
    %p204 = scmp.le.s32.totalorder 1, %s11
    %p205 = scmp.lt.s32.totalorder %s11, 5
    %p206 = pnand %p204, %p205
    %p207 = pneg %p206
    // Predicated region
    $region9: #{forward.3} parent=5 // pred_check
      _
    $region10: #{forward.3} parent=5 // pred_check_branch
      %209 = sbr.rel (%p206) target = $region12
    $region11: #{forward.3} parent=5 // pred_region
      %s210 = ssub.s32 %s11, 1
      // Predicated region
      $region13: #{forward.3} parent=11 // pred_check
        %p211 = pneg %p44
      $region14: #{forward.3} parent=11 // pred_check_branch
        %213 = sbr.rel (%p211) target = $region16
      $region15: #{forward.3} parent=11 // pred_region
        _
      $region16: #{forward.3} parent=11 // pred_fallthru
        _
      // Predicated region
      $region17: #{forward.3} parent=11 // pred_check
        %p214 = pneg %p106
      $region18: #{forward.3} parent=11 // pred_check_branch
        %216 = sbr.rel (%p214) target = $region20
      $region19: #{forward.3} parent=11 // pred_region
        %p217 = scmp.lt.s32.totalorder %s20, 1
        %s218 = scalar_select %p217, %s20, 1
        %s219 = smul.addr %s218, 16
        %s220 = smul.addr %s219, 4
        %s221 = scalar_lea.vmem %s2, %s220
      $region20: #{forward.3} parent=11 // pred_fallthru
        _
      // Predicated region
      $region21: #{forward.3} parent=11 // pred_check
        %p222 = pneg %p132
      $region22: #{forward.3} parent=11 // pred_check_branch
        %224 = sbr.rel (%p222) target = $region24
      $region23: #{forward.3} parent=11 // pred_region
        %p225 = scmp.lt.s32.totalorder %s20, 1
        %s226 = scalar_select %p225, %s20, 1
        %s227 = smul.addr %s226, 64
        %s228 = smul.addr %s227, 4
        %s229 = scalar_lea.vmem %s3, %s228
      $region24: #{forward.3} parent=11 // pred_fallthru
        _
    $region12: #{forward.3} parent=5 // pred_fallthru
      _
    %p230 = scmp.lt.s32.totalorder %s11, 4
    // Predicated region
    $region25: #{forward.3} parent=5 // pred_check
      %p231 = pneg %p230
    $region26: #{forward.3} parent=5 // pred_check_branch
      %233 = sbr.rel (%p231) target = $region28
    $region27: #{forward.3} parent=5 // pred_region
      // Predicated region
      $region29: #{forward.3} parent=27 // pred_check
        %p234 = pneg %p74
      $region30: #{forward.3} parent=27 // pred_check_branch
        %236 = sbr.rel (%p234) target = $region32
      $region31: #{forward.3} parent=27 // pred_region
        %s237 = ssub.s32 1, %s18
        %s238 = smul.u32 %s237, %s19
        %s239 = ssub.s32 1, %s19
        %s240 = smul.u32 %s18, %s239
        %s241 = sadd.s32 %s238, %s240
        %s242 = smul.u32 8, %s241
        %p243 = scmp.lt.s32.totalorder %s242, 15
        %s244 = scalar_select %p243, %s242, 15
        %s245 = smul.addr %s244, 2
        %s246 = smul.addr %s245, 4
        %s247 = scalar_lea.vmem %s1, %s246
        %s248 = ssub.s32 1, %s18
        %s249 = smul.u32 %s248, %s19
        %s250 = ssub.s32 1, %s19
        %s251 = smul.u32 %s18, %s250
        %s252 = sadd.s32 %s249, %s251
        %s253 = smul.u32 8, %s252
      $region32: #{forward.3} parent=27 // pred_fallthru
        _
      // Predicated region
      $region33: #{forward.3} parent=27 // pred_check
        %p254 = pneg %p152
      $region34: #{forward.3} parent=27 // pred_check_branch
        %256 = sbr.rel (%p254) target = $region36
      $region35: #{forward.3} parent=27 // pred_region
        %p257 = scmp.lt.s32.totalorder %s18, 1
        %s258 = scalar_select %p257, %s18, 1
        %s259 = smul.addr %s258, 4
        %s260 = scalar_lea.vmem %s4, %s259
      $region36: #{forward.3} parent=27 // pred_fallthru
        _
    $region28: #{forward.3} parent=5 // pred_fallthru
      _
    %p261 = scmp.le.s32.totalorder 1, %s11
    %p262 = scmp.lt.s32.totalorder %s11, 5
    %p263 = pnand %p261, %p262
    %p264 = pneg %p263
    // Predicated region
    $region37: #{forward.3} parent=5 // pred_check
      _
    $region38: #{forward.3} parent=5 // pred_check_branch
      %266 = sbr.rel (%p263) target = $region40
    $region39: #{forward.3} parent=5 // pred_region
      %s267 = ssub.s32 %s11, 1
      %p268 = pneg %p44
      %p269 = pneg %p41
      %s270 = ssub.s32 1, %s20
      %s271 = smul.u32 %s270, %s21
      %s272 = ssub.s32 1, %s21
      %s273 = smul.u32 %s20, %s272
      %s274 = sadd.s32 %s271, %s273
      %s275 = smul.u32 8, %s274
      %p276 = scmp.lt.s32.totalorder %s275, 15
      %s277 = scalar_select %p276, %s275, 15
      %s278 = smul.addr %s277, 2
      %s279 = smul.addr %s278, 4
      %s280 = scalar_lea.vmem %s1, %s279
      %p281 = pneg %p80
      %p282 = pneg %p77
      %p283 = scmp.lt.s32.totalorder %s20, 1
      %s284 = scalar_select %p283, %s20, 1
      %s285 = smul.addr %s284, 16
      %s286 = smul.addr %s285, 4
      %s287 = scalar_lea.vmem %s2, %s286
      %p288 = pneg %p106
      %p289 = pneg %p103
      %p290 = scmp.lt.s32.totalorder %s20, 1
      %s291 = scalar_select %p290, %s20, 1
      %s292 = smul.addr %s291, 64
      %s293 = smul.addr %s292, 4
      %s294 = scalar_lea.vmem %s3, %s293
      %p295 = pneg %p132
      %p296 = pneg %p129
      %p297 = scmp.lt.s32.totalorder %s20, 1
      %s298 = scalar_select %p297, %s20, 1
      %s299 = smul.addr %s298, 4
      %s300 = scalar_lea.vmem %s4, %s299
      %p301 = pneg %p158
      %p302 = pneg %p155
      %p303 = pneg %p196
      %p304 = pneg %p193
      %s305 = ssub.s32 1, %s20
      %s306 = smul.u32 %s305, %s21
      %s307 = ssub.s32 1, %s21
      %s308 = smul.u32 %s20, %s307
      %s309 = sadd.s32 %s306, %s308
      %s310 = smul.u32 8, %s309
      %p311 = scmp.lt.s32.totalorder %s20, 1
      %s312 = scalar_select %p311, %s20, 1
      %p313 = scmp.lt.s32.totalorder %s310, 15
      %s314 = scalar_select %p313, %s310, 15
      %s315 = smul.addr %s314, 2
      %s316 = smul.addr %s312, 32
      %s317 = sadd.s32 %s315, %s316
      %s318 = smul.addr %s317, 4
      %s319 = scalar_lea.vmem %s5, %s318
      %s320 = ssub.s32 1, %s20
      %s321 = smul.u32 %s320, %s21
      %s322 = ssub.s32 1, %s21
      %s323 = smul.u32 %s20, %s322
      %s324 = sadd.s32 %s321, %s323
      %s325 = smul.u32 8, %s324
      %p326 = scmp.lt.s32.totalorder %s325, 15
      %s327 = scalar_select %p326, %s325, 15
      %s328 = smul.addr %s327, 2
      %s329 = smul.addr %s328, 4
      %s330 = scalar_lea.vmem %s1, %s329
      %s331 = ssub.s32 1, %s20
      %s332 = smul.u32 %s331, %s21
      %s333 = ssub.s32 1, %s21
      %s334 = smul.u32 %s20, %s333
      %s335 = sadd.s32 %s332, %s334
      %s336 = smul.u32 8, %s335
      %p337 = scmp.lt.s32.totalorder %s20, 1
      %s338 = scalar_select %p337, %s20, 1
      %s339 = smul.addr %s338, 16
      %s340 = smul.addr %s339, 4
      %s341 = scalar_lea.vmem %s2, %s340
      %p342 = scmp.lt.s32.totalorder %s20, 1
      %s343 = scalar_select %p342, %s20, 1
      %s344 = smul.addr %s343, 64
      %s345 = smul.addr %s344, 4
      %s346 = scalar_lea.vmem %s3, %s345
      %p347 = scmp.lt.s32.totalorder %s20, 1
      %s348 = scalar_select %p347, %s20, 1
      %s349 = smul.addr %s348, 4
      %s350 = scalar_lea.vmem %s4, %s349
      %s351 = ssub.s32 1, %s20
      %s352 = smul.u32 %s351, %s21
      %s353 = ssub.s32 1, %s21
      %s354 = smul.u32 %s20, %s353
      %s355 = sadd.s32 %s352, %s354
      %s356 = smul.u32 8, %s355
      %p357 = scmp.lt.s32.totalorder %s20, 1
      %s358 = scalar_select %p357, %s20, 1
      %p359 = scmp.lt.s32.totalorder %s356, 15
      %s360 = scalar_select %p359, %s356, 15
      %s361 = smul.addr %s360, 2
      %s362 = smul.addr %s358, 32
      %s363 = sadd.s32 %s361, %s362
      %s364 = smul.addr %s363, 4
      %s365 = scalar_lea.vmem %s5, %s364
      %s366 = ssub.s32 1, %s20
      %s367 = smul.u32 %s366, %s21
      %s368 = ssub.s32 1, %s21
      %s369 = smul.u32 %s20, %s368
      %s370 = sadd.s32 %s367, %s369
      %s371 = smul.u32 8, %s370
      %p373 = scmp.eq.s32.totalorder %s21, 0
      // Predicated region
      $region41: #{forward.3} parent=39 // pred_check
        %p374 = pneg %p373
      $region42: #{forward.3} parent=39 // pred_check_branch
        %376 = sbr.rel (%p374) target = $region44
      $region43: #{forward.3} parent=39 // pred_region
        %377 = vst [vmem:[#allocation3] sm:$0xff] 0.0
        %378 = vst [vmem:[#allocation3 + $0x8] sm:$0xff] 0.0
        %379 = vst [vmem:[#allocation4] sm:$0xff] 0.0
        %380 = vst [vmem:[#allocation4 + $0x8] sm:$0xff] 0.0
      $region44: #{forward.3} parent=39 // pred_fallthru
        _
      %v381 = vld [vmem:[%s330] sm:$0xf]
      %v382 = vld [vmem:[%s330 + $0x4] sm:$0xf]
      %v383 = vld [vmem:[%s330 + $0x8] sm:$0xf]
      %v384 = vld [vmem:[%s330 + $0xc] sm:$0xf]
      %v385 = vld [vmem:[%s330 + $0x10] sm:$0xf]
      %v386 = vld [vmem:[%s330 + $0x14] sm:$0xf]
      %v387 = vld [vmem:[%s330 + $0x18] sm:$0xf]
      %v388 = vld [vmem:[%s330 + $0x1c] sm:$0xf]
      %v389 = vld [vmem:[%s330 + $0x20] sm:$0xf]
      %v390 = vld [vmem:[%s330 + $0x24] sm:$0xf]
      %v391 = vld [vmem:[%s330 + $0x28] sm:$0xf]
      %v392 = vld [vmem:[%s330 + $0x2c] sm:$0xf]
      %v393 = vld [vmem:[%s330 + $0x30] sm:$0xf]
      %v394 = vld [vmem:[%s330 + $0x34] sm:$0xf]
      %v395 = vld [vmem:[%s330 + $0x38] sm:$0xf]
      %v396 = vld [vmem:[%s330 + $0x3c] sm:$0xf]
      %v397 = vld [vmem:[%s341] sm:$0xff]
      %v398 = vld [vmem:[%s341 + $0x8] sm:$0xff]
      %v399 = vld [vmem:[%s341 + $0x10] sm:$0xff]
      %v400 = vld [vmem:[%s341 + $0x18] sm:$0xff]
      %v401 = vld [vmem:[%s341 + $0x20] sm:$0xff]
      %v402 = vld [vmem:[%s341 + $0x28] sm:$0xff]
      %v403 = vld [vmem:[%s341 + $0x30] sm:$0xff]
      %v404 = vld [vmem:[%s341 + $0x38] sm:$0xff]
      %v405 = vld [vmem:[%s350] sm:$0xf]
      %v407 = vlaneseq
      %v408 = vshrl.u32 %v407, 7
      %v409 = vsub.s32 0, %v408
      %v410 = vrot.slane %v405, %v409
      %v411 = vlaneseq
      %v412 = vshrl.u32 %v411, 7
      %v413 = vsub.s32 1, %v412
      %v414 = vrot.slane %v405, %v413
      %v415 = vlaneseq
      %v416 = vshrl.u32 %v415, 7
      %v417 = vsub.s32 2, %v416
      %v418 = vrot.slane %v405, %v417
      %v419 = vlaneseq
      %v420 = vshrl.u32 %v419, 7
      %v421 = vsub.s32 3, %v420
      %v422 = vrot.slane %v405, %v421
      %v443 = vunpack.c.l.b16 %v381
      %v444 = vunpack.c.l.b16 %v382
      %v445 = vunpack.c.l.b16 %v383
      %v446 = vunpack.c.l.b16 %v384
      %v447 = vunpack.c.l.b16 %v385
      %v448 = vunpack.c.l.b16 %v386
      %v449 = vunpack.c.l.b16 %v387
      %v450 = vunpack.c.l.b16 %v388
      %v451 = vunpack.c.l.b16 %v389
      %v452 = vunpack.c.l.b16 %v390
      %v453 = vunpack.c.l.b16 %v391
      %v454 = vunpack.c.l.b16 %v392
      %v455 = vunpack.c.l.b16 %v393
      %v456 = vunpack.c.l.b16 %v394
      %v457 = vunpack.c.l.b16 %v395
      %v458 = vunpack.c.l.b16 %v396
      %v459 = vpack.c.b16 %v444, %v443
      %v460 = vpack.c.b16 %v446, %v445
      %v461 = vpack.c.b16 %v448, %v447
      %v462 = vpack.c.b16 %v450, %v449
      %v463 = vpack.c.b16 %v452, %v451
      %v464 = vpack.c.b16 %v454, %v453
      %v465 = vpack.c.b16 %v456, %v455
      %v466 = vpack.c.b16 %v458, %v457
      %v475 = vunpack.c.l.b16 %v397
      %v476 = vunpack.c.h.b16 %v397
      %v477 = vunpack.c.l.b16 %v398
      %v478 = vunpack.c.h.b16 %v398
      %v479 = vunpack.c.l.b16 %v399
      %v480 = vunpack.c.h.b16 %v399
      %v481 = vunpack.c.l.b16 %v400
      %v482 = vunpack.c.h.b16 %v400
      %v483 = vunpack.c.l.b16 %v401
      %v484 = vunpack.c.h.b16 %v401
      %v485 = vunpack.c.l.b16 %v402
      %v486 = vunpack.c.h.b16 %v402
      %v487 = vunpack.c.l.b16 %v403
      %v488 = vunpack.c.h.b16 %v403
      %v489 = vunpack.c.l.b16 %v404
      %v490 = vunpack.c.h.b16 %v404
      %v491 = vpack.c.b16 %v479, %v475
      %v492 = vpack.c.b16 %v480, %v476
      %v493 = vpack.c.b16 %v481, %v477
      %v494 = vpack.c.b16 %v482, %v478
      %v495 = vpack.c.b16 %v487, %v483
      %v496 = vpack.c.b16 %v488, %v484
      %v497 = vpack.c.b16 %v489, %v485
      %v498 = vpack.c.b16 %v490, %v486
      %vm507 = vcmask 261120
      %v509 = vsel %vm507, %v459, 0
      %v512 = vsel %vm507, %v460, 0
      %v515 = vsel %vm507, %v461, 0
      %v518 = vsel %vm507, %v462, 0
      %v521 = vsel %vm507, %v463, 0
      %v524 = vsel %vm507, %v464, 0
      %v527 = vsel %vm507, %v465, 0
      %v530 = vsel %vm507, %v466, 0
      %532 = vmatprep.subr.bf16.mxu0 0
      %533 = vmatpush1.bf16.msra.mxu0 0
      %534 = vmatprep.subr.bf16.mxu0 0
      %535 = vmatpush1.bf16.msra.mxu0 0
      %536 = vmatprep.subr.bf16.mxu0 0
      %537 = vmatpush1.bf16.msra.mxu0 0
      %538 = vmatprep.subr.bf16.mxu0 0
      %539 = vmatpush1.bf16.msra.mxu0 0
      %540 = vmatprep.subr.bf16.mxu0 0
      %541 = vmatpush1.bf16.msra.mxu0 0
      %542 = vmatprep.subr.bf16.mxu0 0
      %543 = vmatpush1.bf16.msra.mxu0 0
      %544 = vmatprep.subr.bf16.mxu0 %v496
      %545 = vmatpush1.bf16.msra.mxu0 %v495
      %546 = vmatprep.subr.bf16.mxu0 %v492
      %547 = vmatpush1.bf16.msra.mxu0 %v491
      %548 = vmatprep.subr.bf16.mxu0 0
      %549 = vmatpush2.bf16.msra.mxu0 0
      %550 = vmatprep.subr.bf16.mxu0 0
      %551 = vmatpush2.bf16.msra.mxu0 0
      %552 = vmatprep.subr.bf16.mxu0 0
      %553 = vmatpush2.bf16.msra.mxu0 0
      %554 = vmatprep.subr.bf16.mxu0 0
      %555 = vmatpush2.bf16.msra.mxu0 0
      %556 = vmatprep.subr.bf16.mxu0 0
      %557 = vmatpush2.bf16.msra.mxu0 0
      %558 = vmatprep.subr.bf16.mxu0 0
      %559 = vmatpush2.bf16.msra.mxu0 0
      %560 = vmatprep.subr.bf16.mxu0 0
      %561 = vmatpush2.bf16.msra.mxu0 0
      %562 = vmatprep.subr.bf16.mxu0 0
      %563 = vmatpush2.bf16.msra.mxu0 0
      %564 = vmatprep.mubr.bf16.mxu0 0
      %565 = vmatmul.mubr.bf16.gmra.mxu0 %v509
      %v566 = vpop.f32.mrf.mxu0
      %v567 = vadd.f32 %v410, %v566
      %v568 = vpop.f32.mrf.mxu0
      %v569 = vadd.f32 %v414, %v568
      %v570 = vpop.f32.mrf.mxu0
      %v571 = vadd.f32 %v410, %v570
      %v572 = vpop.f32.mrf.mxu0
      %v573 = vadd.f32 %v414, %v572
      %574 = vmatprep.mubr.bf16.mxu0 0
      %575 = vmatmul.mubr.bf16.gmra.mxu0 %v512
      %v576 = vpop.f32.mrf.mxu0
      %v577 = vadd.f32 %v410, %v576
      %v578 = vpop.f32.mrf.mxu0
      %v579 = vadd.f32 %v414, %v578
      %v580 = vpop.f32.mrf.mxu0
      %v581 = vadd.f32 %v410, %v580
      %v582 = vpop.f32.mrf.mxu0
      %v583 = vadd.f32 %v414, %v582
      %584 = vmatprep.mubr.bf16.mxu0 0
      %585 = vmatmul.mubr.bf16.gmra.mxu0 %v515
      %v586 = vpop.f32.mrf.mxu0
      %v587 = vadd.f32 %v410, %v586
      %v588 = vpop.f32.mrf.mxu0
      %v589 = vadd.f32 %v414, %v588
      %v590 = vpop.f32.mrf.mxu0
      %v591 = vadd.f32 %v410, %v590
      %v592 = vpop.f32.mrf.mxu0
      %v593 = vadd.f32 %v414, %v592
      %594 = vmatprep.mubr.bf16.mxu0 0
      %595 = vmatmul.mubr.bf16.gmra.mxu0 %v518
      %v596 = vpop.f32.mrf.mxu0
      %v597 = vadd.f32 %v410, %v596
      %v598 = vpop.f32.mrf.mxu0
      %v599 = vadd.f32 %v414, %v598
      %v600 = vpop.f32.mrf.mxu0
      %v601 = vadd.f32 %v410, %v600
      %v602 = vpop.f32.mrf.mxu0
      %v603 = vadd.f32 %v414, %v602
      %604 = vmatprep.mubr.bf16.mxu0 0
      %605 = vmatmul.mubr.bf16.gmra.mxu0 %v521
      %v606 = vpop.f32.mrf.mxu0
      %v607 = vadd.f32 %v410, %v606
      %v608 = vpop.f32.mrf.mxu0
      %v609 = vadd.f32 %v414, %v608
      %v610 = vpop.f32.mrf.mxu0
      %v611 = vadd.f32 %v410, %v610
      %v612 = vpop.f32.mrf.mxu0
      %v613 = vadd.f32 %v414, %v612
      %614 = vmatprep.mubr.bf16.mxu0 0
      %615 = vmatmul.mubr.bf16.gmra.mxu0 %v524
      %v616 = vpop.f32.mrf.mxu0
      %v617 = vadd.f32 %v410, %v616
      %v618 = vpop.f32.mrf.mxu0
      %v619 = vadd.f32 %v414, %v618
      %v620 = vpop.f32.mrf.mxu0
      %v621 = vadd.f32 %v410, %v620
      %v622 = vpop.f32.mrf.mxu0
      %v623 = vadd.f32 %v414, %v622
      %624 = vmatprep.mubr.bf16.mxu0 0
      %625 = vmatmul.mubr.bf16.gmra.mxu0 %v527
      %v626 = vpop.f32.mrf.mxu0
      %v627 = vadd.f32 %v410, %v626
      %v628 = vpop.f32.mrf.mxu0
      %v629 = vadd.f32 %v414, %v628
      %v630 = vpop.f32.mrf.mxu0
      %v631 = vadd.f32 %v410, %v630
      %v632 = vpop.f32.mrf.mxu0
      %v633 = vadd.f32 %v414, %v632
      %634 = vmatprep.mubr.bf16.mxu0 0
      %635 = vmatmul.mubr.bf16.gmra.mxu0 %v530
      %v636 = vpop.f32.mrf.mxu0
      %v637 = vadd.f32 %v410, %v636
      %v638 = vpop.f32.mrf.mxu0
      %v639 = vadd.f32 %v414, %v638
      %v640 = vpop.f32.mrf.mxu0
      %v641 = vadd.f32 %v410, %v640
      %v642 = vpop.f32.mrf.mxu0
      %v643 = vadd.f32 %v414, %v642
      %644 = vdwg.mxu0
      %645 = vmatprep.subr.bf16.mxu0 0
      %646 = vmatpush1.bf16.msra.mxu0 0
      %647 = vmatprep.subr.bf16.mxu0 0
      %648 = vmatpush1.bf16.msra.mxu0 0
      %649 = vmatprep.subr.bf16.mxu0 0
      %650 = vmatpush1.bf16.msra.mxu0 0
      %651 = vmatprep.subr.bf16.mxu0 0
      %652 = vmatpush1.bf16.msra.mxu0 0
      %653 = vmatprep.subr.bf16.mxu0 0
      %654 = vmatpush1.bf16.msra.mxu0 0
      %655 = vmatprep.subr.bf16.mxu0 0
      %656 = vmatpush1.bf16.msra.mxu0 0
      %657 = vmatprep.subr.bf16.mxu0 %v498
      %658 = vmatpush1.bf16.msra.mxu0 %v497
      %659 = vmatprep.subr.bf16.mxu0 %v494
      %660 = vmatpush1.bf16.msra.mxu0 %v493
      %661 = vmatprep.subr.bf16.mxu0 0
      %662 = vmatpush2.bf16.msra.mxu0 0
      %663 = vmatprep.subr.bf16.mxu0 0
      %664 = vmatpush2.bf16.msra.mxu0 0
      %665 = vmatprep.subr.bf16.mxu0 0
      %666 = vmatpush2.bf16.msra.mxu0 0
      %667 = vmatprep.subr.bf16.mxu0 0
      %668 = vmatpush2.bf16.msra.mxu0 0
      %669 = vmatprep.subr.bf16.mxu0 0
      %670 = vmatpush2.bf16.msra.mxu0 0
      %671 = vmatprep.subr.bf16.mxu0 0
      %672 = vmatpush2.bf16.msra.mxu0 0
      %673 = vmatprep.subr.bf16.mxu0 0
      %674 = vmatpush2.bf16.msra.mxu0 0
      %675 = vmatprep.subr.bf16.mxu0 0
      %676 = vmatpush2.bf16.msra.mxu0 0
      %677 = vmatprep.mubr.bf16.mxu0 0
      %678 = vmatmul.mubr.bf16.gmra.mxu0 %v509
      %v679 = vpop.f32.mrf.mxu0
      %v680 = vadd.f32 %v418, %v679
      %v681 = vpop.f32.mrf.mxu0
      %v682 = vadd.f32 %v422, %v681
      %v683 = vpop.f32.mrf.mxu0
      %v684 = vadd.f32 %v418, %v683
      %v685 = vpop.f32.mrf.mxu0
      %v686 = vadd.f32 %v422, %v685
      %687 = vmatprep.mubr.bf16.mxu0 0
      %688 = vmatmul.mubr.bf16.gmra.mxu0 %v512
      %v689 = vpop.f32.mrf.mxu0
      %v690 = vadd.f32 %v418, %v689
      %v691 = vpop.f32.mrf.mxu0
      %v692 = vadd.f32 %v422, %v691
      %v693 = vpop.f32.mrf.mxu0
      %v694 = vadd.f32 %v418, %v693
      %v695 = vpop.f32.mrf.mxu0
      %v696 = vadd.f32 %v422, %v695
      %697 = vmatprep.mubr.bf16.mxu0 0
      %698 = vmatmul.mubr.bf16.gmra.mxu0 %v515
      %v699 = vpop.f32.mrf.mxu0
      %v700 = vadd.f32 %v418, %v699
      %v701 = vpop.f32.mrf.mxu0
      %v702 = vadd.f32 %v422, %v701
      %v703 = vpop.f32.mrf.mxu0
      %v704 = vadd.f32 %v418, %v703
      %v705 = vpop.f32.mrf.mxu0
      %v706 = vadd.f32 %v422, %v705
      %707 = vmatprep.mubr.bf16.mxu0 0
      %708 = vmatmul.mubr.bf16.gmra.mxu0 %v518
      %v709 = vpop.f32.mrf.mxu0
      %v710 = vadd.f32 %v418, %v709
      %v711 = vpop.f32.mrf.mxu0
      %v712 = vadd.f32 %v422, %v711
      %v713 = vpop.f32.mrf.mxu0
      %v714 = vadd.f32 %v418, %v713
      %v715 = vpop.f32.mrf.mxu0
      %v716 = vadd.f32 %v422, %v715
      %717 = vmatprep.mubr.bf16.mxu0 0
      %718 = vmatmul.mubr.bf16.gmra.mxu0 %v521
      %v719 = vpop.f32.mrf.mxu0
      %v720 = vadd.f32 %v418, %v719
      %v721 = vpop.f32.mrf.mxu0
      %v722 = vadd.f32 %v422, %v721
      %v723 = vpop.f32.mrf.mxu0
      %v724 = vadd.f32 %v418, %v723
      %v725 = vpop.f32.mrf.mxu0
      %v726 = vadd.f32 %v422, %v725
      %727 = vmatprep.mubr.bf16.mxu0 0
      %728 = vmatmul.mubr.bf16.gmra.mxu0 %v524
      %v729 = vpop.f32.mrf.mxu0
      %v730 = vadd.f32 %v418, %v729
      %v731 = vpop.f32.mrf.mxu0
      %v732 = vadd.f32 %v422, %v731
      %v733 = vpop.f32.mrf.mxu0
      %v734 = vadd.f32 %v418, %v733
      %v735 = vpop.f32.mrf.mxu0
      %v736 = vadd.f32 %v422, %v735
      %737 = vmatprep.mubr.bf16.mxu0 0
      %738 = vmatmul.mubr.bf16.gmra.mxu0 %v527
      %v739 = vpop.f32.mrf.mxu0
      %v740 = vadd.f32 %v418, %v739
      %v741 = vpop.f32.mrf.mxu0
      %v742 = vadd.f32 %v422, %v741
      %v743 = vpop.f32.mrf.mxu0
      %v744 = vadd.f32 %v418, %v743
      %v745 = vpop.f32.mrf.mxu0
      %v746 = vadd.f32 %v422, %v745
      %747 = vmatprep.mubr.bf16.mxu0 0
      %748 = vmatmul.mubr.bf16.gmra.mxu0 %v530
      %v749 = vpop.f32.mrf.mxu0
      %v750 = vadd.f32 %v418, %v749
      %v751 = vpop.f32.mrf.mxu0
      %v752 = vadd.f32 %v422, %v751
      %v753 = vpop.f32.mrf.mxu0
      %v754 = vadd.f32 %v418, %v753
      %v755 = vpop.f32.mrf.mxu0
      %v756 = vadd.f32 %v422, %v755
      %757 = vdwg.mxu0
      %758 = vst [vmem:[#allocation2] sm:$0xff] %v567
      %759 = vst [vmem:[#allocation2 + $0x8] sm:$0xff] %v569
      %760 = vst [vmem:[#allocation2 + $0x10] sm:$0xff] %v680
      %761 = vst [vmem:[#allocation2 + $0x18] sm:$0xff] %v682
      %762 = vst [vmem:[#allocation2 + $0x20] sm:$0xff] %v571
      %763 = vst [vmem:[#allocation2 + $0x28] sm:$0xff] %v573
      %764 = vst [vmem:[#allocation2 + $0x30] sm:$0xff] %v684
      %765 = vst [vmem:[#allocation2 + $0x38] sm:$0xff] %v686
      %766 = vst [vmem:[#allocation2 + $0x40] sm:$0xff] %v577
      %767 = vst [vmem:[#allocation2 + $0x48] sm:$0xff] %v579
      %768 = vst [vmem:[#allocation2 + $0x50] sm:$0xff] %v690
      %769 = vst [vmem:[#allocation2 + $0x58] sm:$0xff] %v692
      %770 = vst [vmem:[#allocation2 + $0x60] sm:$0xff] %v581
      %771 = vst [vmem:[#allocation2 + $0x68] sm:$0xff] %v583
      %772 = vst [vmem:[#allocation2 + $0x70] sm:$0xff] %v694
      %773 = vst [vmem:[#allocation2 + $0x78] sm:$0xff] %v696
      %774 = vst [vmem:[#allocation2 + $0x80] sm:$0xff] %v587
      %775 = vst [vmem:[#allocation2 + $0x88] sm:$0xff] %v589
      %776 = vst [vmem:[#allocation2 + $0x90] sm:$0xff] %v700
      %777 = vst [vmem:[#allocation2 + $0x98] sm:$0xff] %v702
      %778 = vst [vmem:[#allocation2 + $0xa0] sm:$0xff] %v591
      %779 = vst [vmem:[#allocation2 + $0xa8] sm:$0xff] %v593
      %780 = vst [vmem:[#allocation2 + $0xb0] sm:$0xff] %v704
      %781 = vst [vmem:[#allocation2 + $0xb8] sm:$0xff] %v706
      %782 = vst [vmem:[#allocation2 + $0xc0] sm:$0xff] %v597
      %783 = vst [vmem:[#allocation2 + $0xc8] sm:$0xff] %v599
      %784 = vst [vmem:[#allocation2 + $0xd0] sm:$0xff] %v710
      %785 = vst [vmem:[#allocation2 + $0xd8] sm:$0xff] %v712
      %786 = vst [vmem:[#allocation2 + $0xe0] sm:$0xff] %v601
      %787 = vst [vmem:[#allocation2 + $0xe8] sm:$0xff] %v603
      %788 = vst [vmem:[#allocation2 + $0xf0] sm:$0xff] %v714
      %789 = vst [vmem:[#allocation2 + $0xf8] sm:$0xff] %v716
      %790 = vst [vmem:[#allocation2 + $0x100] sm:$0xff] %v607
      %791 = vst [vmem:[#allocation2 + $0x108] sm:$0xff] %v609
      %792 = vst [vmem:[#allocation2 + $0x110] sm:$0xff] %v720
      %793 = vst [vmem:[#allocation2 + $0x118] sm:$0xff] %v722
      %794 = vst [vmem:[#allocation2 + $0x120] sm:$0xff] %v611
      %795 = vst [vmem:[#allocation2 + $0x128] sm:$0xff] %v613
      %796 = vst [vmem:[#allocation2 + $0x130] sm:$0xff] %v724
      %797 = vst [vmem:[#allocation2 + $0x138] sm:$0xff] %v726
      %798 = vst [vmem:[#allocation2 + $0x140] sm:$0xff] %v617
      %799 = vst [vmem:[#allocation2 + $0x148] sm:$0xff] %v619
      %800 = vst [vmem:[#allocation2 + $0x150] sm:$0xff] %v730
      %801 = vst [vmem:[#allocation2 + $0x158] sm:$0xff] %v732
      %802 = vst [vmem:[#allocation2 + $0x160] sm:$0xff] %v621
      %803 = vst [vmem:[#allocation2 + $0x168] sm:$0xff] %v623
      %804 = vst [vmem:[#allocation2 + $0x170] sm:$0xff] %v734
      %805 = vst [vmem:[#allocation2 + $0x178] sm:$0xff] %v736
      %806 = vst [vmem:[#allocation2 + $0x180] sm:$0xff] %v627
      %807 = vst [vmem:[#allocation2 + $0x188] sm:$0xff] %v629
      %808 = vst [vmem:[#allocation2 + $0x190] sm:$0xff] %v740
      %809 = vst [vmem:[#allocation2 + $0x198] sm:$0xff] %v742
      %810 = vst [vmem:[#allocation2 + $0x1a0] sm:$0xff] %v631
      %811 = vst [vmem:[#allocation2 + $0x1a8] sm:$0xff] %v633
      %812 = vst [vmem:[#allocation2 + $0x1b0] sm:$0xff] %v744
      %813 = vst [vmem:[#allocation2 + $0x1b8] sm:$0xff] %v746
      %814 = vst [vmem:[#allocation2 + $0x1c0] sm:$0xff] %v637
      %815 = vst [vmem:[#allocation2 + $0x1c8] sm:$0xff] %v639
      %816 = vst [vmem:[#allocation2 + $0x1d0] sm:$0xff] %v750
      %817 = vst [vmem:[#allocation2 + $0x1d8] sm:$0xff] %v752
      %818 = vst [vmem:[#allocation2 + $0x1e0] sm:$0xff] %v641
      %819 = vst [vmem:[#allocation2 + $0x1e8] sm:$0xff] %v643
      %820 = vst [vmem:[#allocation2 + $0x1f0] sm:$0xff] %v754
      %821 = vst [vmem:[#allocation2 + $0x1f8] sm:$0xff] %v756
      %s822 = ssub.s32 1, %s20
      %s823 = smul.u32 %s822, %s21
      %s824 = ssub.s32 1, %s21
      %s825 = smul.u32 %s20, %s824
      %s826 = sadd.s32 %s823, %s825
      %s827 = smul.u32 %s826, 8
      %v828 = vld [vmem:[%s0] sm:$0xff]
      %v829 = vld [vmem:[%s0 + $0x8] sm:$0xff]
      %s830 = smul.u32 %s20, 7
      %s831 = sadd.s32 %s827, %s830
      %s832 = smul.u32 %s830, 8
      %s833 = smul.addr %s832, 8
      %s834 = scalar_lea.vmem [#allocation2], %s833
      %v835 = vld [vmem:[%s834] sm:$0xff]
      %v836 = vld [vmem:[%s834 + $0x8] sm:$0xff]
      %v837 = vld [vmem:[%s834 + $0x10] sm:$0xff]
      %v838 = vld [vmem:[%s834 + $0x18] sm:$0xff]
      %v839 = vld [vmem:[%s834 + $0x20] sm:$0xff]
      %v840 = vld [vmem:[%s834 + $0x28] sm:$0xff]
      %v841 = vld [vmem:[%s834 + $0x30] sm:$0xff]
      %v842 = vld [vmem:[%s834 + $0x38] sm:$0xff]
      %v843 = vld [vmem:[#allocation3] sm:$0xff]
      %v844 = vld [vmem:[#allocation3 + $0x8] sm:$0xff]
      %v845 = vpack.c.bf16 %v844, %v843
      %v846 = vld [vmem:[%s346] sm:$0xff]
      %v847 = vld [vmem:[%s346 + $0x8] sm:$0xff]
      %v848 = vld [vmem:[%s346 + $0x10] sm:$0xff]
      %v849 = vld [vmem:[%s346 + $0x18] sm:$0xff]
      %v850 = vld [vmem:[%s346 + $0x20] sm:$0xff]
      %v851 = vld [vmem:[%s346 + $0x28] sm:$0xff]
      %v852 = vld [vmem:[%s346 + $0x30] sm:$0xff]
      %v853 = vld [vmem:[%s346 + $0x38] sm:$0xff]
      %v854 = vld [vmem:[%s346 + $0x40] sm:$0xff]
      %v855 = vld [vmem:[%s346 + $0x48] sm:$0xff]
      %v856 = vld [vmem:[%s346 + $0x50] sm:$0xff]
      %v857 = vld [vmem:[%s346 + $0x58] sm:$0xff]
      %v858 = vld [vmem:[%s346 + $0x60] sm:$0xff]
      %v859 = vld [vmem:[%s346 + $0x68] sm:$0xff]
      %v860 = vld [vmem:[%s346 + $0x70] sm:$0xff]
      %v861 = vld [vmem:[%s346 + $0x78] sm:$0xff]
      %v862 = vld [vmem:[%s346 + $0x80] sm:$0xff]
      %v863 = vld [vmem:[%s346 + $0x88] sm:$0xff]
      %v864 = vld [vmem:[%s346 + $0x90] sm:$0xff]
      %v865 = vld [vmem:[%s346 + $0x98] sm:$0xff]
      %v866 = vld [vmem:[%s346 + $0xa0] sm:$0xff]
      %v867 = vld [vmem:[%s346 + $0xa8] sm:$0xff]
      %v868 = vld [vmem:[%s346 + $0xb0] sm:$0xff]
      %v869 = vld [vmem:[%s346 + $0xb8] sm:$0xff]
      %v870 = vld [vmem:[%s346 + $0xc0] sm:$0xff]
      %v871 = vld [vmem:[%s346 + $0xc8] sm:$0xff]
      %v872 = vld [vmem:[%s346 + $0xd0] sm:$0xff]
      %v873 = vld [vmem:[%s346 + $0xd8] sm:$0xff]
      %v874 = vld [vmem:[%s346 + $0xe0] sm:$0xff]
      %v875 = vld [vmem:[%s346 + $0xe8] sm:$0xff]
      %v876 = vld [vmem:[%s346 + $0xf0] sm:$0xff]
      %v877 = vld [vmem:[%s346 + $0xf8] sm:$0xff]
      %v910 = vunpack.c.l.b16 %v846
      %v911 = vunpack.c.h.b16 %v846
      %v912 = vunpack.c.l.b16 %v847
      %v913 = vunpack.c.h.b16 %v847
      %v914 = vunpack.c.l.b16 %v848
      %v915 = vunpack.c.h.b16 %v848
      %v916 = vunpack.c.l.b16 %v849
      %v917 = vunpack.c.h.b16 %v849
      %v918 = vunpack.c.l.b16 %v850
      %v919 = vunpack.c.h.b16 %v850
      %v920 = vunpack.c.l.b16 %v851
      %v921 = vunpack.c.h.b16 %v851
      %v922 = vunpack.c.l.b16 %v852
      %v923 = vunpack.c.h.b16 %v852
      %v924 = vunpack.c.l.b16 %v853
      %v925 = vunpack.c.h.b16 %v853
      %v926 = vunpack.c.l.b16 %v854
      %v927 = vunpack.c.h.b16 %v854
      %v928 = vunpack.c.l.b16 %v855
      %v929 = vunpack.c.h.b16 %v855
      %v930 = vunpack.c.l.b16 %v856
      %v931 = vunpack.c.h.b16 %v856
      %v932 = vunpack.c.l.b16 %v857
      %v933 = vunpack.c.h.b16 %v857
      %v934 = vunpack.c.l.b16 %v858
      %v935 = vunpack.c.h.b16 %v858
      %v936 = vunpack.c.l.b16 %v859
      %v937 = vunpack.c.h.b16 %v859
      %v938 = vunpack.c.l.b16 %v860
      %v939 = vunpack.c.h.b16 %v860
      %v940 = vunpack.c.l.b16 %v861
      %v941 = vunpack.c.h.b16 %v861
      %v942 = vunpack.c.l.b16 %v862
      %v943 = vunpack.c.h.b16 %v862
      %v944 = vunpack.c.l.b16 %v863
      %v945 = vunpack.c.h.b16 %v863
      %v946 = vunpack.c.l.b16 %v864
      %v947 = vunpack.c.h.b16 %v864
      %v948 = vunpack.c.l.b16 %v865
      %v949 = vunpack.c.h.b16 %v865
      %v950 = vunpack.c.l.b16 %v866
      %v951 = vunpack.c.h.b16 %v866
      %v952 = vunpack.c.l.b16 %v867
      %v953 = vunpack.c.h.b16 %v867
      %v954 = vunpack.c.l.b16 %v868
      %v955 = vunpack.c.h.b16 %v868
      %v956 = vunpack.c.l.b16 %v869
      %v957 = vunpack.c.h.b16 %v869
      %v958 = vunpack.c.l.b16 %v870
      %v959 = vunpack.c.h.b16 %v870
      %v960 = vunpack.c.l.b16 %v871
      %v961 = vunpack.c.h.b16 %v871
      %v962 = vunpack.c.l.b16 %v872
      %v963 = vunpack.c.h.b16 %v872
      %v964 = vunpack.c.l.b16 %v873
      %v965 = vunpack.c.h.b16 %v873
      %v966 = vunpack.c.l.b16 %v874
      %v967 = vunpack.c.h.b16 %v874
      %v968 = vunpack.c.l.b16 %v875
      %v969 = vunpack.c.h.b16 %v875
      %v970 = vunpack.c.l.b16 %v876
      %v971 = vunpack.c.h.b16 %v876
      %v972 = vunpack.c.l.b16 %v877
      %v973 = vunpack.c.h.b16 %v877
      %v974 = vpack.c.b16 %v914, %v910
      %v975 = vpack.c.b16 %v915, %v911
      %v976 = vpack.c.b16 %v916, %v912
      %v977 = vpack.c.b16 %v917, %v913
      %v978 = vpack.c.b16 %v922, %v918
      %v979 = vpack.c.b16 %v923, %v919
      %v980 = vpack.c.b16 %v924, %v920
      %v981 = vpack.c.b16 %v925, %v921
      %v982 = vpack.c.b16 %v930, %v926
      %v983 = vpack.c.b16 %v931, %v927
      %v984 = vpack.c.b16 %v932, %v928
      %v985 = vpack.c.b16 %v933, %v929
      %v986 = vpack.c.b16 %v938, %v934
      %v987 = vpack.c.b16 %v939, %v935
      %v988 = vpack.c.b16 %v940, %v936
      %v989 = vpack.c.b16 %v941, %v937
      %v990 = vpack.c.b16 %v946, %v942
      %v991 = vpack.c.b16 %v947, %v943
      %v992 = vpack.c.b16 %v948, %v944
      %v993 = vpack.c.b16 %v949, %v945
      %v994 = vpack.c.b16 %v954, %v950
      %v995 = vpack.c.b16 %v955, %v951
      %v996 = vpack.c.b16 %v956, %v952
      %v997 = vpack.c.b16 %v957, %v953
      %v998 = vpack.c.b16 %v962, %v958
      %v999 = vpack.c.b16 %v963, %v959
      %v1000 = vpack.c.b16 %v964, %v960
      %v1001 = vpack.c.b16 %v965, %v961
      %v1002 = vpack.c.b16 %v970, %v966
      %v1003 = vpack.c.b16 %v971, %v967
      %v1004 = vpack.c.b16 %v972, %v968
      %v1005 = vpack.c.b16 %v973, %v969
      %1038 = vmatprep.subr.bf16.mxu0 %v1003
      %1039 = vmatpush1.bf16.msra.mxu0 %v1002
      %1040 = vmatprep.subr.bf16.mxu0 %v999
      %1041 = vmatpush1.bf16.msra.mxu0 %v998
      %1042 = vmatprep.subr.bf16.mxu0 %v995
      %1043 = vmatpush1.bf16.msra.mxu0 %v994
      %1044 = vmatprep.subr.bf16.mxu0 %v991
      %1045 = vmatpush1.bf16.msra.mxu0 %v990
      %1046 = vmatprep.subr.bf16.mxu0 %v987
      %1047 = vmatpush1.bf16.msra.mxu0 %v986
      %1048 = vmatprep.subr.bf16.mxu0 %v983
      %1049 = vmatpush1.bf16.msra.mxu0 %v982
      %1050 = vmatprep.subr.bf16.mxu0 %v979
      %1051 = vmatpush1.bf16.msra.mxu0 %v978
      %1052 = vmatprep.subr.bf16.mxu0 %v975
      %1053 = vmatpush1.bf16.msra.mxu0 %v974
      %1054 = vmatprep.subr.bf16.mxu0 0
      %1055 = vmatpush2.bf16.msra.mxu0 0
      %1056 = vmatprep.subr.bf16.mxu0 0
      %1057 = vmatpush2.bf16.msra.mxu0 0
      %1058 = vmatprep.subr.bf16.mxu0 0
      %1059 = vmatpush2.bf16.msra.mxu0 0
      %1060 = vmatprep.subr.bf16.mxu0 0
      %1061 = vmatpush2.bf16.msra.mxu0 0
      %1062 = vmatprep.subr.bf16.mxu0 0
      %1063 = vmatpush2.bf16.msra.mxu0 0
      %1064 = vmatprep.subr.bf16.mxu0 0
      %1065 = vmatpush2.bf16.msra.mxu0 0
      %1066 = vmatprep.subr.bf16.mxu0 0
      %1067 = vmatpush2.bf16.msra.mxu0 0
      %1068 = vmatprep.subr.bf16.mxu0 0
      %1069 = vmatpush2.bf16.msra.mxu0 0
      %1070 = vmatprep.mubr.bf16.mxu0 0
      %1071 = vmatmul.mubr.bf16.gmra.mxu0 %v845
      %v1072 = vpop.f32.mrf.mxu0
      %v1073 = vadd.f32 0.0, %v1072
      %v1074 = vpop.f32.mrf.mxu0
      %v1075 = vadd.f32 0.0, %v1074
      %v1076 = vpop.f32.mrf.mxu0
      %v1077 = vadd.f32 0.0, %v1076
      %v1078 = vpop.f32.mrf.mxu0
      %v1079 = vadd.f32 0.0, %v1078
      %1080 = vdwg.mxu0
      %1081 = vmatprep.subr.bf16.mxu0 %v1005
      %1082 = vmatpush1.bf16.msra.mxu0 %v1004
      %1083 = vmatprep.subr.bf16.mxu0 %v1001
      %1084 = vmatpush1.bf16.msra.mxu0 %v1000
      %1085 = vmatprep.subr.bf16.mxu0 %v997
      %1086 = vmatpush1.bf16.msra.mxu0 %v996
      %1087 = vmatprep.subr.bf16.mxu0 %v993
      %1088 = vmatpush1.bf16.msra.mxu0 %v992
      %1089 = vmatprep.subr.bf16.mxu0 %v989
      %1090 = vmatpush1.bf16.msra.mxu0 %v988
      %1091 = vmatprep.subr.bf16.mxu0 %v985
      %1092 = vmatpush1.bf16.msra.mxu0 %v984
      %1093 = vmatprep.subr.bf16.mxu0 %v981
      %1094 = vmatpush1.bf16.msra.mxu0 %v980
      %1095 = vmatprep.subr.bf16.mxu0 %v977
      %1096 = vmatpush1.bf16.msra.mxu0 %v976
      %1097 = vmatprep.subr.bf16.mxu0 0
      %1098 = vmatpush2.bf16.msra.mxu0 0
      %1099 = vmatprep.subr.bf16.mxu0 0
      %1100 = vmatpush2.bf16.msra.mxu0 0
      %1101 = vmatprep.subr.bf16.mxu0 0
      %1102 = vmatpush2.bf16.msra.mxu0 0
      %1103 = vmatprep.subr.bf16.mxu0 0
      %1104 = vmatpush2.bf16.msra.mxu0 0
      %1105 = vmatprep.subr.bf16.mxu0 0
      %1106 = vmatpush2.bf16.msra.mxu0 0
      %1107 = vmatprep.subr.bf16.mxu0 0
      %1108 = vmatpush2.bf16.msra.mxu0 0
      %1109 = vmatprep.subr.bf16.mxu0 0
      %1110 = vmatpush2.bf16.msra.mxu0 0
      %1111 = vmatprep.subr.bf16.mxu0 0
      %1112 = vmatpush2.bf16.msra.mxu0 0
      %1113 = vmatprep.mubr.bf16.mxu0 0
      %1114 = vmatmul.mubr.bf16.gmra.mxu0 %v845
      %v1115 = vpop.f32.mrf.mxu0
      %v1116 = vadd.f32 0.0, %v1115
      %v1117 = vpop.f32.mrf.mxu0
      %v1118 = vadd.f32 0.0, %v1117
      %v1119 = vpop.f32.mrf.mxu0
      %v1120 = vadd.f32 0.0, %v1119
      %v1121 = vpop.f32.mrf.mxu0
      %v1122 = vadd.f32 0.0, %v1121
      %1123 = vdwg.mxu0
      %v1124 = vadd.f32 %v835, %v1073
      %v1125 = vadd.f32 %v836, %v1075
      %v1126 = vadd.f32 %v837, %v1116
      %v1127 = vadd.f32 %v838, %v1118
      %v1128 = vadd.f32 %v839, %v1077
      %v1129 = vadd.f32 %v840, %v1079
      %v1130 = vadd.f32 %v841, %v1120
      %v1131 = vadd.f32 %v842, %v1122
      %v1132 = vxor.u32 %v1124, 2147483648
      %v1133 = vxor.u32 %v1125, 2147483648
      %v1134 = vxor.u32 %v1126, 2147483648
      %v1135 = vxor.u32 %v1128, 2147483648
      %v1136 = vxor.u32 %v1129, 2147483648
      %v1137 = vxor.u32 %v1130, 2147483648
      %v1138 = vmul.f32 %v1132, 1.442695
      %v1139 = vpow.pop %v1138
      %v1140 = vmul.f32 %v1133, 1.442695
      %v1141 = vpow.pop %v1140
      %v1142 = vmul.f32 %v1134, 1.442695
      %v1143 = vpow.pop %v1142
      %v1144 = vmul.f32 %v1135, 1.442695
      %v1145 = vpow.pop %v1144
      %v1146 = vmul.f32 %v1136, 1.442695
      %v1147 = vpow.pop %v1146
      %v1148 = vmul.f32 %v1137, 1.442695
      %v1149 = vpow.pop %v1148
      %v1150 = vadd.f32 %v1139, 1.0
      %v1151 = vadd.f32 %v1141, 1.0
      %v1152 = vadd.f32 %v1143, 1.0
      %v1153 = vadd.f32 %v1145, 1.0
      %v1154 = vadd.f32 %v1147, 1.0
      %v1155 = vadd.f32 %v1149, 1.0
      %v1156 = vrcp.pop %v1150
      %v1157 = vmul.f32 1.0, %v1156
      %v1158 = vrcp.pop %v1151
      %v1159 = vmul.f32 1.0, %v1158
      %v1160 = vrcp.pop %v1152
      %v1161 = vmul.f32 1.0, %v1160
      %v1162 = vrcp.pop %v1153
      %v1163 = vmul.f32 1.0, %v1162
      %v1164 = vrcp.pop %v1154
      %v1165 = vmul.f32 1.0, %v1164
      %v1166 = vrcp.pop %v1155
      %v1167 = vmul.f32 1.0, %v1166
      %v1168 = vtanh.pop %v1127
      %v1169 = vtanh.pop %v1131
      %v1170 = vld [vmem:[#allocation4] sm:$0xff]
      %v1171 = vld [vmem:[#allocation4 + $0x8] sm:$0xff]
      %v1172 = vmul.f32 %v1159, %v1170
      %v1173 = vmul.f32 %v1165, %v1171
      %v1174 = vmul.f32 %v1157, %v1168
      %v1175 = vmul.f32 %v1163, %v1169
      %v1176 = vadd.f32 %v1172, %v1174
      %v1177 = vadd.f32 %v1173, %v1175
      %v1178 = vtanh.pop %v1176
      %v1179 = vtanh.pop %v1177
      %v1180 = vmul.f32 %v1161, %v1178
      %v1181 = vmul.f32 %v1167, %v1179
      %v1182 = vstv %s831
      %vm1183 = vcmp.gt.s32.totalorder %v828, %v1182
      %vm1184 = vcmp.gt.s32.totalorder %v829, %v1182
      %v1185 = vsel %vm1183, 1, 0
      %v1186 = vsel %vm1184, 1, 0
      %1187 = vset.pattern.permute.xlu0 0
      %1188 = vperm.xlu0 %1187, %v1185
      %v1189 = vpop.permute.xlu0 %1188
      %1190 = vset.pattern.permute.xlu0 0
      %1191 = vperm.xlu0 %1190, %v1186
      %v1192 = vpop.permute.xlu0 %1191
      %vm1193 = vcmp.eq.s32.totalorder %v1189, 1
      %vm1194 = vcmp.eq.s32.totalorder %v1192, 1
      %v1195 = vsel %vm1193, %v1180, %v843
      %v1196 = vsel %vm1194, %v1181, %v844
      %1197 = vst [vmem:[#allocation3] sm:$0xff] %v1195
      %1198 = vst [vmem:[#allocation3 + $0x8] sm:$0xff] %v1196
      %v1199 = vld [vmem:[#allocation4] sm:$0xff]
      %v1200 = vld [vmem:[#allocation4 + $0x8] sm:$0xff]
      %v1201 = vsel %vm1193, %v1176, %v1199
      %v1202 = vsel %vm1194, %v1177, %v1200
      %1203 = vst [vmem:[#allocation4] sm:$0xff] %v1201
      %1204 = vst [vmem:[#allocation4 + $0x8] sm:$0xff] %v1202
      %v1205 = vsel %vm1193, %v1180, 0.0
      %v1206 = vsel %vm1194, %v1181, 0.0
      %v1207 = vpack.c.bf16 %v1206, %v1205
      %v1209 = vunpack.c.l.b16 %v1207
      %v1210 = vunpack.c.h.b16 %v1207
      %v1211 = vpack.c.b16 %v1209, %v1209
      %v1212 = vpack.c.b16 %v1210, %v1210
      %s1215 = smul.u32 %s830, 2
      %s1216 = smul.addr %s1215, 4
      %s1217 = scalar_lea.vmem %s365, %s1216
      %1218 = vst [vmem:[%s1217] sm:$0xf] %v1211
      %1219 = vst [vmem:[%s1217 + $0x4] sm:$0xf] %v1212
      %s1220 = smul.u32 %s20, 6
      %s1221 = sadd.s32 %s822, %s1220
      %s1222 = sadd.s32 %s827, %s1221
      %s1223 = smul.u32 %s1221, 8
      %s1224 = smul.addr %s1223, 8
      %s1225 = scalar_lea.vmem [#allocation2], %s1224
      %v1226 = vld [vmem:[%s1225] sm:$0xff]
      %v1227 = vld [vmem:[%s1225 + $0x8] sm:$0xff]
      %v1228 = vld [vmem:[%s1225 + $0x10] sm:$0xff]
      %v1229 = vld [vmem:[%s1225 + $0x18] sm:$0xff]
      %v1230 = vld [vmem:[%s1225 + $0x20] sm:$0xff]
      %v1231 = vld [vmem:[%s1225 + $0x28] sm:$0xff]
      %v1232 = vld [vmem:[%s1225 + $0x30] sm:$0xff]
      %v1233 = vld [vmem:[%s1225 + $0x38] sm:$0xff]
      %v1234 = vld [vmem:[#allocation3] sm:$0xff]
      %v1235 = vld [vmem:[#allocation3 + $0x8] sm:$0xff]
      %v1236 = vpack.c.bf16 %v1235, %v1234
      %v1237 = vld [vmem:[%s346] sm:$0xff]
      %v1238 = vld [vmem:[%s346 + $0x8] sm:$0xff]
      %v1239 = vld [vmem:[%s346 + $0x10] sm:$0xff]
      %v1240 = vld [vmem:[%s346 + $0x18] sm:$0xff]
      %v1241 = vld [vmem:[%s346 + $0x20] sm:$0xff]
      %v1242 = vld [vmem:[%s346 + $0x28] sm:$0xff]
      %v1243 = vld [vmem:[%s346 + $0x30] sm:$0xff]
      %v1244 = vld [vmem:[%s346 + $0x38] sm:$0xff]
      %v1245 = vld [vmem:[%s346 + $0x40] sm:$0xff]
      %v1246 = vld [vmem:[%s346 + $0x48] sm:$0xff]
      %v1247 = vld [vmem:[%s346 + $0x50] sm:$0xff]
      %v1248 = vld [vmem:[%s346 + $0x58] sm:$0xff]
      %v1249 = vld [vmem:[%s346 + $0x60] sm:$0xff]
      %v1250 = vld [vmem:[%s346 + $0x68] sm:$0xff]
      %v1251 = vld [vmem:[%s346 + $0x70] sm:$0xff]
      %v1252 = vld [vmem:[%s346 + $0x78] sm:$0xff]
      %v1253 = vld [vmem:[%s346 + $0x80] sm:$0xff]
      %v1254 = vld [vmem:[%s346 + $0x88] sm:$0xff]
      %v1255 = vld [vmem:[%s346 + $0x90] sm:$0xff]
      %v1256 = vld [vmem:[%s346 + $0x98] sm:$0xff]
      %v1257 = vld [vmem:[%s346 + $0xa0] sm:$0xff]
      %v1258 = vld [vmem:[%s346 + $0xa8] sm:$0xff]
      %v1259 = vld [vmem:[%s346 + $0xb0] sm:$0xff]
      %v1260 = vld [vmem:[%s346 + $0xb8] sm:$0xff]
      %v1261 = vld [vmem:[%s346 + $0xc0] sm:$0xff]
      %v1262 = vld [vmem:[%s346 + $0xc8] sm:$0xff]
      %v1263 = vld [vmem:[%s346 + $0xd0] sm:$0xff]
      %v1264 = vld [vmem:[%s346 + $0xd8] sm:$0xff]
      %v1265 = vld [vmem:[%s346 + $0xe0] sm:$0xff]
      %v1266 = vld [vmem:[%s346 + $0xe8] sm:$0xff]
      %v1267 = vld [vmem:[%s346 + $0xf0] sm:$0xff]
      %v1268 = vld [vmem:[%s346 + $0xf8] sm:$0xff]
      %v1301 = vunpack.c.l.b16 %v1237
      %v1302 = vunpack.c.h.b16 %v1237
      %v1303 = vunpack.c.l.b16 %v1238
      %v1304 = vunpack.c.h.b16 %v1238
      %v1305 = vunpack.c.l.b16 %v1239
      %v1306 = vunpack.c.h.b16 %v1239
      %v1307 = vunpack.c.l.b16 %v1240
      %v1308 = vunpack.c.h.b16 %v1240
      %v1309 = vunpack.c.l.b16 %v1241
      %v1310 = vunpack.c.h.b16 %v1241
      %v1311 = vunpack.c.l.b16 %v1242
      %v1312 = vunpack.c.h.b16 %v1242
      %v1313 = vunpack.c.l.b16 %v1243
      %v1314 = vunpack.c.h.b16 %v1243
      %v1315 = vunpack.c.l.b16 %v1244
      %v1316 = vunpack.c.h.b16 %v1244
      %v1317 = vunpack.c.l.b16 %v1245
      %v1318 = vunpack.c.h.b16 %v1245
      %v1319 = vunpack.c.l.b16 %v1246
      %v1320 = vunpack.c.h.b16 %v1246
      %v1321 = vunpack.c.l.b16 %v1247
      %v1322 = vunpack.c.h.b16 %v1247
      %v1323 = vunpack.c.l.b16 %v1248
      %v1324 = vunpack.c.h.b16 %v1248
      %v1325 = vunpack.c.l.b16 %v1249
      %v1326 = vunpack.c.h.b16 %v1249
      %v1327 = vunpack.c.l.b16 %v1250
      %v1328 = vunpack.c.h.b16 %v1250
      %v1329 = vunpack.c.l.b16 %v1251
      %v1330 = vunpack.c.h.b16 %v1251
      %v1331 = vunpack.c.l.b16 %v1252
      %v1332 = vunpack.c.h.b16 %v1252
      %v1333 = vunpack.c.l.b16 %v1253
      %v1334 = vunpack.c.h.b16 %v1253
      %v1335 = vunpack.c.l.b16 %v1254
      %v1336 = vunpack.c.h.b16 %v1254
      %v1337 = vunpack.c.l.b16 %v1255
      %v1338 = vunpack.c.h.b16 %v1255
      %v1339 = vunpack.c.l.b16 %v1256
      %v1340 = vunpack.c.h.b16 %v1256
      %v1341 = vunpack.c.l.b16 %v1257
      %v1342 = vunpack.c.h.b16 %v1257
      %v1343 = vunpack.c.l.b16 %v1258
      %v1344 = vunpack.c.h.b16 %v1258
      %v1345 = vunpack.c.l.b16 %v1259
      %v1346 = vunpack.c.h.b16 %v1259
      %v1347 = vunpack.c.l.b16 %v1260
      %v1348 = vunpack.c.h.b16 %v1260
      %v1349 = vunpack.c.l.b16 %v1261
      %v1350 = vunpack.c.h.b16 %v1261
      %v1351 = vunpack.c.l.b16 %v1262
      %v1352 = vunpack.c.h.b16 %v1262
      %v1353 = vunpack.c.l.b16 %v1263
      %v1354 = vunpack.c.h.b16 %v1263
      %v1355 = vunpack.c.l.b16 %v1264
      %v1356 = vunpack.c.h.b16 %v1264
      %v1357 = vunpack.c.l.b16 %v1265
      %v1358 = vunpack.c.h.b16 %v1265
      %v1359 = vunpack.c.l.b16 %v1266
      %v1360 = vunpack.c.h.b16 %v1266
      %v1361 = vunpack.c.l.b16 %v1267
      %v1362 = vunpack.c.h.b16 %v1267
      %v1363 = vunpack.c.l.b16 %v1268
      %v1364 = vunpack.c.h.b16 %v1268
      %v1365 = vpack.c.b16 %v1305, %v1301
      %v1366 = vpack.c.b16 %v1306, %v1302
      %v1367 = vpack.c.b16 %v1307, %v1303
      %v1368 = vpack.c.b16 %v1308, %v1304
      %v1369 = vpack.c.b16 %v1313, %v1309
      %v1370 = vpack.c.b16 %v1314, %v1310
      %v1371 = vpack.c.b16 %v1315, %v1311
      %v1372 = vpack.c.b16 %v1316, %v1312
      %v1373 = vpack.c.b16 %v1321, %v1317
      %v1374 = vpack.c.b16 %v1322, %v1318
      %v1375 = vpack.c.b16 %v1323, %v1319
      %v1376 = vpack.c.b16 %v1324, %v1320
      %v1377 = vpack.c.b16 %v1329, %v1325
      %v1378 = vpack.c.b16 %v1330, %v1326
      %v1379 = vpack.c.b16 %v1331, %v1327
      %v1380 = vpack.c.b16 %v1332, %v1328
      %v1381 = vpack.c.b16 %v1337, %v1333
      %v1382 = vpack.c.b16 %v1338, %v1334
      %v1383 = vpack.c.b16 %v1339, %v1335
      %v1384 = vpack.c.b16 %v1340, %v1336
      %v1385 = vpack.c.b16 %v1345, %v1341
      %v1386 = vpack.c.b16 %v1346, %v1342
      %v1387 = vpack.c.b16 %v1347, %v1343
      %v1388 = vpack.c.b16 %v1348, %v1344
      %v1389 = vpack.c.b16 %v1353, %v1349
      %v1390 = vpack.c.b16 %v1354, %v1350
      %v1391 = vpack.c.b16 %v1355, %v1351
      %v1392 = vpack.c.b16 %v1356, %v1352
      %v1393 = vpack.c.b16 %v1361, %v1357
      %v1394 = vpack.c.b16 %v1362, %v1358
      %v1395 = vpack.c.b16 %v1363, %v1359
      %v1396 = vpack.c.b16 %v1364, %v1360
      %1429 = vmatprep.subr.bf16.mxu0 %v1394
      %1430 = vmatpush1.bf16.msra.mxu0 %v1393
      %1431 = vmatprep.subr.bf16.mxu0 %v1390
      %1432 = vmatpush1.bf16.msra.mxu0 %v1389
      %1433 = vmatprep.subr.bf16.mxu0 %v1386
      %1434 = vmatpush1.bf16.msra.mxu0 %v1385
      %1435 = vmatprep.subr.bf16.mxu0 %v1382
      %1436 = vmatpush1.bf16.msra.mxu0 %v1381
      %1437 = vmatprep.subr.bf16.mxu0 %v1378
      %1438 = vmatpush1.bf16.msra.mxu0 %v1377
      %1439 = vmatprep.subr.bf16.mxu0 %v1374
      %1440 = vmatpush1.bf16.msra.mxu0 %v1373
      %1441 = vmatprep.subr.bf16.mxu0 %v1370
      %1442 = vmatpush1.bf16.msra.mxu0 %v1369
      %1443 = vmatprep.subr.bf16.mxu0 %v1366
      %1444 = vmatpush1.bf16.msra.mxu0 %v1365
      %1445 = vmatprep.subr.bf16.mxu0 0
      %1446 = vmatpush2.bf16.msra.mxu0 0
      %1447 = vmatprep.subr.bf16.mxu0 0
      %1448 = vmatpush2.bf16.msra.mxu0 0
      %1449 = vmatprep.subr.bf16.mxu0 0
      %1450 = vmatpush2.bf16.msra.mxu0 0
      %1451 = vmatprep.subr.bf16.mxu0 0
      %1452 = vmatpush2.bf16.msra.mxu0 0
      %1453 = vmatprep.subr.bf16.mxu0 0
      %1454 = vmatpush2.bf16.msra.mxu0 0
      %1455 = vmatprep.subr.bf16.mxu0 0
      %1456 = vmatpush2.bf16.msra.mxu0 0
      %1457 = vmatprep.subr.bf16.mxu0 0
      %1458 = vmatpush2.bf16.msra.mxu0 0
      %1459 = vmatprep.subr.bf16.mxu0 0
      %1460 = vmatpush2.bf16.msra.mxu0 0
      %1461 = vmatprep.mubr.bf16.mxu0 0
      %1462 = vmatmul.mubr.bf16.gmra.mxu0 %v1236
      %v1463 = vpop.f32.mrf.mxu0
      %v1464 = vadd.f32 0.0, %v1463
      %v1465 = vpop.f32.mrf.mxu0
      %v1466 = vadd.f32 0.0, %v1465
      %v1467 = vpop.f32.mrf.mxu0
      %v1468 = vadd.f32 0.0, %v1467
      %v1469 = vpop.f32.mrf.mxu0
      %v1470 = vadd.f32 0.0, %v1469
      %1471 = vdwg.mxu0
      %1472 = vmatprep.subr.bf16.mxu0 %v1396
      %1473 = vmatpush1.bf16.msra.mxu0 %v1395
      %1474 = vmatprep.subr.bf16.mxu0 %v1392
      %1475 = vmatpush1.bf16.msra.mxu0 %v1391
      %1476 = vmatprep.subr.bf16.mxu0 %v1388
      %1477 = vmatpush1.bf16.msra.mxu0 %v1387
      %1478 = vmatprep.subr.bf16.mxu0 %v1384
      %1479 = vmatpush1.bf16.msra.mxu0 %v1383
      %1480 = vmatprep.subr.bf16.mxu0 %v1380
      %1481 = vmatpush1.bf16.msra.mxu0 %v1379
      %1482 = vmatprep.subr.bf16.mxu0 %v1376
      %1483 = vmatpush1.bf16.msra.mxu0 %v1375
      %1484 = vmatprep.subr.bf16.mxu0 %v1372
      %1485 = vmatpush1.bf16.msra.mxu0 %v1371
      %1486 = vmatprep.subr.bf16.mxu0 %v1368
      %1487 = vmatpush1.bf16.msra.mxu0 %v1367
      %1488 = vmatprep.subr.bf16.mxu0 0
      %1489 = vmatpush2.bf16.msra.mxu0 0
      %1490 = vmatprep.subr.bf16.mxu0 0
      %1491 = vmatpush2.bf16.msra.mxu0 0
      %1492 = vmatprep.subr.bf16.mxu0 0
      %1493 = vmatpush2.bf16.msra.mxu0 0
      %1494 = vmatprep.subr.bf16.mxu0 0
      %1495 = vmatpush2.bf16.msra.mxu0 0
      %1496 = vmatprep.subr.bf16.mxu0 0
      %1497 = vmatpush2.bf16.msra.mxu0 0
      %1498 = vmatprep.subr.bf16.mxu0 0
      %1499 = vmatpush2.bf16.msra.mxu0 0
      %1500 = vmatprep.subr.bf16.mxu0 0
      %1501 = vmatpush2.bf16.msra.mxu0 0
      %1502 = vmatprep.subr.bf16.mxu0 0
      %1503 = vmatpush2.bf16.msra.mxu0 0
      %1504 = vmatprep.mubr.bf16.mxu0 0
      %1505 = vmatmul.mubr.bf16.gmra.mxu0 %v1236
      %v1506 = vpop.f32.mrf.mxu0
      %v1507 = vadd.f32 0.0, %v1506
      %v1508 = vpop.f32.mrf.mxu0
      %v1509 = vadd.f32 0.0, %v1508
      %v1510 = vpop.f32.mrf.mxu0
      %v1511 = vadd.f32 0.0, %v1510
      %v1512 = vpop.f32.mrf.mxu0
      %v1513 = vadd.f32 0.0, %v1512
      %1514 = vdwg.mxu0
      %v1515 = vadd.f32 %v1226, %v1464
      %v1516 = vadd.f32 %v1227, %v1466
      %v1517 = vadd.f32 %v1228, %v1507
      %v1518 = vadd.f32 %v1229, %v1509
      %v1519 = vadd.f32 %v1230, %v1468
      %v1520 = vadd.f32 %v1231, %v1470
      %v1521 = vadd.f32 %v1232, %v1511
      %v1522 = vadd.f32 %v1233, %v1513
      %v1523 = vxor.u32 %v1515, 2147483648
      %v1524 = vxor.u32 %v1516, 2147483648
      %v1525 = vxor.u32 %v1517, 2147483648
      %v1526 = vxor.u32 %v1519, 2147483648
      %v1527 = vxor.u32 %v1520, 2147483648
      %v1528 = vxor.u32 %v1521, 2147483648
      %v1529 = vmul.f32 %v1523, 1.442695
      %v1530 = vpow.pop %v1529
      %v1531 = vmul.f32 %v1524, 1.442695
      %v1532 = vpow.pop %v1531
      %v1533 = vmul.f32 %v1525, 1.442695
      %v1534 = vpow.pop %v1533
      %v1535 = vmul.f32 %v1526, 1.442695
      %v1536 = vpow.pop %v1535
      %v1537 = vmul.f32 %v1527, 1.442695
      %v1538 = vpow.pop %v1537
      %v1539 = vmul.f32 %v1528, 1.442695
      %v1540 = vpow.pop %v1539
      %v1541 = vadd.f32 %v1530, 1.0
      %v1542 = vadd.f32 %v1532, 1.0
      %v1543 = vadd.f32 %v1534, 1.0
      %v1544 = vadd.f32 %v1536, 1.0
      %v1545 = vadd.f32 %v1538, 1.0
      %v1546 = vadd.f32 %v1540, 1.0
      %v1547 = vrcp.pop %v1541
      %v1548 = vmul.f32 1.0, %v1547
      %v1549 = vrcp.pop %v1542
      %v1550 = vmul.f32 1.0, %v1549
      %v1551 = vrcp.pop %v1543
      %v1552 = vmul.f32 1.0, %v1551
      %v1553 = vrcp.pop %v1544
      %v1554 = vmul.f32 1.0, %v1553
      %v1555 = vrcp.pop %v1545
      %v1556 = vmul.f32 1.0, %v1555
      %v1557 = vrcp.pop %v1546
      %v1558 = vmul.f32 1.0, %v1557
      %v1559 = vtanh.pop %v1518
      %v1560 = vtanh.pop %v1522
      %v1561 = vld [vmem:[#allocation4] sm:$0xff]
      %v1562 = vld [vmem:[#allocation4 + $0x8] sm:$0xff]
      %v1563 = vmul.f32 %v1550, %v1561
      %v1564 = vmul.f32 %v1556, %v1562
      %v1565 = vmul.f32 %v1548, %v1559
      %v1566 = vmul.f32 %v1554, %v1560
      %v1567 = vadd.f32 %v1563, %v1565
      %v1568 = vadd.f32 %v1564, %v1566
      %v1569 = vtanh.pop %v1567
      %v1570 = vtanh.pop %v1568
      %v1571 = vmul.f32 %v1552, %v1569
      %v1572 = vmul.f32 %v1558, %v1570
      %v1573 = vstv %s1222
      %vm1574 = vcmp.gt.s32.totalorder %v828, %v1573
      %vm1575 = vcmp.gt.s32.totalorder %v829, %v1573
      %v1576 = vsel %vm1574, 1, 0
      %v1577 = vsel %vm1575, 1, 0
      %1578 = vset.pattern.permute.xlu0 0
      %1579 = vperm.xlu0 %1578, %v1576
      %v1580 = vpop.permute.xlu0 %1579
      %1581 = vset.pattern.permute.xlu0 0
      %1582 = vperm.xlu0 %1581, %v1577
      %v1583 = vpop.permute.xlu0 %1582
      %vm1584 = vcmp.eq.s32.totalorder %v1580, 1
      %vm1585 = vcmp.eq.s32.totalorder %v1583, 1
      %v1586 = vsel %vm1584, %v1571, %v1234
      %v1587 = vsel %vm1585, %v1572, %v1235
      %1588 = vst [vmem:[#allocation3] sm:$0xff] %v1586
      %1589 = vst [vmem:[#allocation3 + $0x8] sm:$0xff] %v1587
      %v1590 = vld [vmem:[#allocation4] sm:$0xff]
      %v1591 = vld [vmem:[#allocation4 + $0x8] sm:$0xff]
      %v1592 = vsel %vm1584, %v1567, %v1590
      %v1593 = vsel %vm1585, %v1568, %v1591
      %1594 = vst [vmem:[#allocation4] sm:$0xff] %v1592
      %1595 = vst [vmem:[#allocation4 + $0x8] sm:$0xff] %v1593
      %v1596 = vsel %vm1584, %v1571, 0.0
      %v1597 = vsel %vm1585, %v1572, 0.0
      %v1598 = vpack.c.bf16 %v1597, %v1596
      %v1600 = vunpack.c.l.b16 %v1598
      %v1601 = vunpack.c.h.b16 %v1598
      %v1602 = vpack.c.b16 %v1600, %v1600
      %v1603 = vpack.c.b16 %v1601, %v1601
      %s1606 = smul.u32 %s1221, 2
      %s1607 = smul.addr %s1606, 4
      %s1608 = scalar_lea.vmem %s365, %s1607
      %1609 = vst [vmem:[%s1608] sm:$0xf] %v1602
      %1610 = vst [vmem:[%s1608 + $0x4] sm:$0xf] %v1603
      %s1611 = smul.u32 %s822, 2
      %s1612 = smul.u32 %s20, 5
      %s1613 = sadd.s32 %s1611, %s1612
      %s1614 = sadd.s32 %s827, %s1613
      %s1615 = smul.u32 %s1613, 8
      %s1616 = smul.addr %s1615, 8
      %s1617 = scalar_lea.vmem [#allocation2], %s1616
      %v1618 = vld [vmem:[%s1617] sm:$0xff]
      %v1619 = vld [vmem:[%s1617 + $0x8] sm:$0xff]
      %v1620 = vld [vmem:[%s1617 + $0x10] sm:$0xff]
      %v1621 = vld [vmem:[%s1617 + $0x18] sm:$0xff]
      %v1622 = vld [vmem:[%s1617 + $0x20] sm:$0xff]
      %v1623 = vld [vmem:[%s1617 + $0x28] sm:$0xff]
      %v1624 = vld [vmem:[%s1617 + $0x30] sm:$0xff]
      %v1625 = vld [vmem:[%s1617 + $0x38] sm:$0xff]
      %v1626 = vld [vmem:[#allocation3] sm:$0xff]
      %v1627 = vld [vmem:[#allocation3 + $0x8] sm:$0xff]
      %v1628 = vpack.c.bf16 %v1627, %v1626
      %v1629 = vld [vmem:[%s346] sm:$0xff]
      %v1630 = vld [vmem:[%s346 + $0x8] sm:$0xff]
      %v1631 = vld [vmem:[%s346 + $0x10] sm:$0xff]
      %v1632 = vld [vmem:[%s346 + $0x18] sm:$0xff]
      %v1633 = vld [vmem:[%s346 + $0x20] sm:$0xff]
      %v1634 = vld [vmem:[%s346 + $0x28] sm:$0xff]
      %v1635 = vld [vmem:[%s346 + $0x30] sm:$0xff]
      %v1636 = vld [vmem:[%s346 + $0x38] sm:$0xff]
      %v1637 = vld [vmem:[%s346 + $0x40] sm:$0xff]
      %v1638 = vld [vmem:[%s346 + $0x48] sm:$0xff]
      %v1639 = vld [vmem:[%s346 + $0x50] sm:$0xff]
      %v1640 = vld [vmem:[%s346 + $0x58] sm:$0xff]
      %v1641 = vld [vmem:[%s346 + $0x60] sm:$0xff]
      %v1642 = vld [vmem:[%s346 + $0x68] sm:$0xff]
      %v1643 = vld [vmem:[%s346 + $0x70] sm:$0xff]
      %v1644 = vld [vmem:[%s346 + $0x78] sm:$0xff]
      %v1645 = vld [vmem:[%s346 + $0x80] sm:$0xff]
      %v1646 = vld [vmem:[%s346 + $0x88] sm:$0xff]
      %v1647 = vld [vmem:[%s346 + $0x90] sm:$0xff]
      %v1648 = vld [vmem:[%s346 + $0x98] sm:$0xff]
      %v1649 = vld [vmem:[%s346 + $0xa0] sm:$0xff]
      %v1650 = vld [vmem:[%s346 + $0xa8] sm:$0xff]
      %v1651 = vld [vmem:[%s346 + $0xb0] sm:$0xff]
      %v1652 = vld [vmem:[%s346 + $0xb8] sm:$0xff]
      %v1653 = vld [vmem:[%s346 + $0xc0] sm:$0xff]
      %v1654 = vld [vmem:[%s346 + $0xc8] sm:$0xff]
      %v1655 = vld [vmem:[%s346 + $0xd0] sm:$0xff]
      %v1656 = vld [vmem:[%s346 + $0xd8] sm:$0xff]
      %v1657 = vld [vmem:[%s346 + $0xe0] sm:$0xff]
      %v1658 = vld [vmem:[%s346 + $0xe8] sm:$0xff]
      %v1659 = vld [vmem:[%s346 + $0xf0] sm:$0xff]
      %v1660 = vld [vmem:[%s346 + $0xf8] sm:$0xff]
      %v1693 = vunpack.c.l.b16 %v1629
      %v1694 = vunpack.c.h.b16 %v1629
      %v1695 = vunpack.c.l.b16 %v1630
      %v1696 = vunpack.c.h.b16 %v1630
      %v1697 = vunpack.c.l.b16 %v1631
      %v1698 = vunpack.c.h.b16 %v1631
      %v1699 = vunpack.c.l.b16 %v1632
      %v1700 = vunpack.c.h.b16 %v1632
      %v1701 = vunpack.c.l.b16 %v1633
      %v1702 = vunpack.c.h.b16 %v1633
      %v1703 = vunpack.c.l.b16 %v1634
      %v1704 = vunpack.c.h.b16 %v1634
      %v1705 = vunpack.c.l.b16 %v1635
      %v1706 = vunpack.c.h.b16 %v1635
      %v1707 = vunpack.c.l.b16 %v1636
      %v1708 = vunpack.c.h.b16 %v1636
      %v1709 = vunpack.c.l.b16 %v1637
      %v1710 = vunpack.c.h.b16 %v1637
      %v1711 = vunpack.c.l.b16 %v1638
      %v1712 = vunpack.c.h.b16 %v1638
      %v1713 = vunpack.c.l.b16 %v1639
      %v1714 = vunpack.c.h.b16 %v1639
      %v1715 = vunpack.c.l.b16 %v1640
      %v1716 = vunpack.c.h.b16 %v1640
      %v1717 = vunpack.c.l.b16 %v1641
      %v1718 = vunpack.c.h.b16 %v1641
      %v1719 = vunpack.c.l.b16 %v1642
      %v1720 = vunpack.c.h.b16 %v1642
      %v1721 = vunpack.c.l.b16 %v1643
      %v1722 = vunpack.c.h.b16 %v1643
      %v1723 = vunpack.c.l.b16 %v1644
      %v1724 = vunpack.c.h.b16 %v1644
      %v1725 = vunpack.c.l.b16 %v1645
      %v1726 = vunpack.c.h.b16 %v1645
      %v1727 = vunpack.c.l.b16 %v1646
      %v1728 = vunpack.c.h.b16 %v1646
      %v1729 = vunpack.c.l.b16 %v1647
      %v1730 = vunpack.c.h.b16 %v1647
      %v1731 = vunpack.c.l.b16 %v1648
      %v1732 = vunpack.c.h.b16 %v1648
      %v1733 = vunpack.c.l.b16 %v1649
      %v1734 = vunpack.c.h.b16 %v1649
      %v1735 = vunpack.c.l.b16 %v1650
      %v1736 = vunpack.c.h.b16 %v1650
      %v1737 = vunpack.c.l.b16 %v1651
      %v1738 = vunpack.c.h.b16 %v1651
      %v1739 = vunpack.c.l.b16 %v1652
      %v1740 = vunpack.c.h.b16 %v1652
      %v1741 = vunpack.c.l.b16 %v1653
      %v1742 = vunpack.c.h.b16 %v1653
      %v1743 = vunpack.c.l.b16 %v1654
      %v1744 = vunpack.c.h.b16 %v1654
      %v1745 = vunpack.c.l.b16 %v1655
      %v1746 = vunpack.c.h.b16 %v1655
      %v1747 = vunpack.c.l.b16 %v1656
      %v1748 = vunpack.c.h.b16 %v1656
      %v1749 = vunpack.c.l.b16 %v1657
      %v1750 = vunpack.c.h.b16 %v1657
      %v1751 = vunpack.c.l.b16 %v1658
      %v1752 = vunpack.c.h.b16 %v1658
      %v1753 = vunpack.c.l.b16 %v1659
      %v1754 = vunpack.c.h.b16 %v1659
      %v1755 = vunpack.c.l.b16 %v1660
      %v1756 = vunpack.c.h.b16 %v1660
      %v1757 = vpack.c.b16 %v1697, %v1693
      %v1758 = vpack.c.b16 %v1698, %v1694
      %v1759 = vpack.c.b16 %v1699, %v1695
      %v1760 = vpack.c.b16 %v1700, %v1696
      %v1761 = vpack.c.b16 %v1705, %v1701
      %v1762 = vpack.c.b16 %v1706, %v1702
      %v1763 = vpack.c.b16 %v1707, %v1703
      %v1764 = vpack.c.b16 %v1708, %v1704
      %v1765 = vpack.c.b16 %v1713, %v1709
      %v1766 = vpack.c.b16 %v1714, %v1710
      %v1767 = vpack.c.b16 %v1715, %v1711
      %v1768 = vpack.c.b16 %v1716, %v1712
      %v1769 = vpack.c.b16 %v1721, %v1717
      %v1770 = vpack.c.b16 %v1722, %v1718
      %v1771 = vpack.c.b16 %v1723, %v1719
      %v1772 = vpack.c.b16 %v1724, %v1720
      %v1773 = vpack.c.b16 %v1729, %v1725
      %v1774 = vpack.c.b16 %v1730, %v1726
      %v1775 = vpack.c.b16 %v1731, %v1727
      %v1776 = vpack.c.b16 %v1732, %v1728
      %v1777 = vpack.c.b16 %v1737, %v1733
      %v1778 = vpack.c.b16 %v1738, %v1734
      %v1779 = vpack.c.b16 %v1739, %v1735
      %v1780 = vpack.c.b16 %v1740, %v1736
      %v1781 = vpack.c.b16 %v1745, %v1741
      %v1782 = vpack.c.b16 %v1746, %v1742
      %v1783 = vpack.c.b16 %v1747, %v1743
      %v1784 = vpack.c.b16 %v1748, %v1744
      %v1785 = vpack.c.b16 %v1753, %v1749
      %v1786 = vpack.c.b16 %v1754, %v1750
      %v1787 = vpack.c.b16 %v1755, %v1751
      %v1788 = vpack.c.b16 %v1756, %v1752
      %1821 = vmatprep.subr.bf16.mxu0 %v1786
      %1822 = vmatpush1.bf16.msra.mxu0 %v1785
      %1823 = vmatprep.subr.bf16.mxu0 %v1782
      %1824 = vmatpush1.bf16.msra.mxu0 %v1781
      %1825 = vmatprep.subr.bf16.mxu0 %v1778
      %1826 = vmatpush1.bf16.msra.mxu0 %v1777
      %1827 = vmatprep.subr.bf16.mxu0 %v1774
      %1828 = vmatpush1.bf16.msra.mxu0 %v1773
      %1829 = vmatprep.subr.bf16.mxu0 %v1770
      %1830 = vmatpush1.bf16.msra.mxu0 %v1769
      %1831 = vmatprep.subr.bf16.mxu0 %v1766
      %1832 = vmatpush1.bf16.msra.mxu0 %v1765
      %1833 = vmatprep.subr.bf16.mxu0 %v1762
      %1834 = vmatpush1.bf16.msra.mxu0 %v1761
      %1835 = vmatprep.subr.bf16.mxu0 %v1758
      %1836 = vmatpush1.bf16.msra.mxu0 %v1757
      %1837 = vmatprep.subr.bf16.mxu0 0
      %1838 = vmatpush2.bf16.msra.mxu0 0
      %1839 = vmatprep.subr.bf16.mxu0 0
      %1840 = vmatpush2.bf16.msra.mxu0 0
      %1841 = vmatprep.subr.bf16.mxu0 0
      %1842 = vmatpush2.bf16.msra.mxu0 0
      %1843 = vmatprep.subr.bf16.mxu0 0
      %1844 = vmatpush2.bf16.msra.mxu0 0
      %1845 = vmatprep.subr.bf16.mxu0 0
      %1846 = vmatpush2.bf16.msra.mxu0 0
      %1847 = vmatprep.subr.bf16.mxu0 0
      %1848 = vmatpush2.bf16.msra.mxu0 0
      %1849 = vmatprep.subr.bf16.mxu0 0
      %1850 = vmatpush2.bf16.msra.mxu0 0
      %1851 = vmatprep.subr.bf16.mxu0 0
      %1852 = vmatpush2.bf16.msra.mxu0 0
      %1853 = vmatprep.mubr.bf16.mxu0 0
      %1854 = vmatmul.mubr.bf16.gmra.mxu0 %v1628
      %v1855 = vpop.f32.mrf.mxu0
      %v1856 = vadd.f32 0.0, %v1855
      %v1857 = vpop.f32.mrf.mxu0
      %v1858 = vadd.f32 0.0, %v1857
      %v1859 = vpop.f32.mrf.mxu0
      %v1860 = vadd.f32 0.0, %v1859
      %v1861 = vpop.f32.mrf.mxu0
      %v1862 = vadd.f32 0.0, %v1861
      %1863 = vdwg.mxu0
      %1864 = vmatprep.subr.bf16.mxu0 %v1788
      %1865 = vmatpush1.bf16.msra.mxu0 %v1787
      %1866 = vmatprep.subr.bf16.mxu0 %v1784
      %1867 = vmatpush1.bf16.msra.mxu0 %v1783
      %1868 = vmatprep.subr.bf16.mxu0 %v1780
      %1869 = vmatpush1.bf16.msra.mxu0 %v1779
      %1870 = vmatprep.subr.bf16.mxu0 %v1776
      %1871 = vmatpush1.bf16.msra.mxu0 %v1775
      %1872 = vmatprep.subr.bf16.mxu0 %v1772
      %1873 = vmatpush1.bf16.msra.mxu0 %v1771
      %1874 = vmatprep.subr.bf16.mxu0 %v1768
      %1875 = vmatpush1.bf16.msra.mxu0 %v1767
      %1876 = vmatprep.subr.bf16.mxu0 %v1764
      %1877 = vmatpush1.bf16.msra.mxu0 %v1763
      %1878 = vmatprep.subr.bf16.mxu0 %v1760
      %1879 = vmatpush1.bf16.msra.mxu0 %v1759
      %1880 = vmatprep.subr.bf16.mxu0 0
      %1881 = vmatpush2.bf16.msra.mxu0 0
      %1882 = vmatprep.subr.bf16.mxu0 0
      %1883 = vmatpush2.bf16.msra.mxu0 0
      %1884 = vmatprep.subr.bf16.mxu0 0
      %1885 = vmatpush2.bf16.msra.mxu0 0
      %1886 = vmatprep.subr.bf16.mxu0 0
      %1887 = vmatpush2.bf16.msra.mxu0 0
      %1888 = vmatprep.subr.bf16.mxu0 0
      %1889 = vmatpush2.bf16.msra.mxu0 0
      %1890 = vmatprep.subr.bf16.mxu0 0
      %1891 = vmatpush2.bf16.msra.mxu0 0
      %1892 = vmatprep.subr.bf16.mxu0 0
      %1893 = vmatpush2.bf16.msra.mxu0 0
      %1894 = vmatprep.subr.bf16.mxu0 0
      %1895 = vmatpush2.bf16.msra.mxu0 0
      %1896 = vmatprep.mubr.bf16.mxu0 0
      %1897 = vmatmul.mubr.bf16.gmra.mxu0 %v1628
      %v1898 = vpop.f32.mrf.mxu0
      %v1899 = vadd.f32 0.0, %v1898
      %v1900 = vpop.f32.mrf.mxu0
      %v1901 = vadd.f32 0.0, %v1900
      %v1902 = vpop.f32.mrf.mxu0
      %v1903 = vadd.f32 0.0, %v1902
      %v1904 = vpop.f32.mrf.mxu0
      %v1905 = vadd.f32 0.0, %v1904
      %1906 = vdwg.mxu0
      %v1907 = vadd.f32 %v1618, %v1856
      %v1908 = vadd.f32 %v1619, %v1858
      %v1909 = vadd.f32 %v1620, %v1899
      %v1910 = vadd.f32 %v1621, %v1901
      %v1911 = vadd.f32 %v1622, %v1860
      %v1912 = vadd.f32 %v1623, %v1862
      %v1913 = vadd.f32 %v1624, %v1903
      %v1914 = vadd.f32 %v1625, %v1905
      %v1915 = vxor.u32 %v1907, 2147483648
      %v1916 = vxor.u32 %v1908, 2147483648
      %v1917 = vxor.u32 %v1909, 2147483648
      %v1918 = vxor.u32 %v1911, 2147483648
      %v1919 = vxor.u32 %v1912, 2147483648
      %v1920 = vxor.u32 %v1913, 2147483648
      %v1921 = vmul.f32 %v1915, 1.442695
      %v1922 = vpow.pop %v1921
      %v1923 = vmul.f32 %v1916, 1.442695
      %v1924 = vpow.pop %v1923
      %v1925 = vmul.f32 %v1917, 1.442695
      %v1926 = vpow.pop %v1925
      %v1927 = vmul.f32 %v1918, 1.442695
      %v1928 = vpow.pop %v1927
      %v1929 = vmul.f32 %v1919, 1.442695
      %v1930 = vpow.pop %v1929
      %v1931 = vmul.f32 %v1920, 1.442695
      %v1932 = vpow.pop %v1931
      %v1933 = vadd.f32 %v1922, 1.0
      %v1934 = vadd.f32 %v1924, 1.0
      %v1935 = vadd.f32 %v1926, 1.0
      %v1936 = vadd.f32 %v1928, 1.0
      %v1937 = vadd.f32 %v1930, 1.0
      %v1938 = vadd.f32 %v1932, 1.0
      %v1939 = vrcp.pop %v1933
      %v1940 = vmul.f32 1.0, %v1939
      %v1941 = vrcp.pop %v1934
      %v1942 = vmul.f32 1.0, %v1941
      %v1943 = vrcp.pop %v1935
      %v1944 = vmul.f32 1.0, %v1943
      %v1945 = vrcp.pop %v1936
      %v1946 = vmul.f32 1.0, %v1945
      %v1947 = vrcp.pop %v1937
      %v1948 = vmul.f32 1.0, %v1947
      %v1949 = vrcp.pop %v1938
      %v1950 = vmul.f32 1.0, %v1949
      %v1951 = vtanh.pop %v1910
      %v1952 = vtanh.pop %v1914
      %v1953 = vld [vmem:[#allocation4] sm:$0xff]
      %v1954 = vld [vmem:[#allocation4 + $0x8] sm:$0xff]
      %v1955 = vmul.f32 %v1942, %v1953
      %v1956 = vmul.f32 %v1948, %v1954
      %v1957 = vmul.f32 %v1940, %v1951
      %v1958 = vmul.f32 %v1946, %v1952
      %v1959 = vadd.f32 %v1955, %v1957
      %v1960 = vadd.f32 %v1956, %v1958
      %v1961 = vtanh.pop %v1959
      %v1962 = vtanh.pop %v1960
      %v1963 = vmul.f32 %v1944, %v1961
      %v1964 = vmul.f32 %v1950, %v1962
      %v1965 = vstv %s1614
      %vm1966 = vcmp.gt.s32.totalorder %v828, %v1965
      %vm1967 = vcmp.gt.s32.totalorder %v829, %v1965
      %v1968 = vsel %vm1966, 1, 0
      %v1969 = vsel %vm1967, 1, 0
      %1970 = vset.pattern.permute.xlu0 0
      %1971 = vperm.xlu0 %1970, %v1968
      %v1972 = vpop.permute.xlu0 %1971
      %1973 = vset.pattern.permute.xlu0 0
      %1974 = vperm.xlu0 %1973, %v1969
      %v1975 = vpop.permute.xlu0 %1974
      %vm1976 = vcmp.eq.s32.totalorder %v1972, 1
      %vm1977 = vcmp.eq.s32.totalorder %v1975, 1
      %v1978 = vsel %vm1976, %v1963, %v1626
      %v1979 = vsel %vm1977, %v1964, %v1627
      %1980 = vst [vmem:[#allocation3] sm:$0xff] %v1978
      %1981 = vst [vmem:[#allocation3 + $0x8] sm:$0xff] %v1979
      %v1982 = vld [vmem:[#allocation4] sm:$0xff]
      %v1983 = vld [vmem:[#allocation4 + $0x8] sm:$0xff]
      %v1984 = vsel %vm1976, %v1959, %v1982
      %v1985 = vsel %vm1977, %v1960, %v1983
      %1986 = vst [vmem:[#allocation4] sm:$0xff] %v1984
      %1987 = vst [vmem:[#allocation4 + $0x8] sm:$0xff] %v1985
      %v1988 = vsel %vm1976, %v1963, 0.0
      %v1989 = vsel %vm1977, %v1964, 0.0
      %v1990 = vpack.c.bf16 %v1989, %v1988
      %v1992 = vunpack.c.l.b16 %v1990
      %v1993 = vunpack.c.h.b16 %v1990
      %v1994 = vpack.c.b16 %v1992, %v1992
      %v1995 = vpack.c.b16 %v1993, %v1993
      %s1998 = smul.u32 %s1613, 2
      %s1999 = smul.addr %s1998, 4
      %s2000 = scalar_lea.vmem %s365, %s1999
      %2001 = vst [vmem:[%s2000] sm:$0xf] %v1994
      %2002 = vst [vmem:[%s2000 + $0x4] sm:$0xf] %v1995
      %s2003 = smul.u32 %s822, 3
      %s2004 = smul.u32 %s20, 4
      %s2005 = sadd.s32 %s2003, %s2004
      %s2006 = sadd.s32 %s827, %s2005
      %s2007 = smul.u32 %s2005, 8
      %s2008 = smul.addr %s2007, 8
      %s2009 = scalar_lea.vmem [#allocation2], %s2008
      %v2010 = vld [vmem:[%s2009] sm:$0xff]
      %v2011 = vld [vmem:[%s2009 + $0x8] sm:$0xff]
      %v2012 = vld [vmem:[%s2009 + $0x10] sm:$0xff]
      %v2013 = vld [vmem:[%s2009 + $0x18] sm:$0xff]
      %v2014 = vld [vmem:[%s2009 + $0x20] sm:$0xff]
      %v2015 = vld [vmem:[%s2009 + $0x28] sm:$0xff]
      %v2016 = vld [vmem:[%s2009 + $0x30] sm:$0xff]
      %v2017 = vld [vmem:[%s2009 + $0x38] sm:$0xff]
      %v2018 = vld [vmem:[#allocation3] sm:$0xff]
      %v2019 = vld [vmem:[#allocation3 + $0x8] sm:$0xff]
      %v2020 = vpack.c.bf16 %v2019, %v2018
      %v2021 = vld [vmem:[%s346] sm:$0xff]
      %v2022 = vld [vmem:[%s346 + $0x8] sm:$0xff]
      %v2023 = vld [vmem:[%s346 + $0x10] sm:$0xff]
      %v2024 = vld [vmem:[%s346 + $0x18] sm:$0xff]
      %v2025 = vld [vmem:[%s346 + $0x20] sm:$0xff]
      %v2026 = vld [vmem:[%s346 + $0x28] sm:$0xff]
      %v2027 = vld [vmem:[%s346 + $0x30] sm:$0xff]
      %v2028 = vld [vmem:[%s346 + $0x38] sm:$0xff]
      %v2029 = vld [vmem:[%s346 + $0x40] sm:$0xff]
      %v2030 = vld [vmem:[%s346 + $0x48] sm:$0xff]
      %v2031 = vld [vmem:[%s346 + $0x50] sm:$0xff]
      %v2032 = vld [vmem:[%s346 + $0x58] sm:$0xff]
      %v2033 = vld [vmem:[%s346 + $0x60] sm:$0xff]
      %v2034 = vld [vmem:[%s346 + $0x68] sm:$0xff]
      %v2035 = vld [vmem:[%s346 + $0x70] sm:$0xff]
      %v2036 = vld [vmem:[%s346 + $0x78] sm:$0xff]
      %v2037 = vld [vmem:[%s346 + $0x80] sm:$0xff]
      %v2038 = vld [vmem:[%s346 + $0x88] sm:$0xff]
      %v2039 = vld [vmem:[%s346 + $0x90] sm:$0xff]
      %v2040 = vld [vmem:[%s346 + $0x98] sm:$0xff]
      %v2041 = vld [vmem:[%s346 + $0xa0] sm:$0xff]
      %v2042 = vld [vmem:[%s346 + $0xa8] sm:$0xff]
      %v2043 = vld [vmem:[%s346 + $0xb0] sm:$0xff]
      %v2044 = vld [vmem:[%s346 + $0xb8] sm:$0xff]
      %v2045 = vld [vmem:[%s346 + $0xc0] sm:$0xff]
      %v2046 = vld [vmem:[%s346 + $0xc8] sm:$0xff]
      %v2047 = vld [vmem:[%s346 + $0xd0] sm:$0xff]
      %v2048 = vld [vmem:[%s346 + $0xd8] sm:$0xff]
      %v2049 = vld [vmem:[%s346 + $0xe0] sm:$0xff]
      %v2050 = vld [vmem:[%s346 + $0xe8] sm:$0xff]
      %v2051 = vld [vmem:[%s346 + $0xf0] sm:$0xff]
      %v2052 = vld [vmem:[%s346 + $0xf8] sm:$0xff]
      %v2085 = vunpack.c.l.b16 %v2021
      %v2086 = vunpack.c.h.b16 %v2021
      %v2087 = vunpack.c.l.b16 %v2022
      %v2088 = vunpack.c.h.b16 %v2022
      %v2089 = vunpack.c.l.b16 %v2023
      %v2090 = vunpack.c.h.b16 %v2023
      %v2091 = vunpack.c.l.b16 %v2024
      %v2092 = vunpack.c.h.b16 %v2024
      %v2093 = vunpack.c.l.b16 %v2025
      %v2094 = vunpack.c.h.b16 %v2025
      %v2095 = vunpack.c.l.b16 %v2026
      %v2096 = vunpack.c.h.b16 %v2026
      %v2097 = vunpack.c.l.b16 %v2027
      %v2098 = vunpack.c.h.b16 %v2027
      %v2099 = vunpack.c.l.b16 %v2028
      %v2100 = vunpack.c.h.b16 %v2028
      %v2101 = vunpack.c.l.b16 %v2029
      %v2102 = vunpack.c.h.b16 %v2029
      %v2103 = vunpack.c.l.b16 %v2030
      %v2104 = vunpack.c.h.b16 %v2030
      %v2105 = vunpack.c.l.b16 %v2031
      %v2106 = vunpack.c.h.b16 %v2031
      %v2107 = vunpack.c.l.b16 %v2032
      %v2108 = vunpack.c.h.b16 %v2032
      %v2109 = vunpack.c.l.b16 %v2033
      %v2110 = vunpack.c.h.b16 %v2033
      %v2111 = vunpack.c.l.b16 %v2034
      %v2112 = vunpack.c.h.b16 %v2034
      %v2113 = vunpack.c.l.b16 %v2035
      %v2114 = vunpack.c.h.b16 %v2035
      %v2115 = vunpack.c.l.b16 %v2036
      %v2116 = vunpack.c.h.b16 %v2036
      %v2117 = vunpack.c.l.b16 %v2037
      %v2118 = vunpack.c.h.b16 %v2037
      %v2119 = vunpack.c.l.b16 %v2038
      %v2120 = vunpack.c.h.b16 %v2038
      %v2121 = vunpack.c.l.b16 %v2039
      %v2122 = vunpack.c.h.b16 %v2039
      %v2123 = vunpack.c.l.b16 %v2040
      %v2124 = vunpack.c.h.b16 %v2040
      %v2125 = vunpack.c.l.b16 %v2041
      %v2126 = vunpack.c.h.b16 %v2041
      %v2127 = vunpack.c.l.b16 %v2042
      %v2128 = vunpack.c.h.b16 %v2042
      %v2129 = vunpack.c.l.b16 %v2043
      %v2130 = vunpack.c.h.b16 %v2043
      %v2131 = vunpack.c.l.b16 %v2044
      %v2132 = vunpack.c.h.b16 %v2044
      %v2133 = vunpack.c.l.b16 %v2045
      %v2134 = vunpack.c.h.b16 %v2045
      %v2135 = vunpack.c.l.b16 %v2046
      %v2136 = vunpack.c.h.b16 %v2046
      %v2137 = vunpack.c.l.b16 %v2047
      %v2138 = vunpack.c.h.b16 %v2047
      %v2139 = vunpack.c.l.b16 %v2048
      %v2140 = vunpack.c.h.b16 %v2048
      %v2141 = vunpack.c.l.b16 %v2049
      %v2142 = vunpack.c.h.b16 %v2049
      %v2143 = vunpack.c.l.b16 %v2050
      %v2144 = vunpack.c.h.b16 %v2050
      %v2145 = vunpack.c.l.b16 %v2051
      %v2146 = vunpack.c.h.b16 %v2051
      %v2147 = vunpack.c.l.b16 %v2052
      %v2148 = vunpack.c.h.b16 %v2052
      %v2149 = vpack.c.b16 %v2089, %v2085
      %v2150 = vpack.c.b16 %v2090, %v2086
      %v2151 = vpack.c.b16 %v2091, %v2087
      %v2152 = vpack.c.b16 %v2092, %v2088
      %v2153 = vpack.c.b16 %v2097, %v2093
      %v2154 = vpack.c.b16 %v2098, %v2094
      %v2155 = vpack.c.b16 %v2099, %v2095
      %v2156 = vpack.c.b16 %v2100, %v2096
      %v2157 = vpack.c.b16 %v2105, %v2101
      %v2158 = vpack.c.b16 %v2106, %v2102
      %v2159 = vpack.c.b16 %v2107, %v2103
      %v2160 = vpack.c.b16 %v2108, %v2104
      %v2161 = vpack.c.b16 %v2113, %v2109
      %v2162 = vpack.c.b16 %v2114, %v2110
      %v2163 = vpack.c.b16 %v2115, %v2111
      %v2164 = vpack.c.b16 %v2116, %v2112
      %v2165 = vpack.c.b16 %v2121, %v2117
      %v2166 = vpack.c.b16 %v2122, %v2118
      %v2167 = vpack.c.b16 %v2123, %v2119
      %v2168 = vpack.c.b16 %v2124, %v2120
      %v2169 = vpack.c.b16 %v2129, %v2125
      %v2170 = vpack.c.b16 %v2130, %v2126
      %v2171 = vpack.c.b16 %v2131, %v2127
      %v2172 = vpack.c.b16 %v2132, %v2128
      %v2173 = vpack.c.b16 %v2137, %v2133
      %v2174 = vpack.c.b16 %v2138, %v2134
      %v2175 = vpack.c.b16 %v2139, %v2135
      %v2176 = vpack.c.b16 %v2140, %v2136
      %v2177 = vpack.c.b16 %v2145, %v2141
      %v2178 = vpack.c.b16 %v2146, %v2142
      %v2179 = vpack.c.b16 %v2147, %v2143
      %v2180 = vpack.c.b16 %v2148, %v2144
      %2213 = vmatprep.subr.bf16.mxu0 %v2178
      %2214 = vmatpush1.bf16.msra.mxu0 %v2177
      %2215 = vmatprep.subr.bf16.mxu0 %v2174
      %2216 = vmatpush1.bf16.msra.mxu0 %v2173
      %2217 = vmatprep.subr.bf16.mxu0 %v2170
      %2218 = vmatpush1.bf16.msra.mxu0 %v2169
      %2219 = vmatprep.subr.bf16.mxu0 %v2166
      %2220 = vmatpush1.bf16.msra.mxu0 %v2165
      %2221 = vmatprep.subr.bf16.mxu0 %v2162
      %2222 = vmatpush1.bf16.msra.mxu0 %v2161
      %2223 = vmatprep.subr.bf16.mxu0 %v2158
      %2224 = vmatpush1.bf16.msra.mxu0 %v2157
      %2225 = vmatprep.subr.bf16.mxu0 %v2154
      %2226 = vmatpush1.bf16.msra.mxu0 %v2153
      %2227 = vmatprep.subr.bf16.mxu0 %v2150
      %2228 = vmatpush1.bf16.msra.mxu0 %v2149
      %2229 = vmatprep.subr.bf16.mxu0 0
      %2230 = vmatpush2.bf16.msra.mxu0 0
      %2231 = vmatprep.subr.bf16.mxu0 0
      %2232 = vmatpush2.bf16.msra.mxu0 0
      %2233 = vmatprep.subr.bf16.mxu0 0
      %2234 = vmatpush2.bf16.msra.mxu0 0
      %2235 = vmatprep.subr.bf16.mxu0 0
      %2236 = vmatpush2.bf16.msra.mxu0 0
      %2237 = vmatprep.subr.bf16.mxu0 0
      %2238 = vmatpush2.bf16.msra.mxu0 0
      %2239 = vmatprep.subr.bf16.mxu0 0
      %2240 = vmatpush2.bf16.msra.mxu0 0
      %2241 = vmatprep.subr.bf16.mxu0 0
      %2242 = vmatpush2.bf16.msra.mxu0 0
      %2243 = vmatprep.subr.bf16.mxu0 0
      %2244 = vmatpush2.bf16.msra.mxu0 0
      %2245 = vmatprep.mubr.bf16.mxu0 0
      %2246 = vmatmul.mubr.bf16.gmra.mxu0 %v2020
      %v2247 = vpop.f32.mrf.mxu0
      %v2248 = vadd.f32 0.0, %v2247
      %v2249 = vpop.f32.mrf.mxu0
      %v2250 = vadd.f32 0.0, %v2249
      %v2251 = vpop.f32.mrf.mxu0
      %v2252 = vadd.f32 0.0, %v2251
      %v2253 = vpop.f32.mrf.mxu0
      %v2254 = vadd.f32 0.0, %v2253
      %2255 = vdwg.mxu0
      %2256 = vmatprep.subr.bf16.mxu0 %v2180
      %2257 = vmatpush1.bf16.msra.mxu0 %v2179
      %2258 = vmatprep.subr.bf16.mxu0 %v2176
      %2259 = vmatpush1.bf16.msra.mxu0 %v2175
      %2260 = vmatprep.subr.bf16.mxu0 %v2172
      %2261 = vmatpush1.bf16.msra.mxu0 %v2171
      %2262 = vmatprep.subr.bf16.mxu0 %v2168
      %2263 = vmatpush1.bf16.msra.mxu0 %v2167
      %2264 = vmatprep.subr.bf16.mxu0 %v2164
      %2265 = vmatpush1.bf16.msra.mxu0 %v2163
      %2266 = vmatprep.subr.bf16.mxu0 %v2160
      %2267 = vmatpush1.bf16.msra.mxu0 %v2159
      %2268 = vmatprep.subr.bf16.mxu0 %v2156
      %2269 = vmatpush1.bf16.msra.mxu0 %v2155
      %2270 = vmatprep.subr.bf16.mxu0 %v2152
      %2271 = vmatpush1.bf16.msra.mxu0 %v2151
      %2272 = vmatprep.subr.bf16.mxu0 0
      %2273 = vmatpush2.bf16.msra.mxu0 0
      %2274 = vmatprep.subr.bf16.mxu0 0
      %2275 = vmatpush2.bf16.msra.mxu0 0
      %2276 = vmatprep.subr.bf16.mxu0 0
      %2277 = vmatpush2.bf16.msra.mxu0 0
      %2278 = vmatprep.subr.bf16.mxu0 0
      %2279 = vmatpush2.bf16.msra.mxu0 0
      %2280 = vmatprep.subr.bf16.mxu0 0
      %2281 = vmatpush2.bf16.msra.mxu0 0
      %2282 = vmatprep.subr.bf16.mxu0 0
      %2283 = vmatpush2.bf16.msra.mxu0 0
      %2284 = vmatprep.subr.bf16.mxu0 0
      %2285 = vmatpush2.bf16.msra.mxu0 0
      %2286 = vmatprep.subr.bf16.mxu0 0
      %2287 = vmatpush2.bf16.msra.mxu0 0
      %2288 = vmatprep.mubr.bf16.mxu0 0
      %2289 = vmatmul.mubr.bf16.gmra.mxu0 %v2020
      %v2290 = vpop.f32.mrf.mxu0
      %v2291 = vadd.f32 0.0, %v2290
      %v2292 = vpop.f32.mrf.mxu0
      %v2293 = vadd.f32 0.0, %v2292
      %v2294 = vpop.f32.mrf.mxu0
      %v2295 = vadd.f32 0.0, %v2294
      %v2296 = vpop.f32.mrf.mxu0
      %v2297 = vadd.f32 0.0, %v2296
      %2298 = vdwg.mxu0
      %v2299 = vadd.f32 %v2010, %v2248
      %v2300 = vadd.f32 %v2011, %v2250
      %v2301 = vadd.f32 %v2012, %v2291
      %v2302 = vadd.f32 %v2013, %v2293
      %v2303 = vadd.f32 %v2014, %v2252
      %v2304 = vadd.f32 %v2015, %v2254
      %v2305 = vadd.f32 %v2016, %v2295
      %v2306 = vadd.f32 %v2017, %v2297
      %v2307 = vxor.u32 %v2299, 2147483648
      %v2308 = vxor.u32 %v2300, 2147483648
      %v2309 = vxor.u32 %v2301, 2147483648
      %v2310 = vxor.u32 %v2303, 2147483648
      %v2311 = vxor.u32 %v2304, 2147483648
      %v2312 = vxor.u32 %v2305, 2147483648
      %v2313 = vmul.f32 %v2307, 1.442695
      %v2314 = vpow.pop %v2313
      %v2315 = vmul.f32 %v2308, 1.442695
      %v2316 = vpow.pop %v2315
      %v2317 = vmul.f32 %v2309, 1.442695
      %v2318 = vpow.pop %v2317
      %v2319 = vmul.f32 %v2310, 1.442695
      %v2320 = vpow.pop %v2319
      %v2321 = vmul.f32 %v2311, 1.442695
      %v2322 = vpow.pop %v2321
      %v2323 = vmul.f32 %v2312, 1.442695
      %v2324 = vpow.pop %v2323
      %v2325 = vadd.f32 %v2314, 1.0
      %v2326 = vadd.f32 %v2316, 1.0
      %v2327 = vadd.f32 %v2318, 1.0
      %v2328 = vadd.f32 %v2320, 1.0
      %v2329 = vadd.f32 %v2322, 1.0
      %v2330 = vadd.f32 %v2324, 1.0
      %v2331 = vrcp.pop %v2325
      %v2332 = vmul.f32 1.0, %v2331
      %v2333 = vrcp.pop %v2326
      %v2334 = vmul.f32 1.0, %v2333
      %v2335 = vrcp.pop %v2327
      %v2336 = vmul.f32 1.0, %v2335
      %v2337 = vrcp.pop %v2328
      %v2338 = vmul.f32 1.0, %v2337
      %v2339 = vrcp.pop %v2329
      %v2340 = vmul.f32 1.0, %v2339
      %v2341 = vrcp.pop %v2330
      %v2342 = vmul.f32 1.0, %v2341
      %v2343 = vtanh.pop %v2302
      %v2344 = vtanh.pop %v2306
      %v2345 = vld [vmem:[#allocation4] sm:$0xff]
      %v2346 = vld [vmem:[#allocation4 + $0x8] sm:$0xff]
      %v2347 = vmul.f32 %v2334, %v2345
      %v2348 = vmul.f32 %v2340, %v2346
      %v2349 = vmul.f32 %v2332, %v2343
      %v2350 = vmul.f32 %v2338, %v2344
      %v2351 = vadd.f32 %v2347, %v2349
      %v2352 = vadd.f32 %v2348, %v2350
      %v2353 = vtanh.pop %v2351
      %v2354 = vtanh.pop %v2352
      %v2355 = vmul.f32 %v2336, %v2353
      %v2356 = vmul.f32 %v2342, %v2354
      %v2357 = vstv %s2006
      %vm2358 = vcmp.gt.s32.totalorder %v828, %v2357
      %vm2359 = vcmp.gt.s32.totalorder %v829, %v2357
      %v2360 = vsel %vm2358, 1, 0
      %v2361 = vsel %vm2359, 1, 0
      %2362 = vset.pattern.permute.xlu0 0
      %2363 = vperm.xlu0 %2362, %v2360
      %v2364 = vpop.permute.xlu0 %2363
      %2365 = vset.pattern.permute.xlu0 0
      %2366 = vperm.xlu0 %2365, %v2361
      %v2367 = vpop.permute.xlu0 %2366
      %vm2368 = vcmp.eq.s32.totalorder %v2364, 1
      %vm2369 = vcmp.eq.s32.totalorder %v2367, 1
      %v2370 = vsel %vm2368, %v2355, %v2018
      %v2371 = vsel %vm2369, %v2356, %v2019
      %2372 = vst [vmem:[#allocation3] sm:$0xff] %v2370
      %2373 = vst [vmem:[#allocation3 + $0x8] sm:$0xff] %v2371
      %v2374 = vld [vmem:[#allocation4] sm:$0xff]
      %v2375 = vld [vmem:[#allocation4 + $0x8] sm:$0xff]
      %v2376 = vsel %vm2368, %v2351, %v2374
      %v2377 = vsel %vm2369, %v2352, %v2375
      %2378 = vst [vmem:[#allocation4] sm:$0xff] %v2376
      %2379 = vst [vmem:[#allocation4 + $0x8] sm:$0xff] %v2377
      %v2380 = vsel %vm2368, %v2355, 0.0
      %v2381 = vsel %vm2369, %v2356, 0.0
      %v2382 = vpack.c.bf16 %v2381, %v2380
      %v2384 = vunpack.c.l.b16 %v2382
      %v2385 = vunpack.c.h.b16 %v2382
      %v2386 = vpack.c.b16 %v2384, %v2384
      %v2387 = vpack.c.b16 %v2385, %v2385
      %s2390 = smul.u32 %s2005, 2
      %s2391 = smul.addr %s2390, 4
      %s2392 = scalar_lea.vmem %s365, %s2391
      %2393 = vst [vmem:[%s2392] sm:$0xf] %v2386
      %2394 = vst [vmem:[%s2392 + $0x4] sm:$0xf] %v2387
      %s2395 = smul.u32 %s822, 4
      %s2396 = smul.u32 %s20, 3
      %s2397 = sadd.s32 %s2395, %s2396
      %s2398 = sadd.s32 %s827, %s2397
      %s2399 = smul.u32 %s2397, 8
      %s2400 = smul.addr %s2399, 8
      %s2401 = scalar_lea.vmem [#allocation2], %s2400
      %v2402 = vld [vmem:[%s2401] sm:$0xff]
      %v2403 = vld [vmem:[%s2401 + $0x8] sm:$0xff]
      %v2404 = vld [vmem:[%s2401 + $0x10] sm:$0xff]
      %v2405 = vld [vmem:[%s2401 + $0x18] sm:$0xff]
      %v2406 = vld [vmem:[%s2401 + $0x20] sm:$0xff]
      %v2407 = vld [vmem:[%s2401 + $0x28] sm:$0xff]
      %v2408 = vld [vmem:[%s2401 + $0x30] sm:$0xff]
      %v2409 = vld [vmem:[%s2401 + $0x38] sm:$0xff]
      %v2410 = vld [vmem:[#allocation3] sm:$0xff]
      %v2411 = vld [vmem:[#allocation3 + $0x8] sm:$0xff]
      %v2412 = vpack.c.bf16 %v2411, %v2410
      %v2413 = vld [vmem:[%s346] sm:$0xff]
      %v2414 = vld [vmem:[%s346 + $0x8] sm:$0xff]
      %v2415 = vld [vmem:[%s346 + $0x10] sm:$0xff]
      %v2416 = vld [vmem:[%s346 + $0x18] sm:$0xff]
      %v2417 = vld [vmem:[%s346 + $0x20] sm:$0xff]
      %v2418 = vld [vmem:[%s346 + $0x28] sm:$0xff]
      %v2419 = vld [vmem:[%s346 + $0x30] sm:$0xff]
      %v2420 = vld [vmem:[%s346 + $0x38] sm:$0xff]
      %v2421 = vld [vmem:[%s346 + $0x40] sm:$0xff]
      %v2422 = vld [vmem:[%s346 + $0x48] sm:$0xff]
      %v2423 = vld [vmem:[%s346 + $0x50] sm:$0xff]
      %v2424 = vld [vmem:[%s346 + $0x58] sm:$0xff]
      %v2425 = vld [vmem:[%s346 + $0x60] sm:$0xff]
      %v2426 = vld [vmem:[%s346 + $0x68] sm:$0xff]
      %v2427 = vld [vmem:[%s346 + $0x70] sm:$0xff]
      %v2428 = vld [vmem:[%s346 + $0x78] sm:$0xff]
      %v2429 = vld [vmem:[%s346 + $0x80] sm:$0xff]
      %v2430 = vld [vmem:[%s346 + $0x88] sm:$0xff]
      %v2431 = vld [vmem:[%s346 + $0x90] sm:$0xff]
      %v2432 = vld [vmem:[%s346 + $0x98] sm:$0xff]
      %v2433 = vld [vmem:[%s346 + $0xa0] sm:$0xff]
      %v2434 = vld [vmem:[%s346 + $0xa8] sm:$0xff]
      %v2435 = vld [vmem:[%s346 + $0xb0] sm:$0xff]
      %v2436 = vld [vmem:[%s346 + $0xb8] sm:$0xff]
      %v2437 = vld [vmem:[%s346 + $0xc0] sm:$0xff]
      %v2438 = vld [vmem:[%s346 + $0xc8] sm:$0xff]
      %v2439 = vld [vmem:[%s346 + $0xd0] sm:$0xff]
      %v2440 = vld [vmem:[%s346 + $0xd8] sm:$0xff]
      %v2441 = vld [vmem:[%s346 + $0xe0] sm:$0xff]
      %v2442 = vld [vmem:[%s346 + $0xe8] sm:$0xff]
      %v2443 = vld [vmem:[%s346 + $0xf0] sm:$0xff]
      %v2444 = vld [vmem:[%s346 + $0xf8] sm:$0xff]
      %v2477 = vunpack.c.l.b16 %v2413
      %v2478 = vunpack.c.h.b16 %v2413
      %v2479 = vunpack.c.l.b16 %v2414
      %v2480 = vunpack.c.h.b16 %v2414
      %v2481 = vunpack.c.l.b16 %v2415
      %v2482 = vunpack.c.h.b16 %v2415
      %v2483 = vunpack.c.l.b16 %v2416
      %v2484 = vunpack.c.h.b16 %v2416
      %v2485 = vunpack.c.l.b16 %v2417
      %v2486 = vunpack.c.h.b16 %v2417
      %v2487 = vunpack.c.l.b16 %v2418
      %v2488 = vunpack.c.h.b16 %v2418
      %v2489 = vunpack.c.l.b16 %v2419
      %v2490 = vunpack.c.h.b16 %v2419
      %v2491 = vunpack.c.l.b16 %v2420
      %v2492 = vunpack.c.h.b16 %v2420
      %v2493 = vunpack.c.l.b16 %v2421
      %v2494 = vunpack.c.h.b16 %v2421
      %v2495 = vunpack.c.l.b16 %v2422
      %v2496 = vunpack.c.h.b16 %v2422
      %v2497 = vunpack.c.l.b16 %v2423
      %v2498 = vunpack.c.h.b16 %v2423
      %v2499 = vunpack.c.l.b16 %v2424
      %v2500 = vunpack.c.h.b16 %v2424
      %v2501 = vunpack.c.l.b16 %v2425
      %v2502 = vunpack.c.h.b16 %v2425
      %v2503 = vunpack.c.l.b16 %v2426
      %v2504 = vunpack.c.h.b16 %v2426
      %v2505 = vunpack.c.l.b16 %v2427
      %v2506 = vunpack.c.h.b16 %v2427
      %v2507 = vunpack.c.l.b16 %v2428
      %v2508 = vunpack.c.h.b16 %v2428
      %v2509 = vunpack.c.l.b16 %v2429
      %v2510 = vunpack.c.h.b16 %v2429
      %v2511 = vunpack.c.l.b16 %v2430
      %v2512 = vunpack.c.h.b16 %v2430
      %v2513 = vunpack.c.l.b16 %v2431
      %v2514 = vunpack.c.h.b16 %v2431
      %v2515 = vunpack.c.l.b16 %v2432
      %v2516 = vunpack.c.h.b16 %v2432
      %v2517 = vunpack.c.l.b16 %v2433
      %v2518 = vunpack.c.h.b16 %v2433
      %v2519 = vunpack.c.l.b16 %v2434
      %v2520 = vunpack.c.h.b16 %v2434
      %v2521 = vunpack.c.l.b16 %v2435
      %v2522 = vunpack.c.h.b16 %v2435
      %v2523 = vunpack.c.l.b16 %v2436
      %v2524 = vunpack.c.h.b16 %v2436
      %v2525 = vunpack.c.l.b16 %v2437
      %v2526 = vunpack.c.h.b16 %v2437
      %v2527 = vunpack.c.l.b16 %v2438
      %v2528 = vunpack.c.h.b16 %v2438
      %v2529 = vunpack.c.l.b16 %v2439
      %v2530 = vunpack.c.h.b16 %v2439
      %v2531 = vunpack.c.l.b16 %v2440
      %v2532 = vunpack.c.h.b16 %v2440
      %v2533 = vunpack.c.l.b16 %v2441
      %v2534 = vunpack.c.h.b16 %v2441
      %v2535 = vunpack.c.l.b16 %v2442
      %v2536 = vunpack.c.h.b16 %v2442
      %v2537 = vunpack.c.l.b16 %v2443
      %v2538 = vunpack.c.h.b16 %v2443
      %v2539 = vunpack.c.l.b16 %v2444
      %v2540 = vunpack.c.h.b16 %v2444
      %v2541 = vpack.c.b16 %v2481, %v2477
      %v2542 = vpack.c.b16 %v2482, %v2478
      %v2543 = vpack.c.b16 %v2483, %v2479
      %v2544 = vpack.c.b16 %v2484, %v2480
      %v2545 = vpack.c.b16 %v2489, %v2485
      %v2546 = vpack.c.b16 %v2490, %v2486
      %v2547 = vpack.c.b16 %v2491, %v2487
      %v2548 = vpack.c.b16 %v2492, %v2488
      %v2549 = vpack.c.b16 %v2497, %v2493
      %v2550 = vpack.c.b16 %v2498, %v2494
      %v2551 = vpack.c.b16 %v2499, %v2495
      %v2552 = vpack.c.b16 %v2500, %v2496
      %v2553 = vpack.c.b16 %v2505, %v2501
      %v2554 = vpack.c.b16 %v2506, %v2502
      %v2555 = vpack.c.b16 %v2507, %v2503
      %v2556 = vpack.c.b16 %v2508, %v2504
      %v2557 = vpack.c.b16 %v2513, %v2509
      %v2558 = vpack.c.b16 %v2514, %v2510
      %v2559 = vpack.c.b16 %v2515, %v2511
      %v2560 = vpack.c.b16 %v2516, %v2512
      %v2561 = vpack.c.b16 %v2521, %v2517
      %v2562 = vpack.c.b16 %v2522, %v2518
      %v2563 = vpack.c.b16 %v2523, %v2519
      %v2564 = vpack.c.b16 %v2524, %v2520
      %v2565 = vpack.c.b16 %v2529, %v2525
      %v2566 = vpack.c.b16 %v2530, %v2526
      %v2567 = vpack.c.b16 %v2531, %v2527
      %v2568 = vpack.c.b16 %v2532, %v2528
      %v2569 = vpack.c.b16 %v2537, %v2533
      %v2570 = vpack.c.b16 %v2538, %v2534
      %v2571 = vpack.c.b16 %v2539, %v2535
      %v2572 = vpack.c.b16 %v2540, %v2536
      %2605 = vmatprep.subr.bf16.mxu0 %v2570
      %2606 = vmatpush1.bf16.msra.mxu0 %v2569
      %2607 = vmatprep.subr.bf16.mxu0 %v2566
      %2608 = vmatpush1.bf16.msra.mxu0 %v2565
      %2609 = vmatprep.subr.bf16.mxu0 %v2562
      %2610 = vmatpush1.bf16.msra.mxu0 %v2561
      %2611 = vmatprep.subr.bf16.mxu0 %v2558
      %2612 = vmatpush1.bf16.msra.mxu0 %v2557
      %2613 = vmatprep.subr.bf16.mxu0 %v2554
      %2614 = vmatpush1.bf16.msra.mxu0 %v2553
      %2615 = vmatprep.subr.bf16.mxu0 %v2550
      %2616 = vmatpush1.bf16.msra.mxu0 %v2549
      %2617 = vmatprep.subr.bf16.mxu0 %v2546
      %2618 = vmatpush1.bf16.msra.mxu0 %v2545
      %2619 = vmatprep.subr.bf16.mxu0 %v2542
      %2620 = vmatpush1.bf16.msra.mxu0 %v2541
      %2621 = vmatprep.subr.bf16.mxu0 0
      %2622 = vmatpush2.bf16.msra.mxu0 0
      %2623 = vmatprep.subr.bf16.mxu0 0
      %2624 = vmatpush2.bf16.msra.mxu0 0
      %2625 = vmatprep.subr.bf16.mxu0 0
      %2626 = vmatpush2.bf16.msra.mxu0 0
      %2627 = vmatprep.subr.bf16.mxu0 0
      %2628 = vmatpush2.bf16.msra.mxu0 0
      %2629 = vmatprep.subr.bf16.mxu0 0
      %2630 = vmatpush2.bf16.msra.mxu0 0
      %2631 = vmatprep.subr.bf16.mxu0 0
      %2632 = vmatpush2.bf16.msra.mxu0 0
      %2633 = vmatprep.subr.bf16.mxu0 0
      %2634 = vmatpush2.bf16.msra.mxu0 0
      %2635 = vmatprep.subr.bf16.mxu0 0
      %2636 = vmatpush2.bf16.msra.mxu0 0
      %2637 = vmatprep.mubr.bf16.mxu0 0
      %2638 = vmatmul.mubr.bf16.gmra.mxu0 %v2412
      %v2639 = vpop.f32.mrf.mxu0
      %v2640 = vadd.f32 0.0, %v2639
      %v2641 = vpop.f32.mrf.mxu0
      %v2642 = vadd.f32 0.0, %v2641
      %v2643 = vpop.f32.mrf.mxu0
      %v2644 = vadd.f32 0.0, %v2643
      %v2645 = vpop.f32.mrf.mxu0
      %v2646 = vadd.f32 0.0, %v2645
      %2647 = vdwg.mxu0
      %2648 = vmatprep.subr.bf16.mxu0 %v2572
      %2649 = vmatpush1.bf16.msra.mxu0 %v2571
      %2650 = vmatprep.subr.bf16.mxu0 %v2568
      %2651 = vmatpush1.bf16.msra.mxu0 %v2567
      %2652 = vmatprep.subr.bf16.mxu0 %v2564
      %2653 = vmatpush1.bf16.msra.mxu0 %v2563
      %2654 = vmatprep.subr.bf16.mxu0 %v2560
      %2655 = vmatpush1.bf16.msra.mxu0 %v2559
      %2656 = vmatprep.subr.bf16.mxu0 %v2556
      %2657 = vmatpush1.bf16.msra.mxu0 %v2555
      %2658 = vmatprep.subr.bf16.mxu0 %v2552
      %2659 = vmatpush1.bf16.msra.mxu0 %v2551
      %2660 = vmatprep.subr.bf16.mxu0 %v2548
      %2661 = vmatpush1.bf16.msra.mxu0 %v2547
      %2662 = vmatprep.subr.bf16.mxu0 %v2544
      %2663 = vmatpush1.bf16.msra.mxu0 %v2543
      %2664 = vmatprep.subr.bf16.mxu0 0
      %2665 = vmatpush2.bf16.msra.mxu0 0
      %2666 = vmatprep.subr.bf16.mxu0 0
      %2667 = vmatpush2.bf16.msra.mxu0 0
      %2668 = vmatprep.subr.bf16.mxu0 0
      %2669 = vmatpush2.bf16.msra.mxu0 0
      %2670 = vmatprep.subr.bf16.mxu0 0
      %2671 = vmatpush2.bf16.msra.mxu0 0
      %2672 = vmatprep.subr.bf16.mxu0 0
      %2673 = vmatpush2.bf16.msra.mxu0 0
      %2674 = vmatprep.subr.bf16.mxu0 0
      %2675 = vmatpush2.bf16.msra.mxu0 0
      %2676 = vmatprep.subr.bf16.mxu0 0
      %2677 = vmatpush2.bf16.msra.mxu0 0
      %2678 = vmatprep.subr.bf16.mxu0 0
      %2679 = vmatpush2.bf16.msra.mxu0 0
      %2680 = vmatprep.mubr.bf16.mxu0 0
      %2681 = vmatmul.mubr.bf16.gmra.mxu0 %v2412
      %v2682 = vpop.f32.mrf.mxu0
      %v2683 = vadd.f32 0.0, %v2682
      %v2684 = vpop.f32.mrf.mxu0
      %v2685 = vadd.f32 0.0, %v2684
      %v2686 = vpop.f32.mrf.mxu0
      %v2687 = vadd.f32 0.0, %v2686
      %v2688 = vpop.f32.mrf.mxu0
      %v2689 = vadd.f32 0.0, %v2688
      %2690 = vdwg.mxu0
      %v2691 = vadd.f32 %v2402, %v2640
      %v2692 = vadd.f32 %v2403, %v2642
      %v2693 = vadd.f32 %v2404, %v2683
      %v2694 = vadd.f32 %v2405, %v2685
      %v2695 = vadd.f32 %v2406, %v2644
      %v2696 = vadd.f32 %v2407, %v2646
      %v2697 = vadd.f32 %v2408, %v2687
      %v2698 = vadd.f32 %v2409, %v2689
      %v2699 = vxor.u32 %v2691, 2147483648
      %v2700 = vxor.u32 %v2692, 2147483648
      %v2701 = vxor.u32 %v2693, 2147483648
      %v2702 = vxor.u32 %v2695, 2147483648
      %v2703 = vxor.u32 %v2696, 2147483648
      %v2704 = vxor.u32 %v2697, 2147483648
      %v2705 = vmul.f32 %v2699, 1.442695
      %v2706 = vpow.pop %v2705
      %v2707 = vmul.f32 %v2700, 1.442695
      %v2708 = vpow.pop %v2707
      %v2709 = vmul.f32 %v2701, 1.442695
      %v2710 = vpow.pop %v2709
      %v2711 = vmul.f32 %v2702, 1.442695
      %v2712 = vpow.pop %v2711
      %v2713 = vmul.f32 %v2703, 1.442695
      %v2714 = vpow.pop %v2713
      %v2715 = vmul.f32 %v2704, 1.442695
      %v2716 = vpow.pop %v2715
      %v2717 = vadd.f32 %v2706, 1.0
      %v2718 = vadd.f32 %v2708, 1.0
      %v2719 = vadd.f32 %v2710, 1.0
      %v2720 = vadd.f32 %v2712, 1.0
      %v2721 = vadd.f32 %v2714, 1.0
      %v2722 = vadd.f32 %v2716, 1.0
      %v2723 = vrcp.pop %v2717
      %v2724 = vmul.f32 1.0, %v2723
      %v2725 = vrcp.pop %v2718
      %v2726 = vmul.f32 1.0, %v2725
      %v2727 = vrcp.pop %v2719
      %v2728 = vmul.f32 1.0, %v2727
      %v2729 = vrcp.pop %v2720
      %v2730 = vmul.f32 1.0, %v2729
      %v2731 = vrcp.pop %v2721
      %v2732 = vmul.f32 1.0, %v2731
      %v2733 = vrcp.pop %v2722
      %v2734 = vmul.f32 1.0, %v2733
      %v2735 = vtanh.pop %v2694
      %v2736 = vtanh.pop %v2698
      %v2737 = vld [vmem:[#allocation4] sm:$0xff]
      %v2738 = vld [vmem:[#allocation4 + $0x8] sm:$0xff]
      %v2739 = vmul.f32 %v2726, %v2737
      %v2740 = vmul.f32 %v2732, %v2738
      %v2741 = vmul.f32 %v2724, %v2735
      %v2742 = vmul.f32 %v2730, %v2736
      %v2743 = vadd.f32 %v2739, %v2741
      %v2744 = vadd.f32 %v2740, %v2742
      %v2745 = vtanh.pop %v2743
      %v2746 = vtanh.pop %v2744
      %v2747 = vmul.f32 %v2728, %v2745
      %v2748 = vmul.f32 %v2734, %v2746
      %v2749 = vstv %s2398
      %vm2750 = vcmp.gt.s32.totalorder %v828, %v2749
      %vm2751 = vcmp.gt.s32.totalorder %v829, %v2749
      %v2752 = vsel %vm2750, 1, 0
      %v2753 = vsel %vm2751, 1, 0
      %2754 = vset.pattern.permute.xlu0 0
      %2755 = vperm.xlu0 %2754, %v2752
      %v2756 = vpop.permute.xlu0 %2755
      %2757 = vset.pattern.permute.xlu0 0
      %2758 = vperm.xlu0 %2757, %v2753
      %v2759 = vpop.permute.xlu0 %2758
      %vm2760 = vcmp.eq.s32.totalorder %v2756, 1
      %vm2761 = vcmp.eq.s32.totalorder %v2759, 1
      %v2762 = vsel %vm2760, %v2747, %v2410
      %v2763 = vsel %vm2761, %v2748, %v2411
      %2764 = vst [vmem:[#allocation3] sm:$0xff] %v2762
      %2765 = vst [vmem:[#allocation3 + $0x8] sm:$0xff] %v2763
      %v2766 = vld [vmem:[#allocation4] sm:$0xff]
      %v2767 = vld [vmem:[#allocation4 + $0x8] sm:$0xff]
      %v2768 = vsel %vm2760, %v2743, %v2766
      %v2769 = vsel %vm2761, %v2744, %v2767
      %2770 = vst [vmem:[#allocation4] sm:$0xff] %v2768
      %2771 = vst [vmem:[#allocation4 + $0x8] sm:$0xff] %v2769
      %v2772 = vsel %vm2760, %v2747, 0.0
      %v2773 = vsel %vm2761, %v2748, 0.0
      %v2774 = vpack.c.bf16 %v2773, %v2772
      %v2776 = vunpack.c.l.b16 %v2774
      %v2777 = vunpack.c.h.b16 %v2774
      %v2778 = vpack.c.b16 %v2776, %v2776
      %v2779 = vpack.c.b16 %v2777, %v2777
      %s2782 = smul.u32 %s2397, 2
      %s2783 = smul.addr %s2782, 4
      %s2784 = scalar_lea.vmem %s365, %s2783
      %2785 = vst [vmem:[%s2784] sm:$0xf] %v2778
      %2786 = vst [vmem:[%s2784 + $0x4] sm:$0xf] %v2779
      %s2787 = smul.u32 %s822, 5
      %s2788 = smul.u32 %s20, 2
      %s2789 = sadd.s32 %s2787, %s2788
      %s2790 = sadd.s32 %s827, %s2789
      %s2791 = smul.u32 %s2789, 8
      %s2792 = smul.addr %s2791, 8
      %s2793 = scalar_lea.vmem [#allocation2], %s2792
      %v2794 = vld [vmem:[%s2793] sm:$0xff]
      %v2795 = vld [vmem:[%s2793 + $0x8] sm:$0xff]
      %v2796 = vld [vmem:[%s2793 + $0x10] sm:$0xff]
      %v2797 = vld [vmem:[%s2793 + $0x18] sm:$0xff]
      %v2798 = vld [vmem:[%s2793 + $0x20] sm:$0xff]
      %v2799 = vld [vmem:[%s2793 + $0x28] sm:$0xff]
      %v2800 = vld [vmem:[%s2793 + $0x30] sm:$0xff]
      %v2801 = vld [vmem:[%s2793 + $0x38] sm:$0xff]
      %v2802 = vld [vmem:[#allocation3] sm:$0xff]
      %v2803 = vld [vmem:[#allocation3 + $0x8] sm:$0xff]
      %v2804 = vpack.c.bf16 %v2803, %v2802
      %v2805 = vld [vmem:[%s346] sm:$0xff]
      %v2806 = vld [vmem:[%s346 + $0x8] sm:$0xff]
      %v2807 = vld [vmem:[%s346 + $0x10] sm:$0xff]
      %v2808 = vld [vmem:[%s346 + $0x18] sm:$0xff]
      %v2809 = vld [vmem:[%s346 + $0x20] sm:$0xff]
      %v2810 = vld [vmem:[%s346 + $0x28] sm:$0xff]
      %v2811 = vld [vmem:[%s346 + $0x30] sm:$0xff]
      %v2812 = vld [vmem:[%s346 + $0x38] sm:$0xff]
      %v2813 = vld [vmem:[%s346 + $0x40] sm:$0xff]
      %v2814 = vld [vmem:[%s346 + $0x48] sm:$0xff]
      %v2815 = vld [vmem:[%s346 + $0x50] sm:$0xff]
      %v2816 = vld [vmem:[%s346 + $0x58] sm:$0xff]
      %v2817 = vld [vmem:[%s346 + $0x60] sm:$0xff]
      %v2818 = vld [vmem:[%s346 + $0x68] sm:$0xff]
      %v2819 = vld [vmem:[%s346 + $0x70] sm:$0xff]
      %v2820 = vld [vmem:[%s346 + $0x78] sm:$0xff]
      %v2821 = vld [vmem:[%s346 + $0x80] sm:$0xff]
      %v2822 = vld [vmem:[%s346 + $0x88] sm:$0xff]
      %v2823 = vld [vmem:[%s346 + $0x90] sm:$0xff]
      %v2824 = vld [vmem:[%s346 + $0x98] sm:$0xff]
      %v2825 = vld [vmem:[%s346 + $0xa0] sm:$0xff]
      %v2826 = vld [vmem:[%s346 + $0xa8] sm:$0xff]
      %v2827 = vld [vmem:[%s346 + $0xb0] sm:$0xff]
      %v2828 = vld [vmem:[%s346 + $0xb8] sm:$0xff]
      %v2829 = vld [vmem:[%s346 + $0xc0] sm:$0xff]
      %v2830 = vld [vmem:[%s346 + $0xc8] sm:$0xff]
      %v2831 = vld [vmem:[%s346 + $0xd0] sm:$0xff]
      %v2832 = vld [vmem:[%s346 + $0xd8] sm:$0xff]
      %v2833 = vld [vmem:[%s346 + $0xe0] sm:$0xff]
      %v2834 = vld [vmem:[%s346 + $0xe8] sm:$0xff]
      %v2835 = vld [vmem:[%s346 + $0xf0] sm:$0xff]
      %v2836 = vld [vmem:[%s346 + $0xf8] sm:$0xff]
      %v2869 = vunpack.c.l.b16 %v2805
      %v2870 = vunpack.c.h.b16 %v2805
      %v2871 = vunpack.c.l.b16 %v2806
      %v2872 = vunpack.c.h.b16 %v2806
      %v2873 = vunpack.c.l.b16 %v2807
      %v2874 = vunpack.c.h.b16 %v2807
      %v2875 = vunpack.c.l.b16 %v2808
      %v2876 = vunpack.c.h.b16 %v2808
      %v2877 = vunpack.c.l.b16 %v2809
      %v2878 = vunpack.c.h.b16 %v2809
      %v2879 = vunpack.c.l.b16 %v2810
      %v2880 = vunpack.c.h.b16 %v2810
      %v2881 = vunpack.c.l.b16 %v2811
      %v2882 = vunpack.c.h.b16 %v2811
      %v2883 = vunpack.c.l.b16 %v2812
      %v2884 = vunpack.c.h.b16 %v2812
      %v2885 = vunpack.c.l.b16 %v2813
      %v2886 = vunpack.c.h.b16 %v2813
      %v2887 = vunpack.c.l.b16 %v2814
      %v2888 = vunpack.c.h.b16 %v2814
      %v2889 = vunpack.c.l.b16 %v2815
      %v2890 = vunpack.c.h.b16 %v2815
      %v2891 = vunpack.c.l.b16 %v2816
      %v2892 = vunpack.c.h.b16 %v2816
      %v2893 = vunpack.c.l.b16 %v2817
      %v2894 = vunpack.c.h.b16 %v2817
      %v2895 = vunpack.c.l.b16 %v2818
      %v2896 = vunpack.c.h.b16 %v2818
      %v2897 = vunpack.c.l.b16 %v2819
      %v2898 = vunpack.c.h.b16 %v2819
      %v2899 = vunpack.c.l.b16 %v2820
      %v2900 = vunpack.c.h.b16 %v2820
      %v2901 = vunpack.c.l.b16 %v2821
      %v2902 = vunpack.c.h.b16 %v2821
      %v2903 = vunpack.c.l.b16 %v2822
      %v2904 = vunpack.c.h.b16 %v2822
      %v2905 = vunpack.c.l.b16 %v2823
      %v2906 = vunpack.c.h.b16 %v2823
      %v2907 = vunpack.c.l.b16 %v2824
      %v2908 = vunpack.c.h.b16 %v2824
      %v2909 = vunpack.c.l.b16 %v2825
      %v2910 = vunpack.c.h.b16 %v2825
      %v2911 = vunpack.c.l.b16 %v2826
      %v2912 = vunpack.c.h.b16 %v2826
      %v2913 = vunpack.c.l.b16 %v2827
      %v2914 = vunpack.c.h.b16 %v2827
      %v2915 = vunpack.c.l.b16 %v2828
      %v2916 = vunpack.c.h.b16 %v2828
      %v2917 = vunpack.c.l.b16 %v2829
      %v2918 = vunpack.c.h.b16 %v2829
      %v2919 = vunpack.c.l.b16 %v2830
      %v2920 = vunpack.c.h.b16 %v2830
      %v2921 = vunpack.c.l.b16 %v2831
      %v2922 = vunpack.c.h.b16 %v2831
      %v2923 = vunpack.c.l.b16 %v2832
      %v2924 = vunpack.c.h.b16 %v2832
      %v2925 = vunpack.c.l.b16 %v2833
      %v2926 = vunpack.c.h.b16 %v2833
      %v2927 = vunpack.c.l.b16 %v2834
      %v2928 = vunpack.c.h.b16 %v2834
      %v2929 = vunpack.c.l.b16 %v2835
      %v2930 = vunpack.c.h.b16 %v2835
      %v2931 = vunpack.c.l.b16 %v2836
      %v2932 = vunpack.c.h.b16 %v2836
      %v2933 = vpack.c.b16 %v2873, %v2869
      %v2934 = vpack.c.b16 %v2874, %v2870
      %v2935 = vpack.c.b16 %v2875, %v2871
      %v2936 = vpack.c.b16 %v2876, %v2872
      %v2937 = vpack.c.b16 %v2881, %v2877
      %v2938 = vpack.c.b16 %v2882, %v2878
      %v2939 = vpack.c.b16 %v2883, %v2879
      %v2940 = vpack.c.b16 %v2884, %v2880
      %v2941 = vpack.c.b16 %v2889, %v2885
      %v2942 = vpack.c.b16 %v2890, %v2886
      %v2943 = vpack.c.b16 %v2891, %v2887
      %v2944 = vpack.c.b16 %v2892, %v2888
      %v2945 = vpack.c.b16 %v2897, %v2893
      %v2946 = vpack.c.b16 %v2898, %v2894
      %v2947 = vpack.c.b16 %v2899, %v2895
      %v2948 = vpack.c.b16 %v2900, %v2896
      %v2949 = vpack.c.b16 %v2905, %v2901
      %v2950 = vpack.c.b16 %v2906, %v2902
      %v2951 = vpack.c.b16 %v2907, %v2903
      %v2952 = vpack.c.b16 %v2908, %v2904
      %v2953 = vpack.c.b16 %v2913, %v2909
      %v2954 = vpack.c.b16 %v2914, %v2910
      %v2955 = vpack.c.b16 %v2915, %v2911
      %v2956 = vpack.c.b16 %v2916, %v2912
      %v2957 = vpack.c.b16 %v2921, %v2917
      %v2958 = vpack.c.b16 %v2922, %v2918
      %v2959 = vpack.c.b16 %v2923, %v2919
      %v2960 = vpack.c.b16 %v2924, %v2920
      %v2961 = vpack.c.b16 %v2929, %v2925
      %v2962 = vpack.c.b16 %v2930, %v2926
      %v2963 = vpack.c.b16 %v2931, %v2927
      %v2964 = vpack.c.b16 %v2932, %v2928
      %2997 = vmatprep.subr.bf16.mxu0 %v2962
      %2998 = vmatpush1.bf16.msra.mxu0 %v2961
      %2999 = vmatprep.subr.bf16.mxu0 %v2958
      %3000 = vmatpush1.bf16.msra.mxu0 %v2957
      %3001 = vmatprep.subr.bf16.mxu0 %v2954
      %3002 = vmatpush1.bf16.msra.mxu0 %v2953
      %3003 = vmatprep.subr.bf16.mxu0 %v2950
      %3004 = vmatpush1.bf16.msra.mxu0 %v2949
      %3005 = vmatprep.subr.bf16.mxu0 %v2946
      %3006 = vmatpush1.bf16.msra.mxu0 %v2945
      %3007 = vmatprep.subr.bf16.mxu0 %v2942
      %3008 = vmatpush1.bf16.msra.mxu0 %v2941
      %3009 = vmatprep.subr.bf16.mxu0 %v2938
      %3010 = vmatpush1.bf16.msra.mxu0 %v2937
      %3011 = vmatprep.subr.bf16.mxu0 %v2934
      %3012 = vmatpush1.bf16.msra.mxu0 %v2933
      %3013 = vmatprep.subr.bf16.mxu0 0
      %3014 = vmatpush2.bf16.msra.mxu0 0
      %3015 = vmatprep.subr.bf16.mxu0 0
      %3016 = vmatpush2.bf16.msra.mxu0 0
      %3017 = vmatprep.subr.bf16.mxu0 0
      %3018 = vmatpush2.bf16.msra.mxu0 0
      %3019 = vmatprep.subr.bf16.mxu0 0
      %3020 = vmatpush2.bf16.msra.mxu0 0
      %3021 = vmatprep.subr.bf16.mxu0 0
      %3022 = vmatpush2.bf16.msra.mxu0 0
      %3023 = vmatprep.subr.bf16.mxu0 0
      %3024 = vmatpush2.bf16.msra.mxu0 0
      %3025 = vmatprep.subr.bf16.mxu0 0
      %3026 = vmatpush2.bf16.msra.mxu0 0
      %3027 = vmatprep.subr.bf16.mxu0 0
      %3028 = vmatpush2.bf16.msra.mxu0 0
      %3029 = vmatprep.mubr.bf16.mxu0 0
      %3030 = vmatmul.mubr.bf16.gmra.mxu0 %v2804
      %v3031 = vpop.f32.mrf.mxu0
      %v3032 = vadd.f32 0.0, %v3031
      %v3033 = vpop.f32.mrf.mxu0
      %v3034 = vadd.f32 0.0, %v3033
      %v3035 = vpop.f32.mrf.mxu0
      %v3036 = vadd.f32 0.0, %v3035
      %v3037 = vpop.f32.mrf.mxu0
      %v3038 = vadd.f32 0.0, %v3037
      %3039 = vdwg.mxu0
      %3040 = vmatprep.subr.bf16.mxu0 %v2964
      %3041 = vmatpush1.bf16.msra.mxu0 %v2963
      %3042 = vmatprep.subr.bf16.mxu0 %v2960
      %3043 = vmatpush1.bf16.msra.mxu0 %v2959
      %3044 = vmatprep.subr.bf16.mxu0 %v2956
      %3045 = vmatpush1.bf16.msra.mxu0 %v2955
      %3046 = vmatprep.subr.bf16.mxu0 %v2952
      %3047 = vmatpush1.bf16.msra.mxu0 %v2951
      %3048 = vmatprep.subr.bf16.mxu0 %v2948
      %3049 = vmatpush1.bf16.msra.mxu0 %v2947
      %3050 = vmatprep.subr.bf16.mxu0 %v2944
      %3051 = vmatpush1.bf16.msra.mxu0 %v2943
      %3052 = vmatprep.subr.bf16.mxu0 %v2940
      %3053 = vmatpush1.bf16.msra.mxu0 %v2939
      %3054 = vmatprep.subr.bf16.mxu0 %v2936
      %3055 = vmatpush1.bf16.msra.mxu0 %v2935
      %3056 = vmatprep.subr.bf16.mxu0 0
      %3057 = vmatpush2.bf16.msra.mxu0 0
      %3058 = vmatprep.subr.bf16.mxu0 0
      %3059 = vmatpush2.bf16.msra.mxu0 0
      %3060 = vmatprep.subr.bf16.mxu0 0
      %3061 = vmatpush2.bf16.msra.mxu0 0
      %3062 = vmatprep.subr.bf16.mxu0 0
      %3063 = vmatpush2.bf16.msra.mxu0 0
      %3064 = vmatprep.subr.bf16.mxu0 0
      %3065 = vmatpush2.bf16.msra.mxu0 0
      %3066 = vmatprep.subr.bf16.mxu0 0
      %3067 = vmatpush2.bf16.msra.mxu0 0
      %3068 = vmatprep.subr.bf16.mxu0 0
      %3069 = vmatpush2.bf16.msra.mxu0 0
      %3070 = vmatprep.subr.bf16.mxu0 0
      %3071 = vmatpush2.bf16.msra.mxu0 0
      %3072 = vmatprep.mubr.bf16.mxu0 0
      %3073 = vmatmul.mubr.bf16.gmra.mxu0 %v2804
      %v3074 = vpop.f32.mrf.mxu0
      %v3075 = vadd.f32 0.0, %v3074
      %v3076 = vpop.f32.mrf.mxu0
      %v3077 = vadd.f32 0.0, %v3076
      %v3078 = vpop.f32.mrf.mxu0
      %v3079 = vadd.f32 0.0, %v3078
      %v3080 = vpop.f32.mrf.mxu0
      %v3081 = vadd.f32 0.0, %v3080
      %3082 = vdwg.mxu0
      %v3083 = vadd.f32 %v2794, %v3032
      %v3084 = vadd.f32 %v2795, %v3034
      %v3085 = vadd.f32 %v2796, %v3075
      %v3086 = vadd.f32 %v2797, %v3077
      %v3087 = vadd.f32 %v2798, %v3036
      %v3088 = vadd.f32 %v2799, %v3038
      %v3089 = vadd.f32 %v2800, %v3079
      %v3090 = vadd.f32 %v2801, %v3081
      %v3091 = vxor.u32 %v3083, 2147483648
      %v3092 = vxor.u32 %v3084, 2147483648
      %v3093 = vxor.u32 %v3085, 2147483648
      %v3094 = vxor.u32 %v3087, 2147483648
      %v3095 = vxor.u32 %v3088, 2147483648
      %v3096 = vxor.u32 %v3089, 2147483648
      %v3097 = vmul.f32 %v3091, 1.442695
      %v3098 = vpow.pop %v3097
      %v3099 = vmul.f32 %v3092, 1.442695
      %v3100 = vpow.pop %v3099
      %v3101 = vmul.f32 %v3093, 1.442695
      %v3102 = vpow.pop %v3101
      %v3103 = vmul.f32 %v3094, 1.442695
      %v3104 = vpow.pop %v3103
      %v3105 = vmul.f32 %v3095, 1.442695
      %v3106 = vpow.pop %v3105
      %v3107 = vmul.f32 %v3096, 1.442695
      %v3108 = vpow.pop %v3107
      %v3109 = vadd.f32 %v3098, 1.0
      %v3110 = vadd.f32 %v3100, 1.0
      %v3111 = vadd.f32 %v3102, 1.0
      %v3112 = vadd.f32 %v3104, 1.0
      %v3113 = vadd.f32 %v3106, 1.0
      %v3114 = vadd.f32 %v3108, 1.0
      %v3115 = vrcp.pop %v3109
      %v3116 = vmul.f32 1.0, %v3115
      %v3117 = vrcp.pop %v3110
      %v3118 = vmul.f32 1.0, %v3117
      %v3119 = vrcp.pop %v3111
      %v3120 = vmul.f32 1.0, %v3119
      %v3121 = vrcp.pop %v3112
      %v3122 = vmul.f32 1.0, %v3121
      %v3123 = vrcp.pop %v3113
      %v3124 = vmul.f32 1.0, %v3123
      %v3125 = vrcp.pop %v3114
      %v3126 = vmul.f32 1.0, %v3125
      %v3127 = vtanh.pop %v3086
      %v3128 = vtanh.pop %v3090
      %v3129 = vld [vmem:[#allocation4] sm:$0xff]
      %v3130 = vld [vmem:[#allocation4 + $0x8] sm:$0xff]
      %v3131 = vmul.f32 %v3118, %v3129
      %v3132 = vmul.f32 %v3124, %v3130
      %v3133 = vmul.f32 %v3116, %v3127
      %v3134 = vmul.f32 %v3122, %v3128
      %v3135 = vadd.f32 %v3131, %v3133
      %v3136 = vadd.f32 %v3132, %v3134
      %v3137 = vtanh.pop %v3135
      %v3138 = vtanh.pop %v3136
      %v3139 = vmul.f32 %v3120, %v3137
      %v3140 = vmul.f32 %v3126, %v3138
      %v3141 = vstv %s2790
      %vm3142 = vcmp.gt.s32.totalorder %v828, %v3141
      %vm3143 = vcmp.gt.s32.totalorder %v829, %v3141
      %v3144 = vsel %vm3142, 1, 0
      %v3145 = vsel %vm3143, 1, 0
      %3146 = vset.pattern.permute.xlu0 0
      %3147 = vperm.xlu0 %3146, %v3144
      %v3148 = vpop.permute.xlu0 %3147
      %3149 = vset.pattern.permute.xlu0 0
      %3150 = vperm.xlu0 %3149, %v3145
      %v3151 = vpop.permute.xlu0 %3150
      %vm3152 = vcmp.eq.s32.totalorder %v3148, 1
      %vm3153 = vcmp.eq.s32.totalorder %v3151, 1
      %v3154 = vsel %vm3152, %v3139, %v2802
      %v3155 = vsel %vm3153, %v3140, %v2803
      %3156 = vst [vmem:[#allocation3] sm:$0xff] %v3154
      %3157 = vst [vmem:[#allocation3 + $0x8] sm:$0xff] %v3155
      %v3158 = vld [vmem:[#allocation4] sm:$0xff]
      %v3159 = vld [vmem:[#allocation4 + $0x8] sm:$0xff]
      %v3160 = vsel %vm3152, %v3135, %v3158
      %v3161 = vsel %vm3153, %v3136, %v3159
      %3162 = vst [vmem:[#allocation4] sm:$0xff] %v3160
      %3163 = vst [vmem:[#allocation4 + $0x8] sm:$0xff] %v3161
      %v3164 = vsel %vm3152, %v3139, 0.0
      %v3165 = vsel %vm3153, %v3140, 0.0
      %v3166 = vpack.c.bf16 %v3165, %v3164
      %v3168 = vunpack.c.l.b16 %v3166
      %v3169 = vunpack.c.h.b16 %v3166
      %v3170 = vpack.c.b16 %v3168, %v3168
      %v3171 = vpack.c.b16 %v3169, %v3169
      %s3174 = smul.u32 %s2789, 2
      %s3175 = smul.addr %s3174, 4
      %s3176 = scalar_lea.vmem %s365, %s3175
      %3177 = vst [vmem:[%s3176] sm:$0xf] %v3170
      %3178 = vst [vmem:[%s3176 + $0x4] sm:$0xf] %v3171
      %s3179 = smul.u32 %s822, 6
      %s3180 = sadd.s32 %s3179, %s20
      %s3181 = sadd.s32 %s827, %s3180
      %s3182 = smul.u32 %s3180, 8
      %s3183 = smul.addr %s3182, 8
      %s3184 = scalar_lea.vmem [#allocation2], %s3183
      %v3185 = vld [vmem:[%s3184] sm:$0xff]
      %v3186 = vld [vmem:[%s3184 + $0x8] sm:$0xff]
      %v3187 = vld [vmem:[%s3184 + $0x10] sm:$0xff]
      %v3188 = vld [vmem:[%s3184 + $0x18] sm:$0xff]
      %v3189 = vld [vmem:[%s3184 + $0x20] sm:$0xff]
      %v3190 = vld [vmem:[%s3184 + $0x28] sm:$0xff]
      %v3191 = vld [vmem:[%s3184 + $0x30] sm:$0xff]
      %v3192 = vld [vmem:[%s3184 + $0x38] sm:$0xff]
      %v3193 = vld [vmem:[#allocation3] sm:$0xff]
      %v3194 = vld [vmem:[#allocation3 + $0x8] sm:$0xff]
      %v3195 = vpack.c.bf16 %v3194, %v3193
      %v3196 = vld [vmem:[%s346] sm:$0xff]
      %v3197 = vld [vmem:[%s346 + $0x8] sm:$0xff]
      %v3198 = vld [vmem:[%s346 + $0x10] sm:$0xff]
      %v3199 = vld [vmem:[%s346 + $0x18] sm:$0xff]
      %v3200 = vld [vmem:[%s346 + $0x20] sm:$0xff]
      %v3201 = vld [vmem:[%s346 + $0x28] sm:$0xff]
      %v3202 = vld [vmem:[%s346 + $0x30] sm:$0xff]
      %v3203 = vld [vmem:[%s346 + $0x38] sm:$0xff]
      %v3204 = vld [vmem:[%s346 + $0x40] sm:$0xff]
      %v3205 = vld [vmem:[%s346 + $0x48] sm:$0xff]
      %v3206 = vld [vmem:[%s346 + $0x50] sm:$0xff]
      %v3207 = vld [vmem:[%s346 + $0x58] sm:$0xff]
      %v3208 = vld [vmem:[%s346 + $0x60] sm:$0xff]
      %v3209 = vld [vmem:[%s346 + $0x68] sm:$0xff]
      %v3210 = vld [vmem:[%s346 + $0x70] sm:$0xff]
      %v3211 = vld [vmem:[%s346 + $0x78] sm:$0xff]
      %v3212 = vld [vmem:[%s346 + $0x80] sm:$0xff]
      %v3213 = vld [vmem:[%s346 + $0x88] sm:$0xff]
      %v3214 = vld [vmem:[%s346 + $0x90] sm:$0xff]
      %v3215 = vld [vmem:[%s346 + $0x98] sm:$0xff]
      %v3216 = vld [vmem:[%s346 + $0xa0] sm:$0xff]
      %v3217 = vld [vmem:[%s346 + $0xa8] sm:$0xff]
      %v3218 = vld [vmem:[%s346 + $0xb0] sm:$0xff]
      %v3219 = vld [vmem:[%s346 + $0xb8] sm:$0xff]
      %v3220 = vld [vmem:[%s346 + $0xc0] sm:$0xff]
      %v3221 = vld [vmem:[%s346 + $0xc8] sm:$0xff]
      %v3222 = vld [vmem:[%s346 + $0xd0] sm:$0xff]
      %v3223 = vld [vmem:[%s346 + $0xd8] sm:$0xff]
      %v3224 = vld [vmem:[%s346 + $0xe0] sm:$0xff]
      %v3225 = vld [vmem:[%s346 + $0xe8] sm:$0xff]
      %v3226 = vld [vmem:[%s346 + $0xf0] sm:$0xff]
      %v3227 = vld [vmem:[%s346 + $0xf8] sm:$0xff]
      %v3260 = vunpack.c.l.b16 %v3196
      %v3261 = vunpack.c.h.b16 %v3196
      %v3262 = vunpack.c.l.b16 %v3197
      %v3263 = vunpack.c.h.b16 %v3197
      %v3264 = vunpack.c.l.b16 %v3198
      %v3265 = vunpack.c.h.b16 %v3198
      %v3266 = vunpack.c.l.b16 %v3199
      %v3267 = vunpack.c.h.b16 %v3199
      %v3268 = vunpack.c.l.b16 %v3200
      %v3269 = vunpack.c.h.b16 %v3200
      %v3270 = vunpack.c.l.b16 %v3201
      %v3271 = vunpack.c.h.b16 %v3201
      %v3272 = vunpack.c.l.b16 %v3202
      %v3273 = vunpack.c.h.b16 %v3202
      %v3274 = vunpack.c.l.b16 %v3203
      %v3275 = vunpack.c.h.b16 %v3203
      %v3276 = vunpack.c.l.b16 %v3204
      %v3277 = vunpack.c.h.b16 %v3204
      %v3278 = vunpack.c.l.b16 %v3205
      %v3279 = vunpack.c.h.b16 %v3205
      %v3280 = vunpack.c.l.b16 %v3206
      %v3281 = vunpack.c.h.b16 %v3206
      %v3282 = vunpack.c.l.b16 %v3207
      %v3283 = vunpack.c.h.b16 %v3207
      %v3284 = vunpack.c.l.b16 %v3208
      %v3285 = vunpack.c.h.b16 %v3208
      %v3286 = vunpack.c.l.b16 %v3209
      %v3287 = vunpack.c.h.b16 %v3209
      %v3288 = vunpack.c.l.b16 %v3210
      %v3289 = vunpack.c.h.b16 %v3210
      %v3290 = vunpack.c.l.b16 %v3211
      %v3291 = vunpack.c.h.b16 %v3211
      %v3292 = vunpack.c.l.b16 %v3212
      %v3293 = vunpack.c.h.b16 %v3212
      %v3294 = vunpack.c.l.b16 %v3213
      %v3295 = vunpack.c.h.b16 %v3213
      %v3296 = vunpack.c.l.b16 %v3214
      %v3297 = vunpack.c.h.b16 %v3214
      %v3298 = vunpack.c.l.b16 %v3215
      %v3299 = vunpack.c.h.b16 %v3215
      %v3300 = vunpack.c.l.b16 %v3216
      %v3301 = vunpack.c.h.b16 %v3216
      %v3302 = vunpack.c.l.b16 %v3217
      %v3303 = vunpack.c.h.b16 %v3217
      %v3304 = vunpack.c.l.b16 %v3218
      %v3305 = vunpack.c.h.b16 %v3218
      %v3306 = vunpack.c.l.b16 %v3219
      %v3307 = vunpack.c.h.b16 %v3219
      %v3308 = vunpack.c.l.b16 %v3220
      %v3309 = vunpack.c.h.b16 %v3220
      %v3310 = vunpack.c.l.b16 %v3221
      %v3311 = vunpack.c.h.b16 %v3221
      %v3312 = vunpack.c.l.b16 %v3222
      %v3313 = vunpack.c.h.b16 %v3222
      %v3314 = vunpack.c.l.b16 %v3223
      %v3315 = vunpack.c.h.b16 %v3223
      %v3316 = vunpack.c.l.b16 %v3224
      %v3317 = vunpack.c.h.b16 %v3224
      %v3318 = vunpack.c.l.b16 %v3225
      %v3319 = vunpack.c.h.b16 %v3225
      %v3320 = vunpack.c.l.b16 %v3226
      %v3321 = vunpack.c.h.b16 %v3226
      %v3322 = vunpack.c.l.b16 %v3227
      %v3323 = vunpack.c.h.b16 %v3227
      %v3324 = vpack.c.b16 %v3264, %v3260
      %v3325 = vpack.c.b16 %v3265, %v3261
      %v3326 = vpack.c.b16 %v3266, %v3262
      %v3327 = vpack.c.b16 %v3267, %v3263
      %v3328 = vpack.c.b16 %v3272, %v3268
      %v3329 = vpack.c.b16 %v3273, %v3269
      %v3330 = vpack.c.b16 %v3274, %v3270
      %v3331 = vpack.c.b16 %v3275, %v3271
      %v3332 = vpack.c.b16 %v3280, %v3276
      %v3333 = vpack.c.b16 %v3281, %v3277
      %v3334 = vpack.c.b16 %v3282, %v3278
      %v3335 = vpack.c.b16 %v3283, %v3279
      %v3336 = vpack.c.b16 %v3288, %v3284
      %v3337 = vpack.c.b16 %v3289, %v3285
      %v3338 = vpack.c.b16 %v3290, %v3286
      %v3339 = vpack.c.b16 %v3291, %v3287
      %v3340 = vpack.c.b16 %v3296, %v3292
      %v3341 = vpack.c.b16 %v3297, %v3293
      %v3342 = vpack.c.b16 %v3298, %v3294
      %v3343 = vpack.c.b16 %v3299, %v3295
      %v3344 = vpack.c.b16 %v3304, %v3300
      %v3345 = vpack.c.b16 %v3305, %v3301
      %v3346 = vpack.c.b16 %v3306, %v3302
      %v3347 = vpack.c.b16 %v3307, %v3303
      %v3348 = vpack.c.b16 %v3312, %v3308
      %v3349 = vpack.c.b16 %v3313, %v3309
      %v3350 = vpack.c.b16 %v3314, %v3310
      %v3351 = vpack.c.b16 %v3315, %v3311
      %v3352 = vpack.c.b16 %v3320, %v3316
      %v3353 = vpack.c.b16 %v3321, %v3317
      %v3354 = vpack.c.b16 %v3322, %v3318
      %v3355 = vpack.c.b16 %v3323, %v3319
      %3388 = vmatprep.subr.bf16.mxu0 %v3353
      %3389 = vmatpush1.bf16.msra.mxu0 %v3352
      %3390 = vmatprep.subr.bf16.mxu0 %v3349
      %3391 = vmatpush1.bf16.msra.mxu0 %v3348
      %3392 = vmatprep.subr.bf16.mxu0 %v3345
      %3393 = vmatpush1.bf16.msra.mxu0 %v3344
      %3394 = vmatprep.subr.bf16.mxu0 %v3341
      %3395 = vmatpush1.bf16.msra.mxu0 %v3340
      %3396 = vmatprep.subr.bf16.mxu0 %v3337
      %3397 = vmatpush1.bf16.msra.mxu0 %v3336
      %3398 = vmatprep.subr.bf16.mxu0 %v3333
      %3399 = vmatpush1.bf16.msra.mxu0 %v3332
      %3400 = vmatprep.subr.bf16.mxu0 %v3329
      %3401 = vmatpush1.bf16.msra.mxu0 %v3328
      %3402 = vmatprep.subr.bf16.mxu0 %v3325
      %3403 = vmatpush1.bf16.msra.mxu0 %v3324
      %3404 = vmatprep.subr.bf16.mxu0 0
      %3405 = vmatpush2.bf16.msra.mxu0 0
      %3406 = vmatprep.subr.bf16.mxu0 0
      %3407 = vmatpush2.bf16.msra.mxu0 0
      %3408 = vmatprep.subr.bf16.mxu0 0
      %3409 = vmatpush2.bf16.msra.mxu0 0
      %3410 = vmatprep.subr.bf16.mxu0 0
      %3411 = vmatpush2.bf16.msra.mxu0 0
      %3412 = vmatprep.subr.bf16.mxu0 0
      %3413 = vmatpush2.bf16.msra.mxu0 0
      %3414 = vmatprep.subr.bf16.mxu0 0
      %3415 = vmatpush2.bf16.msra.mxu0 0
      %3416 = vmatprep.subr.bf16.mxu0 0
      %3417 = vmatpush2.bf16.msra.mxu0 0
      %3418 = vmatprep.subr.bf16.mxu0 0
      %3419 = vmatpush2.bf16.msra.mxu0 0
      %3420 = vmatprep.mubr.bf16.mxu0 0
      %3421 = vmatmul.mubr.bf16.gmra.mxu0 %v3195
      %v3422 = vpop.f32.mrf.mxu0
      %v3423 = vadd.f32 0.0, %v3422
      %v3424 = vpop.f32.mrf.mxu0
      %v3425 = vadd.f32 0.0, %v3424
      %v3426 = vpop.f32.mrf.mxu0
      %v3427 = vadd.f32 0.0, %v3426
      %v3428 = vpop.f32.mrf.mxu0
      %v3429 = vadd.f32 0.0, %v3428
      %3430 = vdwg.mxu0
      %3431 = vmatprep.subr.bf16.mxu0 %v3355
      %3432 = vmatpush1.bf16.msra.mxu0 %v3354
      %3433 = vmatprep.subr.bf16.mxu0 %v3351
      %3434 = vmatpush1.bf16.msra.mxu0 %v3350
      %3435 = vmatprep.subr.bf16.mxu0 %v3347
      %3436 = vmatpush1.bf16.msra.mxu0 %v3346
      %3437 = vmatprep.subr.bf16.mxu0 %v3343
      %3438 = vmatpush1.bf16.msra.mxu0 %v3342
      %3439 = vmatprep.subr.bf16.mxu0 %v3339
      %3440 = vmatpush1.bf16.msra.mxu0 %v3338
      %3441 = vmatprep.subr.bf16.mxu0 %v3335
      %3442 = vmatpush1.bf16.msra.mxu0 %v3334
      %3443 = vmatprep.subr.bf16.mxu0 %v3331
      %3444 = vmatpush1.bf16.msra.mxu0 %v3330
      %3445 = vmatprep.subr.bf16.mxu0 %v3327
      %3446 = vmatpush1.bf16.msra.mxu0 %v3326
      %3447 = vmatprep.subr.bf16.mxu0 0
      %3448 = vmatpush2.bf16.msra.mxu0 0
      %3449 = vmatprep.subr.bf16.mxu0 0
      %3450 = vmatpush2.bf16.msra.mxu0 0
      %3451 = vmatprep.subr.bf16.mxu0 0
      %3452 = vmatpush2.bf16.msra.mxu0 0
      %3453 = vmatprep.subr.bf16.mxu0 0
      %3454 = vmatpush2.bf16.msra.mxu0 0
      %3455 = vmatprep.subr.bf16.mxu0 0
      %3456 = vmatpush2.bf16.msra.mxu0 0
      %3457 = vmatprep.subr.bf16.mxu0 0
      %3458 = vmatpush2.bf16.msra.mxu0 0
      %3459 = vmatprep.subr.bf16.mxu0 0
      %3460 = vmatpush2.bf16.msra.mxu0 0
      %3461 = vmatprep.subr.bf16.mxu0 0
      %3462 = vmatpush2.bf16.msra.mxu0 0
      %3463 = vmatprep.mubr.bf16.mxu0 0
      %3464 = vmatmul.mubr.bf16.gmra.mxu0 %v3195
      %v3465 = vpop.f32.mrf.mxu0
      %v3466 = vadd.f32 0.0, %v3465
      %v3467 = vpop.f32.mrf.mxu0
      %v3468 = vadd.f32 0.0, %v3467
      %v3469 = vpop.f32.mrf.mxu0
      %v3470 = vadd.f32 0.0, %v3469
      %v3471 = vpop.f32.mrf.mxu0
      %v3472 = vadd.f32 0.0, %v3471
      %3473 = vdwg.mxu0
      %v3474 = vadd.f32 %v3185, %v3423
      %v3475 = vadd.f32 %v3186, %v3425
      %v3476 = vadd.f32 %v3187, %v3466
      %v3477 = vadd.f32 %v3188, %v3468
      %v3478 = vadd.f32 %v3189, %v3427
      %v3479 = vadd.f32 %v3190, %v3429
      %v3480 = vadd.f32 %v3191, %v3470
      %v3481 = vadd.f32 %v3192, %v3472
      %v3482 = vxor.u32 %v3474, 2147483648
      %v3483 = vxor.u32 %v3475, 2147483648
      %v3484 = vxor.u32 %v3476, 2147483648
      %v3485 = vxor.u32 %v3478, 2147483648
      %v3486 = vxor.u32 %v3479, 2147483648
      %v3487 = vxor.u32 %v3480, 2147483648
      %v3488 = vmul.f32 %v3482, 1.442695
      %v3489 = vpow.pop %v3488
      %v3490 = vmul.f32 %v3483, 1.442695
      %v3491 = vpow.pop %v3490
      %v3492 = vmul.f32 %v3484, 1.442695
      %v3493 = vpow.pop %v3492
      %v3494 = vmul.f32 %v3485, 1.442695
      %v3495 = vpow.pop %v3494
      %v3496 = vmul.f32 %v3486, 1.442695
      %v3497 = vpow.pop %v3496
      %v3498 = vmul.f32 %v3487, 1.442695
      %v3499 = vpow.pop %v3498
      %v3500 = vadd.f32 %v3489, 1.0
      %v3501 = vadd.f32 %v3491, 1.0
      %v3502 = vadd.f32 %v3493, 1.0
      %v3503 = vadd.f32 %v3495, 1.0
      %v3504 = vadd.f32 %v3497, 1.0
      %v3505 = vadd.f32 %v3499, 1.0
      %v3506 = vrcp.pop %v3500
      %v3507 = vmul.f32 1.0, %v3506
      %v3508 = vrcp.pop %v3501
      %v3509 = vmul.f32 1.0, %v3508
      %v3510 = vrcp.pop %v3502
      %v3511 = vmul.f32 1.0, %v3510
      %v3512 = vrcp.pop %v3503
      %v3513 = vmul.f32 1.0, %v3512
      %v3514 = vrcp.pop %v3504
      %v3515 = vmul.f32 1.0, %v3514
      %v3516 = vrcp.pop %v3505
      %v3517 = vmul.f32 1.0, %v3516
      %v3518 = vtanh.pop %v3477
      %v3519 = vtanh.pop %v3481
      %v3520 = vld [vmem:[#allocation4] sm:$0xff]
      %v3521 = vld [vmem:[#allocation4 + $0x8] sm:$0xff]
      %v3522 = vmul.f32 %v3509, %v3520
      %v3523 = vmul.f32 %v3515, %v3521
      %v3524 = vmul.f32 %v3507, %v3518
      %v3525 = vmul.f32 %v3513, %v3519
      %v3526 = vadd.f32 %v3522, %v3524
      %v3527 = vadd.f32 %v3523, %v3525
      %v3528 = vtanh.pop %v3526
      %v3529 = vtanh.pop %v3527
      %v3530 = vmul.f32 %v3511, %v3528
      %v3531 = vmul.f32 %v3517, %v3529
      %v3532 = vstv %s3181
      %vm3533 = vcmp.gt.s32.totalorder %v828, %v3532
      %vm3534 = vcmp.gt.s32.totalorder %v829, %v3532
      %v3535 = vsel %vm3533, 1, 0
      %v3536 = vsel %vm3534, 1, 0
      %3537 = vset.pattern.permute.xlu0 0
      %3538 = vperm.xlu0 %3537, %v3535
      %v3539 = vpop.permute.xlu0 %3538
      %3540 = vset.pattern.permute.xlu0 0
      %3541 = vperm.xlu0 %3540, %v3536
      %v3542 = vpop.permute.xlu0 %3541
      %vm3543 = vcmp.eq.s32.totalorder %v3539, 1
      %vm3544 = vcmp.eq.s32.totalorder %v3542, 1
      %v3545 = vsel %vm3543, %v3530, %v3193
      %v3546 = vsel %vm3544, %v3531, %v3194
      %3547 = vst [vmem:[#allocation3] sm:$0xff] %v3545
      %3548 = vst [vmem:[#allocation3 + $0x8] sm:$0xff] %v3546
      %v3549 = vld [vmem:[#allocation4] sm:$0xff]
      %v3550 = vld [vmem:[#allocation4 + $0x8] sm:$0xff]
      %v3551 = vsel %vm3543, %v3526, %v3549
      %v3552 = vsel %vm3544, %v3527, %v3550
      %3553 = vst [vmem:[#allocation4] sm:$0xff] %v3551
      %3554 = vst [vmem:[#allocation4 + $0x8] sm:$0xff] %v3552
      %v3555 = vsel %vm3543, %v3530, 0.0
      %v3556 = vsel %vm3544, %v3531, 0.0
      %v3557 = vpack.c.bf16 %v3556, %v3555
      %v3559 = vunpack.c.l.b16 %v3557
      %v3560 = vunpack.c.h.b16 %v3557
      %v3561 = vpack.c.b16 %v3559, %v3559
      %v3562 = vpack.c.b16 %v3560, %v3560
      %s3565 = smul.u32 %s3180, 2
      %s3566 = smul.addr %s3565, 4
      %s3567 = scalar_lea.vmem %s365, %s3566
      %3568 = vst [vmem:[%s3567] sm:$0xf] %v3561
      %3569 = vst [vmem:[%s3567 + $0x4] sm:$0xf] %v3562
      %s3570 = smul.u32 %s822, 7
      %s3571 = sadd.s32 %s827, %s3570
      %s3572 = smul.u32 %s3570, 8
      %s3573 = smul.addr %s3572, 8
      %s3574 = scalar_lea.vmem [#allocation2], %s3573
      %v3575 = vld [vmem:[%s3574] sm:$0xff]
      %v3576 = vld [vmem:[%s3574 + $0x8] sm:$0xff]
      %v3577 = vld [vmem:[%s3574 + $0x10] sm:$0xff]
      %v3578 = vld [vmem:[%s3574 + $0x18] sm:$0xff]
      %v3579 = vld [vmem:[%s3574 + $0x20] sm:$0xff]
      %v3580 = vld [vmem:[%s3574 + $0x28] sm:$0xff]
      %v3581 = vld [vmem:[%s3574 + $0x30] sm:$0xff]
      %v3582 = vld [vmem:[%s3574 + $0x38] sm:$0xff]
      %v3583 = vld [vmem:[#allocation3] sm:$0xff]
      %v3584 = vld [vmem:[#allocation3 + $0x8] sm:$0xff]
      %v3585 = vpack.c.bf16 %v3584, %v3583
      %v3586 = vld [vmem:[%s346] sm:$0xff]
      %v3587 = vld [vmem:[%s346 + $0x8] sm:$0xff]
      %v3588 = vld [vmem:[%s346 + $0x10] sm:$0xff]
      %v3589 = vld [vmem:[%s346 + $0x18] sm:$0xff]
      %v3590 = vld [vmem:[%s346 + $0x20] sm:$0xff]
      %v3591 = vld [vmem:[%s346 + $0x28] sm:$0xff]
      %v3592 = vld [vmem:[%s346 + $0x30] sm:$0xff]
      %v3593 = vld [vmem:[%s346 + $0x38] sm:$0xff]
      %v3594 = vld [vmem:[%s346 + $0x40] sm:$0xff]
      %v3595 = vld [vmem:[%s346 + $0x48] sm:$0xff]
      %v3596 = vld [vmem:[%s346 + $0x50] sm:$0xff]
      %v3597 = vld [vmem:[%s346 + $0x58] sm:$0xff]
      %v3598 = vld [vmem:[%s346 + $0x60] sm:$0xff]
      %v3599 = vld [vmem:[%s346 + $0x68] sm:$0xff]
      %v3600 = vld [vmem:[%s346 + $0x70] sm:$0xff]
      %v3601 = vld [vmem:[%s346 + $0x78] sm:$0xff]
      %v3602 = vld [vmem:[%s346 + $0x80] sm:$0xff]
      %v3603 = vld [vmem:[%s346 + $0x88] sm:$0xff]
      %v3604 = vld [vmem:[%s346 + $0x90] sm:$0xff]
      %v3605 = vld [vmem:[%s346 + $0x98] sm:$0xff]
      %v3606 = vld [vmem:[%s346 + $0xa0] sm:$0xff]
      %v3607 = vld [vmem:[%s346 + $0xa8] sm:$0xff]
      %v3608 = vld [vmem:[%s346 + $0xb0] sm:$0xff]
      %v3609 = vld [vmem:[%s346 + $0xb8] sm:$0xff]
      %v3610 = vld [vmem:[%s346 + $0xc0] sm:$0xff]
      %v3611 = vld [vmem:[%s346 + $0xc8] sm:$0xff]
      %v3612 = vld [vmem:[%s346 + $0xd0] sm:$0xff]
      %v3613 = vld [vmem:[%s346 + $0xd8] sm:$0xff]
      %v3614 = vld [vmem:[%s346 + $0xe0] sm:$0xff]
      %v3615 = vld [vmem:[%s346 + $0xe8] sm:$0xff]
      %v3616 = vld [vmem:[%s346 + $0xf0] sm:$0xff]
      %v3617 = vld [vmem:[%s346 + $0xf8] sm:$0xff]
      %v3650 = vunpack.c.l.b16 %v3586
      %v3651 = vunpack.c.h.b16 %v3586
      %v3652 = vunpack.c.l.b16 %v3587
      %v3653 = vunpack.c.h.b16 %v3587
      %v3654 = vunpack.c.l.b16 %v3588
      %v3655 = vunpack.c.h.b16 %v3588
      %v3656 = vunpack.c.l.b16 %v3589
      %v3657 = vunpack.c.h.b16 %v3589
      %v3658 = vunpack.c.l.b16 %v3590
      %v3659 = vunpack.c.h.b16 %v3590
      %v3660 = vunpack.c.l.b16 %v3591
      %v3661 = vunpack.c.h.b16 %v3591
      %v3662 = vunpack.c.l.b16 %v3592
      %v3663 = vunpack.c.h.b16 %v3592
      %v3664 = vunpack.c.l.b16 %v3593
      %v3665 = vunpack.c.h.b16 %v3593
      %v3666 = vunpack.c.l.b16 %v3594
      %v3667 = vunpack.c.h.b16 %v3594
      %v3668 = vunpack.c.l.b16 %v3595
      %v3669 = vunpack.c.h.b16 %v3595
      %v3670 = vunpack.c.l.b16 %v3596
      %v3671 = vunpack.c.h.b16 %v3596
      %v3672 = vunpack.c.l.b16 %v3597
      %v3673 = vunpack.c.h.b16 %v3597
      %v3674 = vunpack.c.l.b16 %v3598
      %v3675 = vunpack.c.h.b16 %v3598
      %v3676 = vunpack.c.l.b16 %v3599
      %v3677 = vunpack.c.h.b16 %v3599
      %v3678 = vunpack.c.l.b16 %v3600
      %v3679 = vunpack.c.h.b16 %v3600
      %v3680 = vunpack.c.l.b16 %v3601
      %v3681 = vunpack.c.h.b16 %v3601
      %v3682 = vunpack.c.l.b16 %v3602
      %v3683 = vunpack.c.h.b16 %v3602
      %v3684 = vunpack.c.l.b16 %v3603
      %v3685 = vunpack.c.h.b16 %v3603
      %v3686 = vunpack.c.l.b16 %v3604
      %v3687 = vunpack.c.h.b16 %v3604
      %v3688 = vunpack.c.l.b16 %v3605
      %v3689 = vunpack.c.h.b16 %v3605
      %v3690 = vunpack.c.l.b16 %v3606
      %v3691 = vunpack.c.h.b16 %v3606
      %v3692 = vunpack.c.l.b16 %v3607
      %v3693 = vunpack.c.h.b16 %v3607
      %v3694 = vunpack.c.l.b16 %v3608
      %v3695 = vunpack.c.h.b16 %v3608
      %v3696 = vunpack.c.l.b16 %v3609
      %v3697 = vunpack.c.h.b16 %v3609
      %v3698 = vunpack.c.l.b16 %v3610
      %v3699 = vunpack.c.h.b16 %v3610
      %v3700 = vunpack.c.l.b16 %v3611
      %v3701 = vunpack.c.h.b16 %v3611
      %v3702 = vunpack.c.l.b16 %v3612
      %v3703 = vunpack.c.h.b16 %v3612
      %v3704 = vunpack.c.l.b16 %v3613
      %v3705 = vunpack.c.h.b16 %v3613
      %v3706 = vunpack.c.l.b16 %v3614
      %v3707 = vunpack.c.h.b16 %v3614
      %v3708 = vunpack.c.l.b16 %v3615
      %v3709 = vunpack.c.h.b16 %v3615
      %v3710 = vunpack.c.l.b16 %v3616
      %v3711 = vunpack.c.h.b16 %v3616
      %v3712 = vunpack.c.l.b16 %v3617
      %v3713 = vunpack.c.h.b16 %v3617
      %v3714 = vpack.c.b16 %v3654, %v3650
      %v3715 = vpack.c.b16 %v3655, %v3651
      %v3716 = vpack.c.b16 %v3656, %v3652
      %v3717 = vpack.c.b16 %v3657, %v3653
      %v3718 = vpack.c.b16 %v3662, %v3658
      %v3719 = vpack.c.b16 %v3663, %v3659
      %v3720 = vpack.c.b16 %v3664, %v3660
      %v3721 = vpack.c.b16 %v3665, %v3661
      %v3722 = vpack.c.b16 %v3670, %v3666
      %v3723 = vpack.c.b16 %v3671, %v3667
      %v3724 = vpack.c.b16 %v3672, %v3668
      %v3725 = vpack.c.b16 %v3673, %v3669
      %v3726 = vpack.c.b16 %v3678, %v3674
      %v3727 = vpack.c.b16 %v3679, %v3675
      %v3728 = vpack.c.b16 %v3680, %v3676
      %v3729 = vpack.c.b16 %v3681, %v3677
      %v3730 = vpack.c.b16 %v3686, %v3682
      %v3731 = vpack.c.b16 %v3687, %v3683
      %v3732 = vpack.c.b16 %v3688, %v3684
      %v3733 = vpack.c.b16 %v3689, %v3685
      %v3734 = vpack.c.b16 %v3694, %v3690
      %v3735 = vpack.c.b16 %v3695, %v3691
      %v3736 = vpack.c.b16 %v3696, %v3692
      %v3737 = vpack.c.b16 %v3697, %v3693
      %v3738 = vpack.c.b16 %v3702, %v3698
      %v3739 = vpack.c.b16 %v3703, %v3699
      %v3740 = vpack.c.b16 %v3704, %v3700
      %v3741 = vpack.c.b16 %v3705, %v3701
      %v3742 = vpack.c.b16 %v3710, %v3706
      %v3743 = vpack.c.b16 %v3711, %v3707
      %v3744 = vpack.c.b16 %v3712, %v3708
      %v3745 = vpack.c.b16 %v3713, %v3709
      %3778 = vmatprep.subr.bf16.mxu0 %v3743
      %3779 = vmatpush1.bf16.msra.mxu0 %v3742
      %3780 = vmatprep.subr.bf16.mxu0 %v3739
      %3781 = vmatpush1.bf16.msra.mxu0 %v3738
      %3782 = vmatprep.subr.bf16.mxu0 %v3735
      %3783 = vmatpush1.bf16.msra.mxu0 %v3734
      %3784 = vmatprep.subr.bf16.mxu0 %v3731
      %3785 = vmatpush1.bf16.msra.mxu0 %v3730
      %3786 = vmatprep.subr.bf16.mxu0 %v3727
      %3787 = vmatpush1.bf16.msra.mxu0 %v3726
      %3788 = vmatprep.subr.bf16.mxu0 %v3723
      %3789 = vmatpush1.bf16.msra.mxu0 %v3722
      %3790 = vmatprep.subr.bf16.mxu0 %v3719
      %3791 = vmatpush1.bf16.msra.mxu0 %v3718
      %3792 = vmatprep.subr.bf16.mxu0 %v3715
      %3793 = vmatpush1.bf16.msra.mxu0 %v3714
      %3794 = vmatprep.subr.bf16.mxu0 0
      %3795 = vmatpush2.bf16.msra.mxu0 0
      %3796 = vmatprep.subr.bf16.mxu0 0
      %3797 = vmatpush2.bf16.msra.mxu0 0
      %3798 = vmatprep.subr.bf16.mxu0 0
      %3799 = vmatpush2.bf16.msra.mxu0 0
      %3800 = vmatprep.subr.bf16.mxu0 0
      %3801 = vmatpush2.bf16.msra.mxu0 0
      %3802 = vmatprep.subr.bf16.mxu0 0
      %3803 = vmatpush2.bf16.msra.mxu0 0
      %3804 = vmatprep.subr.bf16.mxu0 0
      %3805 = vmatpush2.bf16.msra.mxu0 0
      %3806 = vmatprep.subr.bf16.mxu0 0
      %3807 = vmatpush2.bf16.msra.mxu0 0
      %3808 = vmatprep.subr.bf16.mxu0 0
      %3809 = vmatpush2.bf16.msra.mxu0 0
      %3810 = vmatprep.mubr.bf16.mxu0 0
      %3811 = vmatmul.mubr.bf16.gmra.mxu0 %v3585
      %v3812 = vpop.f32.mrf.mxu0
      %v3813 = vadd.f32 0.0, %v3812
      %v3814 = vpop.f32.mrf.mxu0
      %v3815 = vadd.f32 0.0, %v3814
      %v3816 = vpop.f32.mrf.mxu0
      %v3817 = vadd.f32 0.0, %v3816
      %v3818 = vpop.f32.mrf.mxu0
      %v3819 = vadd.f32 0.0, %v3818
      %3820 = vdwg.mxu0
      %3821 = vmatprep.subr.bf16.mxu0 %v3745
      %3822 = vmatpush1.bf16.msra.mxu0 %v3744
      %3823 = vmatprep.subr.bf16.mxu0 %v3741
      %3824 = vmatpush1.bf16.msra.mxu0 %v3740
      %3825 = vmatprep.subr.bf16.mxu0 %v3737
      %3826 = vmatpush1.bf16.msra.mxu0 %v3736
      %3827 = vmatprep.subr.bf16.mxu0 %v3733
      %3828 = vmatpush1.bf16.msra.mxu0 %v3732
      %3829 = vmatprep.subr.bf16.mxu0 %v3729
      %3830 = vmatpush1.bf16.msra.mxu0 %v3728
      %3831 = vmatprep.subr.bf16.mxu0 %v3725
      %3832 = vmatpush1.bf16.msra.mxu0 %v3724
      %3833 = vmatprep.subr.bf16.mxu0 %v3721
      %3834 = vmatpush1.bf16.msra.mxu0 %v3720
      %3835 = vmatprep.subr.bf16.mxu0 %v3717
      %3836 = vmatpush1.bf16.msra.mxu0 %v3716
      %3837 = vmatprep.subr.bf16.mxu0 0
      %3838 = vmatpush2.bf16.msra.mxu0 0
      %3839 = vmatprep.subr.bf16.mxu0 0
      %3840 = vmatpush2.bf16.msra.mxu0 0
      %3841 = vmatprep.subr.bf16.mxu0 0
      %3842 = vmatpush2.bf16.msra.mxu0 0
      %3843 = vmatprep.subr.bf16.mxu0 0
      %3844 = vmatpush2.bf16.msra.mxu0 0
      %3845 = vmatprep.subr.bf16.mxu0 0
      %3846 = vmatpush2.bf16.msra.mxu0 0
      %3847 = vmatprep.subr.bf16.mxu0 0
      %3848 = vmatpush2.bf16.msra.mxu0 0
      %3849 = vmatprep.subr.bf16.mxu0 0
      %3850 = vmatpush2.bf16.msra.mxu0 0
      %3851 = vmatprep.subr.bf16.mxu0 0
      %3852 = vmatpush2.bf16.msra.mxu0 0
      %3853 = vmatprep.mubr.bf16.mxu0 0
      %3854 = vmatmul.mubr.bf16.gmra.mxu0 %v3585
      %v3855 = vpop.f32.mrf.mxu0
      %v3856 = vadd.f32 0.0, %v3855
      %v3857 = vpop.f32.mrf.mxu0
      %v3858 = vadd.f32 0.0, %v3857
      %v3859 = vpop.f32.mrf.mxu0
      %v3860 = vadd.f32 0.0, %v3859
      %v3861 = vpop.f32.mrf.mxu0
      %v3862 = vadd.f32 0.0, %v3861
      %3863 = vdwg.mxu0
      %v3864 = vadd.f32 %v3575, %v3813
      %v3865 = vadd.f32 %v3576, %v3815
      %v3866 = vadd.f32 %v3577, %v3856
      %v3867 = vadd.f32 %v3578, %v3858
      %v3868 = vadd.f32 %v3579, %v3817
      %v3869 = vadd.f32 %v3580, %v3819
      %v3870 = vadd.f32 %v3581, %v3860
      %v3871 = vadd.f32 %v3582, %v3862
      %v3872 = vxor.u32 %v3864, 2147483648
      %v3873 = vxor.u32 %v3865, 2147483648
      %v3874 = vxor.u32 %v3866, 2147483648
      %v3875 = vxor.u32 %v3868, 2147483648
      %v3876 = vxor.u32 %v3869, 2147483648
      %v3877 = vxor.u32 %v3870, 2147483648
      %v3878 = vmul.f32 %v3872, 1.442695
      %v3879 = vpow.pop %v3878
      %v3880 = vmul.f32 %v3873, 1.442695
      %v3881 = vpow.pop %v3880
      %v3882 = vmul.f32 %v3874, 1.442695
      %v3883 = vpow.pop %v3882
      %v3884 = vmul.f32 %v3875, 1.442695
      %v3885 = vpow.pop %v3884
      %v3886 = vmul.f32 %v3876, 1.442695
      %v3887 = vpow.pop %v3886
      %v3888 = vmul.f32 %v3877, 1.442695
      %v3889 = vpow.pop %v3888
      %v3890 = vadd.f32 %v3879, 1.0
      %v3891 = vadd.f32 %v3881, 1.0
      %v3892 = vadd.f32 %v3883, 1.0
      %v3893 = vadd.f32 %v3885, 1.0
      %v3894 = vadd.f32 %v3887, 1.0
      %v3895 = vadd.f32 %v3889, 1.0
      %v3896 = vrcp.pop %v3890
      %v3897 = vmul.f32 1.0, %v3896
      %v3898 = vrcp.pop %v3891
      %v3899 = vmul.f32 1.0, %v3898
      %v3900 = vrcp.pop %v3892
      %v3901 = vmul.f32 1.0, %v3900
      %v3902 = vrcp.pop %v3893
      %v3903 = vmul.f32 1.0, %v3902
      %v3904 = vrcp.pop %v3894
      %v3905 = vmul.f32 1.0, %v3904
      %v3906 = vrcp.pop %v3895
      %v3907 = vmul.f32 1.0, %v3906
      %v3908 = vtanh.pop %v3867
      %v3909 = vtanh.pop %v3871
      %v3910 = vld [vmem:[#allocation4] sm:$0xff]
      %v3911 = vld [vmem:[#allocation4 + $0x8] sm:$0xff]
      %v3912 = vmul.f32 %v3899, %v3910
      %v3913 = vmul.f32 %v3905, %v3911
      %v3914 = vmul.f32 %v3897, %v3908
      %v3915 = vmul.f32 %v3903, %v3909
      %v3916 = vadd.f32 %v3912, %v3914
      %v3917 = vadd.f32 %v3913, %v3915
      %v3918 = vtanh.pop %v3916
      %v3919 = vtanh.pop %v3917
      %v3920 = vmul.f32 %v3901, %v3918
      %v3921 = vmul.f32 %v3907, %v3919
      %v3922 = vstv %s3571
      %vm3923 = vcmp.gt.s32.totalorder %v828, %v3922
      %vm3924 = vcmp.gt.s32.totalorder %v829, %v3922
      %v3925 = vsel %vm3923, 1, 0
      %v3926 = vsel %vm3924, 1, 0
      %3927 = vset.pattern.permute.xlu0 0
      %3928 = vperm.xlu0 %3927, %v3925
      %v3929 = vpop.permute.xlu0 %3928
      %3930 = vset.pattern.permute.xlu0 0
      %3931 = vperm.xlu0 %3930, %v3926
      %v3932 = vpop.permute.xlu0 %3931
      %vm3933 = vcmp.eq.s32.totalorder %v3929, 1
      %vm3934 = vcmp.eq.s32.totalorder %v3932, 1
      %v3935 = vsel %vm3933, %v3920, %v3583
      %v3936 = vsel %vm3934, %v3921, %v3584
      %3937 = vst [vmem:[#allocation3] sm:$0xff] %v3935
      %3938 = vst [vmem:[#allocation3 + $0x8] sm:$0xff] %v3936
      %v3939 = vld [vmem:[#allocation4] sm:$0xff]
      %v3940 = vld [vmem:[#allocation4 + $0x8] sm:$0xff]
      %v3941 = vsel %vm3933, %v3916, %v3939
      %v3942 = vsel %vm3934, %v3917, %v3940
      %3943 = vst [vmem:[#allocation4] sm:$0xff] %v3941
      %3944 = vst [vmem:[#allocation4 + $0x8] sm:$0xff] %v3942
      %v3945 = vsel %vm3933, %v3920, 0.0
      %v3946 = vsel %vm3934, %v3921, 0.0
      %v3947 = vpack.c.bf16 %v3946, %v3945
      %v3949 = vunpack.c.l.b16 %v3947
      %v3950 = vunpack.c.h.b16 %v3947
      %v3951 = vpack.c.b16 %v3949, %v3949
      %v3952 = vpack.c.b16 %v3950, %v3950
      %s3955 = smul.u32 %s3570, 2
      %s3956 = smul.addr %s3955, 4
      %s3957 = scalar_lea.vmem %s365, %s3956
      %3958 = vst [vmem:[%s3957] sm:$0xf] %v3951
      %3959 = vst [vmem:[%s3957 + $0x4] sm:$0xf] %v3952
      %s3960 = ssub.s32 1, %s20
      %s3961 = smul.u32 %s3960, %s21
      %s3962 = ssub.s32 1, %s21
      %s3963 = smul.u32 %s20, %s3962
      %s3964 = sadd.s32 %s3961, %s3963
      %s3965 = smul.u32 8, %s3964
      %p3966 = scmp.lt.s32.totalorder %s20, 1
      %s3967 = scalar_select %p3966, %s20, 1
      %p3968 = scmp.lt.s32.totalorder %s3965, 15
      %s3969 = scalar_select %p3968, %s3965, 15
      %s3970 = smul.addr %s3969, 2
      %s3971 = smul.addr %s3967, 32
      %s3972 = sadd.s32 %s3970, %s3971
      %s3973 = smul.addr %s3972, 4
      %s3974 = scalar_lea.vmem %s5, %s3973
      // Predicated region
      $region45: #{forward.3} parent=39 // pred_check
        %p3975 = pneg %p193
      $region46: #{forward.3} parent=39 // pred_check_branch
        %3977 = sbr.rel (%p3975) target = $region48
      $region47: #{forward.3} parent=39 // pred_region
        %s3978 = ssub.s32 1, %s20
        %s3979 = smul.u32 %s3978, %s21
        %s3980 = ssub.s32 1, %s21
        %s3981 = smul.u32 %s20, %s3980
        %s3982 = sadd.s32 %s3979, %s3981
        %s3983 = smul.u32 8, %s3982
      $region48: #{forward.3} parent=39 // pred_fallthru
        _
    $region40: #{forward.3} parent=5 // pred_fallthru
      _
    %p3984 = scmp.le.s32.totalorder 2, %s11
    // Predicated region
    $region49: #{forward.3} parent=5 // pred_check
      %p3985 = pneg %p3984
    $region50: #{forward.3} parent=5 // pred_check_branch
      %3987 = sbr.rel (%p3985) target = $region52
    $region51: #{forward.3} parent=5 // pred_region
      %s3988 = ssub.s32 %s11, 2
      // Predicated region
      $region53: #{forward.3} parent=51 // pred_check
        %p3989 = pneg %p199
      $region54: #{forward.3} parent=51 // pred_check_branch
        %3991 = sbr.rel (%p3989) target = $region56
      $region55: #{forward.3} parent=51 // pred_region
        %s3992 = ssub.s32 1, %s22
        %s3993 = smul.u32 %s3992, %s23
        %s3994 = ssub.s32 1, %s23
        %s3995 = smul.u32 %s22, %s3994
        %s3996 = sadd.s32 %s3993, %s3995
        %s3997 = smul.u32 8, %s3996
        %p3998 = scmp.lt.s32.totalorder %s22, 1
        %s3999 = scalar_select %p3998, %s22, 1
        %p4000 = scmp.lt.s32.totalorder %s3997, 15
        %s4001 = scalar_select %p4000, %s3997, 15
        %s4002 = smul.addr %s4001, 2
        %s4003 = smul.addr %s3999, 32
        %s4004 = sadd.s32 %s4002, %s4003
        %s4005 = smul.addr %s4004, 4
        %s4006 = scalar_lea.vmem %s5, %s4005
      $region56: #{forward.3} parent=51 // pred_fallthru
        _
    $region52: #{forward.3} parent=5 // pred_fallthru
      _
  $region6: #{forward.3} parent=0 // loop_footer
    %s15 = sadd.s32 1, %s11
  $region7: #{forward.3} parent=0 // loop_footer_branch
    %10 = sbr.rel target = $region3
  $region8: #{forward.3} parent=0 // loop_exit
    _

// kernel: forward.4
$region0: #{forward.4}
  #allocation0 [shape = 'u32[]', space=smem, size = 0x4, offset = 0x4, fixed_abs, tag = 'smem constant byte address 0x4 - core index']
  #allocation1 [shape = 'u32[144,128]{1,0:T(1,128)}', space=vmem, size = 0x12000, scoped, tag = 'internal scratch']
  #allocation2 [shape = 'f32[8,16,512]{2,1,0:T(8,128)}', space=vmem, size = 0x40000, scoped, tag = 'scratch operand']
  #allocation3 [shape = 'f32[16,128]{1,0:T(8,128)}', space=vmem, size = 0x2000, scoped, tag = 'scratch operand']
  #allocation4 [shape = 'f32[16,128]{1,0:T(8,128)}', space=vmem, size = 0x2000, scoped, tag = 'scratch operand']
  %s0 = inlined_call_operand.vmem [shape: s32[16,1], index: 0, kind: input, shape index: {}]
  %s1 = inlined_call_operand.vmem [shape: s32[2,16,1], index: 1, kind: input, shape index: {}]
  %s2 = inlined_call_operand.vmem [shape: bf16[2,16,16,128], index: 2, kind: input, shape index: {}, may-alias: {2,3}]
  %s3 = inlined_call_operand.vmem [shape: bf16[2,16,16,128], index: 3, kind: input, shape index: {}, may-alias: {2,3}]
  %s4 = inlined_call_operand.vmem [shape: bf16[2,128,512], index: 4, kind: input, shape index: {}]
  %s5 = inlined_call_operand.vmem [shape: bf16[2,128,512], index: 5, kind: input, shape index: {}]
  %s6 = inlined_call_operand.vmem [shape: bf16[2,128,512], index: 6, kind: input, shape index: {}]
  %s7 = inlined_call_operand.vmem [shape: f32[2,1,512], index: 7, kind: input, shape index: {}]
  %s8 = inlined_call_operand.vmem [shape: bf16[2,16,128], index: 8, kind: output, shape index: {}]
  %s9 = sld [smem:[#allocation0]]
  $region69: #{forward.4} parent=0
    _
  %s11 = ssub.s32 1, %s9
  %s12 = scalar_select 0, %s11, %s9
  loop: start=0, step=1, limit=6
  $region2: #{forward.4} parent=0 // loop_pre_header
    _
  $region3: #{forward.4} parent=0 // loop_header
    %s14 = sphi 0, %s18
    %p15 = scmp.ge.s32.totalorder %s14, 6
    %s21 = sphi 0, %s33
    %s22 = sphi 0, %s29
    %s23 = sphi 0, %s21
    %s24 = sphi 0, %s22
    %s25 = sphi 0, %s23
    %s26 = sphi 0, %s24
    %s34 = sphi 0, %s34
    %s36 = sphi 0, %s34
    %s37 = sphi 0, %s36
    %s51 = sphi 0, %s37
    %s57 = sphi 0, %s59
    %s60 = sphi 0, %s57
    %s61 = sphi 0, %s60
    %s77 = sphi 0, %s61
    %s93 = sphi 0, %s95
    %s96 = sphi 0, %s93
    %s97 = sphi 0, %s96
    %s113 = sphi 0, %s97
    %s129 = sphi 0, %s131
    %s132 = sphi 0, %s129
    %s133 = sphi 0, %s132
    %s149 = sphi 0, %s133
    %s155 = sphi 0, %s157
    %s158 = sphi 0, %s155
    %s159 = sphi 0, %s158
    %s175 = sphi 0, %s159
    %s181 = sphi 0, %s183
    %s184 = sphi 0, %s181
    %s185 = sphi 0, %s184
    %s201 = sphi 0, %s185
    %s207 = sphi 0, %s209
    %s210 = sphi 0, %s207
    %s211 = sphi 0, %s210
    %s227 = sphi 0, %s211
    %s233 = sphi 0, %s235
    %s236 = sphi 0, %s233
    %s237 = sphi 0, %s236
    %s253 = sphi 0, %s237
    %s259 = sphi 0, %s261
    %s262 = sphi 0, %s259
    %s263 = sphi 0, %s262
    %s279 = sphi 0, %s263
  $region4: #{forward.4} parent=0 // loop_header_branch
    %17 = sbr.rel (%p15) target = $region8
  $region5: #{forward.4} parent=0 // loop_body
    %s19 = ssub.s32 %s14, 1
    %s20 = ssub.s32 %s14, 2
    %s27 = sadd.s32 1, %s22
    %p28 = scmp.ge.s32.totalorder %s27, 2
    %s29 = scalar_select %p28, 0, %s27
    %s30 = sadd.s32 1, %s21
    %s31 = scalar_select %p28, %s30, %s21
    %p32 = scmp.ge.s32.totalorder %s31, 2
    %s33 = scalar_select %p32, 0, %s31
    %s35 = sadd.s32 %s34, 1
    %p38 = scmp.eq.s32.totalorder %s14, 3
    %p39 = scmp.ne.s32.totalorder %s34, %s36
    %p40 = scmp.eq.s32.totalorder %s14, 0
    %p41 = por %p39, %p40
    %p42 = scmp.ne.s32.totalorder %s34, %s36
    %p43 = scmp.eq.s32.totalorder %s19, 3
    %p44 = por %p42, %p43
    %p45 = scmp.ne.s32.totalorder %s36, %s37
    %p46 = scmp.eq.s32.totalorder %s19, 0
    %p47 = por %p45, %p46
    %p48 = scmp.ne.s32.totalorder %s36, %s37
    %p49 = scmp.eq.s32.totalorder %s20, 3
    %p50 = por %p48, %p49
    %p52 = scmp.ne.s32.totalorder %s37, %s51
    %p53 = scmp.eq.s32.totalorder %s20, 0
    %p54 = por %p52, %p53
    %s55 = ssub.s32 %s21, %s33
    %p56 = scmp.eq.s32.totalorder %s55, 0
    %s58 = sadd.s32 %s57, 1
    %s59 = scalar_select %p56, %s57, %s58
    %p62 = pneg %p56
    %p63 = scmp.eq.s32.totalorder %s14, 3
    %p64 = por %p62, %p63
    %p65 = scmp.ne.s32.totalorder %s57, %s60
    %p66 = scmp.eq.s32.totalorder %s14, 0
    %p67 = por %p65, %p66
    %p68 = scmp.ne.s32.totalorder %s57, %s60
    %p69 = scmp.eq.s32.totalorder %s19, 3
    %p70 = por %p68, %p69
    %p71 = scmp.ne.s32.totalorder %s60, %s61
    %p72 = scmp.eq.s32.totalorder %s19, 0
    %p73 = por %p71, %p72
    %p74 = scmp.ne.s32.totalorder %s60, %s61
    %p75 = scmp.eq.s32.totalorder %s20, 3
    %p76 = por %p74, %p75
    %p78 = scmp.ne.s32.totalorder %s61, %s77
    %p79 = scmp.eq.s32.totalorder %s20, 0
    %p80 = por %p78, %p79
    %s81 = ssub.s32 1, %s21
    %s82 = smul.u32 %s81, %s22
    %s83 = ssub.s32 1, %s22
    %s84 = smul.u32 %s21, %s83
    %s85 = sadd.s32 %s82, %s84
    %s86 = ssub.s32 1, %s33
    %s87 = smul.u32 %s86, %s29
    %s88 = ssub.s32 1, %s29
    %s89 = smul.u32 %s33, %s88
    %s90 = sadd.s32 %s87, %s89
    %s91 = ssub.s32 %s85, %s90
    %p92 = scmp.eq.s32.totalorder %s91, 0
    %s94 = sadd.s32 %s93, 1
    %s95 = scalar_select %p92, %s93, %s94
    %p98 = pneg %p92
    %p99 = scmp.eq.s32.totalorder %s14, 3
    %p100 = por %p98, %p99
    %p101 = scmp.ne.s32.totalorder %s93, %s96
    %p102 = scmp.eq.s32.totalorder %s14, 0
    %p103 = por %p101, %p102
    %p104 = scmp.ne.s32.totalorder %s93, %s96
    %p105 = scmp.eq.s32.totalorder %s19, 3
    %p106 = por %p104, %p105
    %p107 = scmp.ne.s32.totalorder %s96, %s97
    %p108 = scmp.eq.s32.totalorder %s19, 0
    %p109 = por %p107, %p108
    %p110 = scmp.ne.s32.totalorder %s96, %s97
    %p111 = scmp.eq.s32.totalorder %s20, 3
    %p112 = por %p110, %p111
    %p114 = scmp.ne.s32.totalorder %s97, %s113
    %p115 = scmp.eq.s32.totalorder %s20, 0
    %p116 = por %p114, %p115
    %s117 = ssub.s32 1, %s21
    %s118 = smul.u32 %s117, %s22
    %s119 = ssub.s32 1, %s22
    %s120 = smul.u32 %s21, %s119
    %s121 = sadd.s32 %s118, %s120
    %s122 = ssub.s32 1, %s33
    %s123 = smul.u32 %s122, %s29
    %s124 = ssub.s32 1, %s29
    %s125 = smul.u32 %s33, %s124
    %s126 = sadd.s32 %s123, %s125
    %s127 = ssub.s32 %s121, %s126
    %p128 = scmp.eq.s32.totalorder %s127, 0
    %s130 = sadd.s32 %s129, 1
    %s131 = scalar_select %p128, %s129, %s130
    %p134 = pneg %p128
    %p135 = scmp.eq.s32.totalorder %s14, 3
    %p136 = por %p134, %p135
    %p137 = scmp.ne.s32.totalorder %s129, %s132
    %p138 = scmp.eq.s32.totalorder %s14, 0
    %p139 = por %p137, %p138
    %p140 = scmp.ne.s32.totalorder %s129, %s132
    %p141 = scmp.eq.s32.totalorder %s19, 3
    %p142 = por %p140, %p141
    %p143 = scmp.ne.s32.totalorder %s132, %s133
    %p144 = scmp.eq.s32.totalorder %s19, 0
    %p145 = por %p143, %p144
    %p146 = scmp.ne.s32.totalorder %s132, %s133
    %p147 = scmp.eq.s32.totalorder %s20, 3
    %p148 = por %p146, %p147
    %p150 = scmp.ne.s32.totalorder %s133, %s149
    %p151 = scmp.eq.s32.totalorder %s20, 0
    %p152 = por %p150, %p151
    %s153 = ssub.s32 %s21, %s33
    %p154 = scmp.eq.s32.totalorder %s153, 0
    %s156 = sadd.s32 %s155, 1
    %s157 = scalar_select %p154, %s155, %s156
    %p160 = pneg %p154
    %p161 = scmp.eq.s32.totalorder %s14, 3
    %p162 = por %p160, %p161
    %p163 = scmp.ne.s32.totalorder %s155, %s158
    %p164 = scmp.eq.s32.totalorder %s14, 0
    %p165 = por %p163, %p164
    %p166 = scmp.ne.s32.totalorder %s155, %s158
    %p167 = scmp.eq.s32.totalorder %s19, 3
    %p168 = por %p166, %p167
    %p169 = scmp.ne.s32.totalorder %s158, %s159
    %p170 = scmp.eq.s32.totalorder %s19, 0
    %p171 = por %p169, %p170
    %p172 = scmp.ne.s32.totalorder %s158, %s159
    %p173 = scmp.eq.s32.totalorder %s20, 3
    %p174 = por %p172, %p173
    %p176 = scmp.ne.s32.totalorder %s159, %s175
    %p177 = scmp.eq.s32.totalorder %s20, 0
    %p178 = por %p176, %p177
    %s179 = ssub.s32 %s21, %s33
    %p180 = scmp.eq.s32.totalorder %s179, 0
    %s182 = sadd.s32 %s181, 1
    %s183 = scalar_select %p180, %s181, %s182
    %p186 = pneg %p180
    %p187 = scmp.eq.s32.totalorder %s14, 3
    %p188 = por %p186, %p187
    %p189 = scmp.ne.s32.totalorder %s181, %s184
    %p190 = scmp.eq.s32.totalorder %s14, 0
    %p191 = por %p189, %p190
    %p192 = scmp.ne.s32.totalorder %s181, %s184
    %p193 = scmp.eq.s32.totalorder %s19, 3
    %p194 = por %p192, %p193
    %p195 = scmp.ne.s32.totalorder %s184, %s185
    %p196 = scmp.eq.s32.totalorder %s19, 0
    %p197 = por %p195, %p196
    %p198 = scmp.ne.s32.totalorder %s184, %s185
    %p199 = scmp.eq.s32.totalorder %s20, 3
    %p200 = por %p198, %p199
    %p202 = scmp.ne.s32.totalorder %s185, %s201
    %p203 = scmp.eq.s32.totalorder %s20, 0
    %p204 = por %p202, %p203
    %s205 = ssub.s32 %s21, %s33
    %p206 = scmp.eq.s32.totalorder %s205, 0
    %s208 = sadd.s32 %s207, 1
    %s209 = scalar_select %p206, %s207, %s208
    %p212 = pneg %p206
    %p213 = scmp.eq.s32.totalorder %s14, 3
    %p214 = por %p212, %p213
    %p215 = scmp.ne.s32.totalorder %s207, %s210
    %p216 = scmp.eq.s32.totalorder %s14, 0
    %p217 = por %p215, %p216
    %p218 = scmp.ne.s32.totalorder %s207, %s210
    %p219 = scmp.eq.s32.totalorder %s19, 3
    %p220 = por %p218, %p219
    %p221 = scmp.ne.s32.totalorder %s210, %s211
    %p222 = scmp.eq.s32.totalorder %s19, 0
    %p223 = por %p221, %p222
    %p224 = scmp.ne.s32.totalorder %s210, %s211
    %p225 = scmp.eq.s32.totalorder %s20, 3
    %p226 = por %p224, %p225
    %p228 = scmp.ne.s32.totalorder %s211, %s227
    %p229 = scmp.eq.s32.totalorder %s20, 0
    %p230 = por %p228, %p229
    %s231 = ssub.s32 %s21, %s33
    %p232 = scmp.eq.s32.totalorder %s231, 0
    %s234 = sadd.s32 %s233, 1
    %s235 = scalar_select %p232, %s233, %s234
    %p238 = pneg %p232
    %p239 = scmp.eq.s32.totalorder %s14, 3
    %p240 = por %p238, %p239
    %p241 = scmp.ne.s32.totalorder %s233, %s236
    %p242 = scmp.eq.s32.totalorder %s14, 0
    %p243 = por %p241, %p242
    %p244 = scmp.ne.s32.totalorder %s233, %s236
    %p245 = scmp.eq.s32.totalorder %s19, 3
    %p246 = por %p244, %p245
    %p247 = scmp.ne.s32.totalorder %s236, %s237
    %p248 = scmp.eq.s32.totalorder %s19, 0
    %p249 = por %p247, %p248
    %p250 = scmp.ne.s32.totalorder %s236, %s237
    %p251 = scmp.eq.s32.totalorder %s20, 3
    %p252 = por %p250, %p251
    %p254 = scmp.ne.s32.totalorder %s237, %s253
    %p255 = scmp.eq.s32.totalorder %s20, 0
    %p256 = por %p254, %p255
    %s257 = ssub.s32 %s21, %s33
    %p258 = scmp.eq.s32.totalorder %s257, 0
    %s260 = sadd.s32 %s259, 1
    %s261 = scalar_select %p258, %s259, %s260
    %p264 = pneg %p258
    %p265 = scmp.eq.s32.totalorder %s14, 3
    %p266 = por %p264, %p265
    %p267 = scmp.ne.s32.totalorder %s259, %s262
    %p268 = scmp.eq.s32.totalorder %s14, 0
    %p269 = por %p267, %p268
    %p270 = scmp.ne.s32.totalorder %s259, %s262
    %p271 = scmp.eq.s32.totalorder %s19, 3
    %p272 = por %p270, %p271
    %p273 = scmp.ne.s32.totalorder %s262, %s263
    %p274 = scmp.eq.s32.totalorder %s19, 0
    %p275 = por %p273, %p274
    %p276 = scmp.ne.s32.totalorder %s262, %s263
    %p277 = scmp.eq.s32.totalorder %s20, 3
    %p278 = por %p276, %p277
    %p280 = scmp.ne.s32.totalorder %s263, %s279
    %p281 = scmp.eq.s32.totalorder %s20, 0
    %p282 = por %p280, %p281
    %p283 = scmp.le.s32.totalorder 1, %s14
    %p284 = scmp.lt.s32.totalorder %s14, 5
    %p285 = pnand %p283, %p284
    %p286 = pneg %p285
    // Predicated region
    $region9: #{forward.4} parent=5 // pred_check
      _
    $region10: #{forward.4} parent=5 // pred_check_branch
      %288 = sbr.rel (%p285) target = $region12
    $region11: #{forward.4} parent=5 // pred_region
      %s289 = ssub.s32 %s14, 1
      // Predicated region
      $region13: #{forward.4} parent=11 // pred_check
        %p290 = pneg %p47
      $region14: #{forward.4} parent=11 // pred_check_branch
        %292 = sbr.rel (%p290) target = $region16
      $region15: #{forward.4} parent=11 // pred_region
        _
      $region16: #{forward.4} parent=11 // pred_fallthru
        _
      // Predicated region
      $region17: #{forward.4} parent=11 // pred_check
        %p293 = pneg %p171
      $region18: #{forward.4} parent=11 // pred_check_branch
        %295 = sbr.rel (%p293) target = $region20
      $region19: #{forward.4} parent=11 // pred_region
        %p296 = scmp.lt.s32.totalorder %s23, 1
        %s297 = scalar_select %p296, %s23, 1
        %s298 = smul.addr %s297, 64
        %s299 = smul.addr %s298, 4
        %s300 = scalar_lea.vmem %s4, %s299
      $region20: #{forward.4} parent=11 // pred_fallthru
        _
      // Predicated region
      $region21: #{forward.4} parent=11 // pred_check
        %p301 = pneg %p197
      $region22: #{forward.4} parent=11 // pred_check_branch
        %303 = sbr.rel (%p301) target = $region24
      $region23: #{forward.4} parent=11 // pred_region
        %p304 = scmp.lt.s32.totalorder %s23, 1
        %s305 = scalar_select %p304, %s23, 1
        %s306 = smul.addr %s305, 64
        %s307 = smul.addr %s306, 4
        %s308 = scalar_lea.vmem %s5, %s307
      $region24: #{forward.4} parent=11 // pred_fallthru
        _
      // Predicated region
      $region25: #{forward.4} parent=11 // pred_check
        %p309 = pneg %p223
      $region26: #{forward.4} parent=11 // pred_check_branch
        %311 = sbr.rel (%p309) target = $region28
      $region27: #{forward.4} parent=11 // pred_region
        %p312 = scmp.lt.s32.totalorder %s23, 1
        %s313 = scalar_select %p312, %s23, 1
        %s314 = smul.addr %s313, 64
        %s315 = smul.addr %s314, 4
        %s316 = scalar_lea.vmem %s6, %s315
      $region28: #{forward.4} parent=11 // pred_fallthru
        _
    $region12: #{forward.4} parent=5 // pred_fallthru
      _
    %p317 = scmp.lt.s32.totalorder %s14, 4
    // Predicated region
    $region29: #{forward.4} parent=5 // pred_check
      %p318 = pneg %p317
    $region30: #{forward.4} parent=5 // pred_check_branch
      %320 = sbr.rel (%p318) target = $region32
    $region31: #{forward.4} parent=5 // pred_region
      // Predicated region
      $region33: #{forward.4} parent=31 // pred_check
        %p321 = pneg %p67
      $region34: #{forward.4} parent=31 // pred_check_branch
        %323 = sbr.rel (%p321) target = $region36
      $region35: #{forward.4} parent=31 // pred_region
        %p324 = scmp.lt.s32.totalorder %s21, 1
        %s325 = scalar_select %p324, %s21, 1
        %s326 = smul.addr %s325, 2
        %s327 = smul.addr %s326, 8
        %s328 = scalar_lea.vmem %s1, %s327
      $region36: #{forward.4} parent=31 // pred_fallthru
        _
      // Predicated region
      $region37: #{forward.4} parent=31 // pred_check
        %p329 = pneg %p103
      $region38: #{forward.4} parent=31 // pred_check_branch
        %331 = sbr.rel (%p329) target = $region40
      $region39: #{forward.4} parent=31 // pred_region
        %s332 = ssub.s32 1, %s21
        %s333 = smul.u32 %s332, %s22
        %s334 = ssub.s32 1, %s22
        %s335 = smul.u32 %s21, %s334
        %s336 = sadd.s32 %s333, %s335
        %s337 = smul.u32 8, %s336
        %p338 = scmp.lt.s32.totalorder %s337, 15
        %s339 = scalar_select %p338, %s337, 15
        %s340 = smul.addr %s339, 2
        %s341 = smul.addr %s340, 4
        %s342 = scalar_lea.vmem %s2, %s341
        %s343 = ssub.s32 1, %s21
        %s344 = smul.u32 %s343, %s22
        %s345 = ssub.s32 1, %s22
        %s346 = smul.u32 %s21, %s345
        %s347 = sadd.s32 %s344, %s346
        %s348 = smul.u32 8, %s347
      $region40: #{forward.4} parent=31 // pred_fallthru
        _
      // Predicated region
      $region41: #{forward.4} parent=31 // pred_check
        %p349 = pneg %p139
      $region42: #{forward.4} parent=31 // pred_check_branch
        %351 = sbr.rel (%p349) target = $region44
      $region43: #{forward.4} parent=31 // pred_region
        %s352 = ssub.s32 1, %s21
        %s353 = smul.u32 %s352, %s22
        %s354 = ssub.s32 1, %s22
        %s355 = smul.u32 %s21, %s354
        %s356 = sadd.s32 %s353, %s355
        %s357 = smul.u32 8, %s356
        %p358 = scmp.lt.s32.totalorder %s357, 15
        %s359 = scalar_select %p358, %s357, 15
        %s360 = smul.addr %s359, 2
        %s361 = sadd.s32 %s360, 32
        %s362 = smul.addr %s361, 4
        %s363 = scalar_lea.vmem %s3, %s362
        %s364 = ssub.s32 1, %s21
        %s365 = smul.u32 %s364, %s22
        %s366 = ssub.s32 1, %s22
        %s367 = smul.u32 %s21, %s366
        %s368 = sadd.s32 %s365, %s367
        %s369 = smul.u32 8, %s368
      $region44: #{forward.4} parent=31 // pred_fallthru
        _
      // Predicated region
      $region45: #{forward.4} parent=31 // pred_check
        %p370 = pneg %p243
      $region46: #{forward.4} parent=31 // pred_check_branch
        %372 = sbr.rel (%p370) target = $region48
      $region47: #{forward.4} parent=31 // pred_region
        %p373 = scmp.lt.s32.totalorder %s21, 1
        %s374 = scalar_select %p373, %s21, 1
        %s375 = smul.addr %s374, 4
        %s376 = scalar_lea.vmem %s7, %s375
      $region48: #{forward.4} parent=31 // pred_fallthru
        _
    $region32: #{forward.4} parent=5 // pred_fallthru
      _
    %p377 = scmp.le.s32.totalorder 1, %s14
    %p378 = scmp.lt.s32.totalorder %s14, 5
    %p379 = pnand %p377, %p378
    %p380 = pneg %p379
    // Predicated region
    $region49: #{forward.4} parent=5 // pred_check
      _
    $region50: #{forward.4} parent=5 // pred_check_branch
      %382 = sbr.rel (%p379) target = $region52
    $region51: #{forward.4} parent=5 // pred_region
      %s383 = ssub.s32 %s14, 1
      %p384 = pneg %p47
      %p385 = pneg %p44
      %p386 = scmp.lt.s32.totalorder %s23, 1
      %s387 = scalar_select %p386, %s23, 1
      %s388 = smul.addr %s387, 2
      %s389 = smul.addr %s388, 8
      %s390 = scalar_lea.vmem %s1, %s389
      %p391 = pneg %p73
      %p392 = pneg %p70
      %s393 = ssub.s32 1, %s23
      %s394 = smul.u32 %s393, %s24
      %s395 = ssub.s32 1, %s24
      %s396 = smul.u32 %s23, %s395
      %s397 = sadd.s32 %s394, %s396
      %s398 = smul.u32 8, %s397
      %p399 = scmp.lt.s32.totalorder %s398, 15
      %s400 = scalar_select %p399, %s398, 15
      %s401 = smul.addr %s400, 2
      %s402 = smul.addr %s401, 4
      %s403 = scalar_lea.vmem %s2, %s402
      %p404 = pneg %p109
      %p405 = pneg %p106
      %s406 = ssub.s32 1, %s23
      %s407 = smul.u32 %s406, %s24
      %s408 = ssub.s32 1, %s24
      %s409 = smul.u32 %s23, %s408
      %s410 = sadd.s32 %s407, %s409
      %s411 = smul.u32 8, %s410
      %p412 = scmp.lt.s32.totalorder %s411, 15
      %s413 = scalar_select %p412, %s411, 15
      %s414 = smul.addr %s413, 2
      %s415 = sadd.s32 %s414, 32
      %s416 = smul.addr %s415, 4
      %s417 = scalar_lea.vmem %s3, %s416
      %p418 = pneg %p145
      %p419 = pneg %p142
      %p420 = scmp.lt.s32.totalorder %s23, 1
      %s421 = scalar_select %p420, %s23, 1
      %s422 = smul.addr %s421, 64
      %s423 = smul.addr %s422, 4
      %s424 = scalar_lea.vmem %s4, %s423
      %p425 = pneg %p171
      %p426 = pneg %p168
      %p427 = scmp.lt.s32.totalorder %s23, 1
      %s428 = scalar_select %p427, %s23, 1
      %s429 = smul.addr %s428, 64
      %s430 = smul.addr %s429, 4
      %s431 = scalar_lea.vmem %s5, %s430
      %p432 = pneg %p197
      %p433 = pneg %p194
      %p434 = scmp.lt.s32.totalorder %s23, 1
      %s435 = scalar_select %p434, %s23, 1
      %s436 = smul.addr %s435, 64
      %s437 = smul.addr %s436, 4
      %s438 = scalar_lea.vmem %s6, %s437
      %p439 = pneg %p223
      %p440 = pneg %p220
      %p441 = scmp.lt.s32.totalorder %s23, 1
      %s442 = scalar_select %p441, %s23, 1
      %s443 = smul.addr %s442, 4
      %s444 = scalar_lea.vmem %s7, %s443
      %p445 = pneg %p249
      %p446 = pneg %p246
      %p447 = pneg %p275
      %p448 = pneg %p272
      %p449 = scmp.lt.s32.totalorder %s23, 1
      %s450 = scalar_select %p449, %s23, 1
      %s451 = smul.addr %s450, 2
      %s452 = smul.addr %s451, 4
      %s453 = scalar_lea.vmem %s8, %s452
      %p454 = scmp.lt.s32.totalorder %s23, 1
      %s455 = scalar_select %p454, %s23, 1
      %s456 = smul.addr %s455, 2
      %s457 = smul.addr %s456, 8
      %s458 = scalar_lea.vmem %s1, %s457
      %s459 = ssub.s32 1, %s23
      %s460 = smul.u32 %s459, %s24
      %s461 = ssub.s32 1, %s24
      %s462 = smul.u32 %s23, %s461
      %s463 = sadd.s32 %s460, %s462
      %s464 = smul.u32 8, %s463
      %p465 = scmp.lt.s32.totalorder %s464, 15
      %s466 = scalar_select %p465, %s464, 15
      %s467 = smul.addr %s466, 2
      %s468 = smul.addr %s467, 4
      %s469 = scalar_lea.vmem %s2, %s468
      %s470 = ssub.s32 1, %s23
      %s471 = smul.u32 %s470, %s24
      %s472 = ssub.s32 1, %s24
      %s473 = smul.u32 %s23, %s472
      %s474 = sadd.s32 %s471, %s473
      %s475 = smul.u32 8, %s474
      %s476 = ssub.s32 1, %s23
      %s477 = smul.u32 %s476, %s24
      %s478 = ssub.s32 1, %s24
      %s479 = smul.u32 %s23, %s478
      %s480 = sadd.s32 %s477, %s479
      %s481 = smul.u32 8, %s480
      %p482 = scmp.lt.s32.totalorder %s481, 15
      %s483 = scalar_select %p482, %s481, 15
      %s484 = smul.addr %s483, 2
      %s485 = sadd.s32 %s484, 32
      %s486 = smul.addr %s485, 4
      %s487 = scalar_lea.vmem %s3, %s486
      %s488 = ssub.s32 1, %s23
      %s489 = smul.u32 %s488, %s24
      %s490 = ssub.s32 1, %s24
      %s491 = smul.u32 %s23, %s490
      %s492 = sadd.s32 %s489, %s491
      %s493 = smul.u32 8, %s492
      %p494 = scmp.lt.s32.totalorder %s23, 1
      %s495 = scalar_select %p494, %s23, 1
      %s496 = smul.addr %s495, 64
      %s497 = smul.addr %s496, 4
      %s498 = scalar_lea.vmem %s4, %s497
      %p499 = scmp.lt.s32.totalorder %s23, 1
      %s500 = scalar_select %p499, %s23, 1
      %s501 = smul.addr %s500, 64
      %s502 = smul.addr %s501, 4
      %s503 = scalar_lea.vmem %s5, %s502
      %p504 = scmp.lt.s32.totalorder %s23, 1
      %s505 = scalar_select %p504, %s23, 1
      %s506 = smul.addr %s505, 64
      %s507 = smul.addr %s506, 4
      %s508 = scalar_lea.vmem %s6, %s507
      %p509 = scmp.lt.s32.totalorder %s23, 1
      %s510 = scalar_select %p509, %s23, 1
      %s511 = smul.addr %s510, 4
      %s512 = scalar_lea.vmem %s7, %s511
      %p513 = scmp.lt.s32.totalorder %s23, 1
      %s514 = scalar_select %p513, %s23, 1
      %s515 = smul.addr %s514, 2
      %s516 = smul.addr %s515, 4
      %s517 = scalar_lea.vmem %s8, %s516
      %p521 = scmp.eq.s32.totalorder %s24, 0
      // Predicated region
      $region53: #{forward.4} parent=51 // pred_check
        %p522 = pneg %p521
      $region54: #{forward.4} parent=51 // pred_check_branch
        %524 = sbr.rel (%p522) target = $region56
      $region55: #{forward.4} parent=51 // pred_region
        %525 = vst [vmem:[#allocation3] sm:$0xff] 0.0
        %526 = vst [vmem:[#allocation3 + $0x8] sm:$0xff] 0.0
        %527 = vst [vmem:[#allocation4] sm:$0xff] 0.0
        %528 = vst [vmem:[#allocation4 + $0x8] sm:$0xff] 0.0
        %529 = vst [vmem:[%s517] sm:$0xf] 0
        %530 = vst [vmem:[%s517 + $0x4] sm:$0xf] 0
      $region56: #{forward.4} parent=51 // pred_fallthru
        _
      %v531 = vld [vmem:[%s469] sm:$0xf]
      %v532 = vld [vmem:[%s469 + $0x4] sm:$0xf]
      %v533 = vld [vmem:[%s469 + $0x8] sm:$0xf]
      %v534 = vld [vmem:[%s469 + $0xc] sm:$0xf]
      %v535 = vld [vmem:[%s469 + $0x10] sm:$0xf]
      %v536 = vld [vmem:[%s469 + $0x14] sm:$0xf]
      %v537 = vld [vmem:[%s469 + $0x18] sm:$0xf]
      %v538 = vld [vmem:[%s469 + $0x1c] sm:$0xf]
      %v539 = vld [vmem:[%s469 + $0x20] sm:$0xf]
      %v540 = vld [vmem:[%s469 + $0x24] sm:$0xf]
      %v541 = vld [vmem:[%s469 + $0x28] sm:$0xf]
      %v542 = vld [vmem:[%s469 + $0x2c] sm:$0xf]
      %v543 = vld [vmem:[%s469 + $0x30] sm:$0xf]
      %v544 = vld [vmem:[%s469 + $0x34] sm:$0xf]
      %v545 = vld [vmem:[%s469 + $0x38] sm:$0xf]
      %v546 = vld [vmem:[%s469 + $0x3c] sm:$0xf]
      %v547 = vld [vmem:[%s498] sm:$0xff]
      %v548 = vld [vmem:[%s498 + $0x8] sm:$0xff]
      %v549 = vld [vmem:[%s498 + $0x10] sm:$0xff]
      %v550 = vld [vmem:[%s498 + $0x18] sm:$0xff]
      %v551 = vld [vmem:[%s498 + $0x20] sm:$0xff]
      %v552 = vld [vmem:[%s498 + $0x28] sm:$0xff]
      %v553 = vld [vmem:[%s498 + $0x30] sm:$0xff]
      %v554 = vld [vmem:[%s498 + $0x38] sm:$0xff]
      %v555 = vld [vmem:[%s498 + $0x40] sm:$0xff]
      %v556 = vld [vmem:[%s498 + $0x48] sm:$0xff]
      %v557 = vld [vmem:[%s498 + $0x50] sm:$0xff]
      %v558 = vld [vmem:[%s498 + $0x58] sm:$0xff]
      %v559 = vld [vmem:[%s498 + $0x60] sm:$0xff]
      %v560 = vld [vmem:[%s498 + $0x68] sm:$0xff]
      %v561 = vld [vmem:[%s498 + $0x70] sm:$0xff]
      %v562 = vld [vmem:[%s498 + $0x78] sm:$0xff]
      %v563 = vld [vmem:[%s498 + $0x80] sm:$0xff]
      %v564 = vld [vmem:[%s498 + $0x88] sm:$0xff]
      %v565 = vld [vmem:[%s498 + $0x90] sm:$0xff]
      %v566 = vld [vmem:[%s498 + $0x98] sm:$0xff]
      %v567 = vld [vmem:[%s498 + $0xa0] sm:$0xff]
      %v568 = vld [vmem:[%s498 + $0xa8] sm:$0xff]
      %v569 = vld [vmem:[%s498 + $0xb0] sm:$0xff]
      %v570 = vld [vmem:[%s498 + $0xb8] sm:$0xff]
      %v571 = vld [vmem:[%s498 + $0xc0] sm:$0xff]
      %v572 = vld [vmem:[%s498 + $0xc8] sm:$0xff]
      %v573 = vld [vmem:[%s498 + $0xd0] sm:$0xff]
      %v574 = vld [vmem:[%s498 + $0xd8] sm:$0xff]
      %v575 = vld [vmem:[%s498 + $0xe0] sm:$0xff]
      %v576 = vld [vmem:[%s498 + $0xe8] sm:$0xff]
      %v577 = vld [vmem:[%s498 + $0xf0] sm:$0xff]
      %v578 = vld [vmem:[%s498 + $0xf8] sm:$0xff]
      %v579 = vld [vmem:[%s487] sm:$0xf]
      %v580 = vld [vmem:[%s487 + $0x4] sm:$0xf]
      %v581 = vld [vmem:[%s487 + $0x8] sm:$0xf]
      %v582 = vld [vmem:[%s487 + $0xc] sm:$0xf]
      %v583 = vld [vmem:[%s487 + $0x10] sm:$0xf]
      %v584 = vld [vmem:[%s487 + $0x14] sm:$0xf]
      %v585 = vld [vmem:[%s487 + $0x18] sm:$0xf]
      %v586 = vld [vmem:[%s487 + $0x1c] sm:$0xf]
      %v587 = vld [vmem:[%s487 + $0x20] sm:$0xf]
      %v588 = vld [vmem:[%s487 + $0x24] sm:$0xf]
      %v589 = vld [vmem:[%s487 + $0x28] sm:$0xf]
      %v590 = vld [vmem:[%s487 + $0x2c] sm:$0xf]
      %v591 = vld [vmem:[%s487 + $0x30] sm:$0xf]
      %v592 = vld [vmem:[%s487 + $0x34] sm:$0xf]
      %v593 = vld [vmem:[%s487 + $0x38] sm:$0xf]
      %v594 = vld [vmem:[%s487 + $0x3c] sm:$0xf]
      %v595 = vld [vmem:[%s503] sm:$0xff]
      %v596 = vld [vmem:[%s503 + $0x8] sm:$0xff]
      %v597 = vld [vmem:[%s503 + $0x10] sm:$0xff]
      %v598 = vld [vmem:[%s503 + $0x18] sm:$0xff]
      %v599 = vld [vmem:[%s503 + $0x20] sm:$0xff]
      %v600 = vld [vmem:[%s503 + $0x28] sm:$0xff]
      %v601 = vld [vmem:[%s503 + $0x30] sm:$0xff]
      %v602 = vld [vmem:[%s503 + $0x38] sm:$0xff]
      %v603 = vld [vmem:[%s503 + $0x40] sm:$0xff]
      %v604 = vld [vmem:[%s503 + $0x48] sm:$0xff]
      %v605 = vld [vmem:[%s503 + $0x50] sm:$0xff]
      %v606 = vld [vmem:[%s503 + $0x58] sm:$0xff]
      %v607 = vld [vmem:[%s503 + $0x60] sm:$0xff]
      %v608 = vld [vmem:[%s503 + $0x68] sm:$0xff]
      %v609 = vld [vmem:[%s503 + $0x70] sm:$0xff]
      %v610 = vld [vmem:[%s503 + $0x78] sm:$0xff]
      %v611 = vld [vmem:[%s503 + $0x80] sm:$0xff]
      %v612 = vld [vmem:[%s503 + $0x88] sm:$0xff]
      %v613 = vld [vmem:[%s503 + $0x90] sm:$0xff]
      %v614 = vld [vmem:[%s503 + $0x98] sm:$0xff]
      %v615 = vld [vmem:[%s503 + $0xa0] sm:$0xff]
      %v616 = vld [vmem:[%s503 + $0xa8] sm:$0xff]
      %v617 = vld [vmem:[%s503 + $0xb0] sm:$0xff]
      %v618 = vld [vmem:[%s503 + $0xb8] sm:$0xff]
      %v619 = vld [vmem:[%s503 + $0xc0] sm:$0xff]
      %v620 = vld [vmem:[%s503 + $0xc8] sm:$0xff]
      %v621 = vld [vmem:[%s503 + $0xd0] sm:$0xff]
      %v622 = vld [vmem:[%s503 + $0xd8] sm:$0xff]
      %v623 = vld [vmem:[%s503 + $0xe0] sm:$0xff]
      %v624 = vld [vmem:[%s503 + $0xe8] sm:$0xff]
      %v625 = vld [vmem:[%s503 + $0xf0] sm:$0xff]
      %v626 = vld [vmem:[%s503 + $0xf8] sm:$0xff]
      %v643 = vunpack.c.l.b16 %v579
      %v644 = vunpack.c.l.b16 %v580
      %v645 = vunpack.c.l.b16 %v581
      %v646 = vunpack.c.l.b16 %v582
      %v647 = vunpack.c.l.b16 %v583
      %v648 = vunpack.c.l.b16 %v584
      %v649 = vunpack.c.l.b16 %v585
      %v650 = vunpack.c.l.b16 %v586
      %v651 = vunpack.c.l.b16 %v587
      %v652 = vunpack.c.l.b16 %v588
      %v653 = vunpack.c.l.b16 %v589
      %v654 = vunpack.c.l.b16 %v590
      %v655 = vunpack.c.l.b16 %v591
      %v656 = vunpack.c.l.b16 %v592
      %v657 = vunpack.c.l.b16 %v593
      %v658 = vunpack.c.l.b16 %v594
      %v659 = vpack.c.b16 %v644, %v643
      %v660 = vpack.c.b16 %v646, %v645
      %v661 = vpack.c.b16 %v648, %v647
      %v662 = vpack.c.b16 %v650, %v649
      %v663 = vpack.c.b16 %v652, %v651
      %v664 = vpack.c.b16 %v654, %v653
      %v665 = vpack.c.b16 %v656, %v655
      %v666 = vpack.c.b16 %v658, %v657
      %v707 = vunpack.c.l.b16 %v595
      %v708 = vunpack.c.h.b16 %v595
      %v709 = vunpack.c.l.b16 %v596
      %v710 = vunpack.c.h.b16 %v596
      %v711 = vunpack.c.l.b16 %v597
      %v712 = vunpack.c.h.b16 %v597
      %v713 = vunpack.c.l.b16 %v598
      %v714 = vunpack.c.h.b16 %v598
      %v715 = vunpack.c.l.b16 %v599
      %v716 = vunpack.c.h.b16 %v599
      %v717 = vunpack.c.l.b16 %v600
      %v718 = vunpack.c.h.b16 %v600
      %v719 = vunpack.c.l.b16 %v601
      %v720 = vunpack.c.h.b16 %v601
      %v721 = vunpack.c.l.b16 %v602
      %v722 = vunpack.c.h.b16 %v602
      %v723 = vunpack.c.l.b16 %v603
      %v724 = vunpack.c.h.b16 %v603
      %v725 = vunpack.c.l.b16 %v604
      %v726 = vunpack.c.h.b16 %v604
      %v727 = vunpack.c.l.b16 %v605
      %v728 = vunpack.c.h.b16 %v605
      %v729 = vunpack.c.l.b16 %v606
      %v730 = vunpack.c.h.b16 %v606
      %v731 = vunpack.c.l.b16 %v607
      %v732 = vunpack.c.h.b16 %v607
      %v733 = vunpack.c.l.b16 %v608
      %v734 = vunpack.c.h.b16 %v608
      %v735 = vunpack.c.l.b16 %v609
      %v736 = vunpack.c.h.b16 %v609
      %v737 = vunpack.c.l.b16 %v610
      %v738 = vunpack.c.h.b16 %v610
      %v739 = vunpack.c.l.b16 %v611
      %v740 = vunpack.c.h.b16 %v611
      %v741 = vunpack.c.l.b16 %v612
      %v742 = vunpack.c.h.b16 %v612
      %v743 = vunpack.c.l.b16 %v613
      %v744 = vunpack.c.h.b16 %v613
      %v745 = vunpack.c.l.b16 %v614
      %v746 = vunpack.c.h.b16 %v614
      %v747 = vunpack.c.l.b16 %v615
      %v748 = vunpack.c.h.b16 %v615
      %v749 = vunpack.c.l.b16 %v616
      %v750 = vunpack.c.h.b16 %v616
      %v751 = vunpack.c.l.b16 %v617
      %v752 = vunpack.c.h.b16 %v617
      %v753 = vunpack.c.l.b16 %v618
      %v754 = vunpack.c.h.b16 %v618
      %v755 = vunpack.c.l.b16 %v619
      %v756 = vunpack.c.h.b16 %v619
      %v757 = vunpack.c.l.b16 %v620
      %v758 = vunpack.c.h.b16 %v620
      %v759 = vunpack.c.l.b16 %v621
      %v760 = vunpack.c.h.b16 %v621
      %v761 = vunpack.c.l.b16 %v622
      %v762 = vunpack.c.h.b16 %v622
      %v763 = vunpack.c.l.b16 %v623
      %v764 = vunpack.c.h.b16 %v623
      %v765 = vunpack.c.l.b16 %v624
      %v766 = vunpack.c.h.b16 %v624
      %v767 = vunpack.c.l.b16 %v625
      %v768 = vunpack.c.h.b16 %v625
      %v769 = vunpack.c.l.b16 %v626
      %v770 = vunpack.c.h.b16 %v626
      %v771 = vpack.c.b16 %v711, %v707
      %v772 = vpack.c.b16 %v712, %v708
      %v773 = vpack.c.b16 %v713, %v709
      %v774 = vpack.c.b16 %v714, %v710
      %v775 = vpack.c.b16 %v719, %v715
      %v776 = vpack.c.b16 %v720, %v716
      %v777 = vpack.c.b16 %v721, %v717
      %v778 = vpack.c.b16 %v722, %v718
      %v779 = vpack.c.b16 %v727, %v723
      %v780 = vpack.c.b16 %v728, %v724
      %v781 = vpack.c.b16 %v729, %v725
      %v782 = vpack.c.b16 %v730, %v726
      %v783 = vpack.c.b16 %v735, %v731
      %v784 = vpack.c.b16 %v736, %v732
      %v785 = vpack.c.b16 %v737, %v733
      %v786 = vpack.c.b16 %v738, %v734
      %v787 = vpack.c.b16 %v743, %v739
      %v788 = vpack.c.b16 %v744, %v740
      %v789 = vpack.c.b16 %v745, %v741
      %v790 = vpack.c.b16 %v746, %v742
      %v791 = vpack.c.b16 %v751, %v747
      %v792 = vpack.c.b16 %v752, %v748
      %v793 = vpack.c.b16 %v753, %v749
      %v794 = vpack.c.b16 %v754, %v750
      %v795 = vpack.c.b16 %v759, %v755
      %v796 = vpack.c.b16 %v760, %v756
      %v797 = vpack.c.b16 %v761, %v757
      %v798 = vpack.c.b16 %v762, %v758
      %v799 = vpack.c.b16 %v767, %v763
      %v800 = vpack.c.b16 %v768, %v764
      %v801 = vpack.c.b16 %v769, %v765
      %v802 = vpack.c.b16 %v770, %v766
      %835 = vmatprep.subr.bf16.mxu0 %v800
      %836 = vmatpush1.bf16.msra.mxu0 %v799
      %837 = vmatprep.subr.bf16.mxu0 %v796
      %838 = vmatpush1.bf16.msra.mxu0 %v795
      %839 = vmatprep.subr.bf16.mxu0 %v792
      %840 = vmatpush1.bf16.msra.mxu0 %v791
      %841 = vmatprep.subr.bf16.mxu0 %v788
      %842 = vmatpush1.bf16.msra.mxu0 %v787
      %843 = vmatprep.subr.bf16.mxu0 %v784
      %844 = vmatpush1.bf16.msra.mxu0 %v783
      %845 = vmatprep.subr.bf16.mxu0 %v780
      %846 = vmatpush1.bf16.msra.mxu0 %v779
      %847 = vmatprep.subr.bf16.mxu0 %v776
      %848 = vmatpush1.bf16.msra.mxu0 %v775
      %849 = vmatprep.subr.bf16.mxu0 %v772
      %850 = vmatpush1.bf16.msra.mxu0 %v771
      %851 = vmatprep.subr.bf16.mxu0 0
      %852 = vmatpush2.bf16.msra.mxu0 0
      %853 = vmatprep.subr.bf16.mxu0 0
      %854 = vmatpush2.bf16.msra.mxu0 0
      %855 = vmatprep.subr.bf16.mxu0 0
      %856 = vmatpush2.bf16.msra.mxu0 0
      %857 = vmatprep.subr.bf16.mxu0 0
      %858 = vmatpush2.bf16.msra.mxu0 0
      %859 = vmatprep.subr.bf16.mxu0 0
      %860 = vmatpush2.bf16.msra.mxu0 0
      %861 = vmatprep.subr.bf16.mxu0 0
      %862 = vmatpush2.bf16.msra.mxu0 0
      %863 = vmatprep.subr.bf16.mxu0 0
      %864 = vmatpush2.bf16.msra.mxu0 0
      %865 = vmatprep.subr.bf16.mxu0 0
      %866 = vmatpush2.bf16.msra.mxu0 0
      %867 = vmatprep.mubr.bf16.mxu0 0
      %868 = vmatmul.mubr.bf16.gmra.mxu0 %v659
      %v869 = vpop.f32.mrf.mxu0
      %v870 = vadd.f32 0.0, %v869
      %v871 = vpop.f32.mrf.mxu0
      %v872 = vadd.f32 0.0, %v871
      %v873 = vpop.f32.mrf.mxu0
      %v874 = vadd.f32 0.0, %v873
      %v875 = vpop.f32.mrf.mxu0
      %v876 = vadd.f32 0.0, %v875
      %877 = vmatprep.mubr.bf16.mxu0 0
      %878 = vmatmul.mubr.bf16.gmra.mxu0 %v660
      %v879 = vpop.f32.mrf.mxu0
      %v880 = vadd.f32 0.0, %v879
      %v881 = vpop.f32.mrf.mxu0
      %v882 = vadd.f32 0.0, %v881
      %v883 = vpop.f32.mrf.mxu0
      %v884 = vadd.f32 0.0, %v883
      %v885 = vpop.f32.mrf.mxu0
      %v886 = vadd.f32 0.0, %v885
      %887 = vmatprep.mubr.bf16.mxu0 0
      %888 = vmatmul.mubr.bf16.gmra.mxu0 %v661
      %v889 = vpop.f32.mrf.mxu0
      %v890 = vadd.f32 0.0, %v889
      %v891 = vpop.f32.mrf.mxu0
      %v892 = vadd.f32 0.0, %v891
      %v893 = vpop.f32.mrf.mxu0
      %v894 = vadd.f32 0.0, %v893
      %v895 = vpop.f32.mrf.mxu0
      %v896 = vadd.f32 0.0, %v895
      %897 = vmatprep.mubr.bf16.mxu0 0
      %898 = vmatmul.mubr.bf16.gmra.mxu0 %v662
      %v899 = vpop.f32.mrf.mxu0
      %v900 = vadd.f32 0.0, %v899
      %v901 = vpop.f32.mrf.mxu0
      %v902 = vadd.f32 0.0, %v901
      %v903 = vpop.f32.mrf.mxu0
      %v904 = vadd.f32 0.0, %v903
      %v905 = vpop.f32.mrf.mxu0
      %v906 = vadd.f32 0.0, %v905
      %907 = vmatprep.mubr.bf16.mxu0 0
      %908 = vmatmul.mubr.bf16.gmra.mxu0 %v663
      %v909 = vpop.f32.mrf.mxu0
      %v910 = vadd.f32 0.0, %v909
      %v911 = vpop.f32.mrf.mxu0
      %v912 = vadd.f32 0.0, %v911
      %v913 = vpop.f32.mrf.mxu0
      %v914 = vadd.f32 0.0, %v913
      %v915 = vpop.f32.mrf.mxu0
      %v916 = vadd.f32 0.0, %v915
      %917 = vmatprep.mubr.bf16.mxu0 0
      %918 = vmatmul.mubr.bf16.gmra.mxu0 %v664
      %v919 = vpop.f32.mrf.mxu0
      %v920 = vadd.f32 0.0, %v919
      %v921 = vpop.f32.mrf.mxu0
      %v922 = vadd.f32 0.0, %v921
      %v923 = vpop.f32.mrf.mxu0
      %v924 = vadd.f32 0.0, %v923
      %v925 = vpop.f32.mrf.mxu0
      %v926 = vadd.f32 0.0, %v925
      %927 = vmatprep.mubr.bf16.mxu0 0
      %928 = vmatmul.mubr.bf16.gmra.mxu0 %v665
      %v929 = vpop.f32.mrf.mxu0
      %v930 = vadd.f32 0.0, %v929
      %v931 = vpop.f32.mrf.mxu0
      %v932 = vadd.f32 0.0, %v931
      %v933 = vpop.f32.mrf.mxu0
      %v934 = vadd.f32 0.0, %v933
      %v935 = vpop.f32.mrf.mxu0
      %v936 = vadd.f32 0.0, %v935
      %937 = vmatprep.mubr.bf16.mxu0 0
      %938 = vmatmul.mubr.bf16.gmra.mxu0 %v666
      %v939 = vpop.f32.mrf.mxu0
      %v940 = vadd.f32 0.0, %v939
      %v941 = vpop.f32.mrf.mxu0
      %v942 = vadd.f32 0.0, %v941
      %v943 = vpop.f32.mrf.mxu0
      %v944 = vadd.f32 0.0, %v943
      %v945 = vpop.f32.mrf.mxu0
      %v946 = vadd.f32 0.0, %v945
      %947 = vdwg.mxu0
      %948 = vmatprep.subr.bf16.mxu0 %v802
      %949 = vmatpush1.bf16.msra.mxu0 %v801
      %950 = vmatprep.subr.bf16.mxu0 %v798
      %951 = vmatpush1.bf16.msra.mxu0 %v797
      %952 = vmatprep.subr.bf16.mxu0 %v794
      %953 = vmatpush1.bf16.msra.mxu0 %v793
      %954 = vmatprep.subr.bf16.mxu0 %v790
      %955 = vmatpush1.bf16.msra.mxu0 %v789
      %956 = vmatprep.subr.bf16.mxu0 %v786
      %957 = vmatpush1.bf16.msra.mxu0 %v785
      %958 = vmatprep.subr.bf16.mxu0 %v782
      %959 = vmatpush1.bf16.msra.mxu0 %v781
      %960 = vmatprep.subr.bf16.mxu0 %v778
      %961 = vmatpush1.bf16.msra.mxu0 %v777
      %962 = vmatprep.subr.bf16.mxu0 %v774
      %963 = vmatpush1.bf16.msra.mxu0 %v773
      %964 = vmatprep.subr.bf16.mxu0 0
      %965 = vmatpush2.bf16.msra.mxu0 0
      %966 = vmatprep.subr.bf16.mxu0 0
      %967 = vmatpush2.bf16.msra.mxu0 0
      %968 = vmatprep.subr.bf16.mxu0 0
      %969 = vmatpush2.bf16.msra.mxu0 0
      %970 = vmatprep.subr.bf16.mxu0 0
      %971 = vmatpush2.bf16.msra.mxu0 0
      %972 = vmatprep.subr.bf16.mxu0 0
      %973 = vmatpush2.bf16.msra.mxu0 0
      %974 = vmatprep.subr.bf16.mxu0 0
      %975 = vmatpush2.bf16.msra.mxu0 0
      %976 = vmatprep.subr.bf16.mxu0 0
      %977 = vmatpush2.bf16.msra.mxu0 0
      %978 = vmatprep.subr.bf16.mxu0 0
      %979 = vmatpush2.bf16.msra.mxu0 0
      %980 = vmatprep.mubr.bf16.mxu0 0
      %981 = vmatmul.mubr.bf16.gmra.mxu0 %v659
      %v982 = vpop.f32.mrf.mxu0
      %v983 = vadd.f32 0.0, %v982
      %v984 = vpop.f32.mrf.mxu0
      %v985 = vadd.f32 0.0, %v984
      %v986 = vpop.f32.mrf.mxu0
      %v987 = vadd.f32 0.0, %v986
      %v988 = vpop.f32.mrf.mxu0
      %v989 = vadd.f32 0.0, %v988
      %990 = vmatprep.mubr.bf16.mxu0 0
      %991 = vmatmul.mubr.bf16.gmra.mxu0 %v660
      %v992 = vpop.f32.mrf.mxu0
      %v993 = vadd.f32 0.0, %v992
      %v994 = vpop.f32.mrf.mxu0
      %v995 = vadd.f32 0.0, %v994
      %v996 = vpop.f32.mrf.mxu0
      %v997 = vadd.f32 0.0, %v996
      %v998 = vpop.f32.mrf.mxu0
      %v999 = vadd.f32 0.0, %v998
      %1000 = vmatprep.mubr.bf16.mxu0 0
      %1001 = vmatmul.mubr.bf16.gmra.mxu0 %v661
      %v1002 = vpop.f32.mrf.mxu0
      %v1003 = vadd.f32 0.0, %v1002
      %v1004 = vpop.f32.mrf.mxu0
      %v1005 = vadd.f32 0.0, %v1004
      %v1006 = vpop.f32.mrf.mxu0
      %v1007 = vadd.f32 0.0, %v1006
      %v1008 = vpop.f32.mrf.mxu0
      %v1009 = vadd.f32 0.0, %v1008
      %1010 = vmatprep.mubr.bf16.mxu0 0
      %1011 = vmatmul.mubr.bf16.gmra.mxu0 %v662
      %v1012 = vpop.f32.mrf.mxu0
      %v1013 = vadd.f32 0.0, %v1012
      %v1014 = vpop.f32.mrf.mxu0
      %v1015 = vadd.f32 0.0, %v1014
      %v1016 = vpop.f32.mrf.mxu0
      %v1017 = vadd.f32 0.0, %v1016
      %v1018 = vpop.f32.mrf.mxu0
      %v1019 = vadd.f32 0.0, %v1018
      %1020 = vmatprep.mubr.bf16.mxu0 0
      %1021 = vmatmul.mubr.bf16.gmra.mxu0 %v663
      %v1022 = vpop.f32.mrf.mxu0
      %v1023 = vadd.f32 0.0, %v1022
      %v1024 = vpop.f32.mrf.mxu0
      %v1025 = vadd.f32 0.0, %v1024
      %v1026 = vpop.f32.mrf.mxu0
      %v1027 = vadd.f32 0.0, %v1026
      %v1028 = vpop.f32.mrf.mxu0
      %v1029 = vadd.f32 0.0, %v1028
      %1030 = vmatprep.mubr.bf16.mxu0 0
      %1031 = vmatmul.mubr.bf16.gmra.mxu0 %v664
      %v1032 = vpop.f32.mrf.mxu0
      %v1033 = vadd.f32 0.0, %v1032
      %v1034 = vpop.f32.mrf.mxu0
      %v1035 = vadd.f32 0.0, %v1034
      %v1036 = vpop.f32.mrf.mxu0
      %v1037 = vadd.f32 0.0, %v1036
      %v1038 = vpop.f32.mrf.mxu0
      %v1039 = vadd.f32 0.0, %v1038
      %1040 = vmatprep.mubr.bf16.mxu0 0
      %1041 = vmatmul.mubr.bf16.gmra.mxu0 %v665
      %v1042 = vpop.f32.mrf.mxu0
      %v1043 = vadd.f32 0.0, %v1042
      %v1044 = vpop.f32.mrf.mxu0
      %v1045 = vadd.f32 0.0, %v1044
      %v1046 = vpop.f32.mrf.mxu0
      %v1047 = vadd.f32 0.0, %v1046
      %v1048 = vpop.f32.mrf.mxu0
      %v1049 = vadd.f32 0.0, %v1048
      %1050 = vmatprep.mubr.bf16.mxu0 0
      %1051 = vmatmul.mubr.bf16.gmra.mxu0 %v666
      %v1052 = vpop.f32.mrf.mxu0
      %v1053 = vadd.f32 0.0, %v1052
      %v1054 = vpop.f32.mrf.mxu0
      %v1055 = vadd.f32 0.0, %v1054
      %v1056 = vpop.f32.mrf.mxu0
      %v1057 = vadd.f32 0.0, %v1056
      %v1058 = vpop.f32.mrf.mxu0
      %v1059 = vadd.f32 0.0, %v1058
      %1060 = vdwg.mxu0
      %v1077 = vunpack.c.l.b16 %v531
      %v1078 = vunpack.c.l.b16 %v532
      %v1079 = vunpack.c.l.b16 %v533
      %v1080 = vunpack.c.l.b16 %v534
      %v1081 = vunpack.c.l.b16 %v535
      %v1082 = vunpack.c.l.b16 %v536
      %v1083 = vunpack.c.l.b16 %v537
      %v1084 = vunpack.c.l.b16 %v538
      %v1085 = vunpack.c.l.b16 %v539
      %v1086 = vunpack.c.l.b16 %v540
      %v1087 = vunpack.c.l.b16 %v541
      %v1088 = vunpack.c.l.b16 %v542
      %v1089 = vunpack.c.l.b16 %v543
      %v1090 = vunpack.c.l.b16 %v544
      %v1091 = vunpack.c.l.b16 %v545
      %v1092 = vunpack.c.l.b16 %v546
      %v1093 = vpack.c.b16 %v1078, %v1077
      %v1094 = vpack.c.b16 %v1080, %v1079
      %v1095 = vpack.c.b16 %v1082, %v1081
      %v1096 = vpack.c.b16 %v1084, %v1083
      %v1097 = vpack.c.b16 %v1086, %v1085
      %v1098 = vpack.c.b16 %v1088, %v1087
      %v1099 = vpack.c.b16 %v1090, %v1089
      %v1100 = vpack.c.b16 %v1092, %v1091
      %v1141 = vunpack.c.l.b16 %v547
      %v1142 = vunpack.c.h.b16 %v547
      %v1143 = vunpack.c.l.b16 %v548
      %v1144 = vunpack.c.h.b16 %v548
      %v1145 = vunpack.c.l.b16 %v549
      %v1146 = vunpack.c.h.b16 %v549
      %v1147 = vunpack.c.l.b16 %v550
      %v1148 = vunpack.c.h.b16 %v550
      %v1149 = vunpack.c.l.b16 %v551
      %v1150 = vunpack.c.h.b16 %v551
      %v1151 = vunpack.c.l.b16 %v552
      %v1152 = vunpack.c.h.b16 %v552
      %v1153 = vunpack.c.l.b16 %v553
      %v1154 = vunpack.c.h.b16 %v553
      %v1155 = vunpack.c.l.b16 %v554
      %v1156 = vunpack.c.h.b16 %v554
      %v1157 = vunpack.c.l.b16 %v555
      %v1158 = vunpack.c.h.b16 %v555
      %v1159 = vunpack.c.l.b16 %v556
      %v1160 = vunpack.c.h.b16 %v556
      %v1161 = vunpack.c.l.b16 %v557
      %v1162 = vunpack.c.h.b16 %v557
      %v1163 = vunpack.c.l.b16 %v558
      %v1164 = vunpack.c.h.b16 %v558
      %v1165 = vunpack.c.l.b16 %v559
      %v1166 = vunpack.c.h.b16 %v559
      %v1167 = vunpack.c.l.b16 %v560
      %v1168 = vunpack.c.h.b16 %v560
      %v1169 = vunpack.c.l.b16 %v561
      %v1170 = vunpack.c.h.b16 %v561
      %v1171 = vunpack.c.l.b16 %v562
      %v1172 = vunpack.c.h.b16 %v562
      %v1173 = vunpack.c.l.b16 %v563
      %v1174 = vunpack.c.h.b16 %v563
      %v1175 = vunpack.c.l.b16 %v564
      %v1176 = vunpack.c.h.b16 %v564
      %v1177 = vunpack.c.l.b16 %v565
      %v1178 = vunpack.c.h.b16 %v565
      %v1179 = vunpack.c.l.b16 %v566
      %v1180 = vunpack.c.h.b16 %v566
      %v1181 = vunpack.c.l.b16 %v567
      %v1182 = vunpack.c.h.b16 %v567
      %v1183 = vunpack.c.l.b16 %v568
      %v1184 = vunpack.c.h.b16 %v568
      %v1185 = vunpack.c.l.b16 %v569
      %v1186 = vunpack.c.h.b16 %v569
      %v1187 = vunpack.c.l.b16 %v570
      %v1188 = vunpack.c.h.b16 %v570
      %v1189 = vunpack.c.l.b16 %v571
      %v1190 = vunpack.c.h.b16 %v571
      %v1191 = vunpack.c.l.b16 %v572
      %v1192 = vunpack.c.h.b16 %v572
      %v1193 = vunpack.c.l.b16 %v573
      %v1194 = vunpack.c.h.b16 %v573
      %v1195 = vunpack.c.l.b16 %v574
      %v1196 = vunpack.c.h.b16 %v574
      %v1197 = vunpack.c.l.b16 %v575
      %v1198 = vunpack.c.h.b16 %v575
      %v1199 = vunpack.c.l.b16 %v576
      %v1200 = vunpack.c.h.b16 %v576
      %v1201 = vunpack.c.l.b16 %v577
      %v1202 = vunpack.c.h.b16 %v577
      %v1203 = vunpack.c.l.b16 %v578
      %v1204 = vunpack.c.h.b16 %v578
      %v1205 = vpack.c.b16 %v1145, %v1141
      %v1206 = vpack.c.b16 %v1146, %v1142
      %v1207 = vpack.c.b16 %v1147, %v1143
      %v1208 = vpack.c.b16 %v1148, %v1144
      %v1209 = vpack.c.b16 %v1153, %v1149
      %v1210 = vpack.c.b16 %v1154, %v1150
      %v1211 = vpack.c.b16 %v1155, %v1151
      %v1212 = vpack.c.b16 %v1156, %v1152
      %v1213 = vpack.c.b16 %v1161, %v1157
      %v1214 = vpack.c.b16 %v1162, %v1158
      %v1215 = vpack.c.b16 %v1163, %v1159
      %v1216 = vpack.c.b16 %v1164, %v1160
      %v1217 = vpack.c.b16 %v1169, %v1165
      %v1218 = vpack.c.b16 %v1170, %v1166
      %v1219 = vpack.c.b16 %v1171, %v1167
      %v1220 = vpack.c.b16 %v1172, %v1168
      %v1221 = vpack.c.b16 %v1177, %v1173
      %v1222 = vpack.c.b16 %v1178, %v1174
      %v1223 = vpack.c.b16 %v1179, %v1175
      %v1224 = vpack.c.b16 %v1180, %v1176
      %v1225 = vpack.c.b16 %v1185, %v1181
      %v1226 = vpack.c.b16 %v1186, %v1182
      %v1227 = vpack.c.b16 %v1187, %v1183
      %v1228 = vpack.c.b16 %v1188, %v1184
      %v1229 = vpack.c.b16 %v1193, %v1189
      %v1230 = vpack.c.b16 %v1194, %v1190
      %v1231 = vpack.c.b16 %v1195, %v1191
      %v1232 = vpack.c.b16 %v1196, %v1192
      %v1233 = vpack.c.b16 %v1201, %v1197
      %v1234 = vpack.c.b16 %v1202, %v1198
      %v1235 = vpack.c.b16 %v1203, %v1199
      %v1236 = vpack.c.b16 %v1204, %v1200
      %1269 = vmatprep.subr.bf16.mxu0 %v1234
      %1270 = vmatpush1.bf16.msra.mxu0 %v1233
      %1271 = vmatprep.subr.bf16.mxu0 %v1230
      %1272 = vmatpush1.bf16.msra.mxu0 %v1229
      %1273 = vmatprep.subr.bf16.mxu0 %v1226
      %1274 = vmatpush1.bf16.msra.mxu0 %v1225
      %1275 = vmatprep.subr.bf16.mxu0 %v1222
      %1276 = vmatpush1.bf16.msra.mxu0 %v1221
      %1277 = vmatprep.subr.bf16.mxu0 %v1218
      %1278 = vmatpush1.bf16.msra.mxu0 %v1217
      %1279 = vmatprep.subr.bf16.mxu0 %v1214
      %1280 = vmatpush1.bf16.msra.mxu0 %v1213
      %1281 = vmatprep.subr.bf16.mxu0 %v1210
      %1282 = vmatpush1.bf16.msra.mxu0 %v1209
      %1283 = vmatprep.subr.bf16.mxu0 %v1206
      %1284 = vmatpush1.bf16.msra.mxu0 %v1205
      %1285 = vmatprep.subr.bf16.mxu0 0
      %1286 = vmatpush2.bf16.msra.mxu0 0
      %1287 = vmatprep.subr.bf16.mxu0 0
      %1288 = vmatpush2.bf16.msra.mxu0 0
      %1289 = vmatprep.subr.bf16.mxu0 0
      %1290 = vmatpush2.bf16.msra.mxu0 0
      %1291 = vmatprep.subr.bf16.mxu0 0
      %1292 = vmatpush2.bf16.msra.mxu0 0
      %1293 = vmatprep.subr.bf16.mxu0 0
      %1294 = vmatpush2.bf16.msra.mxu0 0
      %1295 = vmatprep.subr.bf16.mxu0 0
      %1296 = vmatpush2.bf16.msra.mxu0 0
      %1297 = vmatprep.subr.bf16.mxu0 0
      %1298 = vmatpush2.bf16.msra.mxu0 0
      %1299 = vmatprep.subr.bf16.mxu0 0
      %1300 = vmatpush2.bf16.msra.mxu0 0
      %1301 = vmatprep.mubr.bf16.mxu0 0
      %1302 = vmatmul.mubr.bf16.gmra.mxu0 %v1093
      %v1303 = vpop.f32.mrf.mxu0
      %v1304 = vadd.f32 %v870, %v1303
      %v1305 = vpop.f32.mrf.mxu0
      %v1306 = vadd.f32 %v872, %v1305
      %v1307 = vpop.f32.mrf.mxu0
      %v1308 = vadd.f32 %v874, %v1307
      %v1309 = vpop.f32.mrf.mxu0
      %v1310 = vadd.f32 %v876, %v1309
      %1311 = vmatprep.mubr.bf16.mxu0 0
      %1312 = vmatmul.mubr.bf16.gmra.mxu0 %v1094
      %v1313 = vpop.f32.mrf.mxu0
      %v1314 = vadd.f32 %v880, %v1313
      %v1315 = vpop.f32.mrf.mxu0
      %v1316 = vadd.f32 %v882, %v1315
      %v1317 = vpop.f32.mrf.mxu0
      %v1318 = vadd.f32 %v884, %v1317
      %v1319 = vpop.f32.mrf.mxu0
      %v1320 = vadd.f32 %v886, %v1319
      %1321 = vmatprep.mubr.bf16.mxu0 0
      %1322 = vmatmul.mubr.bf16.gmra.mxu0 %v1095
      %v1323 = vpop.f32.mrf.mxu0
      %v1324 = vadd.f32 %v890, %v1323
      %v1325 = vpop.f32.mrf.mxu0
      %v1326 = vadd.f32 %v892, %v1325
      %v1327 = vpop.f32.mrf.mxu0
      %v1328 = vadd.f32 %v894, %v1327
      %v1329 = vpop.f32.mrf.mxu0
      %v1330 = vadd.f32 %v896, %v1329
      %1331 = vmatprep.mubr.bf16.mxu0 0
      %1332 = vmatmul.mubr.bf16.gmra.mxu0 %v1096
      %v1333 = vpop.f32.mrf.mxu0
      %v1334 = vadd.f32 %v900, %v1333
      %v1335 = vpop.f32.mrf.mxu0
      %v1336 = vadd.f32 %v902, %v1335
      %v1337 = vpop.f32.mrf.mxu0
      %v1338 = vadd.f32 %v904, %v1337
      %v1339 = vpop.f32.mrf.mxu0
      %v1340 = vadd.f32 %v906, %v1339
      %1341 = vmatprep.mubr.bf16.mxu0 0
      %1342 = vmatmul.mubr.bf16.gmra.mxu0 %v1097
      %v1343 = vpop.f32.mrf.mxu0
      %v1344 = vadd.f32 %v910, %v1343
      %v1345 = vpop.f32.mrf.mxu0
      %v1346 = vadd.f32 %v912, %v1345
      %v1347 = vpop.f32.mrf.mxu0
      %v1348 = vadd.f32 %v914, %v1347
      %v1349 = vpop.f32.mrf.mxu0
      %v1350 = vadd.f32 %v916, %v1349
      %1351 = vmatprep.mubr.bf16.mxu0 0
      %1352 = vmatmul.mubr.bf16.gmra.mxu0 %v1098
      %v1353 = vpop.f32.mrf.mxu0
      %v1354 = vadd.f32 %v920, %v1353
      %v1355 = vpop.f32.mrf.mxu0
      %v1356 = vadd.f32 %v922, %v1355
      %v1357 = vpop.f32.mrf.mxu0
      %v1358 = vadd.f32 %v924, %v1357
      %v1359 = vpop.f32.mrf.mxu0
      %v1360 = vadd.f32 %v926, %v1359
      %1361 = vmatprep.mubr.bf16.mxu0 0
      %1362 = vmatmul.mubr.bf16.gmra.mxu0 %v1099
      %v1363 = vpop.f32.mrf.mxu0
      %v1364 = vadd.f32 %v930, %v1363
      %v1365 = vpop.f32.mrf.mxu0
      %v1366 = vadd.f32 %v932, %v1365
      %v1367 = vpop.f32.mrf.mxu0
      %v1368 = vadd.f32 %v934, %v1367
      %v1369 = vpop.f32.mrf.mxu0
      %v1370 = vadd.f32 %v936, %v1369
      %1371 = vmatprep.mubr.bf16.mxu0 0
      %1372 = vmatmul.mubr.bf16.gmra.mxu0 %v1100
      %v1373 = vpop.f32.mrf.mxu0
      %v1374 = vadd.f32 %v940, %v1373
      %v1375 = vpop.f32.mrf.mxu0
      %v1376 = vadd.f32 %v942, %v1375
      %v1377 = vpop.f32.mrf.mxu0
      %v1378 = vadd.f32 %v944, %v1377
      %v1379 = vpop.f32.mrf.mxu0
      %v1380 = vadd.f32 %v946, %v1379
      %1381 = vdwg.mxu0
      %1382 = vmatprep.subr.bf16.mxu0 %v1236
      %1383 = vmatpush1.bf16.msra.mxu0 %v1235
      %1384 = vmatprep.subr.bf16.mxu0 %v1232
      %1385 = vmatpush1.bf16.msra.mxu0 %v1231
      %1386 = vmatprep.subr.bf16.mxu0 %v1228
      %1387 = vmatpush1.bf16.msra.mxu0 %v1227
      %1388 = vmatprep.subr.bf16.mxu0 %v1224
      %1389 = vmatpush1.bf16.msra.mxu0 %v1223
      %1390 = vmatprep.subr.bf16.mxu0 %v1220
      %1391 = vmatpush1.bf16.msra.mxu0 %v1219
      %1392 = vmatprep.subr.bf16.mxu0 %v1216
      %1393 = vmatpush1.bf16.msra.mxu0 %v1215
      %1394 = vmatprep.subr.bf16.mxu0 %v1212
      %1395 = vmatpush1.bf16.msra.mxu0 %v1211
      %1396 = vmatprep.subr.bf16.mxu0 %v1208
      %1397 = vmatpush1.bf16.msra.mxu0 %v1207
      %1398 = vmatprep.subr.bf16.mxu0 0
      %1399 = vmatpush2.bf16.msra.mxu0 0
      %1400 = vmatprep.subr.bf16.mxu0 0
      %1401 = vmatpush2.bf16.msra.mxu0 0
      %1402 = vmatprep.subr.bf16.mxu0 0
      %1403 = vmatpush2.bf16.msra.mxu0 0
      %1404 = vmatprep.subr.bf16.mxu0 0
      %1405 = vmatpush2.bf16.msra.mxu0 0
      %1406 = vmatprep.subr.bf16.mxu0 0
      %1407 = vmatpush2.bf16.msra.mxu0 0
      %1408 = vmatprep.subr.bf16.mxu0 0
      %1409 = vmatpush2.bf16.msra.mxu0 0
      %1410 = vmatprep.subr.bf16.mxu0 0
      %1411 = vmatpush2.bf16.msra.mxu0 0
      %1412 = vmatprep.subr.bf16.mxu0 0
      %1413 = vmatpush2.bf16.msra.mxu0 0
      %1414 = vmatprep.mubr.bf16.mxu0 0
      %1415 = vmatmul.mubr.bf16.gmra.mxu0 %v1093
      %v1416 = vpop.f32.mrf.mxu0
      %v1417 = vadd.f32 %v983, %v1416
      %v1418 = vpop.f32.mrf.mxu0
      %v1419 = vadd.f32 %v985, %v1418
      %v1420 = vpop.f32.mrf.mxu0
      %v1421 = vadd.f32 %v987, %v1420
      %v1422 = vpop.f32.mrf.mxu0
      %v1423 = vadd.f32 %v989, %v1422
      %1424 = vmatprep.mubr.bf16.mxu0 0
      %1425 = vmatmul.mubr.bf16.gmra.mxu0 %v1094
      %v1426 = vpop.f32.mrf.mxu0
      %v1427 = vadd.f32 %v993, %v1426
      %v1428 = vpop.f32.mrf.mxu0
      %v1429 = vadd.f32 %v995, %v1428
      %v1430 = vpop.f32.mrf.mxu0
      %v1431 = vadd.f32 %v997, %v1430
      %v1432 = vpop.f32.mrf.mxu0
      %v1433 = vadd.f32 %v999, %v1432
      %1434 = vmatprep.mubr.bf16.mxu0 0
      %1435 = vmatmul.mubr.bf16.gmra.mxu0 %v1095
      %v1436 = vpop.f32.mrf.mxu0
      %v1437 = vadd.f32 %v1003, %v1436
      %v1438 = vpop.f32.mrf.mxu0
      %v1439 = vadd.f32 %v1005, %v1438
      %v1440 = vpop.f32.mrf.mxu0
      %v1441 = vadd.f32 %v1007, %v1440
      %v1442 = vpop.f32.mrf.mxu0
      %v1443 = vadd.f32 %v1009, %v1442
      %1444 = vmatprep.mubr.bf16.mxu0 0
      %1445 = vmatmul.mubr.bf16.gmra.mxu0 %v1096
      %v1446 = vpop.f32.mrf.mxu0
      %v1447 = vadd.f32 %v1013, %v1446
      %v1448 = vpop.f32.mrf.mxu0
      %v1449 = vadd.f32 %v1015, %v1448
      %v1450 = vpop.f32.mrf.mxu0
      %v1451 = vadd.f32 %v1017, %v1450
      %v1452 = vpop.f32.mrf.mxu0
      %v1453 = vadd.f32 %v1019, %v1452
      %1454 = vmatprep.mubr.bf16.mxu0 0
      %1455 = vmatmul.mubr.bf16.gmra.mxu0 %v1097
      %v1456 = vpop.f32.mrf.mxu0
      %v1457 = vadd.f32 %v1023, %v1456
      %v1458 = vpop.f32.mrf.mxu0
      %v1459 = vadd.f32 %v1025, %v1458
      %v1460 = vpop.f32.mrf.mxu0
      %v1461 = vadd.f32 %v1027, %v1460
      %v1462 = vpop.f32.mrf.mxu0
      %v1463 = vadd.f32 %v1029, %v1462
      %1464 = vmatprep.mubr.bf16.mxu0 0
      %1465 = vmatmul.mubr.bf16.gmra.mxu0 %v1098
      %v1466 = vpop.f32.mrf.mxu0
      %v1467 = vadd.f32 %v1033, %v1466
      %v1468 = vpop.f32.mrf.mxu0
      %v1469 = vadd.f32 %v1035, %v1468
      %v1470 = vpop.f32.mrf.mxu0
      %v1471 = vadd.f32 %v1037, %v1470
      %v1472 = vpop.f32.mrf.mxu0
      %v1473 = vadd.f32 %v1039, %v1472
      %1474 = vmatprep.mubr.bf16.mxu0 0
      %1475 = vmatmul.mubr.bf16.gmra.mxu0 %v1099
      %v1476 = vpop.f32.mrf.mxu0
      %v1477 = vadd.f32 %v1043, %v1476
      %v1478 = vpop.f32.mrf.mxu0
      %v1479 = vadd.f32 %v1045, %v1478
      %v1480 = vpop.f32.mrf.mxu0
      %v1481 = vadd.f32 %v1047, %v1480
      %v1482 = vpop.f32.mrf.mxu0
      %v1483 = vadd.f32 %v1049, %v1482
      %1484 = vmatprep.mubr.bf16.mxu0 0
      %1485 = vmatmul.mubr.bf16.gmra.mxu0 %v1100
      %v1486 = vpop.f32.mrf.mxu0
      %v1487 = vadd.f32 %v1053, %v1486
      %v1488 = vpop.f32.mrf.mxu0
      %v1489 = vadd.f32 %v1055, %v1488
      %v1490 = vpop.f32.mrf.mxu0
      %v1491 = vadd.f32 %v1057, %v1490
      %v1492 = vpop.f32.mrf.mxu0
      %v1493 = vadd.f32 %v1059, %v1492
      %1494 = vdwg.mxu0
      %v1495 = vld [vmem:[%s512] sm:$0xf]
      %v1497 = vlaneseq
      %v1498 = vshrl.u32 %v1497, 7
      %v1499 = vsub.s32 0, %v1498
      %v1500 = vrot.slane %v1495, %v1499
      %v1501 = vlaneseq
      %v1502 = vshrl.u32 %v1501, 7
      %v1503 = vsub.s32 1, %v1502
      %v1504 = vrot.slane %v1495, %v1503
      %v1505 = vlaneseq
      %v1506 = vshrl.u32 %v1505, 7
      %v1507 = vsub.s32 2, %v1506
      %v1508 = vrot.slane %v1495, %v1507
      %v1509 = vlaneseq
      %v1510 = vshrl.u32 %v1509, 7
      %v1511 = vsub.s32 3, %v1510
      %v1512 = vrot.slane %v1495, %v1511
      %v1517 = vadd.f32 %v1304, %v1500
      %v1518 = vadd.f32 %v1306, %v1504
      %v1519 = vadd.f32 %v1417, %v1508
      %v1520 = vadd.f32 %v1419, %v1512
      %v1521 = vadd.f32 %v1308, %v1500
      %v1522 = vadd.f32 %v1310, %v1504
      %v1523 = vadd.f32 %v1421, %v1508
      %v1524 = vadd.f32 %v1423, %v1512
      %v1525 = vadd.f32 %v1314, %v1500
      %v1526 = vadd.f32 %v1316, %v1504
      %v1527 = vadd.f32 %v1427, %v1508
      %v1528 = vadd.f32 %v1429, %v1512
      %v1529 = vadd.f32 %v1318, %v1500
      %v1530 = vadd.f32 %v1320, %v1504
      %v1531 = vadd.f32 %v1431, %v1508
      %v1532 = vadd.f32 %v1433, %v1512
      %v1533 = vadd.f32 %v1324, %v1500
      %v1534 = vadd.f32 %v1326, %v1504
      %v1535 = vadd.f32 %v1437, %v1508
      %v1536 = vadd.f32 %v1439, %v1512
      %v1537 = vadd.f32 %v1328, %v1500
      %v1538 = vadd.f32 %v1330, %v1504
      %v1539 = vadd.f32 %v1441, %v1508
      %v1540 = vadd.f32 %v1443, %v1512
      %v1541 = vadd.f32 %v1334, %v1500
      %v1542 = vadd.f32 %v1336, %v1504
      %v1543 = vadd.f32 %v1447, %v1508
      %v1544 = vadd.f32 %v1449, %v1512
      %v1545 = vadd.f32 %v1338, %v1500
      %v1546 = vadd.f32 %v1340, %v1504
      %v1547 = vadd.f32 %v1451, %v1508
      %v1548 = vadd.f32 %v1453, %v1512
      %v1549 = vadd.f32 %v1344, %v1500
      %v1550 = vadd.f32 %v1346, %v1504
      %v1551 = vadd.f32 %v1457, %v1508
      %v1552 = vadd.f32 %v1459, %v1512
      %v1553 = vadd.f32 %v1348, %v1500
      %v1554 = vadd.f32 %v1350, %v1504
      %v1555 = vadd.f32 %v1461, %v1508
      %v1556 = vadd.f32 %v1463, %v1512
      %v1557 = vadd.f32 %v1354, %v1500
      %v1558 = vadd.f32 %v1356, %v1504
      %v1559 = vadd.f32 %v1467, %v1508
      %v1560 = vadd.f32 %v1469, %v1512
      %v1561 = vadd.f32 %v1358, %v1500
      %v1562 = vadd.f32 %v1360, %v1504
      %v1563 = vadd.f32 %v1471, %v1508
      %v1564 = vadd.f32 %v1473, %v1512
      %v1565 = vadd.f32 %v1364, %v1500
      %v1566 = vadd.f32 %v1366, %v1504
      %v1567 = vadd.f32 %v1477, %v1508
      %v1568 = vadd.f32 %v1479, %v1512
      %v1569 = vadd.f32 %v1368, %v1500
      %v1570 = vadd.f32 %v1370, %v1504
      %v1571 = vadd.f32 %v1481, %v1508
      %v1572 = vadd.f32 %v1483, %v1512
      %v1573 = vadd.f32 %v1374, %v1500
      %v1574 = vadd.f32 %v1376, %v1504
      %v1575 = vadd.f32 %v1487, %v1508
      %v1576 = vadd.f32 %v1489, %v1512
      %v1577 = vadd.f32 %v1378, %v1500
      %v1578 = vadd.f32 %v1380, %v1504
      %v1579 = vadd.f32 %v1491, %v1508
      %v1580 = vadd.f32 %v1493, %v1512
      %1581 = vst [vmem:[#allocation2] sm:$0xff] %v1517
      %1582 = vst [vmem:[#allocation2 + $0x8] sm:$0xff] %v1518
      %1583 = vst [vmem:[#allocation2 + $0x10] sm:$0xff] %v1519
      %1584 = vst [vmem:[#allocation2 + $0x18] sm:$0xff] %v1520
      %1585 = vst [vmem:[#allocation2 + $0x20] sm:$0xff] %v1521
      %1586 = vst [vmem:[#allocation2 + $0x28] sm:$0xff] %v1522
      %1587 = vst [vmem:[#allocation2 + $0x30] sm:$0xff] %v1523
      %1588 = vst [vmem:[#allocation2 + $0x38] sm:$0xff] %v1524
      %1589 = vst [vmem:[#allocation2 + $0x40] sm:$0xff] %v1525
      %1590 = vst [vmem:[#allocation2 + $0x48] sm:$0xff] %v1526
      %1591 = vst [vmem:[#allocation2 + $0x50] sm:$0xff] %v1527
      %1592 = vst [vmem:[#allocation2 + $0x58] sm:$0xff] %v1528
      %1593 = vst [vmem:[#allocation2 + $0x60] sm:$0xff] %v1529
      %1594 = vst [vmem:[#allocation2 + $0x68] sm:$0xff] %v1530
      %1595 = vst [vmem:[#allocation2 + $0x70] sm:$0xff] %v1531
      %1596 = vst [vmem:[#allocation2 + $0x78] sm:$0xff] %v1532
      %1597 = vst [vmem:[#allocation2 + $0x80] sm:$0xff] %v1533
      %1598 = vst [vmem:[#allocation2 + $0x88] sm:$0xff] %v1534
      %1599 = vst [vmem:[#allocation2 + $0x90] sm:$0xff] %v1535
      %1600 = vst [vmem:[#allocation2 + $0x98] sm:$0xff] %v1536
      %1601 = vst [vmem:[#allocation2 + $0xa0] sm:$0xff] %v1537
      %1602 = vst [vmem:[#allocation2 + $0xa8] sm:$0xff] %v1538
      %1603 = vst [vmem:[#allocation2 + $0xb0] sm:$0xff] %v1539
      %1604 = vst [vmem:[#allocation2 + $0xb8] sm:$0xff] %v1540
      %1605 = vst [vmem:[#allocation2 + $0xc0] sm:$0xff] %v1541
      %1606 = vst [vmem:[#allocation2 + $0xc8] sm:$0xff] %v1542
      %1607 = vst [vmem:[#allocation2 + $0xd0] sm:$0xff] %v1543
      %1608 = vst [vmem:[#allocation2 + $0xd8] sm:$0xff] %v1544
      %1609 = vst [vmem:[#allocation2 + $0xe0] sm:$0xff] %v1545
      %1610 = vst [vmem:[#allocation2 + $0xe8] sm:$0xff] %v1546
      %1611 = vst [vmem:[#allocation2 + $0xf0] sm:$0xff] %v1547
      %1612 = vst [vmem:[#allocation2 + $0xf8] sm:$0xff] %v1548
      %1613 = vst [vmem:[#allocation2 + $0x100] sm:$0xff] %v1549
      %1614 = vst [vmem:[#allocation2 + $0x108] sm:$0xff] %v1550
      %1615 = vst [vmem:[#allocation2 + $0x110] sm:$0xff] %v1551
      %1616 = vst [vmem:[#allocation2 + $0x118] sm:$0xff] %v1552
      %1617 = vst [vmem:[#allocation2 + $0x120] sm:$0xff] %v1553
      %1618 = vst [vmem:[#allocation2 + $0x128] sm:$0xff] %v1554
      %1619 = vst [vmem:[#allocation2 + $0x130] sm:$0xff] %v1555
      %1620 = vst [vmem:[#allocation2 + $0x138] sm:$0xff] %v1556
      %1621 = vst [vmem:[#allocation2 + $0x140] sm:$0xff] %v1557
      %1622 = vst [vmem:[#allocation2 + $0x148] sm:$0xff] %v1558
      %1623 = vst [vmem:[#allocation2 + $0x150] sm:$0xff] %v1559
      %1624 = vst [vmem:[#allocation2 + $0x158] sm:$0xff] %v1560
      %1625 = vst [vmem:[#allocation2 + $0x160] sm:$0xff] %v1561
      %1626 = vst [vmem:[#allocation2 + $0x168] sm:$0xff] %v1562
      %1627 = vst [vmem:[#allocation2 + $0x170] sm:$0xff] %v1563
      %1628 = vst [vmem:[#allocation2 + $0x178] sm:$0xff] %v1564
      %1629 = vst [vmem:[#allocation2 + $0x180] sm:$0xff] %v1565
      %1630 = vst [vmem:[#allocation2 + $0x188] sm:$0xff] %v1566
      %1631 = vst [vmem:[#allocation2 + $0x190] sm:$0xff] %v1567
      %1632 = vst [vmem:[#allocation2 + $0x198] sm:$0xff] %v1568
      %1633 = vst [vmem:[#allocation2 + $0x1a0] sm:$0xff] %v1569
      %1634 = vst [vmem:[#allocation2 + $0x1a8] sm:$0xff] %v1570
      %1635 = vst [vmem:[#allocation2 + $0x1b0] sm:$0xff] %v1571
      %1636 = vst [vmem:[#allocation2 + $0x1b8] sm:$0xff] %v1572
      %1637 = vst [vmem:[#allocation2 + $0x1c0] sm:$0xff] %v1573
      %1638 = vst [vmem:[#allocation2 + $0x1c8] sm:$0xff] %v1574
      %1639 = vst [vmem:[#allocation2 + $0x1d0] sm:$0xff] %v1575
      %1640 = vst [vmem:[#allocation2 + $0x1d8] sm:$0xff] %v1576
      %1641 = vst [vmem:[#allocation2 + $0x1e0] sm:$0xff] %v1577
      %1642 = vst [vmem:[#allocation2 + $0x1e8] sm:$0xff] %v1578
      %1643 = vst [vmem:[#allocation2 + $0x1f0] sm:$0xff] %v1579
      %1644 = vst [vmem:[#allocation2 + $0x1f8] sm:$0xff] %v1580
      %s1645 = ssub.s32 1, %s23
      %s1646 = smul.u32 %s1645, %s24
      %s1647 = ssub.s32 1, %s24
      %s1648 = smul.u32 %s23, %s1647
      %s1649 = sadd.s32 %s1646, %s1648
      %s1650 = smul.u32 %s1649, 8
      %v1651 = vld [vmem:[%s0] sm:$0xff]
      %v1652 = vld [vmem:[%s0 + $0x8] sm:$0xff]
      %v1653 = vld [vmem:[%s458] sm:$0xff]
      %v1654 = vld [vmem:[%s458 + $0x8] sm:$0xff]
      %s1655 = smul.u32 %s23, 7
      %s1656 = sadd.s32 %s1650, %s1655
      %s1657 = smul.u32 %s1655, 8
      %s1658 = smul.addr %s1657, 8
      %s1659 = scalar_lea.vmem [#allocation2], %s1658
      %v1660 = vld [vmem:[%s1659] sm:$0xff]
      %v1661 = vld [vmem:[%s1659 + $0x8] sm:$0xff]
      %v1662 = vld [vmem:[%s1659 + $0x10] sm:$0xff]
      %v1663 = vld [vmem:[%s1659 + $0x18] sm:$0xff]
      %v1664 = vld [vmem:[%s1659 + $0x20] sm:$0xff]
      %v1665 = vld [vmem:[%s1659 + $0x28] sm:$0xff]
      %v1666 = vld [vmem:[%s1659 + $0x30] sm:$0xff]
      %v1667 = vld [vmem:[%s1659 + $0x38] sm:$0xff]
      %v1668 = vld [vmem:[#allocation3] sm:$0xff]
      %v1669 = vld [vmem:[#allocation3 + $0x8] sm:$0xff]
      %v1670 = vpack.c.bf16 %v1669, %v1668
      %v1671 = vld [vmem:[%s508] sm:$0xff]
      %v1672 = vld [vmem:[%s508 + $0x8] sm:$0xff]
      %v1673 = vld [vmem:[%s508 + $0x10] sm:$0xff]
      %v1674 = vld [vmem:[%s508 + $0x18] sm:$0xff]
      %v1675 = vld [vmem:[%s508 + $0x20] sm:$0xff]
      %v1676 = vld [vmem:[%s508 + $0x28] sm:$0xff]
      %v1677 = vld [vmem:[%s508 + $0x30] sm:$0xff]
      %v1678 = vld [vmem:[%s508 + $0x38] sm:$0xff]
      %v1679 = vld [vmem:[%s508 + $0x40] sm:$0xff]
      %v1680 = vld [vmem:[%s508 + $0x48] sm:$0xff]
      %v1681 = vld [vmem:[%s508 + $0x50] sm:$0xff]
      %v1682 = vld [vmem:[%s508 + $0x58] sm:$0xff]
      %v1683 = vld [vmem:[%s508 + $0x60] sm:$0xff]
      %v1684 = vld [vmem:[%s508 + $0x68] sm:$0xff]
      %v1685 = vld [vmem:[%s508 + $0x70] sm:$0xff]
      %v1686 = vld [vmem:[%s508 + $0x78] sm:$0xff]
      %v1687 = vld [vmem:[%s508 + $0x80] sm:$0xff]
      %v1688 = vld [vmem:[%s508 + $0x88] sm:$0xff]
      %v1689 = vld [vmem:[%s508 + $0x90] sm:$0xff]
      %v1690 = vld [vmem:[%s508 + $0x98] sm:$0xff]
      %v1691 = vld [vmem:[%s508 + $0xa0] sm:$0xff]
      %v1692 = vld [vmem:[%s508 + $0xa8] sm:$0xff]
      %v1693 = vld [vmem:[%s508 + $0xb0] sm:$0xff]
      %v1694 = vld [vmem:[%s508 + $0xb8] sm:$0xff]
      %v1695 = vld [vmem:[%s508 + $0xc0] sm:$0xff]
      %v1696 = vld [vmem:[%s508 + $0xc8] sm:$0xff]
      %v1697 = vld [vmem:[%s508 + $0xd0] sm:$0xff]
      %v1698 = vld [vmem:[%s508 + $0xd8] sm:$0xff]
      %v1699 = vld [vmem:[%s508 + $0xe0] sm:$0xff]
      %v1700 = vld [vmem:[%s508 + $0xe8] sm:$0xff]
      %v1701 = vld [vmem:[%s508 + $0xf0] sm:$0xff]
      %v1702 = vld [vmem:[%s508 + $0xf8] sm:$0xff]
      %v1735 = vunpack.c.l.b16 %v1671
      %v1736 = vunpack.c.h.b16 %v1671
      %v1737 = vunpack.c.l.b16 %v1672
      %v1738 = vunpack.c.h.b16 %v1672
      %v1739 = vunpack.c.l.b16 %v1673
      %v1740 = vunpack.c.h.b16 %v1673
      %v1741 = vunpack.c.l.b16 %v1674
      %v1742 = vunpack.c.h.b16 %v1674
      %v1743 = vunpack.c.l.b16 %v1675
      %v1744 = vunpack.c.h.b16 %v1675
      %v1745 = vunpack.c.l.b16 %v1676
      %v1746 = vunpack.c.h.b16 %v1676
      %v1747 = vunpack.c.l.b16 %v1677
      %v1748 = vunpack.c.h.b16 %v1677
      %v1749 = vunpack.c.l.b16 %v1678
      %v1750 = vunpack.c.h.b16 %v1678
      %v1751 = vunpack.c.l.b16 %v1679
      %v1752 = vunpack.c.h.b16 %v1679
      %v1753 = vunpack.c.l.b16 %v1680
      %v1754 = vunpack.c.h.b16 %v1680
      %v1755 = vunpack.c.l.b16 %v1681
      %v1756 = vunpack.c.h.b16 %v1681
      %v1757 = vunpack.c.l.b16 %v1682
      %v1758 = vunpack.c.h.b16 %v1682
      %v1759 = vunpack.c.l.b16 %v1683
      %v1760 = vunpack.c.h.b16 %v1683
      %v1761 = vunpack.c.l.b16 %v1684
      %v1762 = vunpack.c.h.b16 %v1684
      %v1763 = vunpack.c.l.b16 %v1685
      %v1764 = vunpack.c.h.b16 %v1685
      %v1765 = vunpack.c.l.b16 %v1686
      %v1766 = vunpack.c.h.b16 %v1686
      %v1767 = vunpack.c.l.b16 %v1687
      %v1768 = vunpack.c.h.b16 %v1687
      %v1769 = vunpack.c.l.b16 %v1688
      %v1770 = vunpack.c.h.b16 %v1688
      %v1771 = vunpack.c.l.b16 %v1689
      %v1772 = vunpack.c.h.b16 %v1689
      %v1773 = vunpack.c.l.b16 %v1690
      %v1774 = vunpack.c.h.b16 %v1690
      %v1775 = vunpack.c.l.b16 %v1691
      %v1776 = vunpack.c.h.b16 %v1691
      %v1777 = vunpack.c.l.b16 %v1692
      %v1778 = vunpack.c.h.b16 %v1692
      %v1779 = vunpack.c.l.b16 %v1693
      %v1780 = vunpack.c.h.b16 %v1693
      %v1781 = vunpack.c.l.b16 %v1694
      %v1782 = vunpack.c.h.b16 %v1694
      %v1783 = vunpack.c.l.b16 %v1695
      %v1784 = vunpack.c.h.b16 %v1695
      %v1785 = vunpack.c.l.b16 %v1696
      %v1786 = vunpack.c.h.b16 %v1696
      %v1787 = vunpack.c.l.b16 %v1697
      %v1788 = vunpack.c.h.b16 %v1697
      %v1789 = vunpack.c.l.b16 %v1698
      %v1790 = vunpack.c.h.b16 %v1698
      %v1791 = vunpack.c.l.b16 %v1699
      %v1792 = vunpack.c.h.b16 %v1699
      %v1793 = vunpack.c.l.b16 %v1700
      %v1794 = vunpack.c.h.b16 %v1700
      %v1795 = vunpack.c.l.b16 %v1701
      %v1796 = vunpack.c.h.b16 %v1701
      %v1797 = vunpack.c.l.b16 %v1702
      %v1798 = vunpack.c.h.b16 %v1702
      %v1799 = vpack.c.b16 %v1739, %v1735
      %v1800 = vpack.c.b16 %v1740, %v1736
      %v1801 = vpack.c.b16 %v1741, %v1737
      %v1802 = vpack.c.b16 %v1742, %v1738
      %v1803 = vpack.c.b16 %v1747, %v1743
      %v1804 = vpack.c.b16 %v1748, %v1744
      %v1805 = vpack.c.b16 %v1749, %v1745
      %v1806 = vpack.c.b16 %v1750, %v1746
      %v1807 = vpack.c.b16 %v1755, %v1751
      %v1808 = vpack.c.b16 %v1756, %v1752
      %v1809 = vpack.c.b16 %v1757, %v1753
      %v1810 = vpack.c.b16 %v1758, %v1754
      %v1811 = vpack.c.b16 %v1763, %v1759
      %v1812 = vpack.c.b16 %v1764, %v1760
      %v1813 = vpack.c.b16 %v1765, %v1761
      %v1814 = vpack.c.b16 %v1766, %v1762
      %v1815 = vpack.c.b16 %v1771, %v1767
      %v1816 = vpack.c.b16 %v1772, %v1768
      %v1817 = vpack.c.b16 %v1773, %v1769
      %v1818 = vpack.c.b16 %v1774, %v1770
      %v1819 = vpack.c.b16 %v1779, %v1775
      %v1820 = vpack.c.b16 %v1780, %v1776
      %v1821 = vpack.c.b16 %v1781, %v1777
      %v1822 = vpack.c.b16 %v1782, %v1778
      %v1823 = vpack.c.b16 %v1787, %v1783
      %v1824 = vpack.c.b16 %v1788, %v1784
      %v1825 = vpack.c.b16 %v1789, %v1785
      %v1826 = vpack.c.b16 %v1790, %v1786
      %v1827 = vpack.c.b16 %v1795, %v1791
      %v1828 = vpack.c.b16 %v1796, %v1792
      %v1829 = vpack.c.b16 %v1797, %v1793
      %v1830 = vpack.c.b16 %v1798, %v1794
      %1863 = vmatprep.subr.bf16.mxu0 %v1828
      %1864 = vmatpush1.bf16.msra.mxu0 %v1827
      %1865 = vmatprep.subr.bf16.mxu0 %v1824
      %1866 = vmatpush1.bf16.msra.mxu0 %v1823
      %1867 = vmatprep.subr.bf16.mxu0 %v1820
      %1868 = vmatpush1.bf16.msra.mxu0 %v1819
      %1869 = vmatprep.subr.bf16.mxu0 %v1816
      %1870 = vmatpush1.bf16.msra.mxu0 %v1815
      %1871 = vmatprep.subr.bf16.mxu0 %v1812
      %1872 = vmatpush1.bf16.msra.mxu0 %v1811
      %1873 = vmatprep.subr.bf16.mxu0 %v1808
      %1874 = vmatpush1.bf16.msra.mxu0 %v1807
      %1875 = vmatprep.subr.bf16.mxu0 %v1804
      %1876 = vmatpush1.bf16.msra.mxu0 %v1803
      %1877 = vmatprep.subr.bf16.mxu0 %v1800
      %1878 = vmatpush1.bf16.msra.mxu0 %v1799
      %1879 = vmatprep.subr.bf16.mxu0 0
      %1880 = vmatpush2.bf16.msra.mxu0 0
      %1881 = vmatprep.subr.bf16.mxu0 0
      %1882 = vmatpush2.bf16.msra.mxu0 0
      %1883 = vmatprep.subr.bf16.mxu0 0
      %1884 = vmatpush2.bf16.msra.mxu0 0
      %1885 = vmatprep.subr.bf16.mxu0 0
      %1886 = vmatpush2.bf16.msra.mxu0 0
      %1887 = vmatprep.subr.bf16.mxu0 0
      %1888 = vmatpush2.bf16.msra.mxu0 0
      %1889 = vmatprep.subr.bf16.mxu0 0
      %1890 = vmatpush2.bf16.msra.mxu0 0
      %1891 = vmatprep.subr.bf16.mxu0 0
      %1892 = vmatpush2.bf16.msra.mxu0 0
      %1893 = vmatprep.subr.bf16.mxu0 0
      %1894 = vmatpush2.bf16.msra.mxu0 0
      %1895 = vmatprep.mubr.bf16.mxu0 0
      %1896 = vmatmul.mubr.bf16.gmra.mxu0 %v1670
      %v1897 = vpop.f32.mrf.mxu0
      %v1898 = vadd.f32 0.0, %v1897
      %v1899 = vpop.f32.mrf.mxu0
      %v1900 = vadd.f32 0.0, %v1899
      %v1901 = vpop.f32.mrf.mxu0
      %v1902 = vadd.f32 0.0, %v1901
      %v1903 = vpop.f32.mrf.mxu0
      %v1904 = vadd.f32 0.0, %v1903
      %1905 = vdwg.mxu0
      %1906 = vmatprep.subr.bf16.mxu0 %v1830
      %1907 = vmatpush1.bf16.msra.mxu0 %v1829
      %1908 = vmatprep.subr.bf16.mxu0 %v1826
      %1909 = vmatpush1.bf16.msra.mxu0 %v1825
      %1910 = vmatprep.subr.bf16.mxu0 %v1822
      %1911 = vmatpush1.bf16.msra.mxu0 %v1821
      %1912 = vmatprep.subr.bf16.mxu0 %v1818
      %1913 = vmatpush1.bf16.msra.mxu0 %v1817
      %1914 = vmatprep.subr.bf16.mxu0 %v1814
      %1915 = vmatpush1.bf16.msra.mxu0 %v1813
      %1916 = vmatprep.subr.bf16.mxu0 %v1810
      %1917 = vmatpush1.bf16.msra.mxu0 %v1809
      %1918 = vmatprep.subr.bf16.mxu0 %v1806
      %1919 = vmatpush1.bf16.msra.mxu0 %v1805
      %1920 = vmatprep.subr.bf16.mxu0 %v1802
      %1921 = vmatpush1.bf16.msra.mxu0 %v1801
      %1922 = vmatprep.subr.bf16.mxu0 0
      %1923 = vmatpush2.bf16.msra.mxu0 0
      %1924 = vmatprep.subr.bf16.mxu0 0
      %1925 = vmatpush2.bf16.msra.mxu0 0
      %1926 = vmatprep.subr.bf16.mxu0 0
      %1927 = vmatpush2.bf16.msra.mxu0 0
      %1928 = vmatprep.subr.bf16.mxu0 0
      %1929 = vmatpush2.bf16.msra.mxu0 0
      %1930 = vmatprep.subr.bf16.mxu0 0
      %1931 = vmatpush2.bf16.msra.mxu0 0
      %1932 = vmatprep.subr.bf16.mxu0 0
      %1933 = vmatpush2.bf16.msra.mxu0 0
      %1934 = vmatprep.subr.bf16.mxu0 0
      %1935 = vmatpush2.bf16.msra.mxu0 0
      %1936 = vmatprep.subr.bf16.mxu0 0
      %1937 = vmatpush2.bf16.msra.mxu0 0
      %1938 = vmatprep.mubr.bf16.mxu0 0
      %1939 = vmatmul.mubr.bf16.gmra.mxu0 %v1670
      %v1940 = vpop.f32.mrf.mxu0
      %v1941 = vadd.f32 0.0, %v1940
      %v1942 = vpop.f32.mrf.mxu0
      %v1943 = vadd.f32 0.0, %v1942
      %v1944 = vpop.f32.mrf.mxu0
      %v1945 = vadd.f32 0.0, %v1944
      %v1946 = vpop.f32.mrf.mxu0
      %v1947 = vadd.f32 0.0, %v1946
      %1948 = vdwg.mxu0
      %v1949 = vadd.f32 %v1660, %v1898
      %v1950 = vadd.f32 %v1661, %v1900
      %v1951 = vadd.f32 %v1662, %v1941
      %v1952 = vadd.f32 %v1663, %v1943
      %v1953 = vadd.f32 %v1664, %v1902
      %v1954 = vadd.f32 %v1665, %v1904
      %v1955 = vadd.f32 %v1666, %v1945
      %v1956 = vadd.f32 %v1667, %v1947
      %v1957 = vxor.u32 %v1949, 2147483648
      %v1958 = vxor.u32 %v1950, 2147483648
      %v1959 = vxor.u32 %v1951, 2147483648
      %v1960 = vxor.u32 %v1953, 2147483648
      %v1961 = vxor.u32 %v1954, 2147483648
      %v1962 = vxor.u32 %v1955, 2147483648
      %v1963 = vmul.f32 %v1957, 1.442695
      %v1964 = vpow.pop %v1963
      %v1965 = vmul.f32 %v1958, 1.442695
      %v1966 = vpow.pop %v1965
      %v1967 = vmul.f32 %v1959, 1.442695
      %v1968 = vpow.pop %v1967
      %v1969 = vmul.f32 %v1960, 1.442695
      %v1970 = vpow.pop %v1969
      %v1971 = vmul.f32 %v1961, 1.442695
      %v1972 = vpow.pop %v1971
      %v1973 = vmul.f32 %v1962, 1.442695
      %v1974 = vpow.pop %v1973
      %v1975 = vadd.f32 %v1964, 1.0
      %v1976 = vadd.f32 %v1966, 1.0
      %v1977 = vadd.f32 %v1968, 1.0
      %v1978 = vadd.f32 %v1970, 1.0
      %v1979 = vadd.f32 %v1972, 1.0
      %v1980 = vadd.f32 %v1974, 1.0
      %v1981 = vrcp.pop %v1975
      %v1982 = vmul.f32 1.0, %v1981
      %v1983 = vrcp.pop %v1976
      %v1984 = vmul.f32 1.0, %v1983
      %v1985 = vrcp.pop %v1977
      %v1986 = vmul.f32 1.0, %v1985
      %v1987 = vrcp.pop %v1978
      %v1988 = vmul.f32 1.0, %v1987
      %v1989 = vrcp.pop %v1979
      %v1990 = vmul.f32 1.0, %v1989
      %v1991 = vrcp.pop %v1980
      %v1992 = vmul.f32 1.0, %v1991
      %v1993 = vtanh.pop %v1952
      %v1994 = vtanh.pop %v1956
      %v1995 = vld [vmem:[#allocation4] sm:$0xff]
      %v1996 = vld [vmem:[#allocation4 + $0x8] sm:$0xff]
      %v1997 = vmul.f32 %v1984, %v1995
      %v1998 = vmul.f32 %v1990, %v1996
      %v1999 = vmul.f32 %v1982, %v1993
      %v2000 = vmul.f32 %v1988, %v1994
      %v2001 = vadd.f32 %v1997, %v1999
      %v2002 = vadd.f32 %v1998, %v2000
      %v2003 = vtanh.pop %v2001
      %v2004 = vtanh.pop %v2002
      %v2005 = vmul.f32 %v1986, %v2003
      %v2006 = vmul.f32 %v1992, %v2004
      %v2007 = vstv %s1656
      %vm2008 = vcmp.gt.s32.totalorder %v1651, %v2007
      %vm2009 = vcmp.gt.s32.totalorder %v1652, %v2007
      %v2010 = vsel %vm2008, 1, 0
      %v2011 = vsel %vm2009, 1, 0
      %2012 = vset.pattern.permute.xlu0 0
      %2013 = vperm.xlu0 %2012, %v2010
      %v2014 = vpop.permute.xlu0 %2013
      %2015 = vset.pattern.permute.xlu0 0
      %2016 = vperm.xlu0 %2015, %v2011
      %v2017 = vpop.permute.xlu0 %2016
      %vm2018 = vcmp.eq.s32.totalorder %v2014, 1
      %vm2019 = vcmp.eq.s32.totalorder %v2017, 1
      %v2020 = vsel %vm2018, %v2005, %v1668
      %v2021 = vsel %vm2019, %v2006, %v1669
      %2022 = vst [vmem:[#allocation3] sm:$0xff] %v2020
      %2023 = vst [vmem:[#allocation3 + $0x8] sm:$0xff] %v2021
      %v2024 = vld [vmem:[#allocation4] sm:$0xff]
      %v2025 = vld [vmem:[#allocation4 + $0x8] sm:$0xff]
      %v2026 = vsel %vm2018, %v2001, %v2024
      %v2027 = vsel %vm2019, %v2002, %v2025
      %2028 = vst [vmem:[#allocation4] sm:$0xff] %v2026
      %2029 = vst [vmem:[#allocation4 + $0x8] sm:$0xff] %v2027
      %v2030 = vsel %vm2018, %v2005, 0.0
      %v2031 = vsel %vm2019, %v2006, 0.0
      %v2032 = vpack.c.bf16 %v2031, %v2030
      %vm2033 = vcmp.eq.s32.totalorder %v1653, %v2007
      %vm2034 = vcmp.eq.s32.totalorder %v1654, %v2007
      %v2035 = vld [vmem:[%s517] sm:$0xf]
      %v2036 = vld [vmem:[%s517 + $0x4] sm:$0xf]
      %v2037 = vsel %vm2033, 1, 0
      %v2038 = vsel %vm2034, 1, 0
      %2039 = vset.pattern.permute.xlu0 0
      %2040 = vperm.xlu0 %2039, %v2037
      %v2041 = vpop.permute.xlu0 %2040
      %2042 = vset.pattern.permute.xlu0 0
      %2043 = vperm.xlu0 %2042, %v2038
      %v2044 = vpop.permute.xlu0 %2043
      %vm2045 = vcmp.eq.s32.totalorder %v2041, 1
      %vm2046 = vcmp.eq.s32.totalorder %v2044, 1
      %vm2047 = vmpackc.low %vm2045, %vm2045
      %vm2048 = vmpackc.low %vm2046, %vm2046
      %v2049 = vsel %vm2047, 65537, 0
      %v2050 = vsel %vm2048, 65537, 0
      %v2051 = vunpack.c.l.b16 %v2049
      %v2052 = vunpack.c.l.b16 %v2050
      %v2053 = vpack.c.b16 %v2052, %v2051
      %vm2054 = vcmp.ne.s16.totalorder %v2053, 0
      %v2057 = vunpack.c.l.b16 %v2035
      %v2058 = vunpack.c.l.b16 %v2036
      %v2059 = vpack.c.b16 %v2058, %v2057
      %v2061 = vsel %vm2054, %v2032, %v2059
      %v2063 = vunpack.c.l.b16 %v2061
      %v2064 = vunpack.c.h.b16 %v2061
      %v2065 = vpack.c.b16 %v2063, %v2063
      %v2066 = vpack.c.b16 %v2064, %v2064
      %2069 = vst [vmem:[%s517] sm:$0xf] %v2065
      %2070 = vst [vmem:[%s517 + $0x4] sm:$0xf] %v2066
      %s2071 = smul.u32 %s23, 6
      %s2072 = sadd.s32 %s1645, %s2071
      %s2073 = sadd.s32 %s1650, %s2072
      %s2074 = smul.u32 %s2072, 8
      %s2075 = smul.addr %s2074, 8
      %s2076 = scalar_lea.vmem [#allocation2], %s2075
      %v2077 = vld [vmem:[%s2076] sm:$0xff]
      %v2078 = vld [vmem:[%s2076 + $0x8] sm:$0xff]
      %v2079 = vld [vmem:[%s2076 + $0x10] sm:$0xff]
      %v2080 = vld [vmem:[%s2076 + $0x18] sm:$0xff]
      %v2081 = vld [vmem:[%s2076 + $0x20] sm:$0xff]
      %v2082 = vld [vmem:[%s2076 + $0x28] sm:$0xff]
      %v2083 = vld [vmem:[%s2076 + $0x30] sm:$0xff]
      %v2084 = vld [vmem:[%s2076 + $0x38] sm:$0xff]
      %v2085 = vld [vmem:[#allocation3] sm:$0xff]
      %v2086 = vld [vmem:[#allocation3 + $0x8] sm:$0xff]
      %v2087 = vpack.c.bf16 %v2086, %v2085
      %v2088 = vld [vmem:[%s508] sm:$0xff]
      %v2089 = vld [vmem:[%s508 + $0x8] sm:$0xff]
      %v2090 = vld [vmem:[%s508 + $0x10] sm:$0xff]
      %v2091 = vld [vmem:[%s508 + $0x18] sm:$0xff]
      %v2092 = vld [vmem:[%s508 + $0x20] sm:$0xff]
      %v2093 = vld [vmem:[%s508 + $0x28] sm:$0xff]
      %v2094 = vld [vmem:[%s508 + $0x30] sm:$0xff]
      %v2095 = vld [vmem:[%s508 + $0x38] sm:$0xff]
      %v2096 = vld [vmem:[%s508 + $0x40] sm:$0xff]
      %v2097 = vld [vmem:[%s508 + $0x48] sm:$0xff]
      %v2098 = vld [vmem:[%s508 + $0x50] sm:$0xff]
      %v2099 = vld [vmem:[%s508 + $0x58] sm:$0xff]
      %v2100 = vld [vmem:[%s508 + $0x60] sm:$0xff]
      %v2101 = vld [vmem:[%s508 + $0x68] sm:$0xff]
      %v2102 = vld [vmem:[%s508 + $0x70] sm:$0xff]
      %v2103 = vld [vmem:[%s508 + $0x78] sm:$0xff]
      %v2104 = vld [vmem:[%s508 + $0x80] sm:$0xff]
      %v2105 = vld [vmem:[%s508 + $0x88] sm:$0xff]
      %v2106 = vld [vmem:[%s508 + $0x90] sm:$0xff]
      %v2107 = vld [vmem:[%s508 + $0x98] sm:$0xff]
      %v2108 = vld [vmem:[%s508 + $0xa0] sm:$0xff]
      %v2109 = vld [vmem:[%s508 + $0xa8] sm:$0xff]
      %v2110 = vld [vmem:[%s508 + $0xb0] sm:$0xff]
      %v2111 = vld [vmem:[%s508 + $0xb8] sm:$0xff]
      %v2112 = vld [vmem:[%s508 + $0xc0] sm:$0xff]
      %v2113 = vld [vmem:[%s508 + $0xc8] sm:$0xff]
      %v2114 = vld [vmem:[%s508 + $0xd0] sm:$0xff]
      %v2115 = vld [vmem:[%s508 + $0xd8] sm:$0xff]
      %v2116 = vld [vmem:[%s508 + $0xe0] sm:$0xff]
      %v2117 = vld [vmem:[%s508 + $0xe8] sm:$0xff]
      %v2118 = vld [vmem:[%s508 + $0xf0] sm:$0xff]
      %v2119 = vld [vmem:[%s508 + $0xf8] sm:$0xff]
      %v2152 = vunpack.c.l.b16 %v2088
      %v2153 = vunpack.c.h.b16 %v2088
      %v2154 = vunpack.c.l.b16 %v2089
      %v2155 = vunpack.c.h.b16 %v2089
      %v2156 = vunpack.c.l.b16 %v2090
      %v2157 = vunpack.c.h.b16 %v2090
      %v2158 = vunpack.c.l.b16 %v2091
      %v2159 = vunpack.c.h.b16 %v2091
      %v2160 = vunpack.c.l.b16 %v2092
      %v2161 = vunpack.c.h.b16 %v2092
      %v2162 = vunpack.c.l.b16 %v2093
      %v2163 = vunpack.c.h.b16 %v2093
      %v2164 = vunpack.c.l.b16 %v2094
      %v2165 = vunpack.c.h.b16 %v2094
      %v2166 = vunpack.c.l.b16 %v2095
      %v2167 = vunpack.c.h.b16 %v2095
      %v2168 = vunpack.c.l.b16 %v2096
      %v2169 = vunpack.c.h.b16 %v2096
      %v2170 = vunpack.c.l.b16 %v2097
      %v2171 = vunpack.c.h.b16 %v2097
      %v2172 = vunpack.c.l.b16 %v2098
      %v2173 = vunpack.c.h.b16 %v2098
      %v2174 = vunpack.c.l.b16 %v2099
      %v2175 = vunpack.c.h.b16 %v2099
      %v2176 = vunpack.c.l.b16 %v2100
      %v2177 = vunpack.c.h.b16 %v2100
      %v2178 = vunpack.c.l.b16 %v2101
      %v2179 = vunpack.c.h.b16 %v2101
      %v2180 = vunpack.c.l.b16 %v2102
      %v2181 = vunpack.c.h.b16 %v2102
      %v2182 = vunpack.c.l.b16 %v2103
      %v2183 = vunpack.c.h.b16 %v2103
      %v2184 = vunpack.c.l.b16 %v2104
      %v2185 = vunpack.c.h.b16 %v2104
      %v2186 = vunpack.c.l.b16 %v2105
      %v2187 = vunpack.c.h.b16 %v2105
      %v2188 = vunpack.c.l.b16 %v2106
      %v2189 = vunpack.c.h.b16 %v2106
      %v2190 = vunpack.c.l.b16 %v2107
      %v2191 = vunpack.c.h.b16 %v2107
      %v2192 = vunpack.c.l.b16 %v2108
      %v2193 = vunpack.c.h.b16 %v2108
      %v2194 = vunpack.c.l.b16 %v2109
      %v2195 = vunpack.c.h.b16 %v2109
      %v2196 = vunpack.c.l.b16 %v2110
      %v2197 = vunpack.c.h.b16 %v2110
      %v2198 = vunpack.c.l.b16 %v2111
      %v2199 = vunpack.c.h.b16 %v2111
      %v2200 = vunpack.c.l.b16 %v2112
      %v2201 = vunpack.c.h.b16 %v2112
      %v2202 = vunpack.c.l.b16 %v2113
      %v2203 = vunpack.c.h.b16 %v2113
      %v2204 = vunpack.c.l.b16 %v2114
      %v2205 = vunpack.c.h.b16 %v2114
      %v2206 = vunpack.c.l.b16 %v2115
      %v2207 = vunpack.c.h.b16 %v2115
      %v2208 = vunpack.c.l.b16 %v2116
      %v2209 = vunpack.c.h.b16 %v2116
      %v2210 = vunpack.c.l.b16 %v2117
      %v2211 = vunpack.c.h.b16 %v2117
      %v2212 = vunpack.c.l.b16 %v2118
      %v2213 = vunpack.c.h.b16 %v2118
      %v2214 = vunpack.c.l.b16 %v2119
      %v2215 = vunpack.c.h.b16 %v2119
      %v2216 = vpack.c.b16 %v2156, %v2152
      %v2217 = vpack.c.b16 %v2157, %v2153
      %v2218 = vpack.c.b16 %v2158, %v2154
      %v2219 = vpack.c.b16 %v2159, %v2155
      %v2220 = vpack.c.b16 %v2164, %v2160
      %v2221 = vpack.c.b16 %v2165, %v2161
      %v2222 = vpack.c.b16 %v2166, %v2162
      %v2223 = vpack.c.b16 %v2167, %v2163
      %v2224 = vpack.c.b16 %v2172, %v2168
      %v2225 = vpack.c.b16 %v2173, %v2169
      %v2226 = vpack.c.b16 %v2174, %v2170
      %v2227 = vpack.c.b16 %v2175, %v2171
      %v2228 = vpack.c.b16 %v2180, %v2176
      %v2229 = vpack.c.b16 %v2181, %v2177
      %v2230 = vpack.c.b16 %v2182, %v2178
      %v2231 = vpack.c.b16 %v2183, %v2179
      %v2232 = vpack.c.b16 %v2188, %v2184
      %v2233 = vpack.c.b16 %v2189, %v2185
      %v2234 = vpack.c.b16 %v2190, %v2186
      %v2235 = vpack.c.b16 %v2191, %v2187
      %v2236 = vpack.c.b16 %v2196, %v2192
      %v2237 = vpack.c.b16 %v2197, %v2193
      %v2238 = vpack.c.b16 %v2198, %v2194
      %v2239 = vpack.c.b16 %v2199, %v2195
      %v2240 = vpack.c.b16 %v2204, %v2200
      %v2241 = vpack.c.b16 %v2205, %v2201
      %v2242 = vpack.c.b16 %v2206, %v2202
      %v2243 = vpack.c.b16 %v2207, %v2203
      %v2244 = vpack.c.b16 %v2212, %v2208
      %v2245 = vpack.c.b16 %v2213, %v2209
      %v2246 = vpack.c.b16 %v2214, %v2210
      %v2247 = vpack.c.b16 %v2215, %v2211
      %2280 = vmatprep.subr.bf16.mxu0 %v2245
      %2281 = vmatpush1.bf16.msra.mxu0 %v2244
      %2282 = vmatprep.subr.bf16.mxu0 %v2241
      %2283 = vmatpush1.bf16.msra.mxu0 %v2240
      %2284 = vmatprep.subr.bf16.mxu0 %v2237
      %2285 = vmatpush1.bf16.msra.mxu0 %v2236
      %2286 = vmatprep.subr.bf16.mxu0 %v2233
      %2287 = vmatpush1.bf16.msra.mxu0 %v2232
      %2288 = vmatprep.subr.bf16.mxu0 %v2229
      %2289 = vmatpush1.bf16.msra.mxu0 %v2228
      %2290 = vmatprep.subr.bf16.mxu0 %v2225
      %2291 = vmatpush1.bf16.msra.mxu0 %v2224
      %2292 = vmatprep.subr.bf16.mxu0 %v2221
      %2293 = vmatpush1.bf16.msra.mxu0 %v2220
      %2294 = vmatprep.subr.bf16.mxu0 %v2217
      %2295 = vmatpush1.bf16.msra.mxu0 %v2216
      %2296 = vmatprep.subr.bf16.mxu0 0
      %2297 = vmatpush2.bf16.msra.mxu0 0
      %2298 = vmatprep.subr.bf16.mxu0 0
      %2299 = vmatpush2.bf16.msra.mxu0 0
      %2300 = vmatprep.subr.bf16.mxu0 0
      %2301 = vmatpush2.bf16.msra.mxu0 0
      %2302 = vmatprep.subr.bf16.mxu0 0
      %2303 = vmatpush2.bf16.msra.mxu0 0
      %2304 = vmatprep.subr.bf16.mxu0 0
      %2305 = vmatpush2.bf16.msra.mxu0 0
      %2306 = vmatprep.subr.bf16.mxu0 0
      %2307 = vmatpush2.bf16.msra.mxu0 0
      %2308 = vmatprep.subr.bf16.mxu0 0
      %2309 = vmatpush2.bf16.msra.mxu0 0
      %2310 = vmatprep.subr.bf16.mxu0 0
      %2311 = vmatpush2.bf16.msra.mxu0 0
      %2312 = vmatprep.mubr.bf16.mxu0 0
      %2313 = vmatmul.mubr.bf16.gmra.mxu0 %v2087
      %v2314 = vpop.f32.mrf.mxu0
      %v2315 = vadd.f32 0.0, %v2314
      %v2316 = vpop.f32.mrf.mxu0
      %v2317 = vadd.f32 0.0, %v2316
      %v2318 = vpop.f32.mrf.mxu0
      %v2319 = vadd.f32 0.0, %v2318
      %v2320 = vpop.f32.mrf.mxu0
      %v2321 = vadd.f32 0.0, %v2320
      %2322 = vdwg.mxu0
      %2323 = vmatprep.subr.bf16.mxu0 %v2247
      %2324 = vmatpush1.bf16.msra.mxu0 %v2246
      %2325 = vmatprep.subr.bf16.mxu0 %v2243
      %2326 = vmatpush1.bf16.msra.mxu0 %v2242
      %2327 = vmatprep.subr.bf16.mxu0 %v2239
      %2328 = vmatpush1.bf16.msra.mxu0 %v2238
      %2329 = vmatprep.subr.bf16.mxu0 %v2235
      %2330 = vmatpush1.bf16.msra.mxu0 %v2234
      %2331 = vmatprep.subr.bf16.mxu0 %v2231
      %2332 = vmatpush1.bf16.msra.mxu0 %v2230
      %2333 = vmatprep.subr.bf16.mxu0 %v2227
      %2334 = vmatpush1.bf16.msra.mxu0 %v2226
      %2335 = vmatprep.subr.bf16.mxu0 %v2223
      %2336 = vmatpush1.bf16.msra.mxu0 %v2222
      %2337 = vmatprep.subr.bf16.mxu0 %v2219
      %2338 = vmatpush1.bf16.msra.mxu0 %v2218
      %2339 = vmatprep.subr.bf16.mxu0 0
      %2340 = vmatpush2.bf16.msra.mxu0 0
      %2341 = vmatprep.subr.bf16.mxu0 0
      %2342 = vmatpush2.bf16.msra.mxu0 0
      %2343 = vmatprep.subr.bf16.mxu0 0
      %2344 = vmatpush2.bf16.msra.mxu0 0
      %2345 = vmatprep.subr.bf16.mxu0 0
      %2346 = vmatpush2.bf16.msra.mxu0 0
      %2347 = vmatprep.subr.bf16.mxu0 0
      %2348 = vmatpush2.bf16.msra.mxu0 0
      %2349 = vmatprep.subr.bf16.mxu0 0
      %2350 = vmatpush2.bf16.msra.mxu0 0
      %2351 = vmatprep.subr.bf16.mxu0 0
      %2352 = vmatpush2.bf16.msra.mxu0 0
      %2353 = vmatprep.subr.bf16.mxu0 0
      %2354 = vmatpush2.bf16.msra.mxu0 0
      %2355 = vmatprep.mubr.bf16.mxu0 0
      %2356 = vmatmul.mubr.bf16.gmra.mxu0 %v2087
      %v2357 = vpop.f32.mrf.mxu0
      %v2358 = vadd.f32 0.0, %v2357
      %v2359 = vpop.f32.mrf.mxu0
      %v2360 = vadd.f32 0.0, %v2359
      %v2361 = vpop.f32.mrf.mxu0
      %v2362 = vadd.f32 0.0, %v2361
      %v2363 = vpop.f32.mrf.mxu0
      %v2364 = vadd.f32 0.0, %v2363
      %2365 = vdwg.mxu0
      %v2366 = vadd.f32 %v2077, %v2315
      %v2367 = vadd.f32 %v2078, %v2317
      %v2368 = vadd.f32 %v2079, %v2358
      %v2369 = vadd.f32 %v2080, %v2360
      %v2370 = vadd.f32 %v2081, %v2319
      %v2371 = vadd.f32 %v2082, %v2321
      %v2372 = vadd.f32 %v2083, %v2362
      %v2373 = vadd.f32 %v2084, %v2364
      %v2374 = vxor.u32 %v2366, 2147483648
      %v2375 = vxor.u32 %v2367, 2147483648
      %v2376 = vxor.u32 %v2368, 2147483648
      %v2377 = vxor.u32 %v2370, 2147483648
      %v2378 = vxor.u32 %v2371, 2147483648
      %v2379 = vxor.u32 %v2372, 2147483648
      %v2380 = vmul.f32 %v2374, 1.442695
      %v2381 = vpow.pop %v2380
      %v2382 = vmul.f32 %v2375, 1.442695
      %v2383 = vpow.pop %v2382
      %v2384 = vmul.f32 %v2376, 1.442695
      %v2385 = vpow.pop %v2384
      %v2386 = vmul.f32 %v2377, 1.442695
      %v2387 = vpow.pop %v2386
      %v2388 = vmul.f32 %v2378, 1.442695
      %v2389 = vpow.pop %v2388
      %v2390 = vmul.f32 %v2379, 1.442695
      %v2391 = vpow.pop %v2390
      %v2392 = vadd.f32 %v2381, 1.0
      %v2393 = vadd.f32 %v2383, 1.0
      %v2394 = vadd.f32 %v2385, 1.0
      %v2395 = vadd.f32 %v2387, 1.0
      %v2396 = vadd.f32 %v2389, 1.0
      %v2397 = vadd.f32 %v2391, 1.0
      %v2398 = vrcp.pop %v2392
      %v2399 = vmul.f32 1.0, %v2398
      %v2400 = vrcp.pop %v2393
      %v2401 = vmul.f32 1.0, %v2400
      %v2402 = vrcp.pop %v2394
      %v2403 = vmul.f32 1.0, %v2402
      %v2404 = vrcp.pop %v2395
      %v2405 = vmul.f32 1.0, %v2404
      %v2406 = vrcp.pop %v2396
      %v2407 = vmul.f32 1.0, %v2406
      %v2408 = vrcp.pop %v2397
      %v2409 = vmul.f32 1.0, %v2408
      %v2410 = vtanh.pop %v2369
      %v2411 = vtanh.pop %v2373
      %v2412 = vld [vmem:[#allocation4] sm:$0xff]
      %v2413 = vld [vmem:[#allocation4 + $0x8] sm:$0xff]
      %v2414 = vmul.f32 %v2401, %v2412
      %v2415 = vmul.f32 %v2407, %v2413
      %v2416 = vmul.f32 %v2399, %v2410
      %v2417 = vmul.f32 %v2405, %v2411
      %v2418 = vadd.f32 %v2414, %v2416
      %v2419 = vadd.f32 %v2415, %v2417
      %v2420 = vtanh.pop %v2418
      %v2421 = vtanh.pop %v2419
      %v2422 = vmul.f32 %v2403, %v2420
      %v2423 = vmul.f32 %v2409, %v2421
      %v2424 = vstv %s2073
      %vm2425 = vcmp.gt.s32.totalorder %v1651, %v2424
      %vm2426 = vcmp.gt.s32.totalorder %v1652, %v2424
      %v2427 = vsel %vm2425, 1, 0
      %v2428 = vsel %vm2426, 1, 0
      %2429 = vset.pattern.permute.xlu0 0
      %2430 = vperm.xlu0 %2429, %v2427
      %v2431 = vpop.permute.xlu0 %2430
      %2432 = vset.pattern.permute.xlu0 0
      %2433 = vperm.xlu0 %2432, %v2428
      %v2434 = vpop.permute.xlu0 %2433
      %vm2435 = vcmp.eq.s32.totalorder %v2431, 1
      %vm2436 = vcmp.eq.s32.totalorder %v2434, 1
      %v2437 = vsel %vm2435, %v2422, %v2085
      %v2438 = vsel %vm2436, %v2423, %v2086
      %2439 = vst [vmem:[#allocation3] sm:$0xff] %v2437
      %2440 = vst [vmem:[#allocation3 + $0x8] sm:$0xff] %v2438
      %v2441 = vld [vmem:[#allocation4] sm:$0xff]
      %v2442 = vld [vmem:[#allocation4 + $0x8] sm:$0xff]
      %v2443 = vsel %vm2435, %v2418, %v2441
      %v2444 = vsel %vm2436, %v2419, %v2442
      %2445 = vst [vmem:[#allocation4] sm:$0xff] %v2443
      %2446 = vst [vmem:[#allocation4 + $0x8] sm:$0xff] %v2444
      %v2447 = vsel %vm2435, %v2422, 0.0
      %v2448 = vsel %vm2436, %v2423, 0.0
      %v2449 = vpack.c.bf16 %v2448, %v2447
      %vm2450 = vcmp.eq.s32.totalorder %v1653, %v2424
      %vm2451 = vcmp.eq.s32.totalorder %v1654, %v2424
      %v2452 = vld [vmem:[%s517] sm:$0xf]
      %v2453 = vld [vmem:[%s517 + $0x4] sm:$0xf]
      %v2454 = vsel %vm2450, 1, 0
      %v2455 = vsel %vm2451, 1, 0
      %2456 = vset.pattern.permute.xlu0 0
      %2457 = vperm.xlu0 %2456, %v2454
      %v2458 = vpop.permute.xlu0 %2457
      %2459 = vset.pattern.permute.xlu0 0
      %2460 = vperm.xlu0 %2459, %v2455
      %v2461 = vpop.permute.xlu0 %2460
      %vm2462 = vcmp.eq.s32.totalorder %v2458, 1
      %vm2463 = vcmp.eq.s32.totalorder %v2461, 1
      %vm2464 = vmpackc.low %vm2462, %vm2462
      %vm2465 = vmpackc.low %vm2463, %vm2463
      %v2466 = vsel %vm2464, 65537, 0
      %v2467 = vsel %vm2465, 65537, 0
      %v2468 = vunpack.c.l.b16 %v2466
      %v2469 = vunpack.c.l.b16 %v2467
      %v2470 = vpack.c.b16 %v2469, %v2468
      %vm2471 = vcmp.ne.s16.totalorder %v2470, 0
      %v2474 = vunpack.c.l.b16 %v2452
      %v2475 = vunpack.c.l.b16 %v2453
      %v2476 = vpack.c.b16 %v2475, %v2474
      %v2478 = vsel %vm2471, %v2449, %v2476
      %v2480 = vunpack.c.l.b16 %v2478
      %v2481 = vunpack.c.h.b16 %v2478
      %v2482 = vpack.c.b16 %v2480, %v2480
      %v2483 = vpack.c.b16 %v2481, %v2481
      %2486 = vst [vmem:[%s517] sm:$0xf] %v2482
      %2487 = vst [vmem:[%s517 + $0x4] sm:$0xf] %v2483
      %s2488 = smul.u32 %s1645, 2
      %s2489 = smul.u32 %s23, 5
      %s2490 = sadd.s32 %s2488, %s2489
      %s2491 = sadd.s32 %s1650, %s2490
      %s2492 = smul.u32 %s2490, 8
      %s2493 = smul.addr %s2492, 8
      %s2494 = scalar_lea.vmem [#allocation2], %s2493
      %v2495 = vld [vmem:[%s2494] sm:$0xff]
      %v2496 = vld [vmem:[%s2494 + $0x8] sm:$0xff]
      %v2497 = vld [vmem:[%s2494 + $0x10] sm:$0xff]
      %v2498 = vld [vmem:[%s2494 + $0x18] sm:$0xff]
      %v2499 = vld [vmem:[%s2494 + $0x20] sm:$0xff]
      %v2500 = vld [vmem:[%s2494 + $0x28] sm:$0xff]
      %v2501 = vld [vmem:[%s2494 + $0x30] sm:$0xff]
      %v2502 = vld [vmem:[%s2494 + $0x38] sm:$0xff]
      %v2503 = vld [vmem:[#allocation3] sm:$0xff]
      %v2504 = vld [vmem:[#allocation3 + $0x8] sm:$0xff]
      %v2505 = vpack.c.bf16 %v2504, %v2503
      %v2506 = vld [vmem:[%s508] sm:$0xff]
      %v2507 = vld [vmem:[%s508 + $0x8] sm:$0xff]
      %v2508 = vld [vmem:[%s508 + $0x10] sm:$0xff]
      %v2509 = vld [vmem:[%s508 + $0x18] sm:$0xff]
      %v2510 = vld [vmem:[%s508 + $0x20] sm:$0xff]
      %v2511 = vld [vmem:[%s508 + $0x28] sm:$0xff]
      %v2512 = vld [vmem:[%s508 + $0x30] sm:$0xff]
      %v2513 = vld [vmem:[%s508 + $0x38] sm:$0xff]
      %v2514 = vld [vmem:[%s508 + $0x40] sm:$0xff]
      %v2515 = vld [vmem:[%s508 + $0x48] sm:$0xff]
      %v2516 = vld [vmem:[%s508 + $0x50] sm:$0xff]
      %v2517 = vld [vmem:[%s508 + $0x58] sm:$0xff]
      %v2518 = vld [vmem:[%s508 + $0x60] sm:$0xff]
      %v2519 = vld [vmem:[%s508 + $0x68] sm:$0xff]
      %v2520 = vld [vmem:[%s508 + $0x70] sm:$0xff]
      %v2521 = vld [vmem:[%s508 + $0x78] sm:$0xff]
      %v2522 = vld [vmem:[%s508 + $0x80] sm:$0xff]
      %v2523 = vld [vmem:[%s508 + $0x88] sm:$0xff]
      %v2524 = vld [vmem:[%s508 + $0x90] sm:$0xff]
      %v2525 = vld [vmem:[%s508 + $0x98] sm:$0xff]
      %v2526 = vld [vmem:[%s508 + $0xa0] sm:$0xff]
      %v2527 = vld [vmem:[%s508 + $0xa8] sm:$0xff]
      %v2528 = vld [vmem:[%s508 + $0xb0] sm:$0xff]
      %v2529 = vld [vmem:[%s508 + $0xb8] sm:$0xff]
      %v2530 = vld [vmem:[%s508 + $0xc0] sm:$0xff]
      %v2531 = vld [vmem:[%s508 + $0xc8] sm:$0xff]
      %v2532 = vld [vmem:[%s508 + $0xd0] sm:$0xff]
      %v2533 = vld [vmem:[%s508 + $0xd8] sm:$0xff]
      %v2534 = vld [vmem:[%s508 + $0xe0] sm:$0xff]
      %v2535 = vld [vmem:[%s508 + $0xe8] sm:$0xff]
      %v2536 = vld [vmem:[%s508 + $0xf0] sm:$0xff]
      %v2537 = vld [vmem:[%s508 + $0xf8] sm:$0xff]
      %v2570 = vunpack.c.l.b16 %v2506
      %v2571 = vunpack.c.h.b16 %v2506
      %v2572 = vunpack.c.l.b16 %v2507
      %v2573 = vunpack.c.h.b16 %v2507
      %v2574 = vunpack.c.l.b16 %v2508
      %v2575 = vunpack.c.h.b16 %v2508
      %v2576 = vunpack.c.l.b16 %v2509
      %v2577 = vunpack.c.h.b16 %v2509
      %v2578 = vunpack.c.l.b16 %v2510
      %v2579 = vunpack.c.h.b16 %v2510
      %v2580 = vunpack.c.l.b16 %v2511
      %v2581 = vunpack.c.h.b16 %v2511
      %v2582 = vunpack.c.l.b16 %v2512
      %v2583 = vunpack.c.h.b16 %v2512
      %v2584 = vunpack.c.l.b16 %v2513
      %v2585 = vunpack.c.h.b16 %v2513
      %v2586 = vunpack.c.l.b16 %v2514
      %v2587 = vunpack.c.h.b16 %v2514
      %v2588 = vunpack.c.l.b16 %v2515
      %v2589 = vunpack.c.h.b16 %v2515
      %v2590 = vunpack.c.l.b16 %v2516
      %v2591 = vunpack.c.h.b16 %v2516
      %v2592 = vunpack.c.l.b16 %v2517
      %v2593 = vunpack.c.h.b16 %v2517
      %v2594 = vunpack.c.l.b16 %v2518
      %v2595 = vunpack.c.h.b16 %v2518
      %v2596 = vunpack.c.l.b16 %v2519
      %v2597 = vunpack.c.h.b16 %v2519
      %v2598 = vunpack.c.l.b16 %v2520
      %v2599 = vunpack.c.h.b16 %v2520
      %v2600 = vunpack.c.l.b16 %v2521
      %v2601 = vunpack.c.h.b16 %v2521
      %v2602 = vunpack.c.l.b16 %v2522
      %v2603 = vunpack.c.h.b16 %v2522
      %v2604 = vunpack.c.l.b16 %v2523
      %v2605 = vunpack.c.h.b16 %v2523
      %v2606 = vunpack.c.l.b16 %v2524
      %v2607 = vunpack.c.h.b16 %v2524
      %v2608 = vunpack.c.l.b16 %v2525
      %v2609 = vunpack.c.h.b16 %v2525
      %v2610 = vunpack.c.l.b16 %v2526
      %v2611 = vunpack.c.h.b16 %v2526
      %v2612 = vunpack.c.l.b16 %v2527
      %v2613 = vunpack.c.h.b16 %v2527
      %v2614 = vunpack.c.l.b16 %v2528
      %v2615 = vunpack.c.h.b16 %v2528
      %v2616 = vunpack.c.l.b16 %v2529
      %v2617 = vunpack.c.h.b16 %v2529
      %v2618 = vunpack.c.l.b16 %v2530
      %v2619 = vunpack.c.h.b16 %v2530
      %v2620 = vunpack.c.l.b16 %v2531
      %v2621 = vunpack.c.h.b16 %v2531
      %v2622 = vunpack.c.l.b16 %v2532
      %v2623 = vunpack.c.h.b16 %v2532
      %v2624 = vunpack.c.l.b16 %v2533
      %v2625 = vunpack.c.h.b16 %v2533
      %v2626 = vunpack.c.l.b16 %v2534
      %v2627 = vunpack.c.h.b16 %v2534
      %v2628 = vunpack.c.l.b16 %v2535
      %v2629 = vunpack.c.h.b16 %v2535
      %v2630 = vunpack.c.l.b16 %v2536
      %v2631 = vunpack.c.h.b16 %v2536
      %v2632 = vunpack.c.l.b16 %v2537
      %v2633 = vunpack.c.h.b16 %v2537
      %v2634 = vpack.c.b16 %v2574, %v2570
      %v2635 = vpack.c.b16 %v2575, %v2571
      %v2636 = vpack.c.b16 %v2576, %v2572
      %v2637 = vpack.c.b16 %v2577, %v2573
      %v2638 = vpack.c.b16 %v2582, %v2578
      %v2639 = vpack.c.b16 %v2583, %v2579
      %v2640 = vpack.c.b16 %v2584, %v2580
      %v2641 = vpack.c.b16 %v2585, %v2581
      %v2642 = vpack.c.b16 %v2590, %v2586
      %v2643 = vpack.c.b16 %v2591, %v2587
      %v2644 = vpack.c.b16 %v2592, %v2588
      %v2645 = vpack.c.b16 %v2593, %v2589
      %v2646 = vpack.c.b16 %v2598, %v2594
      %v2647 = vpack.c.b16 %v2599, %v2595
      %v2648 = vpack.c.b16 %v2600, %v2596
      %v2649 = vpack.c.b16 %v2601, %v2597
      %v2650 = vpack.c.b16 %v2606, %v2602
      %v2651 = vpack.c.b16 %v2607, %v2603
      %v2652 = vpack.c.b16 %v2608, %v2604
      %v2653 = vpack.c.b16 %v2609, %v2605
      %v2654 = vpack.c.b16 %v2614, %v2610
      %v2655 = vpack.c.b16 %v2615, %v2611
      %v2656 = vpack.c.b16 %v2616, %v2612
      %v2657 = vpack.c.b16 %v2617, %v2613
      %v2658 = vpack.c.b16 %v2622, %v2618
      %v2659 = vpack.c.b16 %v2623, %v2619
      %v2660 = vpack.c.b16 %v2624, %v2620
      %v2661 = vpack.c.b16 %v2625, %v2621
      %v2662 = vpack.c.b16 %v2630, %v2626
      %v2663 = vpack.c.b16 %v2631, %v2627
      %v2664 = vpack.c.b16 %v2632, %v2628
      %v2665 = vpack.c.b16 %v2633, %v2629
      %2698 = vmatprep.subr.bf16.mxu0 %v2663
      %2699 = vmatpush1.bf16.msra.mxu0 %v2662
      %2700 = vmatprep.subr.bf16.mxu0 %v2659
      %2701 = vmatpush1.bf16.msra.mxu0 %v2658
      %2702 = vmatprep.subr.bf16.mxu0 %v2655
      %2703 = vmatpush1.bf16.msra.mxu0 %v2654
      %2704 = vmatprep.subr.bf16.mxu0 %v2651
      %2705 = vmatpush1.bf16.msra.mxu0 %v2650
      %2706 = vmatprep.subr.bf16.mxu0 %v2647
      %2707 = vmatpush1.bf16.msra.mxu0 %v2646
      %2708 = vmatprep.subr.bf16.mxu0 %v2643
      %2709 = vmatpush1.bf16.msra.mxu0 %v2642
      %2710 = vmatprep.subr.bf16.mxu0 %v2639
      %2711 = vmatpush1.bf16.msra.mxu0 %v2638
      %2712 = vmatprep.subr.bf16.mxu0 %v2635
      %2713 = vmatpush1.bf16.msra.mxu0 %v2634
      %2714 = vmatprep.subr.bf16.mxu0 0
      %2715 = vmatpush2.bf16.msra.mxu0 0
      %2716 = vmatprep.subr.bf16.mxu0 0
      %2717 = vmatpush2.bf16.msra.mxu0 0
      %2718 = vmatprep.subr.bf16.mxu0 0
      %2719 = vmatpush2.bf16.msra.mxu0 0
      %2720 = vmatprep.subr.bf16.mxu0 0
      %2721 = vmatpush2.bf16.msra.mxu0 0
      %2722 = vmatprep.subr.bf16.mxu0 0
      %2723 = vmatpush2.bf16.msra.mxu0 0
      %2724 = vmatprep.subr.bf16.mxu0 0
      %2725 = vmatpush2.bf16.msra.mxu0 0
      %2726 = vmatprep.subr.bf16.mxu0 0
      %2727 = vmatpush2.bf16.msra.mxu0 0
      %2728 = vmatprep.subr.bf16.mxu0 0
      %2729 = vmatpush2.bf16.msra.mxu0 0
      %2730 = vmatprep.mubr.bf16.mxu0 0
      %2731 = vmatmul.mubr.bf16.gmra.mxu0 %v2505
      %v2732 = vpop.f32.mrf.mxu0
      %v2733 = vadd.f32 0.0, %v2732
      %v2734 = vpop.f32.mrf.mxu0
      %v2735 = vadd.f32 0.0, %v2734
      %v2736 = vpop.f32.mrf.mxu0
      %v2737 = vadd.f32 0.0, %v2736
      %v2738 = vpop.f32.mrf.mxu0
      %v2739 = vadd.f32 0.0, %v2738
      %2740 = vdwg.mxu0
      %2741 = vmatprep.subr.bf16.mxu0 %v2665
      %2742 = vmatpush1.bf16.msra.mxu0 %v2664
      %2743 = vmatprep.subr.bf16.mxu0 %v2661
      %2744 = vmatpush1.bf16.msra.mxu0 %v2660
      %2745 = vmatprep.subr.bf16.mxu0 %v2657
      %2746 = vmatpush1.bf16.msra.mxu0 %v2656
      %2747 = vmatprep.subr.bf16.mxu0 %v2653
      %2748 = vmatpush1.bf16.msra.mxu0 %v2652
      %2749 = vmatprep.subr.bf16.mxu0 %v2649
      %2750 = vmatpush1.bf16.msra.mxu0 %v2648
      %2751 = vmatprep.subr.bf16.mxu0 %v2645
      %2752 = vmatpush1.bf16.msra.mxu0 %v2644
      %2753 = vmatprep.subr.bf16.mxu0 %v2641
      %2754 = vmatpush1.bf16.msra.mxu0 %v2640
      %2755 = vmatprep.subr.bf16.mxu0 %v2637
      %2756 = vmatpush1.bf16.msra.mxu0 %v2636
      %2757 = vmatprep.subr.bf16.mxu0 0
      %2758 = vmatpush2.bf16.msra.mxu0 0
      %2759 = vmatprep.subr.bf16.mxu0 0
      %2760 = vmatpush2.bf16.msra.mxu0 0
      %2761 = vmatprep.subr.bf16.mxu0 0
      %2762 = vmatpush2.bf16.msra.mxu0 0
      %2763 = vmatprep.subr.bf16.mxu0 0
      %2764 = vmatpush2.bf16.msra.mxu0 0
      %2765 = vmatprep.subr.bf16.mxu0 0
      %2766 = vmatpush2.bf16.msra.mxu0 0
      %2767 = vmatprep.subr.bf16.mxu0 0
      %2768 = vmatpush2.bf16.msra.mxu0 0
      %2769 = vmatprep.subr.bf16.mxu0 0
      %2770 = vmatpush2.bf16.msra.mxu0 0
      %2771 = vmatprep.subr.bf16.mxu0 0
      %2772 = vmatpush2.bf16.msra.mxu0 0
      %2773 = vmatprep.mubr.bf16.mxu0 0
      %2774 = vmatmul.mubr.bf16.gmra.mxu0 %v2505
      %v2775 = vpop.f32.mrf.mxu0
      %v2776 = vadd.f32 0.0, %v2775
      %v2777 = vpop.f32.mrf.mxu0
      %v2778 = vadd.f32 0.0, %v2777
      %v2779 = vpop.f32.mrf.mxu0
      %v2780 = vadd.f32 0.0, %v2779
      %v2781 = vpop.f32.mrf.mxu0
      %v2782 = vadd.f32 0.0, %v2781
      %2783 = vdwg.mxu0
      %v2784 = vadd.f32 %v2495, %v2733
      %v2785 = vadd.f32 %v2496, %v2735
      %v2786 = vadd.f32 %v2497, %v2776
      %v2787 = vadd.f32 %v2498, %v2778
      %v2788 = vadd.f32 %v2499, %v2737
      %v2789 = vadd.f32 %v2500, %v2739
      %v2790 = vadd.f32 %v2501, %v2780
      %v2791 = vadd.f32 %v2502, %v2782
      %v2792 = vxor.u32 %v2784, 2147483648
      %v2793 = vxor.u32 %v2785, 2147483648
      %v2794 = vxor.u32 %v2786, 2147483648
      %v2795 = vxor.u32 %v2788, 2147483648
      %v2796 = vxor.u32 %v2789, 2147483648
      %v2797 = vxor.u32 %v2790, 2147483648
      %v2798 = vmul.f32 %v2792, 1.442695
      %v2799 = vpow.pop %v2798
      %v2800 = vmul.f32 %v2793, 1.442695
      %v2801 = vpow.pop %v2800
      %v2802 = vmul.f32 %v2794, 1.442695
      %v2803 = vpow.pop %v2802
      %v2804 = vmul.f32 %v2795, 1.442695
      %v2805 = vpow.pop %v2804
      %v2806 = vmul.f32 %v2796, 1.442695
      %v2807 = vpow.pop %v2806
      %v2808 = vmul.f32 %v2797, 1.442695
      %v2809 = vpow.pop %v2808
      %v2810 = vadd.f32 %v2799, 1.0
      %v2811 = vadd.f32 %v2801, 1.0
      %v2812 = vadd.f32 %v2803, 1.0
      %v2813 = vadd.f32 %v2805, 1.0
      %v2814 = vadd.f32 %v2807, 1.0
      %v2815 = vadd.f32 %v2809, 1.0
      %v2816 = vrcp.pop %v2810
      %v2817 = vmul.f32 1.0, %v2816
      %v2818 = vrcp.pop %v2811
      %v2819 = vmul.f32 1.0, %v2818
      %v2820 = vrcp.pop %v2812
      %v2821 = vmul.f32 1.0, %v2820
      %v2822 = vrcp.pop %v2813
      %v2823 = vmul.f32 1.0, %v2822
      %v2824 = vrcp.pop %v2814
      %v2825 = vmul.f32 1.0, %v2824
      %v2826 = vrcp.pop %v2815
      %v2827 = vmul.f32 1.0, %v2826
      %v2828 = vtanh.pop %v2787
      %v2829 = vtanh.pop %v2791
      %v2830 = vld [vmem:[#allocation4] sm:$0xff]
      %v2831 = vld [vmem:[#allocation4 + $0x8] sm:$0xff]
      %v2832 = vmul.f32 %v2819, %v2830
      %v2833 = vmul.f32 %v2825, %v2831
      %v2834 = vmul.f32 %v2817, %v2828
      %v2835 = vmul.f32 %v2823, %v2829
      %v2836 = vadd.f32 %v2832, %v2834
      %v2837 = vadd.f32 %v2833, %v2835
      %v2838 = vtanh.pop %v2836
      %v2839 = vtanh.pop %v2837
      %v2840 = vmul.f32 %v2821, %v2838
      %v2841 = vmul.f32 %v2827, %v2839
      %v2842 = vstv %s2491
      %vm2843 = vcmp.gt.s32.totalorder %v1651, %v2842
      %vm2844 = vcmp.gt.s32.totalorder %v1652, %v2842
      %v2845 = vsel %vm2843, 1, 0
      %v2846 = vsel %vm2844, 1, 0
      %2847 = vset.pattern.permute.xlu0 0
      %2848 = vperm.xlu0 %2847, %v2845
      %v2849 = vpop.permute.xlu0 %2848
      %2850 = vset.pattern.permute.xlu0 0
      %2851 = vperm.xlu0 %2850, %v2846
      %v2852 = vpop.permute.xlu0 %2851
      %vm2853 = vcmp.eq.s32.totalorder %v2849, 1
      %vm2854 = vcmp.eq.s32.totalorder %v2852, 1
      %v2855 = vsel %vm2853, %v2840, %v2503
      %v2856 = vsel %vm2854, %v2841, %v2504
      %2857 = vst [vmem:[#allocation3] sm:$0xff] %v2855
      %2858 = vst [vmem:[#allocation3 + $0x8] sm:$0xff] %v2856
      %v2859 = vld [vmem:[#allocation4] sm:$0xff]
      %v2860 = vld [vmem:[#allocation4 + $0x8] sm:$0xff]
      %v2861 = vsel %vm2853, %v2836, %v2859
      %v2862 = vsel %vm2854, %v2837, %v2860
      %2863 = vst [vmem:[#allocation4] sm:$0xff] %v2861
      %2864 = vst [vmem:[#allocation4 + $0x8] sm:$0xff] %v2862
      %v2865 = vsel %vm2853, %v2840, 0.0
      %v2866 = vsel %vm2854, %v2841, 0.0
      %v2867 = vpack.c.bf16 %v2866, %v2865
      %vm2868 = vcmp.eq.s32.totalorder %v1653, %v2842
      %vm2869 = vcmp.eq.s32.totalorder %v1654, %v2842
      %v2870 = vld [vmem:[%s517] sm:$0xf]
      %v2871 = vld [vmem:[%s517 + $0x4] sm:$0xf]
      %v2872 = vsel %vm2868, 1, 0
      %v2873 = vsel %vm2869, 1, 0
      %2874 = vset.pattern.permute.xlu0 0
      %2875 = vperm.xlu0 %2874, %v2872
      %v2876 = vpop.permute.xlu0 %2875
      %2877 = vset.pattern.permute.xlu0 0
      %2878 = vperm.xlu0 %2877, %v2873
      %v2879 = vpop.permute.xlu0 %2878
      %vm2880 = vcmp.eq.s32.totalorder %v2876, 1
      %vm2881 = vcmp.eq.s32.totalorder %v2879, 1
      %vm2882 = vmpackc.low %vm2880, %vm2880
      %vm2883 = vmpackc.low %vm2881, %vm2881
      %v2884 = vsel %vm2882, 65537, 0
      %v2885 = vsel %vm2883, 65537, 0
      %v2886 = vunpack.c.l.b16 %v2884
      %v2887 = vunpack.c.l.b16 %v2885
      %v2888 = vpack.c.b16 %v2887, %v2886
      %vm2889 = vcmp.ne.s16.totalorder %v2888, 0
      %v2892 = vunpack.c.l.b16 %v2870
      %v2893 = vunpack.c.l.b16 %v2871
      %v2894 = vpack.c.b16 %v2893, %v2892
      %v2896 = vsel %vm2889, %v2867, %v2894
      %v2898 = vunpack.c.l.b16 %v2896
      %v2899 = vunpack.c.h.b16 %v2896
      %v2900 = vpack.c.b16 %v2898, %v2898
      %v2901 = vpack.c.b16 %v2899, %v2899
      %2904 = vst [vmem:[%s517] sm:$0xf] %v2900
      %2905 = vst [vmem:[%s517 + $0x4] sm:$0xf] %v2901
      %s2906 = smul.u32 %s1645, 3
      %s2907 = smul.u32 %s23, 4
      %s2908 = sadd.s32 %s2906, %s2907
      %s2909 = sadd.s32 %s1650, %s2908
      %s2910 = smul.u32 %s2908, 8
      %s2911 = smul.addr %s2910, 8
      %s2912 = scalar_lea.vmem [#allocation2], %s2911
      %v2913 = vld [vmem:[%s2912] sm:$0xff]
      %v2914 = vld [vmem:[%s2912 + $0x8] sm:$0xff]
      %v2915 = vld [vmem:[%s2912 + $0x10] sm:$0xff]
      %v2916 = vld [vmem:[%s2912 + $0x18] sm:$0xff]
      %v2917 = vld [vmem:[%s2912 + $0x20] sm:$0xff]
      %v2918 = vld [vmem:[%s2912 + $0x28] sm:$0xff]
      %v2919 = vld [vmem:[%s2912 + $0x30] sm:$0xff]
      %v2920 = vld [vmem:[%s2912 + $0x38] sm:$0xff]
      %v2921 = vld [vmem:[#allocation3] sm:$0xff]
      %v2922 = vld [vmem:[#allocation3 + $0x8] sm:$0xff]
      %v2923 = vpack.c.bf16 %v2922, %v2921
      %v2924 = vld [vmem:[%s508] sm:$0xff]
      %v2925 = vld [vmem:[%s508 + $0x8] sm:$0xff]
      %v2926 = vld [vmem:[%s508 + $0x10] sm:$0xff]
      %v2927 = vld [vmem:[%s508 + $0x18] sm:$0xff]
      %v2928 = vld [vmem:[%s508 + $0x20] sm:$0xff]
      %v2929 = vld [vmem:[%s508 + $0x28] sm:$0xff]
      %v2930 = vld [vmem:[%s508 + $0x30] sm:$0xff]
      %v2931 = vld [vmem:[%s508 + $0x38] sm:$0xff]
      %v2932 = vld [vmem:[%s508 + $0x40] sm:$0xff]
      %v2933 = vld [vmem:[%s508 + $0x48] sm:$0xff]
      %v2934 = vld [vmem:[%s508 + $0x50] sm:$0xff]
      %v2935 = vld [vmem:[%s508 + $0x58] sm:$0xff]
      %v2936 = vld [vmem:[%s508 + $0x60] sm:$0xff]
      %v2937 = vld [vmem:[%s508 + $0x68] sm:$0xff]
      %v2938 = vld [vmem:[%s508 + $0x70] sm:$0xff]
      %v2939 = vld [vmem:[%s508 + $0x78] sm:$0xff]
      %v2940 = vld [vmem:[%s508 + $0x80] sm:$0xff]
      %v2941 = vld [vmem:[%s508 + $0x88] sm:$0xff]
      %v2942 = vld [vmem:[%s508 + $0x90] sm:$0xff]
      %v2943 = vld [vmem:[%s508 + $0x98] sm:$0xff]
      %v2944 = vld [vmem:[%s508 + $0xa0] sm:$0xff]
      %v2945 = vld [vmem:[%s508 + $0xa8] sm:$0xff]
      %v2946 = vld [vmem:[%s508 + $0xb0] sm:$0xff]
      %v2947 = vld [vmem:[%s508 + $0xb8] sm:$0xff]
      %v2948 = vld [vmem:[%s508 + $0xc0] sm:$0xff]
      %v2949 = vld [vmem:[%s508 + $0xc8] sm:$0xff]
      %v2950 = vld [vmem:[%s508 + $0xd0] sm:$0xff]
      %v2951 = vld [vmem:[%s508 + $0xd8] sm:$0xff]
      %v2952 = vld [vmem:[%s508 + $0xe0] sm:$0xff]
      %v2953 = vld [vmem:[%s508 + $0xe8] sm:$0xff]
      %v2954 = vld [vmem:[%s508 + $0xf0] sm:$0xff]
      %v2955 = vld [vmem:[%s508 + $0xf8] sm:$0xff]
      %v2988 = vunpack.c.l.b16 %v2924
      %v2989 = vunpack.c.h.b16 %v2924
      %v2990 = vunpack.c.l.b16 %v2925
      %v2991 = vunpack.c.h.b16 %v2925
      %v2992 = vunpack.c.l.b16 %v2926
      %v2993 = vunpack.c.h.b16 %v2926
      %v2994 = vunpack.c.l.b16 %v2927
      %v2995 = vunpack.c.h.b16 %v2927
      %v2996 = vunpack.c.l.b16 %v2928
      %v2997 = vunpack.c.h.b16 %v2928
      %v2998 = vunpack.c.l.b16 %v2929
      %v2999 = vunpack.c.h.b16 %v2929
      %v3000 = vunpack.c.l.b16 %v2930
      %v3001 = vunpack.c.h.b16 %v2930
      %v3002 = vunpack.c.l.b16 %v2931
      %v3003 = vunpack.c.h.b16 %v2931
      %v3004 = vunpack.c.l.b16 %v2932
      %v3005 = vunpack.c.h.b16 %v2932
      %v3006 = vunpack.c.l.b16 %v2933
      %v3007 = vunpack.c.h.b16 %v2933
      %v3008 = vunpack.c.l.b16 %v2934
      %v3009 = vunpack.c.h.b16 %v2934
      %v3010 = vunpack.c.l.b16 %v2935
      %v3011 = vunpack.c.h.b16 %v2935
      %v3012 = vunpack.c.l.b16 %v2936
      %v3013 = vunpack.c.h.b16 %v2936
      %v3014 = vunpack.c.l.b16 %v2937
      %v3015 = vunpack.c.h.b16 %v2937
      %v3016 = vunpack.c.l.b16 %v2938
      %v3017 = vunpack.c.h.b16 %v2938
      %v3018 = vunpack.c.l.b16 %v2939
      %v3019 = vunpack.c.h.b16 %v2939
      %v3020 = vunpack.c.l.b16 %v2940
      %v3021 = vunpack.c.h.b16 %v2940
      %v3022 = vunpack.c.l.b16 %v2941
      %v3023 = vunpack.c.h.b16 %v2941
      %v3024 = vunpack.c.l.b16 %v2942
      %v3025 = vunpack.c.h.b16 %v2942
      %v3026 = vunpack.c.l.b16 %v2943
      %v3027 = vunpack.c.h.b16 %v2943
      %v3028 = vunpack.c.l.b16 %v2944
      %v3029 = vunpack.c.h.b16 %v2944
      %v3030 = vunpack.c.l.b16 %v2945
      %v3031 = vunpack.c.h.b16 %v2945
      %v3032 = vunpack.c.l.b16 %v2946
      %v3033 = vunpack.c.h.b16 %v2946
      %v3034 = vunpack.c.l.b16 %v2947
      %v3035 = vunpack.c.h.b16 %v2947
      %v3036 = vunpack.c.l.b16 %v2948
      %v3037 = vunpack.c.h.b16 %v2948
      %v3038 = vunpack.c.l.b16 %v2949
      %v3039 = vunpack.c.h.b16 %v2949
      %v3040 = vunpack.c.l.b16 %v2950
      %v3041 = vunpack.c.h.b16 %v2950
      %v3042 = vunpack.c.l.b16 %v2951
      %v3043 = vunpack.c.h.b16 %v2951
      %v3044 = vunpack.c.l.b16 %v2952
      %v3045 = vunpack.c.h.b16 %v2952
      %v3046 = vunpack.c.l.b16 %v2953
      %v3047 = vunpack.c.h.b16 %v2953
      %v3048 = vunpack.c.l.b16 %v2954
      %v3049 = vunpack.c.h.b16 %v2954
      %v3050 = vunpack.c.l.b16 %v2955
      %v3051 = vunpack.c.h.b16 %v2955
      %v3052 = vpack.c.b16 %v2992, %v2988
      %v3053 = vpack.c.b16 %v2993, %v2989
      %v3054 = vpack.c.b16 %v2994, %v2990
      %v3055 = vpack.c.b16 %v2995, %v2991
      %v3056 = vpack.c.b16 %v3000, %v2996
      %v3057 = vpack.c.b16 %v3001, %v2997
      %v3058 = vpack.c.b16 %v3002, %v2998
      %v3059 = vpack.c.b16 %v3003, %v2999
      %v3060 = vpack.c.b16 %v3008, %v3004
      %v3061 = vpack.c.b16 %v3009, %v3005
      %v3062 = vpack.c.b16 %v3010, %v3006
      %v3063 = vpack.c.b16 %v3011, %v3007
      %v3064 = vpack.c.b16 %v3016, %v3012
      %v3065 = vpack.c.b16 %v3017, %v3013
      %v3066 = vpack.c.b16 %v3018, %v3014
      %v3067 = vpack.c.b16 %v3019, %v3015
      %v3068 = vpack.c.b16 %v3024, %v3020
      %v3069 = vpack.c.b16 %v3025, %v3021
      %v3070 = vpack.c.b16 %v3026, %v3022
      %v3071 = vpack.c.b16 %v3027, %v3023
      %v3072 = vpack.c.b16 %v3032, %v3028
      %v3073 = vpack.c.b16 %v3033, %v3029
      %v3074 = vpack.c.b16 %v3034, %v3030
      %v3075 = vpack.c.b16 %v3035, %v3031
      %v3076 = vpack.c.b16 %v3040, %v3036
      %v3077 = vpack.c.b16 %v3041, %v3037
      %v3078 = vpack.c.b16 %v3042, %v3038
      %v3079 = vpack.c.b16 %v3043, %v3039
      %v3080 = vpack.c.b16 %v3048, %v3044
      %v3081 = vpack.c.b16 %v3049, %v3045
      %v3082 = vpack.c.b16 %v3050, %v3046
      %v3083 = vpack.c.b16 %v3051, %v3047
      %3116 = vmatprep.subr.bf16.mxu0 %v3081
      %3117 = vmatpush1.bf16.msra.mxu0 %v3080
      %3118 = vmatprep.subr.bf16.mxu0 %v3077
      %3119 = vmatpush1.bf16.msra.mxu0 %v3076
      %3120 = vmatprep.subr.bf16.mxu0 %v3073
      %3121 = vmatpush1.bf16.msra.mxu0 %v3072
      %3122 = vmatprep.subr.bf16.mxu0 %v3069
      %3123 = vmatpush1.bf16.msra.mxu0 %v3068
      %3124 = vmatprep.subr.bf16.mxu0 %v3065
      %3125 = vmatpush1.bf16.msra.mxu0 %v3064
      %3126 = vmatprep.subr.bf16.mxu0 %v3061
      %3127 = vmatpush1.bf16.msra.mxu0 %v3060
      %3128 = vmatprep.subr.bf16.mxu0 %v3057
      %3129 = vmatpush1.bf16.msra.mxu0 %v3056
      %3130 = vmatprep.subr.bf16.mxu0 %v3053
      %3131 = vmatpush1.bf16.msra.mxu0 %v3052
      %3132 = vmatprep.subr.bf16.mxu0 0
      %3133 = vmatpush2.bf16.msra.mxu0 0
      %3134 = vmatprep.subr.bf16.mxu0 0
      %3135 = vmatpush2.bf16.msra.mxu0 0
      %3136 = vmatprep.subr.bf16.mxu0 0
      %3137 = vmatpush2.bf16.msra.mxu0 0
      %3138 = vmatprep.subr.bf16.mxu0 0
      %3139 = vmatpush2.bf16.msra.mxu0 0
      %3140 = vmatprep.subr.bf16.mxu0 0
      %3141 = vmatpush2.bf16.msra.mxu0 0
      %3142 = vmatprep.subr.bf16.mxu0 0
      %3143 = vmatpush2.bf16.msra.mxu0 0
      %3144 = vmatprep.subr.bf16.mxu0 0
      %3145 = vmatpush2.bf16.msra.mxu0 0
      %3146 = vmatprep.subr.bf16.mxu0 0
      %3147 = vmatpush2.bf16.msra.mxu0 0
      %3148 = vmatprep.mubr.bf16.mxu0 0
      %3149 = vmatmul.mubr.bf16.gmra.mxu0 %v2923
      %v3150 = vpop.f32.mrf.mxu0
      %v3151 = vadd.f32 0.0, %v3150
      %v3152 = vpop.f32.mrf.mxu0
      %v3153 = vadd.f32 0.0, %v3152
      %v3154 = vpop.f32.mrf.mxu0
      %v3155 = vadd.f32 0.0, %v3154
      %v3156 = vpop.f32.mrf.mxu0
      %v3157 = vadd.f32 0.0, %v3156
      %3158 = vdwg.mxu0
      %3159 = vmatprep.subr.bf16.mxu0 %v3083
      %3160 = vmatpush1.bf16.msra.mxu0 %v3082
      %3161 = vmatprep.subr.bf16.mxu0 %v3079
      %3162 = vmatpush1.bf16.msra.mxu0 %v3078
      %3163 = vmatprep.subr.bf16.mxu0 %v3075
      %3164 = vmatpush1.bf16.msra.mxu0 %v3074
      %3165 = vmatprep.subr.bf16.mxu0 %v3071
      %3166 = vmatpush1.bf16.msra.mxu0 %v3070
      %3167 = vmatprep.subr.bf16.mxu0 %v3067
      %3168 = vmatpush1.bf16.msra.mxu0 %v3066
      %3169 = vmatprep.subr.bf16.mxu0 %v3063
      %3170 = vmatpush1.bf16.msra.mxu0 %v3062
      %3171 = vmatprep.subr.bf16.mxu0 %v3059
      %3172 = vmatpush1.bf16.msra.mxu0 %v3058
      %3173 = vmatprep.subr.bf16.mxu0 %v3055
      %3174 = vmatpush1.bf16.msra.mxu0 %v3054
      %3175 = vmatprep.subr.bf16.mxu0 0
      %3176 = vmatpush2.bf16.msra.mxu0 0
      %3177 = vmatprep.subr.bf16.mxu0 0
      %3178 = vmatpush2.bf16.msra.mxu0 0
      %3179 = vmatprep.subr.bf16.mxu0 0
      %3180 = vmatpush2.bf16.msra.mxu0 0
      %3181 = vmatprep.subr.bf16.mxu0 0
      %3182 = vmatpush2.bf16.msra.mxu0 0
      %3183 = vmatprep.subr.bf16.mxu0 0
      %3184 = vmatpush2.bf16.msra.mxu0 0
      %3185 = vmatprep.subr.bf16.mxu0 0
      %3186 = vmatpush2.bf16.msra.mxu0 0
      %3187 = vmatprep.subr.bf16.mxu0 0
      %3188 = vmatpush2.bf16.msra.mxu0 0
      %3189 = vmatprep.subr.bf16.mxu0 0
      %3190 = vmatpush2.bf16.msra.mxu0 0
      %3191 = vmatprep.mubr.bf16.mxu0 0
      %3192 = vmatmul.mubr.bf16.gmra.mxu0 %v2923
      %v3193 = vpop.f32.mrf.mxu0
      %v3194 = vadd.f32 0.0, %v3193
      %v3195 = vpop.f32.mrf.mxu0
      %v3196 = vadd.f32 0.0, %v3195
      %v3197 = vpop.f32.mrf.mxu0
      %v3198 = vadd.f32 0.0, %v3197
      %v3199 = vpop.f32.mrf.mxu0
      %v3200 = vadd.f32 0.0, %v3199
      %3201 = vdwg.mxu0
      %v3202 = vadd.f32 %v2913, %v3151
      %v3203 = vadd.f32 %v2914, %v3153
      %v3204 = vadd.f32 %v2915, %v3194
      %v3205 = vadd.f32 %v2916, %v3196
      %v3206 = vadd.f32 %v2917, %v3155
      %v3207 = vadd.f32 %v2918, %v3157
      %v3208 = vadd.f32 %v2919, %v3198
      %v3209 = vadd.f32 %v2920, %v3200
      %v3210 = vxor.u32 %v3202, 2147483648
      %v3211 = vxor.u32 %v3203, 2147483648
      %v3212 = vxor.u32 %v3204, 2147483648
      %v3213 = vxor.u32 %v3206, 2147483648
      %v3214 = vxor.u32 %v3207, 2147483648
      %v3215 = vxor.u32 %v3208, 2147483648
      %v3216 = vmul.f32 %v3210, 1.442695
      %v3217 = vpow.pop %v3216
      %v3218 = vmul.f32 %v3211, 1.442695
      %v3219 = vpow.pop %v3218
      %v3220 = vmul.f32 %v3212, 1.442695
      %v3221 = vpow.pop %v3220
      %v3222 = vmul.f32 %v3213, 1.442695
      %v3223 = vpow.pop %v3222
      %v3224 = vmul.f32 %v3214, 1.442695
      %v3225 = vpow.pop %v3224
      %v3226 = vmul.f32 %v3215, 1.442695
      %v3227 = vpow.pop %v3226
      %v3228 = vadd.f32 %v3217, 1.0
      %v3229 = vadd.f32 %v3219, 1.0
      %v3230 = vadd.f32 %v3221, 1.0
      %v3231 = vadd.f32 %v3223, 1.0
      %v3232 = vadd.f32 %v3225, 1.0
      %v3233 = vadd.f32 %v3227, 1.0
      %v3234 = vrcp.pop %v3228
      %v3235 = vmul.f32 1.0, %v3234
      %v3236 = vrcp.pop %v3229
      %v3237 = vmul.f32 1.0, %v3236
      %v3238 = vrcp.pop %v3230
      %v3239 = vmul.f32 1.0, %v3238
      %v3240 = vrcp.pop %v3231
      %v3241 = vmul.f32 1.0, %v3240
      %v3242 = vrcp.pop %v3232
      %v3243 = vmul.f32 1.0, %v3242
      %v3244 = vrcp.pop %v3233
      %v3245 = vmul.f32 1.0, %v3244
      %v3246 = vtanh.pop %v3205
      %v3247 = vtanh.pop %v3209
      %v3248 = vld [vmem:[#allocation4] sm:$0xff]
      %v3249 = vld [vmem:[#allocation4 + $0x8] sm:$0xff]
      %v3250 = vmul.f32 %v3237, %v3248
      %v3251 = vmul.f32 %v3243, %v3249
      %v3252 = vmul.f32 %v3235, %v3246
      %v3253 = vmul.f32 %v3241, %v3247
      %v3254 = vadd.f32 %v3250, %v3252
      %v3255 = vadd.f32 %v3251, %v3253
      %v3256 = vtanh.pop %v3254
      %v3257 = vtanh.pop %v3255
      %v3258 = vmul.f32 %v3239, %v3256
      %v3259 = vmul.f32 %v3245, %v3257
      %v3260 = vstv %s2909
      %vm3261 = vcmp.gt.s32.totalorder %v1651, %v3260
      %vm3262 = vcmp.gt.s32.totalorder %v1652, %v3260
      %v3263 = vsel %vm3261, 1, 0
      %v3264 = vsel %vm3262, 1, 0
      %3265 = vset.pattern.permute.xlu0 0
      %3266 = vperm.xlu0 %3265, %v3263
      %v3267 = vpop.permute.xlu0 %3266
      %3268 = vset.pattern.permute.xlu0 0
      %3269 = vperm.xlu0 %3268, %v3264
      %v3270 = vpop.permute.xlu0 %3269
      %vm3271 = vcmp.eq.s32.totalorder %v3267, 1
      %vm3272 = vcmp.eq.s32.totalorder %v3270, 1
      %v3273 = vsel %vm3271, %v3258, %v2921
      %v3274 = vsel %vm3272, %v3259, %v2922
      %3275 = vst [vmem:[#allocation3] sm:$0xff] %v3273
      %3276 = vst [vmem:[#allocation3 + $0x8] sm:$0xff] %v3274
      %v3277 = vld [vmem:[#allocation4] sm:$0xff]
      %v3278 = vld [vmem:[#allocation4 + $0x8] sm:$0xff]
      %v3279 = vsel %vm3271, %v3254, %v3277
      %v3280 = vsel %vm3272, %v3255, %v3278
      %3281 = vst [vmem:[#allocation4] sm:$0xff] %v3279
      %3282 = vst [vmem:[#allocation4 + $0x8] sm:$0xff] %v3280
      %v3283 = vsel %vm3271, %v3258, 0.0
      %v3284 = vsel %vm3272, %v3259, 0.0
      %v3285 = vpack.c.bf16 %v3284, %v3283
      %vm3286 = vcmp.eq.s32.totalorder %v1653, %v3260
      %vm3287 = vcmp.eq.s32.totalorder %v1654, %v3260
      %v3288 = vld [vmem:[%s517] sm:$0xf]
      %v3289 = vld [vmem:[%s517 + $0x4] sm:$0xf]
      %v3290 = vsel %vm3286, 1, 0
      %v3291 = vsel %vm3287, 1, 0
      %3292 = vset.pattern.permute.xlu0 0
      %3293 = vperm.xlu0 %3292, %v3290
      %v3294 = vpop.permute.xlu0 %3293
      %3295 = vset.pattern.permute.xlu0 0
      %3296 = vperm.xlu0 %3295, %v3291
      %v3297 = vpop.permute.xlu0 %3296
      %vm3298 = vcmp.eq.s32.totalorder %v3294, 1
      %vm3299 = vcmp.eq.s32.totalorder %v3297, 1
      %vm3300 = vmpackc.low %vm3298, %vm3298
      %vm3301 = vmpackc.low %vm3299, %vm3299
      %v3302 = vsel %vm3300, 65537, 0
      %v3303 = vsel %vm3301, 65537, 0
      %v3304 = vunpack.c.l.b16 %v3302
      %v3305 = vunpack.c.l.b16 %v3303
      %v3306 = vpack.c.b16 %v3305, %v3304
      %vm3307 = vcmp.ne.s16.totalorder %v3306, 0
      %v3310 = vunpack.c.l.b16 %v3288
      %v3311 = vunpack.c.l.b16 %v3289
      %v3312 = vpack.c.b16 %v3311, %v3310
      %v3314 = vsel %vm3307, %v3285, %v3312
      %v3316 = vunpack.c.l.b16 %v3314
      %v3317 = vunpack.c.h.b16 %v3314
      %v3318 = vpack.c.b16 %v3316, %v3316
      %v3319 = vpack.c.b16 %v3317, %v3317
      %3322 = vst [vmem:[%s517] sm:$0xf] %v3318
      %3323 = vst [vmem:[%s517 + $0x4] sm:$0xf] %v3319
      %s3324 = smul.u32 %s1645, 4
      %s3325 = smul.u32 %s23, 3
      %s3326 = sadd.s32 %s3324, %s3325
      %s3327 = sadd.s32 %s1650, %s3326
      %s3328 = smul.u32 %s3326, 8
      %s3329 = smul.addr %s3328, 8
      %s3330 = scalar_lea.vmem [#allocation2], %s3329
      %v3331 = vld [vmem:[%s3330] sm:$0xff]
      %v3332 = vld [vmem:[%s3330 + $0x8] sm:$0xff]
      %v3333 = vld [vmem:[%s3330 + $0x10] sm:$0xff]
      %v3334 = vld [vmem:[%s3330 + $0x18] sm:$0xff]
      %v3335 = vld [vmem:[%s3330 + $0x20] sm:$0xff]
      %v3336 = vld [vmem:[%s3330 + $0x28] sm:$0xff]
      %v3337 = vld [vmem:[%s3330 + $0x30] sm:$0xff]
      %v3338 = vld [vmem:[%s3330 + $0x38] sm:$0xff]
      %v3339 = vld [vmem:[#allocation3] sm:$0xff]
      %v3340 = vld [vmem:[#allocation3 + $0x8] sm:$0xff]
      %v3341 = vpack.c.bf16 %v3340, %v3339
      %v3342 = vld [vmem:[%s508] sm:$0xff]
      %v3343 = vld [vmem:[%s508 + $0x8] sm:$0xff]
      %v3344 = vld [vmem:[%s508 + $0x10] sm:$0xff]
      %v3345 = vld [vmem:[%s508 + $0x18] sm:$0xff]
      %v3346 = vld [vmem:[%s508 + $0x20] sm:$0xff]
      %v3347 = vld [vmem:[%s508 + $0x28] sm:$0xff]
      %v3348 = vld [vmem:[%s508 + $0x30] sm:$0xff]
      %v3349 = vld [vmem:[%s508 + $0x38] sm:$0xff]
      %v3350 = vld [vmem:[%s508 + $0x40] sm:$0xff]
      %v3351 = vld [vmem:[%s508 + $0x48] sm:$0xff]
      %v3352 = vld [vmem:[%s508 + $0x50] sm:$0xff]
      %v3353 = vld [vmem:[%s508 + $0x58] sm:$0xff]
      %v3354 = vld [vmem:[%s508 + $0x60] sm:$0xff]
      %v3355 = vld [vmem:[%s508 + $0x68] sm:$0xff]
      %v3356 = vld [vmem:[%s508 + $0x70] sm:$0xff]
      %v3357 = vld [vmem:[%s508 + $0x78] sm:$0xff]
      %v3358 = vld [vmem:[%s508 + $0x80] sm:$0xff]
      %v3359 = vld [vmem:[%s508 + $0x88] sm:$0xff]
      %v3360 = vld [vmem:[%s508 + $0x90] sm:$0xff]
      %v3361 = vld [vmem:[%s508 + $0x98] sm:$0xff]
      %v3362 = vld [vmem:[%s508 + $0xa0] sm:$0xff]
      %v3363 = vld [vmem:[%s508 + $0xa8] sm:$0xff]
      %v3364 = vld [vmem:[%s508 + $0xb0] sm:$0xff]
      %v3365 = vld [vmem:[%s508 + $0xb8] sm:$0xff]
      %v3366 = vld [vmem:[%s508 + $0xc0] sm:$0xff]
      %v3367 = vld [vmem:[%s508 + $0xc8] sm:$0xff]
      %v3368 = vld [vmem:[%s508 + $0xd0] sm:$0xff]
      %v3369 = vld [vmem:[%s508 + $0xd8] sm:$0xff]
      %v3370 = vld [vmem:[%s508 + $0xe0] sm:$0xff]
      %v3371 = vld [vmem:[%s508 + $0xe8] sm:$0xff]
      %v3372 = vld [vmem:[%s508 + $0xf0] sm:$0xff]
      %v3373 = vld [vmem:[%s508 + $0xf8] sm:$0xff]
      %v3406 = vunpack.c.l.b16 %v3342
      %v3407 = vunpack.c.h.b16 %v3342
      %v3408 = vunpack.c.l.b16 %v3343
      %v3409 = vunpack.c.h.b16 %v3343
      %v3410 = vunpack.c.l.b16 %v3344
      %v3411 = vunpack.c.h.b16 %v3344
      %v3412 = vunpack.c.l.b16 %v3345
      %v3413 = vunpack.c.h.b16 %v3345
      %v3414 = vunpack.c.l.b16 %v3346
      %v3415 = vunpack.c.h.b16 %v3346
      %v3416 = vunpack.c.l.b16 %v3347
      %v3417 = vunpack.c.h.b16 %v3347
      %v3418 = vunpack.c.l.b16 %v3348
      %v3419 = vunpack.c.h.b16 %v3348
      %v3420 = vunpack.c.l.b16 %v3349
      %v3421 = vunpack.c.h.b16 %v3349
      %v3422 = vunpack.c.l.b16 %v3350
      %v3423 = vunpack.c.h.b16 %v3350
      %v3424 = vunpack.c.l.b16 %v3351
      %v3425 = vunpack.c.h.b16 %v3351
      %v3426 = vunpack.c.l.b16 %v3352
      %v3427 = vunpack.c.h.b16 %v3352
      %v3428 = vunpack.c.l.b16 %v3353
      %v3429 = vunpack.c.h.b16 %v3353
      %v3430 = vunpack.c.l.b16 %v3354
      %v3431 = vunpack.c.h.b16 %v3354
      %v3432 = vunpack.c.l.b16 %v3355
      %v3433 = vunpack.c.h.b16 %v3355
      %v3434 = vunpack.c.l.b16 %v3356
      %v3435 = vunpack.c.h.b16 %v3356
      %v3436 = vunpack.c.l.b16 %v3357
      %v3437 = vunpack.c.h.b16 %v3357
      %v3438 = vunpack.c.l.b16 %v3358
      %v3439 = vunpack.c.h.b16 %v3358
      %v3440 = vunpack.c.l.b16 %v3359
      %v3441 = vunpack.c.h.b16 %v3359
      %v3442 = vunpack.c.l.b16 %v3360
      %v3443 = vunpack.c.h.b16 %v3360
      %v3444 = vunpack.c.l.b16 %v3361
      %v3445 = vunpack.c.h.b16 %v3361
      %v3446 = vunpack.c.l.b16 %v3362
      %v3447 = vunpack.c.h.b16 %v3362
      %v3448 = vunpack.c.l.b16 %v3363
      %v3449 = vunpack.c.h.b16 %v3363
      %v3450 = vunpack.c.l.b16 %v3364
      %v3451 = vunpack.c.h.b16 %v3364
      %v3452 = vunpack.c.l.b16 %v3365
      %v3453 = vunpack.c.h.b16 %v3365
      %v3454 = vunpack.c.l.b16 %v3366
      %v3455 = vunpack.c.h.b16 %v3366
      %v3456 = vunpack.c.l.b16 %v3367
      %v3457 = vunpack.c.h.b16 %v3367
      %v3458 = vunpack.c.l.b16 %v3368
      %v3459 = vunpack.c.h.b16 %v3368
      %v3460 = vunpack.c.l.b16 %v3369
      %v3461 = vunpack.c.h.b16 %v3369
      %v3462 = vunpack.c.l.b16 %v3370
      %v3463 = vunpack.c.h.b16 %v3370
      %v3464 = vunpack.c.l.b16 %v3371
      %v3465 = vunpack.c.h.b16 %v3371
      %v3466 = vunpack.c.l.b16 %v3372
      %v3467 = vunpack.c.h.b16 %v3372
      %v3468 = vunpack.c.l.b16 %v3373
      %v3469 = vunpack.c.h.b16 %v3373
      %v3470 = vpack.c.b16 %v3410, %v3406
      %v3471 = vpack.c.b16 %v3411, %v3407
      %v3472 = vpack.c.b16 %v3412, %v3408
      %v3473 = vpack.c.b16 %v3413, %v3409
      %v3474 = vpack.c.b16 %v3418, %v3414
      %v3475 = vpack.c.b16 %v3419, %v3415
      %v3476 = vpack.c.b16 %v3420, %v3416
      %v3477 = vpack.c.b16 %v3421, %v3417
      %v3478 = vpack.c.b16 %v3426, %v3422
      %v3479 = vpack.c.b16 %v3427, %v3423
      %v3480 = vpack.c.b16 %v3428, %v3424
      %v3481 = vpack.c.b16 %v3429, %v3425
      %v3482 = vpack.c.b16 %v3434, %v3430
      %v3483 = vpack.c.b16 %v3435, %v3431
      %v3484 = vpack.c.b16 %v3436, %v3432
      %v3485 = vpack.c.b16 %v3437, %v3433
      %v3486 = vpack.c.b16 %v3442, %v3438
      %v3487 = vpack.c.b16 %v3443, %v3439
      %v3488 = vpack.c.b16 %v3444, %v3440
      %v3489 = vpack.c.b16 %v3445, %v3441
      %v3490 = vpack.c.b16 %v3450, %v3446
      %v3491 = vpack.c.b16 %v3451, %v3447
      %v3492 = vpack.c.b16 %v3452, %v3448
      %v3493 = vpack.c.b16 %v3453, %v3449
      %v3494 = vpack.c.b16 %v3458, %v3454
      %v3495 = vpack.c.b16 %v3459, %v3455
      %v3496 = vpack.c.b16 %v3460, %v3456
      %v3497 = vpack.c.b16 %v3461, %v3457
      %v3498 = vpack.c.b16 %v3466, %v3462
      %v3499 = vpack.c.b16 %v3467, %v3463
      %v3500 = vpack.c.b16 %v3468, %v3464
      %v3501 = vpack.c.b16 %v3469, %v3465
      %3534 = vmatprep.subr.bf16.mxu0 %v3499
      %3535 = vmatpush1.bf16.msra.mxu0 %v3498
      %3536 = vmatprep.subr.bf16.mxu0 %v3495
      %3537 = vmatpush1.bf16.msra.mxu0 %v3494
      %3538 = vmatprep.subr.bf16.mxu0 %v3491
      %3539 = vmatpush1.bf16.msra.mxu0 %v3490
      %3540 = vmatprep.subr.bf16.mxu0 %v3487
      %3541 = vmatpush1.bf16.msra.mxu0 %v3486
      %3542 = vmatprep.subr.bf16.mxu0 %v3483
      %3543 = vmatpush1.bf16.msra.mxu0 %v3482
      %3544 = vmatprep.subr.bf16.mxu0 %v3479
      %3545 = vmatpush1.bf16.msra.mxu0 %v3478
      %3546 = vmatprep.subr.bf16.mxu0 %v3475
      %3547 = vmatpush1.bf16.msra.mxu0 %v3474
      %3548 = vmatprep.subr.bf16.mxu0 %v3471
      %3549 = vmatpush1.bf16.msra.mxu0 %v3470
      %3550 = vmatprep.subr.bf16.mxu0 0
      %3551 = vmatpush2.bf16.msra.mxu0 0
      %3552 = vmatprep.subr.bf16.mxu0 0
      %3553 = vmatpush2.bf16.msra.mxu0 0
      %3554 = vmatprep.subr.bf16.mxu0 0
      %3555 = vmatpush2.bf16.msra.mxu0 0
      %3556 = vmatprep.subr.bf16.mxu0 0
      %3557 = vmatpush2.bf16.msra.mxu0 0
      %3558 = vmatprep.subr.bf16.mxu0 0
      %3559 = vmatpush2.bf16.msra.mxu0 0
      %3560 = vmatprep.subr.bf16.mxu0 0
      %3561 = vmatpush2.bf16.msra.mxu0 0
      %3562 = vmatprep.subr.bf16.mxu0 0
      %3563 = vmatpush2.bf16.msra.mxu0 0
      %3564 = vmatprep.subr.bf16.mxu0 0
      %3565 = vmatpush2.bf16.msra.mxu0 0
      %3566 = vmatprep.mubr.bf16.mxu0 0
      %3567 = vmatmul.mubr.bf16.gmra.mxu0 %v3341
      %v3568 = vpop.f32.mrf.mxu0
      %v3569 = vadd.f32 0.0, %v3568
      %v3570 = vpop.f32.mrf.mxu0
      %v3571 = vadd.f32 0.0, %v3570
      %v3572 = vpop.f32.mrf.mxu0
      %v3573 = vadd.f32 0.0, %v3572
      %v3574 = vpop.f32.mrf.mxu0
      %v3575 = vadd.f32 0.0, %v3574
      %3576 = vdwg.mxu0
      %3577 = vmatprep.subr.bf16.mxu0 %v3501
      %3578 = vmatpush1.bf16.msra.mxu0 %v3500
      %3579 = vmatprep.subr.bf16.mxu0 %v3497
      %3580 = vmatpush1.bf16.msra.mxu0 %v3496
      %3581 = vmatprep.subr.bf16.mxu0 %v3493
      %3582 = vmatpush1.bf16.msra.mxu0 %v3492
      %3583 = vmatprep.subr.bf16.mxu0 %v3489
      %3584 = vmatpush1.bf16.msra.mxu0 %v3488
      %3585 = vmatprep.subr.bf16.mxu0 %v3485
      %3586 = vmatpush1.bf16.msra.mxu0 %v3484
      %3587 = vmatprep.subr.bf16.mxu0 %v3481
      %3588 = vmatpush1.bf16.msra.mxu0 %v3480
      %3589 = vmatprep.subr.bf16.mxu0 %v3477
      %3590 = vmatpush1.bf16.msra.mxu0 %v3476
      %3591 = vmatprep.subr.bf16.mxu0 %v3473
      %3592 = vmatpush1.bf16.msra.mxu0 %v3472
      %3593 = vmatprep.subr.bf16.mxu0 0
      %3594 = vmatpush2.bf16.msra.mxu0 0
      %3595 = vmatprep.subr.bf16.mxu0 0
      %3596 = vmatpush2.bf16.msra.mxu0 0
      %3597 = vmatprep.subr.bf16.mxu0 0
      %3598 = vmatpush2.bf16.msra.mxu0 0
      %3599 = vmatprep.subr.bf16.mxu0 0
      %3600 = vmatpush2.bf16.msra.mxu0 0
      %3601 = vmatprep.subr.bf16.mxu0 0
      %3602 = vmatpush2.bf16.msra.mxu0 0
      %3603 = vmatprep.subr.bf16.mxu0 0
      %3604 = vmatpush2.bf16.msra.mxu0 0
      %3605 = vmatprep.subr.bf16.mxu0 0
      %3606 = vmatpush2.bf16.msra.mxu0 0
      %3607 = vmatprep.subr.bf16.mxu0 0
      %3608 = vmatpush2.bf16.msra.mxu0 0
      %3609 = vmatprep.mubr.bf16.mxu0 0
      %3610 = vmatmul.mubr.bf16.gmra.mxu0 %v3341
      %v3611 = vpop.f32.mrf.mxu0
      %v3612 = vadd.f32 0.0, %v3611
      %v3613 = vpop.f32.mrf.mxu0
      %v3614 = vadd.f32 0.0, %v3613
      %v3615 = vpop.f32.mrf.mxu0
      %v3616 = vadd.f32 0.0, %v3615
      %v3617 = vpop.f32.mrf.mxu0
      %v3618 = vadd.f32 0.0, %v3617
      %3619 = vdwg.mxu0
      %v3620 = vadd.f32 %v3331, %v3569
      %v3621 = vadd.f32 %v3332, %v3571
      %v3622 = vadd.f32 %v3333, %v3612
      %v3623 = vadd.f32 %v3334, %v3614
      %v3624 = vadd.f32 %v3335, %v3573
      %v3625 = vadd.f32 %v3336, %v3575
      %v3626 = vadd.f32 %v3337, %v3616
      %v3627 = vadd.f32 %v3338, %v3618
      %v3628 = vxor.u32 %v3620, 2147483648
      %v3629 = vxor.u32 %v3621, 2147483648
      %v3630 = vxor.u32 %v3622, 2147483648
      %v3631 = vxor.u32 %v3624, 2147483648
      %v3632 = vxor.u32 %v3625, 2147483648
      %v3633 = vxor.u32 %v3626, 2147483648
      %v3634 = vmul.f32 %v3628, 1.442695
      %v3635 = vpow.pop %v3634
      %v3636 = vmul.f32 %v3629, 1.442695
      %v3637 = vpow.pop %v3636
      %v3638 = vmul.f32 %v3630, 1.442695
      %v3639 = vpow.pop %v3638
      %v3640 = vmul.f32 %v3631, 1.442695
      %v3641 = vpow.pop %v3640
      %v3642 = vmul.f32 %v3632, 1.442695
      %v3643 = vpow.pop %v3642
      %v3644 = vmul.f32 %v3633, 1.442695
      %v3645 = vpow.pop %v3644
      %v3646 = vadd.f32 %v3635, 1.0
      %v3647 = vadd.f32 %v3637, 1.0
      %v3648 = vadd.f32 %v3639, 1.0
      %v3649 = vadd.f32 %v3641, 1.0
      %v3650 = vadd.f32 %v3643, 1.0
      %v3651 = vadd.f32 %v3645, 1.0
      %v3652 = vrcp.pop %v3646
      %v3653 = vmul.f32 1.0, %v3652
      %v3654 = vrcp.pop %v3647
      %v3655 = vmul.f32 1.0, %v3654
      %v3656 = vrcp.pop %v3648
      %v3657 = vmul.f32 1.0, %v3656
      %v3658 = vrcp.pop %v3649
      %v3659 = vmul.f32 1.0, %v3658
      %v3660 = vrcp.pop %v3650
      %v3661 = vmul.f32 1.0, %v3660
      %v3662 = vrcp.pop %v3651
      %v3663 = vmul.f32 1.0, %v3662
      %v3664 = vtanh.pop %v3623
      %v3665 = vtanh.pop %v3627
      %v3666 = vld [vmem:[#allocation4] sm:$0xff]
      %v3667 = vld [vmem:[#allocation4 + $0x8] sm:$0xff]
      %v3668 = vmul.f32 %v3655, %v3666
      %v3669 = vmul.f32 %v3661, %v3667
      %v3670 = vmul.f32 %v3653, %v3664
      %v3671 = vmul.f32 %v3659, %v3665
      %v3672 = vadd.f32 %v3668, %v3670
      %v3673 = vadd.f32 %v3669, %v3671
      %v3674 = vtanh.pop %v3672
      %v3675 = vtanh.pop %v3673
      %v3676 = vmul.f32 %v3657, %v3674
      %v3677 = vmul.f32 %v3663, %v3675
      %v3678 = vstv %s3327
      %vm3679 = vcmp.gt.s32.totalorder %v1651, %v3678
      %vm3680 = vcmp.gt.s32.totalorder %v1652, %v3678
      %v3681 = vsel %vm3679, 1, 0
      %v3682 = vsel %vm3680, 1, 0
      %3683 = vset.pattern.permute.xlu0 0
      %3684 = vperm.xlu0 %3683, %v3681
      %v3685 = vpop.permute.xlu0 %3684
      %3686 = vset.pattern.permute.xlu0 0
      %3687 = vperm.xlu0 %3686, %v3682
      %v3688 = vpop.permute.xlu0 %3687
      %vm3689 = vcmp.eq.s32.totalorder %v3685, 1
      %vm3690 = vcmp.eq.s32.totalorder %v3688, 1
      %v3691 = vsel %vm3689, %v3676, %v3339
      %v3692 = vsel %vm3690, %v3677, %v3340
      %3693 = vst [vmem:[#allocation3] sm:$0xff] %v3691
      %3694 = vst [vmem:[#allocation3 + $0x8] sm:$0xff] %v3692
      %v3695 = vld [vmem:[#allocation4] sm:$0xff]
      %v3696 = vld [vmem:[#allocation4 + $0x8] sm:$0xff]
      %v3697 = vsel %vm3689, %v3672, %v3695
      %v3698 = vsel %vm3690, %v3673, %v3696
      %3699 = vst [vmem:[#allocation4] sm:$0xff] %v3697
      %3700 = vst [vmem:[#allocation4 + $0x8] sm:$0xff] %v3698
      %v3701 = vsel %vm3689, %v3676, 0.0
      %v3702 = vsel %vm3690, %v3677, 0.0
      %v3703 = vpack.c.bf16 %v3702, %v3701
      %vm3704 = vcmp.eq.s32.totalorder %v1653, %v3678
      %vm3705 = vcmp.eq.s32.totalorder %v1654, %v3678
      %v3706 = vld [vmem:[%s517] sm:$0xf]
      %v3707 = vld [vmem:[%s517 + $0x4] sm:$0xf]
      %v3708 = vsel %vm3704, 1, 0
      %v3709 = vsel %vm3705, 1, 0
      %3710 = vset.pattern.permute.xlu0 0
      %3711 = vperm.xlu0 %3710, %v3708
      %v3712 = vpop.permute.xlu0 %3711
      %3713 = vset.pattern.permute.xlu0 0
      %3714 = vperm.xlu0 %3713, %v3709
      %v3715 = vpop.permute.xlu0 %3714
      %vm3716 = vcmp.eq.s32.totalorder %v3712, 1
      %vm3717 = vcmp.eq.s32.totalorder %v3715, 1
      %vm3718 = vmpackc.low %vm3716, %vm3716
      %vm3719 = vmpackc.low %vm3717, %vm3717
      %v3720 = vsel %vm3718, 65537, 0
      %v3721 = vsel %vm3719, 65537, 0
      %v3722 = vunpack.c.l.b16 %v3720
      %v3723 = vunpack.c.l.b16 %v3721
      %v3724 = vpack.c.b16 %v3723, %v3722
      %vm3725 = vcmp.ne.s16.totalorder %v3724, 0
      %v3728 = vunpack.c.l.b16 %v3706
      %v3729 = vunpack.c.l.b16 %v3707
      %v3730 = vpack.c.b16 %v3729, %v3728
      %v3732 = vsel %vm3725, %v3703, %v3730
      %v3734 = vunpack.c.l.b16 %v3732
      %v3735 = vunpack.c.h.b16 %v3732
      %v3736 = vpack.c.b16 %v3734, %v3734
      %v3737 = vpack.c.b16 %v3735, %v3735
      %3740 = vst [vmem:[%s517] sm:$0xf] %v3736
      %3741 = vst [vmem:[%s517 + $0x4] sm:$0xf] %v3737
      %s3742 = smul.u32 %s1645, 5
      %s3743 = smul.u32 %s23, 2
      %s3744 = sadd.s32 %s3742, %s3743
      %s3745 = sadd.s32 %s1650, %s3744
      %s3746 = smul.u32 %s3744, 8
      %s3747 = smul.addr %s3746, 8
      %s3748 = scalar_lea.vmem [#allocation2], %s3747
      %v3749 = vld [vmem:[%s3748] sm:$0xff]
      %v3750 = vld [vmem:[%s3748 + $0x8] sm:$0xff]
      %v3751 = vld [vmem:[%s3748 + $0x10] sm:$0xff]
      %v3752 = vld [vmem:[%s3748 + $0x18] sm:$0xff]
      %v3753 = vld [vmem:[%s3748 + $0x20] sm:$0xff]
      %v3754 = vld [vmem:[%s3748 + $0x28] sm:$0xff]
      %v3755 = vld [vmem:[%s3748 + $0x30] sm:$0xff]
      %v3756 = vld [vmem:[%s3748 + $0x38] sm:$0xff]
      %v3757 = vld [vmem:[#allocation3] sm:$0xff]
      %v3758 = vld [vmem:[#allocation3 + $0x8] sm:$0xff]
      %v3759 = vpack.c.bf16 %v3758, %v3757
      %v3760 = vld [vmem:[%s508] sm:$0xff]
      %v3761 = vld [vmem:[%s508 + $0x8] sm:$0xff]
      %v3762 = vld [vmem:[%s508 + $0x10] sm:$0xff]
      %v3763 = vld [vmem:[%s508 + $0x18] sm:$0xff]
      %v3764 = vld [vmem:[%s508 + $0x20] sm:$0xff]
      %v3765 = vld [vmem:[%s508 + $0x28] sm:$0xff]
      %v3766 = vld [vmem:[%s508 + $0x30] sm:$0xff]
      %v3767 = vld [vmem:[%s508 + $0x38] sm:$0xff]
      %v3768 = vld [vmem:[%s508 + $0x40] sm:$0xff]
      %v3769 = vld [vmem:[%s508 + $0x48] sm:$0xff]
      %v3770 = vld [vmem:[%s508 + $0x50] sm:$0xff]
      %v3771 = vld [vmem:[%s508 + $0x58] sm:$0xff]
      %v3772 = vld [vmem:[%s508 + $0x60] sm:$0xff]
      %v3773 = vld [vmem:[%s508 + $0x68] sm:$0xff]
      %v3774 = vld [vmem:[%s508 + $0x70] sm:$0xff]
      %v3775 = vld [vmem:[%s508 + $0x78] sm:$0xff]
      %v3776 = vld [vmem:[%s508 + $0x80] sm:$0xff]
      %v3777 = vld [vmem:[%s508 + $0x88] sm:$0xff]
      %v3778 = vld [vmem:[%s508 + $0x90] sm:$0xff]
      %v3779 = vld [vmem:[%s508 + $0x98] sm:$0xff]
      %v3780 = vld [vmem:[%s508 + $0xa0] sm:$0xff]
      %v3781 = vld [vmem:[%s508 + $0xa8] sm:$0xff]
      %v3782 = vld [vmem:[%s508 + $0xb0] sm:$0xff]
      %v3783 = vld [vmem:[%s508 + $0xb8] sm:$0xff]
      %v3784 = vld [vmem:[%s508 + $0xc0] sm:$0xff]
      %v3785 = vld [vmem:[%s508 + $0xc8] sm:$0xff]
      %v3786 = vld [vmem:[%s508 + $0xd0] sm:$0xff]
      %v3787 = vld [vmem:[%s508 + $0xd8] sm:$0xff]
      %v3788 = vld [vmem:[%s508 + $0xe0] sm:$0xff]
      %v3789 = vld [vmem:[%s508 + $0xe8] sm:$0xff]
      %v3790 = vld [vmem:[%s508 + $0xf0] sm:$0xff]
      %v3791 = vld [vmem:[%s508 + $0xf8] sm:$0xff]
      %v3824 = vunpack.c.l.b16 %v3760
      %v3825 = vunpack.c.h.b16 %v3760
      %v3826 = vunpack.c.l.b16 %v3761
      %v3827 = vunpack.c.h.b16 %v3761
      %v3828 = vunpack.c.l.b16 %v3762
      %v3829 = vunpack.c.h.b16 %v3762
      %v3830 = vunpack.c.l.b16 %v3763
      %v3831 = vunpack.c.h.b16 %v3763
      %v3832 = vunpack.c.l.b16 %v3764
      %v3833 = vunpack.c.h.b16 %v3764
      %v3834 = vunpack.c.l.b16 %v3765
      %v3835 = vunpack.c.h.b16 %v3765
      %v3836 = vunpack.c.l.b16 %v3766
      %v3837 = vunpack.c.h.b16 %v3766
      %v3838 = vunpack.c.l.b16 %v3767
      %v3839 = vunpack.c.h.b16 %v3767
      %v3840 = vunpack.c.l.b16 %v3768
      %v3841 = vunpack.c.h.b16 %v3768
      %v3842 = vunpack.c.l.b16 %v3769
      %v3843 = vunpack.c.h.b16 %v3769
      %v3844 = vunpack.c.l.b16 %v3770
      %v3845 = vunpack.c.h.b16 %v3770
      %v3846 = vunpack.c.l.b16 %v3771
      %v3847 = vunpack.c.h.b16 %v3771
      %v3848 = vunpack.c.l.b16 %v3772
      %v3849 = vunpack.c.h.b16 %v3772
      %v3850 = vunpack.c.l.b16 %v3773
      %v3851 = vunpack.c.h.b16 %v3773
      %v3852 = vunpack.c.l.b16 %v3774
      %v3853 = vunpack.c.h.b16 %v3774
      %v3854 = vunpack.c.l.b16 %v3775
      %v3855 = vunpack.c.h.b16 %v3775
      %v3856 = vunpack.c.l.b16 %v3776
      %v3857 = vunpack.c.h.b16 %v3776
      %v3858 = vunpack.c.l.b16 %v3777
      %v3859 = vunpack.c.h.b16 %v3777
      %v3860 = vunpack.c.l.b16 %v3778
      %v3861 = vunpack.c.h.b16 %v3778
      %v3862 = vunpack.c.l.b16 %v3779
      %v3863 = vunpack.c.h.b16 %v3779
      %v3864 = vunpack.c.l.b16 %v3780
      %v3865 = vunpack.c.h.b16 %v3780
      %v3866 = vunpack.c.l.b16 %v3781
      %v3867 = vunpack.c.h.b16 %v3781
      %v3868 = vunpack.c.l.b16 %v3782
      %v3869 = vunpack.c.h.b16 %v3782
      %v3870 = vunpack.c.l.b16 %v3783
      %v3871 = vunpack.c.h.b16 %v3783
      %v3872 = vunpack.c.l.b16 %v3784
      %v3873 = vunpack.c.h.b16 %v3784
      %v3874 = vunpack.c.l.b16 %v3785
      %v3875 = vunpack.c.h.b16 %v3785
      %v3876 = vunpack.c.l.b16 %v3786
      %v3877 = vunpack.c.h.b16 %v3786
      %v3878 = vunpack.c.l.b16 %v3787
      %v3879 = vunpack.c.h.b16 %v3787
      %v3880 = vunpack.c.l.b16 %v3788
      %v3881 = vunpack.c.h.b16 %v3788
      %v3882 = vunpack.c.l.b16 %v3789
      %v3883 = vunpack.c.h.b16 %v3789
      %v3884 = vunpack.c.l.b16 %v3790
      %v3885 = vunpack.c.h.b16 %v3790
      %v3886 = vunpack.c.l.b16 %v3791
      %v3887 = vunpack.c.h.b16 %v3791
      %v3888 = vpack.c.b16 %v3828, %v3824
      %v3889 = vpack.c.b16 %v3829, %v3825
      %v3890 = vpack.c.b16 %v3830, %v3826
      %v3891 = vpack.c.b16 %v3831, %v3827
      %v3892 = vpack.c.b16 %v3836, %v3832
      %v3893 = vpack.c.b16 %v3837, %v3833
      %v3894 = vpack.c.b16 %v3838, %v3834
      %v3895 = vpack.c.b16 %v3839, %v3835
      %v3896 = vpack.c.b16 %v3844, %v3840
      %v3897 = vpack.c.b16 %v3845, %v3841
      %v3898 = vpack.c.b16 %v3846, %v3842
      %v3899 = vpack.c.b16 %v3847, %v3843
      %v3900 = vpack.c.b16 %v3852, %v3848
      %v3901 = vpack.c.b16 %v3853, %v3849
      %v3902 = vpack.c.b16 %v3854, %v3850
      %v3903 = vpack.c.b16 %v3855, %v3851
      %v3904 = vpack.c.b16 %v3860, %v3856
      %v3905 = vpack.c.b16 %v3861, %v3857
      %v3906 = vpack.c.b16 %v3862, %v3858
      %v3907 = vpack.c.b16 %v3863, %v3859
      %v3908 = vpack.c.b16 %v3868, %v3864
      %v3909 = vpack.c.b16 %v3869, %v3865
      %v3910 = vpack.c.b16 %v3870, %v3866
      %v3911 = vpack.c.b16 %v3871, %v3867
      %v3912 = vpack.c.b16 %v3876, %v3872
      %v3913 = vpack.c.b16 %v3877, %v3873
      %v3914 = vpack.c.b16 %v3878, %v3874
      %v3915 = vpack.c.b16 %v3879, %v3875
      %v3916 = vpack.c.b16 %v3884, %v3880
      %v3917 = vpack.c.b16 %v3885, %v3881
      %v3918 = vpack.c.b16 %v3886, %v3882
      %v3919 = vpack.c.b16 %v3887, %v3883
      %3952 = vmatprep.subr.bf16.mxu0 %v3917
      %3953 = vmatpush1.bf16.msra.mxu0 %v3916
      %3954 = vmatprep.subr.bf16.mxu0 %v3913
      %3955 = vmatpush1.bf16.msra.mxu0 %v3912
      %3956 = vmatprep.subr.bf16.mxu0 %v3909
      %3957 = vmatpush1.bf16.msra.mxu0 %v3908
      %3958 = vmatprep.subr.bf16.mxu0 %v3905
      %3959 = vmatpush1.bf16.msra.mxu0 %v3904
      %3960 = vmatprep.subr.bf16.mxu0 %v3901
      %3961 = vmatpush1.bf16.msra.mxu0 %v3900
      %3962 = vmatprep.subr.bf16.mxu0 %v3897
      %3963 = vmatpush1.bf16.msra.mxu0 %v3896
      %3964 = vmatprep.subr.bf16.mxu0 %v3893
      %3965 = vmatpush1.bf16.msra.mxu0 %v3892
      %3966 = vmatprep.subr.bf16.mxu0 %v3889
      %3967 = vmatpush1.bf16.msra.mxu0 %v3888
      %3968 = vmatprep.subr.bf16.mxu0 0
      %3969 = vmatpush2.bf16.msra.mxu0 0
      %3970 = vmatprep.subr.bf16.mxu0 0
      %3971 = vmatpush2.bf16.msra.mxu0 0
      %3972 = vmatprep.subr.bf16.mxu0 0
      %3973 = vmatpush2.bf16.msra.mxu0 0
      %3974 = vmatprep.subr.bf16.mxu0 0
      %3975 = vmatpush2.bf16.msra.mxu0 0
      %3976 = vmatprep.subr.bf16.mxu0 0
      %3977 = vmatpush2.bf16.msra.mxu0 0
      %3978 = vmatprep.subr.bf16.mxu0 0
      %3979 = vmatpush2.bf16.msra.mxu0 0
      %3980 = vmatprep.subr.bf16.mxu0 0
      %3981 = vmatpush2.bf16.msra.mxu0 0
      %3982 = vmatprep.subr.bf16.mxu0 0
      %3983 = vmatpush2.bf16.msra.mxu0 0
      %3984 = vmatprep.mubr.bf16.mxu0 0
      %3985 = vmatmul.mubr.bf16.gmra.mxu0 %v3759
      %v3986 = vpop.f32.mrf.mxu0
      %v3987 = vadd.f32 0.0, %v3986
      %v3988 = vpop.f32.mrf.mxu0
      %v3989 = vadd.f32 0.0, %v3988
      %v3990 = vpop.f32.mrf.mxu0
      %v3991 = vadd.f32 0.0, %v3990
      %v3992 = vpop.f32.mrf.mxu0
      %v3993 = vadd.f32 0.0, %v3992
      %3994 = vdwg.mxu0
      %3995 = vmatprep.subr.bf16.mxu0 %v3919
      %3996 = vmatpush1.bf16.msra.mxu0 %v3918
      %3997 = vmatprep.subr.bf16.mxu0 %v3915
      %3998 = vmatpush1.bf16.msra.mxu0 %v3914
      %3999 = vmatprep.subr.bf16.mxu0 %v3911
      %4000 = vmatpush1.bf16.msra.mxu0 %v3910
      %4001 = vmatprep.subr.bf16.mxu0 %v3907
      %4002 = vmatpush1.bf16.msra.mxu0 %v3906
      %4003 = vmatprep.subr.bf16.mxu0 %v3903
      %4004 = vmatpush1.bf16.msra.mxu0 %v3902
      %4005 = vmatprep.subr.bf16.mxu0 %v3899
      %4006 = vmatpush1.bf16.msra.mxu0 %v3898
      %4007 = vmatprep.subr.bf16.mxu0 %v3895
      %4008 = vmatpush1.bf16.msra.mxu0 %v3894
      %4009 = vmatprep.subr.bf16.mxu0 %v3891
      %4010 = vmatpush1.bf16.msra.mxu0 %v3890
      %4011 = vmatprep.subr.bf16.mxu0 0
      %4012 = vmatpush2.bf16.msra.mxu0 0
      %4013 = vmatprep.subr.bf16.mxu0 0
      %4014 = vmatpush2.bf16.msra.mxu0 0
      %4015 = vmatprep.subr.bf16.mxu0 0
      %4016 = vmatpush2.bf16.msra.mxu0 0
      %4017 = vmatprep.subr.bf16.mxu0 0
      %4018 = vmatpush2.bf16.msra.mxu0 0
      %4019 = vmatprep.subr.bf16.mxu0 0
      %4020 = vmatpush2.bf16.msra.mxu0 0
      %4021 = vmatprep.subr.bf16.mxu0 0
      %4022 = vmatpush2.bf16.msra.mxu0 0
      %4023 = vmatprep.subr.bf16.mxu0 0
      %4024 = vmatpush2.bf16.msra.mxu0 0
      %4025 = vmatprep.subr.bf16.mxu0 0
      %4026 = vmatpush2.bf16.msra.mxu0 0
      %4027 = vmatprep.mubr.bf16.mxu0 0
      %4028 = vmatmul.mubr.bf16.gmra.mxu0 %v3759
      %v4029 = vpop.f32.mrf.mxu0
      %v4030 = vadd.f32 0.0, %v4029
      %v4031 = vpop.f32.mrf.mxu0
      %v4032 = vadd.f32 0.0, %v4031
      %v4033 = vpop.f32.mrf.mxu0
      %v4034 = vadd.f32 0.0, %v4033
      %v4035 = vpop.f32.mrf.mxu0
      %v4036 = vadd.f32 0.0, %v4035
      %4037 = vdwg.mxu0
      %v4038 = vadd.f32 %v3749, %v3987
      %v4039 = vadd.f32 %v3750, %v3989
      %v4040 = vadd.f32 %v3751, %v4030
      %v4041 = vadd.f32 %v3752, %v4032
      %v4042 = vadd.f32 %v3753, %v3991
      %v4043 = vadd.f32 %v3754, %v3993
      %v4044 = vadd.f32 %v3755, %v4034
      %v4045 = vadd.f32 %v3756, %v4036
      %v4046 = vxor.u32 %v4038, 2147483648
      %v4047 = vxor.u32 %v4039, 2147483648
      %v4048 = vxor.u32 %v4040, 2147483648
      %v4049 = vxor.u32 %v4042, 2147483648
      %v4050 = vxor.u32 %v4043, 2147483648
      %v4051 = vxor.u32 %v4044, 2147483648
      %v4052 = vmul.f32 %v4046, 1.442695
      %v4053 = vpow.pop %v4052
      %v4054 = vmul.f32 %v4047, 1.442695
      %v4055 = vpow.pop %v4054
      %v4056 = vmul.f32 %v4048, 1.442695
      %v4057 = vpow.pop %v4056
      %v4058 = vmul.f32 %v4049, 1.442695
      %v4059 = vpow.pop %v4058
      %v4060 = vmul.f32 %v4050, 1.442695
      %v4061 = vpow.pop %v4060
      %v4062 = vmul.f32 %v4051, 1.442695
      %v4063 = vpow.pop %v4062
      %v4064 = vadd.f32 %v4053, 1.0
      %v4065 = vadd.f32 %v4055, 1.0
      %v4066 = vadd.f32 %v4057, 1.0
      %v4067 = vadd.f32 %v4059, 1.0
      %v4068 = vadd.f32 %v4061, 1.0
      %v4069 = vadd.f32 %v4063, 1.0
      %v4070 = vrcp.pop %v4064
      %v4071 = vmul.f32 1.0, %v4070
      %v4072 = vrcp.pop %v4065
      %v4073 = vmul.f32 1.0, %v4072
      %v4074 = vrcp.pop %v4066
      %v4075 = vmul.f32 1.0, %v4074
      %v4076 = vrcp.pop %v4067
      %v4077 = vmul.f32 1.0, %v4076
      %v4078 = vrcp.pop %v4068
      %v4079 = vmul.f32 1.0, %v4078
      %v4080 = vrcp.pop %v4069
      %v4081 = vmul.f32 1.0, %v4080
      %v4082 = vtanh.pop %v4041
      %v4083 = vtanh.pop %v4045
      %v4084 = vld [vmem:[#allocation4] sm:$0xff]
      %v4085 = vld [vmem:[#allocation4 + $0x8] sm:$0xff]
      %v4086 = vmul.f32 %v4073, %v4084
      %v4087 = vmul.f32 %v4079, %v4085
      %v4088 = vmul.f32 %v4071, %v4082
      %v4089 = vmul.f32 %v4077, %v4083
      %v4090 = vadd.f32 %v4086, %v4088
      %v4091 = vadd.f32 %v4087, %v4089
      %v4092 = vtanh.pop %v4090
      %v4093 = vtanh.pop %v4091
      %v4094 = vmul.f32 %v4075, %v4092
      %v4095 = vmul.f32 %v4081, %v4093
      %v4096 = vstv %s3745
      %vm4097 = vcmp.gt.s32.totalorder %v1651, %v4096
      %vm4098 = vcmp.gt.s32.totalorder %v1652, %v4096
      %v4099 = vsel %vm4097, 1, 0
      %v4100 = vsel %vm4098, 1, 0
      %4101 = vset.pattern.permute.xlu0 0
      %4102 = vperm.xlu0 %4101, %v4099
      %v4103 = vpop.permute.xlu0 %4102
      %4104 = vset.pattern.permute.xlu0 0
      %4105 = vperm.xlu0 %4104, %v4100
      %v4106 = vpop.permute.xlu0 %4105
      %vm4107 = vcmp.eq.s32.totalorder %v4103, 1
      %vm4108 = vcmp.eq.s32.totalorder %v4106, 1
      %v4109 = vsel %vm4107, %v4094, %v3757
      %v4110 = vsel %vm4108, %v4095, %v3758
      %4111 = vst [vmem:[#allocation3] sm:$0xff] %v4109
      %4112 = vst [vmem:[#allocation3 + $0x8] sm:$0xff] %v4110
      %v4113 = vld [vmem:[#allocation4] sm:$0xff]
      %v4114 = vld [vmem:[#allocation4 + $0x8] sm:$0xff]
      %v4115 = vsel %vm4107, %v4090, %v4113
      %v4116 = vsel %vm4108, %v4091, %v4114
      %4117 = vst [vmem:[#allocation4] sm:$0xff] %v4115
      %4118 = vst [vmem:[#allocation4 + $0x8] sm:$0xff] %v4116
      %v4119 = vsel %vm4107, %v4094, 0.0
      %v4120 = vsel %vm4108, %v4095, 0.0
      %v4121 = vpack.c.bf16 %v4120, %v4119
      %vm4122 = vcmp.eq.s32.totalorder %v1653, %v4096
      %vm4123 = vcmp.eq.s32.totalorder %v1654, %v4096
      %v4124 = vld [vmem:[%s517] sm:$0xf]
      %v4125 = vld [vmem:[%s517 + $0x4] sm:$0xf]
      %v4126 = vsel %vm4122, 1, 0
      %v4127 = vsel %vm4123, 1, 0
      %4128 = vset.pattern.permute.xlu0 0
      %4129 = vperm.xlu0 %4128, %v4126
      %v4130 = vpop.permute.xlu0 %4129
      %4131 = vset.pattern.permute.xlu0 0
      %4132 = vperm.xlu0 %4131, %v4127
      %v4133 = vpop.permute.xlu0 %4132
      %vm4134 = vcmp.eq.s32.totalorder %v4130, 1
      %vm4135 = vcmp.eq.s32.totalorder %v4133, 1
      %vm4136 = vmpackc.low %vm4134, %vm4134
      %vm4137 = vmpackc.low %vm4135, %vm4135
      %v4138 = vsel %vm4136, 65537, 0
      %v4139 = vsel %vm4137, 65537, 0
      %v4140 = vunpack.c.l.b16 %v4138
      %v4141 = vunpack.c.l.b16 %v4139
      %v4142 = vpack.c.b16 %v4141, %v4140
      %vm4143 = vcmp.ne.s16.totalorder %v4142, 0
      %v4146 = vunpack.c.l.b16 %v4124
      %v4147 = vunpack.c.l.b16 %v4125
      %v4148 = vpack.c.b16 %v4147, %v4146
      %v4150 = vsel %vm4143, %v4121, %v4148
      %v4152 = vunpack.c.l.b16 %v4150
      %v4153 = vunpack.c.h.b16 %v4150
      %v4154 = vpack.c.b16 %v4152, %v4152
      %v4155 = vpack.c.b16 %v4153, %v4153
      %4158 = vst [vmem:[%s517] sm:$0xf] %v4154
      %4159 = vst [vmem:[%s517 + $0x4] sm:$0xf] %v4155
      %s4160 = smul.u32 %s1645, 6
      %s4161 = sadd.s32 %s4160, %s23
      %s4162 = sadd.s32 %s1650, %s4161
      %s4163 = smul.u32 %s4161, 8
      %s4164 = smul.addr %s4163, 8
      %s4165 = scalar_lea.vmem [#allocation2], %s4164
      %v4166 = vld [vmem:[%s4165] sm:$0xff]
      %v4167 = vld [vmem:[%s4165 + $0x8] sm:$0xff]
      %v4168 = vld [vmem:[%s4165 + $0x10] sm:$0xff]
      %v4169 = vld [vmem:[%s4165 + $0x18] sm:$0xff]
      %v4170 = vld [vmem:[%s4165 + $0x20] sm:$0xff]
      %v4171 = vld [vmem:[%s4165 + $0x28] sm:$0xff]
      %v4172 = vld [vmem:[%s4165 + $0x30] sm:$0xff]
      %v4173 = vld [vmem:[%s4165 + $0x38] sm:$0xff]
      %v4174 = vld [vmem:[#allocation3] sm:$0xff]
      %v4175 = vld [vmem:[#allocation3 + $0x8] sm:$0xff]
      %v4176 = vpack.c.bf16 %v4175, %v4174
      %v4177 = vld [vmem:[%s508] sm:$0xff]
      %v4178 = vld [vmem:[%s508 + $0x8] sm:$0xff]
      %v4179 = vld [vmem:[%s508 + $0x10] sm:$0xff]
      %v4180 = vld [vmem:[%s508 + $0x18] sm:$0xff]
      %v4181 = vld [vmem:[%s508 + $0x20] sm:$0xff]
      %v4182 = vld [vmem:[%s508 + $0x28] sm:$0xff]
      %v4183 = vld [vmem:[%s508 + $0x30] sm:$0xff]
      %v4184 = vld [vmem:[%s508 + $0x38] sm:$0xff]
      %v4185 = vld [vmem:[%s508 + $0x40] sm:$0xff]
      %v4186 = vld [vmem:[%s508 + $0x48] sm:$0xff]
      %v4187 = vld [vmem:[%s508 + $0x50] sm:$0xff]
      %v4188 = vld [vmem:[%s508 + $0x58] sm:$0xff]
      %v4189 = vld [vmem:[%s508 + $0x60] sm:$0xff]
      %v4190 = vld [vmem:[%s508 + $0x68] sm:$0xff]
      %v4191 = vld [vmem:[%s508 + $0x70] sm:$0xff]
      %v4192 = vld [vmem:[%s508 + $0x78] sm:$0xff]
      %v4193 = vld [vmem:[%s508 + $0x80] sm:$0xff]
      %v4194 = vld [vmem:[%s508 + $0x88] sm:$0xff]
      %v4195 = vld [vmem:[%s508 + $0x90] sm:$0xff]
      %v4196 = vld [vmem:[%s508 + $0x98] sm:$0xff]
      %v4197 = vld [vmem:[%s508 + $0xa0] sm:$0xff]
      %v4198 = vld [vmem:[%s508 + $0xa8] sm:$0xff]
      %v4199 = vld [vmem:[%s508 + $0xb0] sm:$0xff]
      %v4200 = vld [vmem:[%s508 + $0xb8] sm:$0xff]
      %v4201 = vld [vmem:[%s508 + $0xc0] sm:$0xff]
      %v4202 = vld [vmem:[%s508 + $0xc8] sm:$0xff]
      %v4203 = vld [vmem:[%s508 + $0xd0] sm:$0xff]
      %v4204 = vld [vmem:[%s508 + $0xd8] sm:$0xff]
      %v4205 = vld [vmem:[%s508 + $0xe0] sm:$0xff]
      %v4206 = vld [vmem:[%s508 + $0xe8] sm:$0xff]
      %v4207 = vld [vmem:[%s508 + $0xf0] sm:$0xff]
      %v4208 = vld [vmem:[%s508 + $0xf8] sm:$0xff]
      %v4241 = vunpack.c.l.b16 %v4177
      %v4242 = vunpack.c.h.b16 %v4177
      %v4243 = vunpack.c.l.b16 %v4178
      %v4244 = vunpack.c.h.b16 %v4178
      %v4245 = vunpack.c.l.b16 %v4179
      %v4246 = vunpack.c.h.b16 %v4179
      %v4247 = vunpack.c.l.b16 %v4180
      %v4248 = vunpack.c.h.b16 %v4180
      %v4249 = vunpack.c.l.b16 %v4181
      %v4250 = vunpack.c.h.b16 %v4181
      %v4251 = vunpack.c.l.b16 %v4182
      %v4252 = vunpack.c.h.b16 %v4182
      %v4253 = vunpack.c.l.b16 %v4183
      %v4254 = vunpack.c.h.b16 %v4183
      %v4255 = vunpack.c.l.b16 %v4184
      %v4256 = vunpack.c.h.b16 %v4184
      %v4257 = vunpack.c.l.b16 %v4185
      %v4258 = vunpack.c.h.b16 %v4185
      %v4259 = vunpack.c.l.b16 %v4186
      %v4260 = vunpack.c.h.b16 %v4186
      %v4261 = vunpack.c.l.b16 %v4187
      %v4262 = vunpack.c.h.b16 %v4187
      %v4263 = vunpack.c.l.b16 %v4188
      %v4264 = vunpack.c.h.b16 %v4188
      %v4265 = vunpack.c.l.b16 %v4189
      %v4266 = vunpack.c.h.b16 %v4189
      %v4267 = vunpack.c.l.b16 %v4190
      %v4268 = vunpack.c.h.b16 %v4190
      %v4269 = vunpack.c.l.b16 %v4191
      %v4270 = vunpack.c.h.b16 %v4191
      %v4271 = vunpack.c.l.b16 %v4192
      %v4272 = vunpack.c.h.b16 %v4192
      %v4273 = vunpack.c.l.b16 %v4193
      %v4274 = vunpack.c.h.b16 %v4193
      %v4275 = vunpack.c.l.b16 %v4194
      %v4276 = vunpack.c.h.b16 %v4194
      %v4277 = vunpack.c.l.b16 %v4195
      %v4278 = vunpack.c.h.b16 %v4195
      %v4279 = vunpack.c.l.b16 %v4196
      %v4280 = vunpack.c.h.b16 %v4196
      %v4281 = vunpack.c.l.b16 %v4197
      %v4282 = vunpack.c.h.b16 %v4197
      %v4283 = vunpack.c.l.b16 %v4198
      %v4284 = vunpack.c.h.b16 %v4198
      %v4285 = vunpack.c.l.b16 %v4199
      %v4286 = vunpack.c.h.b16 %v4199
      %v4287 = vunpack.c.l.b16 %v4200
      %v4288 = vunpack.c.h.b16 %v4200
      %v4289 = vunpack.c.l.b16 %v4201
      %v4290 = vunpack.c.h.b16 %v4201
      %v4291 = vunpack.c.l.b16 %v4202
      %v4292 = vunpack.c.h.b16 %v4202
      %v4293 = vunpack.c.l.b16 %v4203
      %v4294 = vunpack.c.h.b16 %v4203
      %v4295 = vunpack.c.l.b16 %v4204
      %v4296 = vunpack.c.h.b16 %v4204
      %v4297 = vunpack.c.l.b16 %v4205
      %v4298 = vunpack.c.h.b16 %v4205
      %v4299 = vunpack.c.l.b16 %v4206
      %v4300 = vunpack.c.h.b16 %v4206
      %v4301 = vunpack.c.l.b16 %v4207
      %v4302 = vunpack.c.h.b16 %v4207
      %v4303 = vunpack.c.l.b16 %v4208
      %v4304 = vunpack.c.h.b16 %v4208
      %v4305 = vpack.c.b16 %v4245, %v4241
      %v4306 = vpack.c.b16 %v4246, %v4242
      %v4307 = vpack.c.b16 %v4247, %v4243
      %v4308 = vpack.c.b16 %v4248, %v4244
      %v4309 = vpack.c.b16 %v4253, %v4249
      %v4310 = vpack.c.b16 %v4254, %v4250
      %v4311 = vpack.c.b16 %v4255, %v4251
      %v4312 = vpack.c.b16 %v4256, %v4252
      %v4313 = vpack.c.b16 %v4261, %v4257
      %v4314 = vpack.c.b16 %v4262, %v4258
      %v4315 = vpack.c.b16 %v4263, %v4259
      %v4316 = vpack.c.b16 %v4264, %v4260
      %v4317 = vpack.c.b16 %v4269, %v4265
      %v4318 = vpack.c.b16 %v4270, %v4266
      %v4319 = vpack.c.b16 %v4271, %v4267
      %v4320 = vpack.c.b16 %v4272, %v4268
      %v4321 = vpack.c.b16 %v4277, %v4273
      %v4322 = vpack.c.b16 %v4278, %v4274
      %v4323 = vpack.c.b16 %v4279, %v4275
      %v4324 = vpack.c.b16 %v4280, %v4276
      %v4325 = vpack.c.b16 %v4285, %v4281
      %v4326 = vpack.c.b16 %v4286, %v4282
      %v4327 = vpack.c.b16 %v4287, %v4283
      %v4328 = vpack.c.b16 %v4288, %v4284
      %v4329 = vpack.c.b16 %v4293, %v4289
      %v4330 = vpack.c.b16 %v4294, %v4290
      %v4331 = vpack.c.b16 %v4295, %v4291
      %v4332 = vpack.c.b16 %v4296, %v4292
      %v4333 = vpack.c.b16 %v4301, %v4297
      %v4334 = vpack.c.b16 %v4302, %v4298
      %v4335 = vpack.c.b16 %v4303, %v4299
      %v4336 = vpack.c.b16 %v4304, %v4300
      %4369 = vmatprep.subr.bf16.mxu0 %v4334
      %4370 = vmatpush1.bf16.msra.mxu0 %v4333
      %4371 = vmatprep.subr.bf16.mxu0 %v4330
      %4372 = vmatpush1.bf16.msra.mxu0 %v4329
      %4373 = vmatprep.subr.bf16.mxu0 %v4326
      %4374 = vmatpush1.bf16.msra.mxu0 %v4325
      %4375 = vmatprep.subr.bf16.mxu0 %v4322
      %4376 = vmatpush1.bf16.msra.mxu0 %v4321
      %4377 = vmatprep.subr.bf16.mxu0 %v4318
      %4378 = vmatpush1.bf16.msra.mxu0 %v4317
      %4379 = vmatprep.subr.bf16.mxu0 %v4314
      %4380 = vmatpush1.bf16.msra.mxu0 %v4313
      %4381 = vmatprep.subr.bf16.mxu0 %v4310
      %4382 = vmatpush1.bf16.msra.mxu0 %v4309
      %4383 = vmatprep.subr.bf16.mxu0 %v4306
      %4384 = vmatpush1.bf16.msra.mxu0 %v4305
      %4385 = vmatprep.subr.bf16.mxu0 0
      %4386 = vmatpush2.bf16.msra.mxu0 0
      %4387 = vmatprep.subr.bf16.mxu0 0
      %4388 = vmatpush2.bf16.msra.mxu0 0
      %4389 = vmatprep.subr.bf16.mxu0 0
      %4390 = vmatpush2.bf16.msra.mxu0 0
      %4391 = vmatprep.subr.bf16.mxu0 0
      %4392 = vmatpush2.bf16.msra.mxu0 0
      %4393 = vmatprep.subr.bf16.mxu0 0
      %4394 = vmatpush2.bf16.msra.mxu0 0
      %4395 = vmatprep.subr.bf16.mxu0 0
      %4396 = vmatpush2.bf16.msra.mxu0 0
      %4397 = vmatprep.subr.bf16.mxu0 0
      %4398 = vmatpush2.bf16.msra.mxu0 0
      %4399 = vmatprep.subr.bf16.mxu0 0
      %4400 = vmatpush2.bf16.msra.mxu0 0
      %4401 = vmatprep.mubr.bf16.mxu0 0
      %4402 = vmatmul.mubr.bf16.gmra.mxu0 %v4176
      %v4403 = vpop.f32.mrf.mxu0
      %v4404 = vadd.f32 0.0, %v4403
      %v4405 = vpop.f32.mrf.mxu0
      %v4406 = vadd.f32 0.0, %v4405
      %v4407 = vpop.f32.mrf.mxu0
      %v4408 = vadd.f32 0.0, %v4407
      %v4409 = vpop.f32.mrf.mxu0
      %v4410 = vadd.f32 0.0, %v4409
      %4411 = vdwg.mxu0
      %4412 = vmatprep.subr.bf16.mxu0 %v4336
      %4413 = vmatpush1.bf16.msra.mxu0 %v4335
      %4414 = vmatprep.subr.bf16.mxu0 %v4332
      %4415 = vmatpush1.bf16.msra.mxu0 %v4331
      %4416 = vmatprep.subr.bf16.mxu0 %v4328
      %4417 = vmatpush1.bf16.msra.mxu0 %v4327
      %4418 = vmatprep.subr.bf16.mxu0 %v4324
      %4419 = vmatpush1.bf16.msra.mxu0 %v4323
      %4420 = vmatprep.subr.bf16.mxu0 %v4320
      %4421 = vmatpush1.bf16.msra.mxu0 %v4319
      %4422 = vmatprep.subr.bf16.mxu0 %v4316
      %4423 = vmatpush1.bf16.msra.mxu0 %v4315
      %4424 = vmatprep.subr.bf16.mxu0 %v4312
      %4425 = vmatpush1.bf16.msra.mxu0 %v4311
      %4426 = vmatprep.subr.bf16.mxu0 %v4308
      %4427 = vmatpush1.bf16.msra.mxu0 %v4307
      %4428 = vmatprep.subr.bf16.mxu0 0
      %4429 = vmatpush2.bf16.msra.mxu0 0
      %4430 = vmatprep.subr.bf16.mxu0 0
      %4431 = vmatpush2.bf16.msra.mxu0 0
      %4432 = vmatprep.subr.bf16.mxu0 0
      %4433 = vmatpush2.bf16.msra.mxu0 0
      %4434 = vmatprep.subr.bf16.mxu0 0
      %4435 = vmatpush2.bf16.msra.mxu0 0
      %4436 = vmatprep.subr.bf16.mxu0 0
      %4437 = vmatpush2.bf16.msra.mxu0 0
      %4438 = vmatprep.subr.bf16.mxu0 0
      %4439 = vmatpush2.bf16.msra.mxu0 0
      %4440 = vmatprep.subr.bf16.mxu0 0
      %4441 = vmatpush2.bf16.msra.mxu0 0
      %4442 = vmatprep.subr.bf16.mxu0 0
      %4443 = vmatpush2.bf16.msra.mxu0 0
      %4444 = vmatprep.mubr.bf16.mxu0 0
      %4445 = vmatmul.mubr.bf16.gmra.mxu0 %v4176
      %v4446 = vpop.f32.mrf.mxu0
      %v4447 = vadd.f32 0.0, %v4446
      %v4448 = vpop.f32.mrf.mxu0
      %v4449 = vadd.f32 0.0, %v4448
      %v4450 = vpop.f32.mrf.mxu0
      %v4451 = vadd.f32 0.0, %v4450
      %v4452 = vpop.f32.mrf.mxu0
      %v4453 = vadd.f32 0.0, %v4452
      %4454 = vdwg.mxu0
      %v4455 = vadd.f32 %v4166, %v4404
      %v4456 = vadd.f32 %v4167, %v4406
      %v4457 = vadd.f32 %v4168, %v4447
      %v4458 = vadd.f32 %v4169, %v4449
      %v4459 = vadd.f32 %v4170, %v4408
      %v4460 = vadd.f32 %v4171, %v4410
      %v4461 = vadd.f32 %v4172, %v4451
      %v4462 = vadd.f32 %v4173, %v4453
      %v4463 = vxor.u32 %v4455, 2147483648
      %v4464 = vxor.u32 %v4456, 2147483648
      %v4465 = vxor.u32 %v4457, 2147483648
      %v4466 = vxor.u32 %v4459, 2147483648
      %v4467 = vxor.u32 %v4460, 2147483648
      %v4468 = vxor.u32 %v4461, 2147483648
      %v4469 = vmul.f32 %v4463, 1.442695
      %v4470 = vpow.pop %v4469
      %v4471 = vmul.f32 %v4464, 1.442695
      %v4472 = vpow.pop %v4471
      %v4473 = vmul.f32 %v4465, 1.442695
      %v4474 = vpow.pop %v4473
      %v4475 = vmul.f32 %v4466, 1.442695
      %v4476 = vpow.pop %v4475
      %v4477 = vmul.f32 %v4467, 1.442695
      %v4478 = vpow.pop %v4477
      %v4479 = vmul.f32 %v4468, 1.442695
      %v4480 = vpow.pop %v4479
      %v4481 = vadd.f32 %v4470, 1.0
      %v4482 = vadd.f32 %v4472, 1.0
      %v4483 = vadd.f32 %v4474, 1.0
      %v4484 = vadd.f32 %v4476, 1.0
      %v4485 = vadd.f32 %v4478, 1.0
      %v4486 = vadd.f32 %v4480, 1.0
      %v4487 = vrcp.pop %v4481
      %v4488 = vmul.f32 1.0, %v4487
      %v4489 = vrcp.pop %v4482
      %v4490 = vmul.f32 1.0, %v4489
      %v4491 = vrcp.pop %v4483
      %v4492 = vmul.f32 1.0, %v4491
      %v4493 = vrcp.pop %v4484
      %v4494 = vmul.f32 1.0, %v4493
      %v4495 = vrcp.pop %v4485
      %v4496 = vmul.f32 1.0, %v4495
      %v4497 = vrcp.pop %v4486
      %v4498 = vmul.f32 1.0, %v4497
      %v4499 = vtanh.pop %v4458
      %v4500 = vtanh.pop %v4462
      %v4501 = vld [vmem:[#allocation4] sm:$0xff]
      %v4502 = vld [vmem:[#allocation4 + $0x8] sm:$0xff]
      %v4503 = vmul.f32 %v4490, %v4501
      %v4504 = vmul.f32 %v4496, %v4502
      %v4505 = vmul.f32 %v4488, %v4499
      %v4506 = vmul.f32 %v4494, %v4500
      %v4507 = vadd.f32 %v4503, %v4505
      %v4508 = vadd.f32 %v4504, %v4506
      %v4509 = vtanh.pop %v4507
      %v4510 = vtanh.pop %v4508
      %v4511 = vmul.f32 %v4492, %v4509
      %v4512 = vmul.f32 %v4498, %v4510
      %v4513 = vstv %s4162
      %vm4514 = vcmp.gt.s32.totalorder %v1651, %v4513
      %vm4515 = vcmp.gt.s32.totalorder %v1652, %v4513
      %v4516 = vsel %vm4514, 1, 0
      %v4517 = vsel %vm4515, 1, 0
      %4518 = vset.pattern.permute.xlu0 0
      %4519 = vperm.xlu0 %4518, %v4516
      %v4520 = vpop.permute.xlu0 %4519
      %4521 = vset.pattern.permute.xlu0 0
      %4522 = vperm.xlu0 %4521, %v4517
      %v4523 = vpop.permute.xlu0 %4522
      %vm4524 = vcmp.eq.s32.totalorder %v4520, 1
      %vm4525 = vcmp.eq.s32.totalorder %v4523, 1
      %v4526 = vsel %vm4524, %v4511, %v4174
      %v4527 = vsel %vm4525, %v4512, %v4175
      %4528 = vst [vmem:[#allocation3] sm:$0xff] %v4526
      %4529 = vst [vmem:[#allocation3 + $0x8] sm:$0xff] %v4527
      %v4530 = vld [vmem:[#allocation4] sm:$0xff]
      %v4531 = vld [vmem:[#allocation4 + $0x8] sm:$0xff]
      %v4532 = vsel %vm4524, %v4507, %v4530
      %v4533 = vsel %vm4525, %v4508, %v4531
      %4534 = vst [vmem:[#allocation4] sm:$0xff] %v4532
      %4535 = vst [vmem:[#allocation4 + $0x8] sm:$0xff] %v4533
      %v4536 = vsel %vm4524, %v4511, 0.0
      %v4537 = vsel %vm4525, %v4512, 0.0
      %v4538 = vpack.c.bf16 %v4537, %v4536
      %vm4539 = vcmp.eq.s32.totalorder %v1653, %v4513
      %vm4540 = vcmp.eq.s32.totalorder %v1654, %v4513
      %v4541 = vld [vmem:[%s517] sm:$0xf]
      %v4542 = vld [vmem:[%s517 + $0x4] sm:$0xf]
      %v4543 = vsel %vm4539, 1, 0
      %v4544 = vsel %vm4540, 1, 0
      %4545 = vset.pattern.permute.xlu0 0
      %4546 = vperm.xlu0 %4545, %v4543
      %v4547 = vpop.permute.xlu0 %4546
      %4548 = vset.pattern.permute.xlu0 0
      %4549 = vperm.xlu0 %4548, %v4544
      %v4550 = vpop.permute.xlu0 %4549
      %vm4551 = vcmp.eq.s32.totalorder %v4547, 1
      %vm4552 = vcmp.eq.s32.totalorder %v4550, 1
      %vm4553 = vmpackc.low %vm4551, %vm4551
      %vm4554 = vmpackc.low %vm4552, %vm4552
      %v4555 = vsel %vm4553, 65537, 0
      %v4556 = vsel %vm4554, 65537, 0
      %v4557 = vunpack.c.l.b16 %v4555
      %v4558 = vunpack.c.l.b16 %v4556
      %v4559 = vpack.c.b16 %v4558, %v4557
      %vm4560 = vcmp.ne.s16.totalorder %v4559, 0
      %v4563 = vunpack.c.l.b16 %v4541
      %v4564 = vunpack.c.l.b16 %v4542
      %v4565 = vpack.c.b16 %v4564, %v4563
      %v4567 = vsel %vm4560, %v4538, %v4565
      %v4569 = vunpack.c.l.b16 %v4567
      %v4570 = vunpack.c.h.b16 %v4567
      %v4571 = vpack.c.b16 %v4569, %v4569
      %v4572 = vpack.c.b16 %v4570, %v4570
      %4575 = vst [vmem:[%s517] sm:$0xf] %v4571
      %4576 = vst [vmem:[%s517 + $0x4] sm:$0xf] %v4572
      %s4577 = smul.u32 %s1645, 7
      %s4578 = sadd.s32 %s1650, %s4577
      %s4579 = smul.u32 %s4577, 8
      %s4580 = smul.addr %s4579, 8
      %s4581 = scalar_lea.vmem [#allocation2], %s4580
      %v4582 = vld [vmem:[%s4581] sm:$0xff]
      %v4583 = vld [vmem:[%s4581 + $0x8] sm:$0xff]
      %v4584 = vld [vmem:[%s4581 + $0x10] sm:$0xff]
      %v4585 = vld [vmem:[%s4581 + $0x18] sm:$0xff]
      %v4586 = vld [vmem:[%s4581 + $0x20] sm:$0xff]
      %v4587 = vld [vmem:[%s4581 + $0x28] sm:$0xff]
      %v4588 = vld [vmem:[%s4581 + $0x30] sm:$0xff]
      %v4589 = vld [vmem:[%s4581 + $0x38] sm:$0xff]
      %v4590 = vld [vmem:[#allocation3] sm:$0xff]
      %v4591 = vld [vmem:[#allocation3 + $0x8] sm:$0xff]
      %v4592 = vpack.c.bf16 %v4591, %v4590
      %v4593 = vld [vmem:[%s508] sm:$0xff]
      %v4594 = vld [vmem:[%s508 + $0x8] sm:$0xff]
      %v4595 = vld [vmem:[%s508 + $0x10] sm:$0xff]
      %v4596 = vld [vmem:[%s508 + $0x18] sm:$0xff]
      %v4597 = vld [vmem:[%s508 + $0x20] sm:$0xff]
      %v4598 = vld [vmem:[%s508 + $0x28] sm:$0xff]
      %v4599 = vld [vmem:[%s508 + $0x30] sm:$0xff]
      %v4600 = vld [vmem:[%s508 + $0x38] sm:$0xff]
      %v4601 = vld [vmem:[%s508 + $0x40] sm:$0xff]
      %v4602 = vld [vmem:[%s508 + $0x48] sm:$0xff]
      %v4603 = vld [vmem:[%s508 + $0x50] sm:$0xff]
      %v4604 = vld [vmem:[%s508 + $0x58] sm:$0xff]
      %v4605 = vld [vmem:[%s508 + $0x60] sm:$0xff]
      %v4606 = vld [vmem:[%s508 + $0x68] sm:$0xff]
      %v4607 = vld [vmem:[%s508 + $0x70] sm:$0xff]
      %v4608 = vld [vmem:[%s508 + $0x78] sm:$0xff]
      %v4609 = vld [vmem:[%s508 + $0x80] sm:$0xff]
      %v4610 = vld [vmem:[%s508 + $0x88] sm:$0xff]
      %v4611 = vld [vmem:[%s508 + $0x90] sm:$0xff]
      %v4612 = vld [vmem:[%s508 + $0x98] sm:$0xff]
      %v4613 = vld [vmem:[%s508 + $0xa0] sm:$0xff]
      %v4614 = vld [vmem:[%s508 + $0xa8] sm:$0xff]
      %v4615 = vld [vmem:[%s508 + $0xb0] sm:$0xff]
      %v4616 = vld [vmem:[%s508 + $0xb8] sm:$0xff]
      %v4617 = vld [vmem:[%s508 + $0xc0] sm:$0xff]
      %v4618 = vld [vmem:[%s508 + $0xc8] sm:$0xff]
      %v4619 = vld [vmem:[%s508 + $0xd0] sm:$0xff]
      %v4620 = vld [vmem:[%s508 + $0xd8] sm:$0xff]
      %v4621 = vld [vmem:[%s508 + $0xe0] sm:$0xff]
      %v4622 = vld [vmem:[%s508 + $0xe8] sm:$0xff]
      %v4623 = vld [vmem:[%s508 + $0xf0] sm:$0xff]
      %v4624 = vld [vmem:[%s508 + $0xf8] sm:$0xff]
      %v4657 = vunpack.c.l.b16 %v4593
      %v4658 = vunpack.c.h.b16 %v4593
      %v4659 = vunpack.c.l.b16 %v4594
      %v4660 = vunpack.c.h.b16 %v4594
      %v4661 = vunpack.c.l.b16 %v4595
      %v4662 = vunpack.c.h.b16 %v4595
      %v4663 = vunpack.c.l.b16 %v4596
      %v4664 = vunpack.c.h.b16 %v4596
      %v4665 = vunpack.c.l.b16 %v4597
      %v4666 = vunpack.c.h.b16 %v4597
      %v4667 = vunpack.c.l.b16 %v4598
      %v4668 = vunpack.c.h.b16 %v4598
      %v4669 = vunpack.c.l.b16 %v4599
      %v4670 = vunpack.c.h.b16 %v4599
      %v4671 = vunpack.c.l.b16 %v4600
      %v4672 = vunpack.c.h.b16 %v4600
      %v4673 = vunpack.c.l.b16 %v4601
      %v4674 = vunpack.c.h.b16 %v4601
      %v4675 = vunpack.c.l.b16 %v4602
      %v4676 = vunpack.c.h.b16 %v4602
      %v4677 = vunpack.c.l.b16 %v4603
      %v4678 = vunpack.c.h.b16 %v4603
      %v4679 = vunpack.c.l.b16 %v4604
      %v4680 = vunpack.c.h.b16 %v4604
      %v4681 = vunpack.c.l.b16 %v4605
      %v4682 = vunpack.c.h.b16 %v4605
      %v4683 = vunpack.c.l.b16 %v4606
      %v4684 = vunpack.c.h.b16 %v4606
      %v4685 = vunpack.c.l.b16 %v4607
      %v4686 = vunpack.c.h.b16 %v4607
      %v4687 = vunpack.c.l.b16 %v4608
      %v4688 = vunpack.c.h.b16 %v4608
      %v4689 = vunpack.c.l.b16 %v4609
      %v4690 = vunpack.c.h.b16 %v4609
      %v4691 = vunpack.c.l.b16 %v4610
      %v4692 = vunpack.c.h.b16 %v4610
      %v4693 = vunpack.c.l.b16 %v4611
      %v4694 = vunpack.c.h.b16 %v4611
      %v4695 = vunpack.c.l.b16 %v4612
      %v4696 = vunpack.c.h.b16 %v4612
      %v4697 = vunpack.c.l.b16 %v4613
      %v4698 = vunpack.c.h.b16 %v4613
      %v4699 = vunpack.c.l.b16 %v4614
      %v4700 = vunpack.c.h.b16 %v4614
      %v4701 = vunpack.c.l.b16 %v4615
      %v4702 = vunpack.c.h.b16 %v4615
      %v4703 = vunpack.c.l.b16 %v4616
      %v4704 = vunpack.c.h.b16 %v4616
      %v4705 = vunpack.c.l.b16 %v4617
      %v4706 = vunpack.c.h.b16 %v4617
      %v4707 = vunpack.c.l.b16 %v4618
      %v4708 = vunpack.c.h.b16 %v4618
      %v4709 = vunpack.c.l.b16 %v4619
      %v4710 = vunpack.c.h.b16 %v4619
      %v4711 = vunpack.c.l.b16 %v4620
      %v4712 = vunpack.c.h.b16 %v4620
      %v4713 = vunpack.c.l.b16 %v4621
      %v4714 = vunpack.c.h.b16 %v4621
      %v4715 = vunpack.c.l.b16 %v4622
      %v4716 = vunpack.c.h.b16 %v4622
      %v4717 = vunpack.c.l.b16 %v4623
      %v4718 = vunpack.c.h.b16 %v4623
      %v4719 = vunpack.c.l.b16 %v4624
      %v4720 = vunpack.c.h.b16 %v4624
      %v4721 = vpack.c.b16 %v4661, %v4657
      %v4722 = vpack.c.b16 %v4662, %v4658
      %v4723 = vpack.c.b16 %v4663, %v4659
      %v4724 = vpack.c.b16 %v4664, %v4660
      %v4725 = vpack.c.b16 %v4669, %v4665
      %v4726 = vpack.c.b16 %v4670, %v4666
      %v4727 = vpack.c.b16 %v4671, %v4667
      %v4728 = vpack.c.b16 %v4672, %v4668
      %v4729 = vpack.c.b16 %v4677, %v4673
      %v4730 = vpack.c.b16 %v4678, %v4674
      %v4731 = vpack.c.b16 %v4679, %v4675
      %v4732 = vpack.c.b16 %v4680, %v4676
      %v4733 = vpack.c.b16 %v4685, %v4681
      %v4734 = vpack.c.b16 %v4686, %v4682
      %v4735 = vpack.c.b16 %v4687, %v4683
      %v4736 = vpack.c.b16 %v4688, %v4684
      %v4737 = vpack.c.b16 %v4693, %v4689
      %v4738 = vpack.c.b16 %v4694, %v4690
      %v4739 = vpack.c.b16 %v4695, %v4691
      %v4740 = vpack.c.b16 %v4696, %v4692
      %v4741 = vpack.c.b16 %v4701, %v4697
      %v4742 = vpack.c.b16 %v4702, %v4698
      %v4743 = vpack.c.b16 %v4703, %v4699
      %v4744 = vpack.c.b16 %v4704, %v4700
      %v4745 = vpack.c.b16 %v4709, %v4705
      %v4746 = vpack.c.b16 %v4710, %v4706
      %v4747 = vpack.c.b16 %v4711, %v4707
      %v4748 = vpack.c.b16 %v4712, %v4708
      %v4749 = vpack.c.b16 %v4717, %v4713
      %v4750 = vpack.c.b16 %v4718, %v4714
      %v4751 = vpack.c.b16 %v4719, %v4715
      %v4752 = vpack.c.b16 %v4720, %v4716
      %4785 = vmatprep.subr.bf16.mxu0 %v4750
      %4786 = vmatpush1.bf16.msra.mxu0 %v4749
      %4787 = vmatprep.subr.bf16.mxu0 %v4746
      %4788 = vmatpush1.bf16.msra.mxu0 %v4745
      %4789 = vmatprep.subr.bf16.mxu0 %v4742
      %4790 = vmatpush1.bf16.msra.mxu0 %v4741
      %4791 = vmatprep.subr.bf16.mxu0 %v4738
      %4792 = vmatpush1.bf16.msra.mxu0 %v4737
      %4793 = vmatprep.subr.bf16.mxu0 %v4734
      %4794 = vmatpush1.bf16.msra.mxu0 %v4733
      %4795 = vmatprep.subr.bf16.mxu0 %v4730
      %4796 = vmatpush1.bf16.msra.mxu0 %v4729
      %4797 = vmatprep.subr.bf16.mxu0 %v4726
      %4798 = vmatpush1.bf16.msra.mxu0 %v4725
      %4799 = vmatprep.subr.bf16.mxu0 %v4722
      %4800 = vmatpush1.bf16.msra.mxu0 %v4721
      %4801 = vmatprep.subr.bf16.mxu0 0
      %4802 = vmatpush2.bf16.msra.mxu0 0
      %4803 = vmatprep.subr.bf16.mxu0 0
      %4804 = vmatpush2.bf16.msra.mxu0 0
      %4805 = vmatprep.subr.bf16.mxu0 0
      %4806 = vmatpush2.bf16.msra.mxu0 0
      %4807 = vmatprep.subr.bf16.mxu0 0
      %4808 = vmatpush2.bf16.msra.mxu0 0
      %4809 = vmatprep.subr.bf16.mxu0 0
      %4810 = vmatpush2.bf16.msra.mxu0 0
      %4811 = vmatprep.subr.bf16.mxu0 0
      %4812 = vmatpush2.bf16.msra.mxu0 0
      %4813 = vmatprep.subr.bf16.mxu0 0
      %4814 = vmatpush2.bf16.msra.mxu0 0
      %4815 = vmatprep.subr.bf16.mxu0 0
      %4816 = vmatpush2.bf16.msra.mxu0 0
      %4817 = vmatprep.mubr.bf16.mxu0 0
      %4818 = vmatmul.mubr.bf16.gmra.mxu0 %v4592
      %v4819 = vpop.f32.mrf.mxu0
      %v4820 = vadd.f32 0.0, %v4819
      %v4821 = vpop.f32.mrf.mxu0
      %v4822 = vadd.f32 0.0, %v4821
      %v4823 = vpop.f32.mrf.mxu0
      %v4824 = vadd.f32 0.0, %v4823
      %v4825 = vpop.f32.mrf.mxu0
      %v4826 = vadd.f32 0.0, %v4825
      %4827 = vdwg.mxu0
      %4828 = vmatprep.subr.bf16.mxu0 %v4752
      %4829 = vmatpush1.bf16.msra.mxu0 %v4751
      %4830 = vmatprep.subr.bf16.mxu0 %v4748
      %4831 = vmatpush1.bf16.msra.mxu0 %v4747
      %4832 = vmatprep.subr.bf16.mxu0 %v4744
      %4833 = vmatpush1.bf16.msra.mxu0 %v4743
      %4834 = vmatprep.subr.bf16.mxu0 %v4740
      %4835 = vmatpush1.bf16.msra.mxu0 %v4739
      %4836 = vmatprep.subr.bf16.mxu0 %v4736
      %4837 = vmatpush1.bf16.msra.mxu0 %v4735
      %4838 = vmatprep.subr.bf16.mxu0 %v4732
      %4839 = vmatpush1.bf16.msra.mxu0 %v4731
      %4840 = vmatprep.subr.bf16.mxu0 %v4728
      %4841 = vmatpush1.bf16.msra.mxu0 %v4727
      %4842 = vmatprep.subr.bf16.mxu0 %v4724
      %4843 = vmatpush1.bf16.msra.mxu0 %v4723
      %4844 = vmatprep.subr.bf16.mxu0 0
      %4845 = vmatpush2.bf16.msra.mxu0 0
      %4846 = vmatprep.subr.bf16.mxu0 0
      %4847 = vmatpush2.bf16.msra.mxu0 0
      %4848 = vmatprep.subr.bf16.mxu0 0
      %4849 = vmatpush2.bf16.msra.mxu0 0
      %4850 = vmatprep.subr.bf16.mxu0 0
      %4851 = vmatpush2.bf16.msra.mxu0 0
      %4852 = vmatprep.subr.bf16.mxu0 0
      %4853 = vmatpush2.bf16.msra.mxu0 0
      %4854 = vmatprep.subr.bf16.mxu0 0
      %4855 = vmatpush2.bf16.msra.mxu0 0
      %4856 = vmatprep.subr.bf16.mxu0 0
      %4857 = vmatpush2.bf16.msra.mxu0 0
      %4858 = vmatprep.subr.bf16.mxu0 0
      %4859 = vmatpush2.bf16.msra.mxu0 0
      %4860 = vmatprep.mubr.bf16.mxu0 0
      %4861 = vmatmul.mubr.bf16.gmra.mxu0 %v4592
      %v4862 = vpop.f32.mrf.mxu0
      %v4863 = vadd.f32 0.0, %v4862
      %v4864 = vpop.f32.mrf.mxu0
      %v4865 = vadd.f32 0.0, %v4864
      %v4866 = vpop.f32.mrf.mxu0
      %v4867 = vadd.f32 0.0, %v4866
      %v4868 = vpop.f32.mrf.mxu0
      %v4869 = vadd.f32 0.0, %v4868
      %4870 = vdwg.mxu0
      %v4871 = vadd.f32 %v4582, %v4820
      %v4872 = vadd.f32 %v4583, %v4822
      %v4873 = vadd.f32 %v4584, %v4863
      %v4874 = vadd.f32 %v4585, %v4865
      %v4875 = vadd.f32 %v4586, %v4824
      %v4876 = vadd.f32 %v4587, %v4826
      %v4877 = vadd.f32 %v4588, %v4867
      %v4878 = vadd.f32 %v4589, %v4869
      %v4879 = vxor.u32 %v4871, 2147483648
      %v4880 = vxor.u32 %v4872, 2147483648
      %v4881 = vxor.u32 %v4873, 2147483648
      %v4882 = vxor.u32 %v4875, 2147483648
      %v4883 = vxor.u32 %v4876, 2147483648
      %v4884 = vxor.u32 %v4877, 2147483648
      %v4885 = vmul.f32 %v4879, 1.442695
      %v4886 = vpow.pop %v4885
      %v4887 = vmul.f32 %v4880, 1.442695
      %v4888 = vpow.pop %v4887
      %v4889 = vmul.f32 %v4881, 1.442695
      %v4890 = vpow.pop %v4889
      %v4891 = vmul.f32 %v4882, 1.442695
      %v4892 = vpow.pop %v4891
      %v4893 = vmul.f32 %v4883, 1.442695
      %v4894 = vpow.pop %v4893
      %v4895 = vmul.f32 %v4884, 1.442695
      %v4896 = vpow.pop %v4895
      %v4897 = vadd.f32 %v4886, 1.0
      %v4898 = vadd.f32 %v4888, 1.0
      %v4899 = vadd.f32 %v4890, 1.0
      %v4900 = vadd.f32 %v4892, 1.0
      %v4901 = vadd.f32 %v4894, 1.0
      %v4902 = vadd.f32 %v4896, 1.0
      %v4903 = vrcp.pop %v4897
      %v4904 = vmul.f32 1.0, %v4903
      %v4905 = vrcp.pop %v4898
      %v4906 = vmul.f32 1.0, %v4905
      %v4907 = vrcp.pop %v4899
      %v4908 = vmul.f32 1.0, %v4907
      %v4909 = vrcp.pop %v4900
      %v4910 = vmul.f32 1.0, %v4909
      %v4911 = vrcp.pop %v4901
      %v4912 = vmul.f32 1.0, %v4911
      %v4913 = vrcp.pop %v4902
      %v4914 = vmul.f32 1.0, %v4913
      %v4915 = vtanh.pop %v4874
      %v4916 = vtanh.pop %v4878
      %v4917 = vld [vmem:[#allocation4] sm:$0xff]
      %v4918 = vld [vmem:[#allocation4 + $0x8] sm:$0xff]
      %v4919 = vmul.f32 %v4906, %v4917
      %v4920 = vmul.f32 %v4912, %v4918
      %v4921 = vmul.f32 %v4904, %v4915
      %v4922 = vmul.f32 %v4910, %v4916
      %v4923 = vadd.f32 %v4919, %v4921
      %v4924 = vadd.f32 %v4920, %v4922
      %v4925 = vtanh.pop %v4923
      %v4926 = vtanh.pop %v4924
      %v4927 = vmul.f32 %v4908, %v4925
      %v4928 = vmul.f32 %v4914, %v4926
      %v4929 = vstv %s4578
      %vm4930 = vcmp.gt.s32.totalorder %v1651, %v4929
      %vm4931 = vcmp.gt.s32.totalorder %v1652, %v4929
      %v4932 = vsel %vm4930, 1, 0
      %v4933 = vsel %vm4931, 1, 0
      %4934 = vset.pattern.permute.xlu0 0
      %4935 = vperm.xlu0 %4934, %v4932
      %v4936 = vpop.permute.xlu0 %4935
      %4937 = vset.pattern.permute.xlu0 0
      %4938 = vperm.xlu0 %4937, %v4933
      %v4939 = vpop.permute.xlu0 %4938
      %vm4940 = vcmp.eq.s32.totalorder %v4936, 1
      %vm4941 = vcmp.eq.s32.totalorder %v4939, 1
      %v4942 = vsel %vm4940, %v4927, %v4590
      %v4943 = vsel %vm4941, %v4928, %v4591
      %4944 = vst [vmem:[#allocation3] sm:$0xff] %v4942
      %4945 = vst [vmem:[#allocation3 + $0x8] sm:$0xff] %v4943
      %v4946 = vld [vmem:[#allocation4] sm:$0xff]
      %v4947 = vld [vmem:[#allocation4 + $0x8] sm:$0xff]
      %v4948 = vsel %vm4940, %v4923, %v4946
      %v4949 = vsel %vm4941, %v4924, %v4947
      %4950 = vst [vmem:[#allocation4] sm:$0xff] %v4948
      %4951 = vst [vmem:[#allocation4 + $0x8] sm:$0xff] %v4949
      %v4952 = vsel %vm4940, %v4927, 0.0
      %v4953 = vsel %vm4941, %v4928, 0.0
      %v4954 = vpack.c.bf16 %v4953, %v4952
      %vm4955 = vcmp.eq.s32.totalorder %v1653, %v4929
      %vm4956 = vcmp.eq.s32.totalorder %v1654, %v4929
      %v4957 = vld [vmem:[%s517] sm:$0xf]
      %v4958 = vld [vmem:[%s517 + $0x4] sm:$0xf]
      %v4959 = vsel %vm4955, 1, 0
      %v4960 = vsel %vm4956, 1, 0
      %4961 = vset.pattern.permute.xlu0 0
      %4962 = vperm.xlu0 %4961, %v4959
      %v4963 = vpop.permute.xlu0 %4962
      %4964 = vset.pattern.permute.xlu0 0
      %4965 = vperm.xlu0 %4964, %v4960
      %v4966 = vpop.permute.xlu0 %4965
      %vm4967 = vcmp.eq.s32.totalorder %v4963, 1
      %vm4968 = vcmp.eq.s32.totalorder %v4966, 1
      %vm4969 = vmpackc.low %vm4967, %vm4967
      %vm4970 = vmpackc.low %vm4968, %vm4968
      %v4971 = vsel %vm4969, 65537, 0
      %v4972 = vsel %vm4970, 65537, 0
      %v4973 = vunpack.c.l.b16 %v4971
      %v4974 = vunpack.c.l.b16 %v4972
      %v4975 = vpack.c.b16 %v4974, %v4973
      %vm4976 = vcmp.ne.s16.totalorder %v4975, 0
      %v4979 = vunpack.c.l.b16 %v4957
      %v4980 = vunpack.c.l.b16 %v4958
      %v4981 = vpack.c.b16 %v4980, %v4979
      %v4983 = vsel %vm4976, %v4954, %v4981
      %v4985 = vunpack.c.l.b16 %v4983
      %v4986 = vunpack.c.h.b16 %v4983
      %v4987 = vpack.c.b16 %v4985, %v4985
      %v4988 = vpack.c.b16 %v4986, %v4986
      %4991 = vst [vmem:[%s517] sm:$0xf] %v4987
      %4992 = vst [vmem:[%s517 + $0x4] sm:$0xf] %v4988
      %p4993 = scmp.lt.s32.totalorder %s23, 1
      %s4994 = scalar_select %p4993, %s23, 1
      %s4995 = smul.addr %s4994, 2
      %s4996 = smul.addr %s4995, 4
      %s4997 = scalar_lea.vmem %s8, %s4996
      // Predicated region
      $region57: #{forward.4} parent=51 // pred_check
        %p4998 = pneg %p272
      $region58: #{forward.4} parent=51 // pred_check_branch
        %5000 = sbr.rel (%p4998) target = $region60
      $region59: #{forward.4} parent=51 // pred_region
        _
      $region60: #{forward.4} parent=51 // pred_fallthru
        _
    $region52: #{forward.4} parent=5 // pred_fallthru
      _
    %p5001 = scmp.le.s32.totalorder 2, %s14
    // Predicated region
    $region61: #{forward.4} parent=5 // pred_check
      %p5002 = pneg %p5001
    $region62: #{forward.4} parent=5 // pred_check_branch
      %5004 = sbr.rel (%p5002) target = $region64
    $region63: #{forward.4} parent=5 // pred_region
      %s5005 = ssub.s32 %s14, 2
      // Predicated region
      $region65: #{forward.4} parent=63 // pred_check
        %p5006 = pneg %p278
      $region66: #{forward.4} parent=63 // pred_check_branch
        %5008 = sbr.rel (%p5006) target = $region68
      $region67: #{forward.4} parent=63 // pred_region
        %p5009 = scmp.lt.s32.totalorder %s25, 1
        %s5010 = scalar_select %p5009, %s25, 1
        %s5011 = smul.addr %s5010, 2
        %s5012 = smul.addr %s5011, 4
        %s5013 = scalar_lea.vmem %s8, %s5012
      $region68: #{forward.4} parent=63 // pred_fallthru
        _
    $region64: #{forward.4} parent=5 // pred_fallthru
      _
  $region6: #{forward.4} parent=0 // loop_footer
    %s18 = sadd.s32 1, %s14
  $region7: #{forward.4} parent=0 // loop_footer_branch
    %13 = sbr.rel target = $region3
  $region8: #{forward.4} parent=0 // loop_exit
    _

</llo_original>
